<compile_context>
chip_gen: v6e
topology: v6e:2x2x1
jax: 0.10.0
libtpu: 0.0.40
codegen_flags: <defaults>
</compile_context>

<pallas_src>
import numpy as np
import jax
import jax.numpy as jnp
from jax.experimental import pallas as pl
from jax.experimental.pallas import tpu as pltpu

# ----------------------------------------------------------------------------
# Config (mirrors LDIFDecoder.__init__)
# ----------------------------------------------------------------------------
ELEMENT_COUNT = 8            # config['model']['element_count']
SYM_ELEMENT_COUNT = 4        # config['model']['sym_element_count']
EFFECTIVE_ELEMENT_COUNT = ELEMENT_COUNT + SYM_ELEMENT_COUNT
IMPLICIT_PARAM_LEN = 32      # config['model']['implicit_parameter_length'] == OccNet f_dim
ELEMENT_EMBEDDING_LEN = 10 + IMPLICIT_PARAM_LEN

BN_EPS = 1e-5
# TODO(synk): nn.BatchNorm1d(affine=False) is evaluated with its init running
# stats (eval mode); training-mode batch statistics would need a global pass.
BN_SCALE = 1.0 / float(np.sqrt(1.0 + BN_EPS))
SIGMOID_SHARPNESS = 100.0
LEVEL_SET = -0.07            # ldif hparams.lset (class transfer offset)
REFLECT = np.array([1.0, 1.0, -1.0], dtype=np.float32)  # sym elements mirrored across z=0

HP = jax.lax.Precision.HIGHEST


# ----------------------------------------------------------------------------
# Pallas kernel: one (batch, sample-tile) grid point; all effective elements
# are processed by an unrolled in-kernel loop, channels-first [C, ts] layout.
# ----------------------------------------------------------------------------
def _ldif_eval_kernel(samples_ref, centers_ref, icov_ref, consts_ref, em_ref,
                      wfc0_ref, bfc0_ref, wfc1_ref, bfc1_ref, wout_ref, bout_ref,
                      out_ref):
  x_t = samples_ref[0]          # (3, TS)   world-space samples, channels-first
  centers = centers_ref[0]      # (3, EEC)  RBF centers
  consts = consts_ref[0]        # (1, EEC)  element constants (negative)
  wfc0 = wfc0_ref[...]          # (F, F)    fc_0 weight, out-major
  bfc0 = bfc0_ref[...]          # (F, 1)
  wfc1 = wfc1_ref[...]          # (F, F)
  bfc1 = bfc1_ref[...]          # (F, 1)
  wout = wout_ref[...]          # (1, F)
  bout = bout_ref[...]          # (1, 1)

  eec = centers.shape[1]
  ts = x_t.shape[1]
  acc = jnp.zeros((1, ts), jnp.float32)   # lane-dense sdf accumulator

  for e in range(eec):          # unrolled; eec is small (12)
    # ---- analytic RBF weight (factored quadratic, no cross-lane reduce) ----
    diff = x_t - centers[:, e:e + 1]                                   # (3, TS)
    v = jnp.dot(icov_ref[0, e], diff, preferred_element_type=jnp.float32)
    md = (v[0:1, :] * diff[0:1, :] + v[1:2, :] * diff[1:2, :]
          + v[2:3, :] * diff[2:3, :])                                  # (1, TS)
    w = consts[:, e:e + 1] * jnp.exp(-0.5 * md)                        # (1, TS)

    # ---- OccNetDecoder (channels-first [F, TS]) ---------------------------
    # em columns: 0:3 = wp^T @ world2local_A,  3 = wp^T @ world2local_t + bp,
    #             4 = gamma0*BN_SCALE, 5 = beta0, 6 = gamma1*BN_SCALE, 7 = beta1
    em = em_ref[0, e]                                                  # (F, 8)
    h = jnp.dot(em[:, 0:3], x_t, preferred_element_type=jnp.float32) + em[:, 3:4]
    t0 = jnp.maximum(em[:, 4:5] * h + em[:, 5:6], 0.0)
    n0 = jnp.dot(wfc0, t0, preferred_element_type=jnp.float32) + bfc0
    t1 = jnp.maximum(em[:, 6:7] * n0 + em[:, 7:8], 0.0)
    n1 = jnp.dot(wfc1, t1, preferred_element_type=jnp.float32) + bfc1
    feat = h + n1                                                      # identity shortcut
    vals = jnp.dot(wout, feat, preferred_element_type=jnp.float32) + bout  # (1, TS)

    # ---- LDIF local decision, accumulated over elements -------------------
    acc = acc + w * (1.0 + vals)

  out_ref[0] = jax.nn.sigmoid(SIGMOID_SHARPNESS * (acc - LEVEL_SET))


def ldif_class_at_samples_pallas(samples_t, centers_t, icov, consts, em,
                                 shared, *, ts):
  """samples_t: [B,3,S]; per-element tensors indexed by batch; shared weights."""
  B, _, S = samples_t.shape
  EEC = icov.shape[1]
  F = em.shape[2]
  assert S % ts == 0 and ts % 128 == 0
  grid = (B, S // ts)

  weight_list = [shared['wfc0'], shared['bfc0'],
                 shared['wfc1'], shared['bfc1'],
                 shared['wout'], shared['bout']]

  in_specs = [
      pl.BlockSpec((1, 3, ts), lambda b, s: (b, 0, s)),            # samples (ch-first)
      pl.BlockSpec((1, 3, EEC), lambda b, s: (b, 0, 0)),           # centers
      pl.BlockSpec((1, EEC, 3, 3), lambda b, s: (b, 0, 0, 0)),     # inverse covariances
      pl.BlockSpec((1, 1, EEC), lambda b, s: (b, 0, 0)),           # constants
      pl.BlockSpec((1, EEC, F, 8), lambda b, s: (b, 0, 0, 0)),     # per-element matrices
  ] + [pl.BlockSpec(w.shape, lambda b, s: (0, 0)) for w in weight_list]

  return pl.pallas_call(
      _ldif_eval_kernel,
      out_shape=jax.ShapeDtypeStruct((B, 1, S), jnp.float32),
      grid_spec=pltpu.PrefetchScalarGridSpec(
          num_scalar_prefetch=0,
          grid=grid,
          in_specs=in_specs,
          out_specs=pl.BlockSpec((1, 1, ts), lambda b, s: (b, 0, s))),
      compiler_params=pltpu.CompilerParams(
          dimension_semantics=("parallel", "parallel")),
  )(samples_t, centers_t, icov, consts, em, *weight_list)


# ----------------------------------------------------------------------------
# Plain-JAX glue (parameter parsing / analytic geometry setup)
# ----------------------------------------------------------------------------
def roll_pitch_yaw_to_rotation_matrices(rpy):
  c, s = jnp.cos(rpy), jnp.sin(rpy)
  cx, cy, cz = c[..., 0], c[..., 1], c[..., 2]
  sx, sy, sz = s[..., 0], s[..., 1], s[..., 2]
  rot = jnp.stack([
      cz * cy, cz * sy * sx - sz * cx, cz * sy * cx + sz * sx,
      sz * cy, sz * sy * sx + cz * cx, sz * sy * cx - cz * sx,
      -sy, cy * sx, cy * cx], axis=-1)
  return rot.reshape(rpy.shape[:-1] + (3, 3))


def structured_implicit_from_activation(activations):
  constant = activations[..., 0:1]
  center = activations[..., 1:4]
  radius = activations[..., 4:10]
  iparam = activations[..., 10:]
  constant = -jnp.abs(constant)
  radius_var = jax.nn.sigmoid(radius[..., 0:3]) * 0.15
  radius_var = radius_var * radius_var
  max_euler = np.pi / 4.0
  radius_rot = jnp.clip(radius[..., 3:6], -max_euler, max_euler)
  radius = jnp.concatenate([radius_var, radius_rot], axis=-1)
  center = center / 2.0
  return constant, center, radius, iparam


def element_geometry(center, radius):
  rot = roll_pitch_yaw_to_rotation_matrices(radius[..., 3:6])        # [B,EC,3,3]
  inv_var = 1.0 / (radius[..., 0:3] + 1e-8)
  icov = rot @ (inv_var[..., :, None] * jnp.swapaxes(rot, -1, -2))   # R diag(1/var) R^T
  scale = 1.0 / (jnp.sqrt(radius[..., 0:3] + 1e-8) + 1e-8)
  a = scale[..., :, None] * jnp.swapaxes(rot, -1, -2)                # diag(scale) R^T
  t = -jnp.einsum('beij,bej->bei', a, center)
  return icov, a, t


def make_effective(constant, center, icov, a, t, iparam, sec):
  # TODO(synk): upstream LDIF symmetry handling (reflection plane / rotation of
  # mirrored Gaussians) reconstructed as a consistent reflection across z=0.
  def tile(x):
    return jnp.concatenate([x, x[:, :sec]], axis=1)
  r = jnp.asarray(REFLECT)
  eff_const = tile(constant)
  eff_center = jnp.concatenate([center, center[:, :sec] * r], axis=1)
  eff_icov = jnp.concatenate([icov, icov[:, :sec] * (r[:, None] * r[None, :])], axis=1)
  eff_a = jnp.concatenate([a, a[:, :sec] * r], axis=1)               # A @ diag(r)
  eff_t = tile(t)
  eff_ip = tile(iparam)
  return eff_const, eff_center, eff_icov, eff_a, eff_t, eff_ip


def init_decoder_params(key, f_dim):
  keys = jax.random.split(key, 12)

  def w(k, shape, scale=0.02):
    return (scale * jax.random.normal(k, shape)).astype(jnp.float32)

  return {
      # fc_p: Conv1d(3, F, 1)
      'wp_t': w(keys[0], (3, f_dim)), 'bp': w(keys[1], (1, f_dim)),
      # CBatchNorm1d #0: conv_gamma / conv_beta (Conv1d(F, F, 1))
      'wg0_t': w(keys[2], (f_dim, f_dim)), 'bg0': jnp.ones((1, f_dim), jnp.float32),
      'wb0_t': w(keys[3], (f_dim, f_dim)), 'bb0': jnp.zeros((1, f_dim), jnp.float32),
      # fc_0: Conv1d(F, F, 1)
      'wfc0_t': w(keys[4], (f_dim, f_dim)), 'bfc0': w(keys[5], (1, f_dim)),
      # CBatchNorm1d #1
      'wg1_t': w(keys[6], (f_dim, f_dim)), 'bg1': jnp.ones((1, f_dim), jnp.float32),
      'wb1_t': w(keys[7], (f_dim, f_dim)), 'bb1': jnp.zeros((1, f_dim), jnp.float32),
      # fc_1: Conv1d(F, F, 1)
      'wfc1_t': w(keys[8], (f_dim, f_dim)), 'bfc1': w(keys[9], (1, f_dim)),
      # fc_out: Conv1d(F, 1, 1)
      'wout_t': w(keys[10], (f_dim, 1)), 'bout': w(keys[11], (1, 1)),
  }


def ldif_decoder_forward(params, activations, samples, *, ts=512):
  """activations: [B, element_count, 10+F] (f32); samples: [B, S, 3] (f32)."""
  constant, center, radius, iparam = structured_implicit_from_activation(activations)
  icov, a, t = element_geometry(center, radius)
  eff_const, eff_center, eff_icov, eff_a, eff_t, eff_ip = make_effective(
      constant, center, icov, a, t, iparam, SYM_ELEMENT_COUNT)

  B, S = samples.shape[0], samples.shape[1]
  F = IMPLICIT_PARAM_LEN
  p = params

  # ---- sample-independent precompute (hoisted out of the kernel) -----------
  # CBN gamma/beta: per-element, tiny; done once here instead of per grid step.
  gamma0 = jnp.einsum('bef,fg->beg', eff_ip, p['wg0_t'], precision=HP) + p['bg0'][0]
  beta0 = jnp.einsum('bef,fg->beg', eff_ip, p['wb0_t'], precision=HP) + p['bb0'][0]
  gamma1 = jnp.einsum('bef,fg->beg', eff_ip, p['wg1_t'], precision=HP) + p['bg1'][0]
  beta1 = jnp.einsum('bef,fg->beg', eff_ip, p['wb1_t'], precision=HP) + p['bb1'][0]
  # fc_p folded with world2local: h = (wp^T A) x + (wp^T t + bp), channels-first.
  wpA = jnp.einsum('if,beij->befj', p['wp_t'], eff_a, precision=HP)      # [B,EEC,F,3]
  hbias = jnp.einsum('if,bei->bef', p['wp_t'], eff_t, precision=HP) + p['bp'][0]
  em = jnp.concatenate([
      wpA,
      hbias[..., None],
      (gamma0 * BN_SCALE)[..., None],
      beta0[..., None],
      (gamma1 * BN_SCALE)[..., None],
      beta1[..., None]], axis=-1).astype(jnp.float32)                    # [B,EEC,F,8]

  # ---- channels-first / lane-dense layouts ----------------------------------
  samples_t = jnp.swapaxes(samples.astype(jnp.float32), 1, 2)            # [B,3,S]
  centers_t = jnp.swapaxes(eff_center, 1, 2)                             # [B,3,EEC]
  consts = jnp.swapaxes(eff_const, 1, 2)                                 # [B,1,EEC]

  # Pad S up to a multiple of the (lane-dense) sample tile.
  ts_eff = ts if S >= ts else int(np.ceil(S / 128) * 128)
  s_pad = int(np.ceil(S / ts_eff) * ts_eff)
  if s_pad != S:
    samples_t = jnp.pad(samples_t, ((0, 0), (0, 0), (0, s_pad - S)))

  shared = {
      'wfc0': jnp.swapaxes(p['wfc0_t'], 0, 1),   # (F_out, F_in)
      'bfc0': p['bfc0'].reshape(F, 1),
      'wfc1': jnp.swapaxes(p['wfc1_t'], 0, 1),
      'bfc1': p['bfc1'].reshape(F, 1),
      'wout': jnp.swapaxes(p['wout_t'], 0, 1),   # (1, F)
      'bout': p['bout'].reshape(1, 1),
  }

  gd = ldif_class_at_samples_pallas(samples_t, centers_t, eff_icov, consts, em,
                                    shared, ts=ts_eff)                   # [B,1,S_pad]
  global_decisions = gd[:, 0, :S][..., None]                             # [B,S,1]

  # TODO(synk): the `samples is None` branch (marching-cubes mesh extraction via
  # `reconstruction`) has no Pallas equivalent and is not implemented.
  return {
      'structured_implicit': {'constant': constant, 'center': center,
                              'radius': radius, 'iparam': iparam},
      'global_decisions': global_decisions,     # [B, S, 1]
      'element_centers': center,                # [B, element_count, 3]
  }


# ----------------------------------------------------------------------------
# Pure-JAX reference (same math, no Pallas) for validation
# ----------------------------------------------------------------------------
def ldif_reference(params, activations, samples):
  hp = jax.lax.Precision.HIGHEST
  constant, center, radius, iparam = structured_implicit_from_activation(activations)
  icov, a, t = element_geometry(center, radius)
  eff_const, eff_center, eff_icov, eff_a, eff_t, eff_ip = make_effective(
      constant, center, icov, a, t, iparam, SYM_ELEMENT_COUNT)
  p = params
  diff = samples[:, None, :, :] - eff_center[:, :, None, :]
  md = jnp.einsum('besi,beij,besj->bes', diff, eff_icov, diff, precision=hp)
  rbf = jnp.exp(-0.5 * md)[..., None]
  local = jnp.einsum('bsj,beij->besi', samples, eff_a, precision=hp) + eff_t[:, :, None, :]
  h = jnp.einsum('besi,if->besf', local, p['wp_t'], precision=hp) + p['bp'][0]
  gamma0 = jnp.einsum('bef,fg->beg', eff_ip, p['wg0_t'], precision=hp) + p['bg0'][0]
  beta0 = jnp.einsum('bef,fg->beg', eff_ip, p['wb0_t'], precision=hp) + p['bb0'][0]
  net = gamma0[:, :, None, :] * (h * BN_SCALE) + beta0[:, :, None, :]
  net = jnp.maximum(net, 0.0)
  net = jnp.einsum('besf,fg->besg', net, p['wfc0_t'], precision=hp) + p['bfc0'][0]
  gamma1 = jnp.einsum('bef,fg->beg', eff_ip, p['wg1_t'], precision=hp) + p['bg1'][0]
  beta1 = jnp.einsum('bef,fg->beg', eff_ip, p['wb1_t'], precision=hp) + p['bb1'][0]
  dx = gamma1[:, :, None, :] * (net * BN_SCALE) + beta1[:, :, None, :]
  dx = jnp.maximum(dx, 0.0)
  dx = jnp.einsum('besf,fg->besg', dx, p['wfc1_t'], precision=hp) + p['bfc1'][0]
  feat = h + dx
  vals = jnp.einsum('besf,fo->beso', feat, p['wout_t'], precision=hp) + p['bout'][0]
  local_decisions = eff_const[:, :, None, :] * rbf * (1.0 + vals)
  sdf = jnp.sum(local_decisions, axis=1)
  return jax.nn.sigmoid(SIGMOID_SHARPNESS * (sdf - LEVEL_SET))


if __name__ == "__main__":
  key = jax.random.PRNGKey(0)
  k_act, k_samp, k_dec = jax.random.split(key, 3)
  B, S = 2, 128
  activations = (0.5 * jax.random.normal(
      k_act, (B, ELEMENT_COUNT, ELEMENT_EMBEDDING_LEN))).astype(jnp.float32)
  samples = jax.random.uniform(
      k_samp, (B, S, 3), minval=-0.4, maxval=0.4).astype(jnp.float32)
  params = init_decoder_params(k_dec, IMPLICIT_PARAM_LEN)

  out = jax.jit(ldif_decoder_forward)(params, activations, samples)
  gd = jax.block_until_ready(out['global_decisions'])

  assert gd.shape == (B, S, 1)
  assert out['element_centers'].shape == (B, ELEMENT_COUNT, 3)
  ref = ldif_reference(params, activations, samples)
  np.testing.assert_allclose(np.asarray(gd), np.asarray(ref), rtol=1e-3, atol=5e-3)
  print("KERNEL_OK")
</pallas_src>

<mosaic_0001>
module attributes {stable_mosaic.version = 11 : i64} {
  func.func @_ldif_eval_kernel(%arg0: i32, %arg1: i32, %arg2: memref<1x3x128xf32, #tpu.memory_space<vmem>>, %arg3: memref<1x3x12xf32, #tpu.memory_space<vmem>>, %arg4: memref<1x12x3x3xf32, #tpu.memory_space<vmem>>, %arg5: memref<1x1x12xf32, #tpu.memory_space<vmem>>, %arg6: memref<1x12x32x8xf32, #tpu.memory_space<vmem>>, %arg7: memref<32x32xf32, #tpu.memory_space<vmem>>, %arg8: memref<32x1xf32, #tpu.memory_space<vmem>>, %arg9: memref<32x32xf32, #tpu.memory_space<vmem>>, %arg10: memref<32x1xf32, #tpu.memory_space<vmem>>, %arg11: memref<1x32xf32, #tpu.memory_space<vmem>>, %arg12: memref<1x1xf32, #tpu.memory_space<vmem>>, %arg13: memref<1x1x128xf32, #tpu.memory_space<vmem>>) attributes {dimension_semantics = [#tpu.dimension_semantics<parallel>, #tpu.dimension_semantics<parallel>], iteration_bounds = array<i64: 2, 1>, scalar_prefetch = 0 : i64, scratch_operands = 0 : i64, tpu.core_type = #tpu.core_type<tc>, window_params = [{transform_indices = @transform_0, window_bounds = array<i64: 1, 3, 128>}, {transform_indices = @transform_1, window_bounds = array<i64: 1, 3, 12>}, {transform_indices = @transform_2, window_bounds = array<i64: 1, 12, 3, 3>}, {transform_indices = @transform_3, window_bounds = array<i64: 1, 1, 12>}, {transform_indices = @transform_4, window_bounds = array<i64: 1, 12, 32, 8>}, {pipeline_mode = #tpu.pipeline_mode<synchronous>, transform_indices = @transform_5, window_bounds = array<i64: 32, 32>}, {pipeline_mode = #tpu.pipeline_mode<synchronous>, transform_indices = @transform_6, window_bounds = array<i64: 32, 1>}, {pipeline_mode = #tpu.pipeline_mode<synchronous>, transform_indices = @transform_7, window_bounds = array<i64: 32, 32>}, {pipeline_mode = #tpu.pipeline_mode<synchronous>, transform_indices = @transform_8, window_bounds = array<i64: 32, 1>}, {pipeline_mode = #tpu.pipeline_mode<synchronous>, transform_indices = @transform_9, window_bounds = array<i64: 1, 32>}, {pipeline_mode = #tpu.pipeline_mode<synchronous>, transform_indices = @transform_10, window_bounds = array<i64: 1, 1>}, {transform_indices = @transform_11, window_bounds = array<i64: 1, 1, 128>}]} {
    %c0 = arith.constant 0 : index
    %c0_0 = arith.constant 0 : index
    %c0_1 = arith.constant 0 : index
    %0 = vector.load %arg2[%c0, %c0_0, %c0_1] : memref<1x3x128xf32, #tpu.memory_space<vmem>>, vector<1x3x128xf32>
    %1 = vector.shape_cast %0 : vector<1x3x128xf32> to vector<3x128xf32>
    %c0_2 = arith.constant 0 : index
    %c0_3 = arith.constant 0 : index
    %c0_4 = arith.constant 0 : index
    %2 = vector.load %arg3[%c0_2, %c0_3, %c0_4] : memref<1x3x12xf32, #tpu.memory_space<vmem>>, vector<1x3x12xf32>
    %3 = vector.shape_cast %2 : vector<1x3x12xf32> to vector<3x12xf32>
    %c0_5 = arith.constant 0 : index
    %c0_6 = arith.constant 0 : index
    %c0_7 = arith.constant 0 : index
    %4 = vector.load %arg5[%c0_5, %c0_6, %c0_7] : memref<1x1x12xf32, #tpu.memory_space<vmem>>, vector<1x1x12xf32>
    %5 = vector.shape_cast %4 : vector<1x1x12xf32> to vector<1x12xf32>
    %c0_8 = arith.constant 0 : index
    %c0_9 = arith.constant 0 : index
    %6 = vector.load %arg7[%c0_8, %c0_9] : memref<32x32xf32, #tpu.memory_space<vmem>>, vector<32x32xf32>
    %c0_10 = arith.constant 0 : index
    %c0_11 = arith.constant 0 : index
    %7 = vector.load %arg8[%c0_10, %c0_11] : memref<32x1xf32, #tpu.memory_space<vmem>>, vector<32x1xf32>
    %c0_12 = arith.constant 0 : index
    %c0_13 = arith.constant 0 : index
    %8 = vector.load %arg9[%c0_12, %c0_13] : memref<32x32xf32, #tpu.memory_space<vmem>>, vector<32x32xf32>
    %c0_14 = arith.constant 0 : index
    %c0_15 = arith.constant 0 : index
    %9 = vector.load %arg10[%c0_14, %c0_15] : memref<32x1xf32, #tpu.memory_space<vmem>>, vector<32x1xf32>
    %c0_16 = arith.constant 0 : index
    %c0_17 = arith.constant 0 : index
    %10 = vector.load %arg11[%c0_16, %c0_17] : memref<1x32xf32, #tpu.memory_space<vmem>>, vector<1x32xf32>
    %c0_18 = arith.constant 0 : index
    %c0_19 = arith.constant 0 : index
    %11 = vector.load %arg12[%c0_18, %c0_19] : memref<1x1xf32, #tpu.memory_space<vmem>>, vector<1x1xf32>
    %cst = arith.constant 0.000000e+00 : f32
    %12 = vector.broadcast %cst : f32 to vector<1x128xf32>
    %13 = vector.extract_strided_slice %3 {offsets = [0, 0], sizes = [3, 1], strides = [1, 1]} : vector<3x12xf32> to vector<3x1xf32>
    %14 = vector.broadcast %13 : vector<3x1xf32> to vector<3x128xf32>
    %15 = arith.subf %1, %14 : vector<3x128xf32>
    %c0_20 = arith.constant 0 : index
    %c0_21 = arith.constant 0 : index
    %c0_22 = arith.constant 0 : index
    %c0_23 = arith.constant 0 : index
    %16 = vector.load %arg4[%c0_20, %c0_21, %c0_22, %c0_23] : memref<1x12x3x3xf32, #tpu.memory_space<vmem>>, vector<1x1x3x3xf32>
    %17 = vector.shape_cast %16 : vector<1x1x3x3xf32> to vector<3x3xf32>
    %cst_24 = arith.constant dense<0.000000e+00> : vector<3x128xf32>
    %18 = tpu.matmul %17, %15, %cst_24 {dimension_numbers = #tpu.dot_dimension_numbers<[1], [0], [0], [1], [0, 0, 1, 1], [], []>} : vector<3x3xf32>, vector<3x128xf32>, vector<3x128xf32> -> vector<3x128xf32>
    %19 = vector.extract_strided_slice %18 {offsets = [0, 0], sizes = [1, 128], strides = [1, 1]} : vector<3x128xf32> to vector<1x128xf32>
    %20 = vector.extract_strided_slice %15 {offsets = [0, 0], sizes = [1, 128], strides = [1, 1]} : vector<3x128xf32> to vector<1x128xf32>
    %21 = arith.mulf %19, %20 : vector<1x128xf32>
    %22 = vector.extract_strided_slice %18 {offsets = [1, 0], sizes = [1, 128], strides = [1, 1]} : vector<3x128xf32> to vector<1x128xf32>
    %23 = vector.extract_strided_slice %15 {offsets = [1, 0], sizes = [1, 128], strides = [1, 1]} : vector<3x128xf32> to vector<1x128xf32>
    %24 = arith.mulf %22, %23 : vector<1x128xf32>
    %25 = arith.addf %21, %24 : vector<1x128xf32>
    %26 = vector.extract_strided_slice %18 {offsets = [2, 0], sizes = [1, 128], strides = [1, 1]} : vector<3x128xf32> to vector<1x128xf32>
    %27 = vector.extract_strided_slice %15 {offsets = [2, 0], sizes = [1, 128], strides = [1, 1]} : vector<3x128xf32> to vector<1x128xf32>
    %28 = arith.mulf %26, %27 : vector<1x128xf32>
    %29 = arith.addf %25, %28 : vector<1x128xf32>
    %30 = vector.extract_strided_slice %5 {offsets = [0, 0], sizes = [1, 1], strides = [1, 1]} : vector<1x12xf32> to vector<1x1xf32>
    %cst_25 = arith.constant -5.000000e-01 : f32
    %31 = vector.broadcast %cst_25 : f32 to vector<1x128xf32>
    %32 = arith.mulf %31, %29 : vector<1x128xf32>
    %33 = math.exp %32 : vector<1x128xf32>
    %34 = vector.broadcast %30 : vector<1x1xf32> to vector<1x128xf32>
    %35 = arith.mulf %34, %33 : vector<1x128xf32>
    %c0_26 = arith.constant 0 : index
    %c0_27 = arith.constant 0 : index
    %c0_28 = arith.constant 0 : index
    %c0_29 = arith.constant 0 : index
    %36 = vector.load %arg6[%c0_26, %c0_27, %c0_28, %c0_29] : memref<1x12x32x8xf32, #tpu.memory_space<vmem>>, vector<1x1x32x8xf32>
    %37 = vector.shape_cast %36 : vector<1x1x32x8xf32> to vector<32x8xf32>
    %38 = vector.extract_strided_slice %37 {offsets = [0, 0], sizes = [32, 3], strides = [1, 1]} : vector<32x8xf32> to vector<32x3xf32>
    %cst_30 = arith.constant dense<0.000000e+00> : vector<32x128xf32>
    %39 = tpu.matmul %38, %1, %cst_30 {dimension_numbers = #tpu.dot_dimension_numbers<[1], [0], [0], [1], [0, 0, 1, 1], [], []>} : vector<32x3xf32>, vector<3x128xf32>, vector<32x128xf32> -> vector<32x128xf32>
    %40 = vector.extract_strided_slice %37 {offsets = [0, 3], sizes = [32, 1], strides = [1, 1]} : vector<32x8xf32> to vector<32x1xf32>
    %41 = vector.broadcast %40 : vector<32x1xf32> to vector<32x128xf32>
    %42 = arith.addf %39, %41 : vector<32x128xf32>
    %43 = vector.extract_strided_slice %37 {offsets = [0, 4], sizes = [32, 1], strides = [1, 1]} : vector<32x8xf32> to vector<32x1xf32>
    %44 = vector.broadcast %43 : vector<32x1xf32> to vector<32x128xf32>
    %45 = arith.mulf %44, %42 : vector<32x128xf32>
    %46 = vector.extract_strided_slice %37 {offsets = [0, 5], sizes = [32, 1], strides = [1, 1]} : vector<32x8xf32> to vector<32x1xf32>
    %47 = vector.broadcast %46 : vector<32x1xf32> to vector<32x128xf32>
    %48 = arith.addf %45, %47 : vector<32x128xf32>
    %cst_31 = arith.constant 0.000000e+00 : f32
    %49 = vector.broadcast %cst_31 : f32 to vector<32x128xf32>
    %50 = arith.maximumf %48, %49 : vector<32x128xf32>
    %cst_32 = arith.constant dense<0.000000e+00> : vector<32x128xf32>
    %51 = tpu.matmul %6, %50, %cst_32 {dimension_numbers = #tpu.dot_dimension_numbers<[1], [0], [0], [1], [0, 0, 1, 1], [], []>} : vector<32x32xf32>, vector<32x128xf32>, vector<32x128xf32> -> vector<32x128xf32>
    %52 = vector.broadcast %7 : vector<32x1xf32> to vector<32x128xf32>
    %53 = arith.addf %51, %52 : vector<32x128xf32>
    %54 = vector.extract_strided_slice %37 {offsets = [0, 6], sizes = [32, 1], strides = [1, 1]} : vector<32x8xf32> to vector<32x1xf32>
    %55 = vector.broadcast %54 : vector<32x1xf32> to vector<32x128xf32>
    %56 = arith.mulf %55, %53 : vector<32x128xf32>
    %57 = vector.extract_strided_slice %37 {offsets = [0, 7], sizes = [32, 1], strides = [1, 1]} : vector<32x8xf32> to vector<32x1xf32>
    %58 = vector.broadcast %57 : vector<32x1xf32> to vector<32x128xf32>
    %59 = arith.addf %56, %58 : vector<32x128xf32>
    %cst_33 = arith.constant 0.000000e+00 : f32
    %60 = vector.broadcast %cst_33 : f32 to vector<32x128xf32>
    %61 = arith.maximumf %59, %60 : vector<32x128xf32>
    %cst_34 = arith.constant dense<0.000000e+00> : vector<32x128xf32>
    %62 = tpu.matmul %8, %61, %cst_34 {dimension_numbers = #tpu.dot_dimension_numbers<[1], [0], [0], [1], [0, 0, 1, 1], [], []>} : vector<32x32xf32>, vector<32x128xf32>, vector<32x128xf32> -> vector<32x128xf32>
    %63 = vector.broadcast %9 : vector<32x1xf32> to vector<32x128xf32>
    %64 = arith.addf %62, %63 : vector<32x128xf32>
    %65 = arith.addf %42, %64 : vector<32x128xf32>
    %cst_35 = arith.constant dense<0.000000e+00> : vector<1x128xf32>
    %66 = tpu.matmul %10, %65, %cst_35 {dimension_numbers = #tpu.dot_dimension_numbers<[1], [0], [0], [1], [0, 0, 1, 1], [], []>} : vector<1x32xf32>, vector<32x128xf32>, vector<1x128xf32> -> vector<1x128xf32>
    %67 = vector.broadcast %11 : vector<1x1xf32> to vector<1x128xf32>
    %68 = arith.addf %66, %67 : vector<1x128xf32>
    %cst_36 = arith.constant 1.000000e+00 : f32
    %69 = vector.broadcast %cst_36 : f32 to vector<1x128xf32>
    %70 = arith.addf %69, %68 : vector<1x128xf32>
    %71 = arith.mulf %35, %70 : vector<1x128xf32>
    %72 = arith.addf %12, %71 : vector<1x128xf32>
    %73 = vector.extract_strided_slice %3 {offsets = [0, 1], sizes = [3, 1], strides = [1, 1]} : vector<3x12xf32> to vector<3x1xf32>
    %74 = vector.broadcast %73 : vector<3x1xf32> to vector<3x128xf32>
    %75 = arith.subf %1, %74 : vector<3x128xf32>
    %c0_37 = arith.constant 0 : index
    %c1 = arith.constant 1 : index
    %c0_38 = arith.constant 0 : index
    %c0_39 = arith.constant 0 : index
    %76 = vector.load %arg4[%c0_37, %c1, %c0_38, %c0_39] : memref<1x12x3x3xf32, #tpu.memory_space<vmem>>, vector<1x1x3x3xf32>
    %77 = vector.shape_cast %76 : vector<1x1x3x3xf32> to vector<3x3xf32>
    %cst_40 = arith.constant dense<0.000000e+00> : vector<3x128xf32>
    %78 = tpu.matmul %77, %75, %cst_40 {dimension_numbers = #tpu.dot_dimension_numbers<[1], [0], [0], [1], [0, 0, 1, 1], [], []>} : vector<3x3xf32>, vector<3x128xf32>, vector<3x128xf32> -> vector<3x128xf32>
    %79 = vector.extract_strided_slice %78 {offsets = [0, 0], sizes = [1, 128], strides = [1, 1]} : vector<3x128xf32> to vector<1x128xf32>
    %80 = vector.extract_strided_slice %75 {offsets = [0, 0], sizes = [1, 128], strides = [1, 1]} : vector<3x128xf32> to vector<1x128xf32>
    %81 = arith.mulf %79, %80 : vector<1x128xf32>
    %82 = vector.extract_strided_slice %78 {offsets = [1, 0], sizes = [1, 128], strides = [1, 1]} : vector<3x128xf32> to vector<1x128xf32>
    %83 = vector.extract_strided_slice %75 {offsets = [1, 0], sizes = [1, 128], strides = [1, 1]} : vector<3x128xf32> to vector<1x128xf32>
    %84 = arith.mulf %82, %83 : vector<1x128xf32>
    %85 = arith.addf %81, %84 : vector<1x128xf32>
    %86 = vector.extract_strided_slice %78 {offsets = [2, 0], sizes = [1, 128], strides = [1, 1]} : vector<3x128xf32> to vector<1x128xf32>
    %87 = vector.extract_strided_slice %75 {offsets = [2, 0], sizes = [1, 128], strides = [1, 1]} : vector<3x128xf32> to vector<1x128xf32>
    %88 = arith.mulf %86, %87 : vector<1x128xf32>
    %89 = arith.addf %85, %88 : vector<1x128xf32>
    %90 = vector.extract_strided_slice %5 {offsets = [0, 1], sizes = [1, 1], strides = [1, 1]} : vector<1x12xf32> to vector<1x1xf32>
    %cst_41 = arith.constant -5.000000e-01 : f32
    %91 = vector.broadcast %cst_41 : f32 to vector<1x128xf32>
    %92 = arith.mulf %91, %89 : vector<1x128xf32>
    %93 = math.exp %92 : vector<1x128xf32>
    %94 = vector.broadcast %90 : vector<1x1xf32> to vector<1x128xf32>
    %95 = arith.mulf %94, %93 : vector<1x128xf32>
    %c0_42 = arith.constant 0 : index
    %c1_43 = arith.constant 1 : index
    %c0_44 = arith.constant 0 : index
    %c0_45 = arith.constant 0 : index
    %96 = vector.load %arg6[%c0_42, %c1_43, %c0_44, %c0_45] : memref<1x12x32x8xf32, #tpu.memory_space<vmem>>, vector<1x1x32x8xf32>
    %97 = vector.shape_cast %96 : vector<1x1x32x8xf32> to vector<32x8xf32>
    %98 = vector.extract_strided_slice %97 {offsets = [0, 0], sizes = [32, 3], strides = [1, 1]} : vector<32x8xf32> to vector<32x3xf32>
    %cst_46 = arith.constant dense<0.000000e+00> : vector<32x128xf32>
    %99 = tpu.matmul %98, %1, %cst_46 {dimension_numbers = #tpu.dot_dimension_numbers<[1], [0], [0], [1], [0, 0, 1, 1], [], []>} : vector<32x3xf32>, vector<3x128xf32>, vector<32x128xf32> -> vector<32x128xf32>
    %100 = vector.extract_strided_slice %97 {offsets = [0, 3], sizes = [32, 1], strides = [1, 1]} : vector<32x8xf32> to vector<32x1xf32>
    %101 = vector.broadcast %100 : vector<32x1xf32> to vector<32x128xf32>
    %102 = arith.addf %99, %101 : vector<32x128xf32>
    %103 = vector.extract_strided_slice %97 {offsets = [0, 4], sizes = [32, 1], strides = [1, 1]} : vector<32x8xf32> to vector<32x1xf32>
    %104 = vector.broadcast %103 : vector<32x1xf32> to vector<32x128xf32>
    %105 = arith.mulf %104, %102 : vector<32x128xf32>
    %106 = vector.extract_strided_slice %97 {offsets = [0, 5], sizes = [32, 1], strides = [1, 1]} : vector<32x8xf32> to vector<32x1xf32>
    %107 = vector.broadcast %106 : vector<32x1xf32> to vector<32x128xf32>
    %108 = arith.addf %105, %107 : vector<32x128xf32>
    %cst_47 = arith.constant 0.000000e+00 : f32
    %109 = vector.broadcast %cst_47 : f32 to vector<32x128xf32>
    %110 = arith.maximumf %108, %109 : vector<32x128xf32>
    %cst_48 = arith.constant dense<0.000000e+00> : vector<32x128xf32>
    %111 = tpu.matmul %6, %110, %cst_48 {dimension_numbers = #tpu.dot_dimension_numbers<[1], [0], [0], [1], [0, 0, 1, 1], [], []>} : vector<32x32xf32>, vector<32x128xf32>, vector<32x128xf32> -> vector<32x128xf32>
    %112 = vector.broadcast %7 : vector<32x1xf32> to vector<32x128xf32>
    %113 = arith.addf %111, %112 : vector<32x128xf32>
    %114 = vector.extract_strided_slice %97 {offsets = [0, 6], sizes = [32, 1], strides = [1, 1]} : vector<32x8xf32> to vector<32x1xf32>
    %115 = vector.broadcast %114 : vector<32x1xf32> to vector<32x128xf32>
    %116 = arith.mulf %115, %113 : vector<32x128xf32>
    %117 = vector.extract_strided_slice %97 {offsets = [0, 7], sizes = [32, 1], strides = [1, 1]} : vector<32x8xf32> to vector<32x1xf32>
    %118 = vector.broadcast %117 : vector<32x1xf32> to vector<32x128xf32>
    %119 = arith.addf %116, %118 : vector<32x128xf32>
    %cst_49 = arith.constant 0.000000e+00 : f32
    %120 = vector.broadcast %cst_49 : f32 to vector<32x128xf32>
    %121 = arith.maximumf %119, %120 : vector<32x128xf32>
    %cst_50 = arith.constant dense<0.000000e+00> : vector<32x128xf32>
    %122 = tpu.matmul %8, %121, %cst_50 {dimension_numbers = #tpu.dot_dimension_numbers<[1], [0], [0], [1], [0, 0, 1, 1], [], []>} : vector<32x32xf32>, vector<32x128xf32>, vector<32x128xf32> -> vector<32x128xf32>
    %123 = vector.broadcast %9 : vector<32x1xf32> to vector<32x128xf32>
    %124 = arith.addf %122, %123 : vector<32x128xf32>
    %125 = arith.addf %102, %124 : vector<32x128xf32>
    %cst_51 = arith.constant dense<0.000000e+00> : vector<1x128xf32>
    %126 = tpu.matmul %10, %125, %cst_51 {dimension_numbers = #tpu.dot_dimension_numbers<[1], [0], [0], [1], [0, 0, 1, 1], [], []>} : vector<1x32xf32>, vector<32x128xf32>, vector<1x128xf32> -> vector<1x128xf32>
    %127 = vector.broadcast %11 : vector<1x1xf32> to vector<1x128xf32>
    %128 = arith.addf %126, %127 : vector<1x128xf32>
    %cst_52 = arith.constant 1.000000e+00 : f32
    %129 = vector.broadcast %cst_52 : f32 to vector<1x128xf32>
    %130 = arith.addf %129, %128 : vector<1x128xf32>
    %131 = arith.mulf %95, %130 : vector<1x128xf32>
    %132 = arith.addf %72, %131 : vector<1x128xf32>
    %133 = vector.extract_strided_slice %3 {offsets = [0, 2], sizes = [3, 1], strides = [1, 1]} : vector<3x12xf32> to vector<3x1xf32>
    %134 = vector.broadcast %133 : vector<3x1xf32> to vector<3x128xf32>
    %135 = arith.subf %1, %134 : vector<3x128xf32>
    %c0_53 = arith.constant 0 : index
    %c2 = arith.constant 2 : index
    %c0_54 = arith.constant 0 : index
    %c0_55 = arith.constant 0 : index
    %136 = vector.load %arg4[%c0_53, %c2, %c0_54, %c0_55] : memref<1x12x3x3xf32, #tpu.memory_space<vmem>>, vector<1x1x3x3xf32>
    %137 = vector.shape_cast %136 : vector<1x1x3x3xf32> to vector<3x3xf32>
    %cst_56 = arith.constant dense<0.000000e+00> : vector<3x128xf32>
    %138 = tpu.matmul %137, %135, %cst_56 {dimension_numbers = #tpu.dot_dimension_numbers<[1], [0], [0], [1], [0, 0, 1, 1], [], []>} : vector<3x3xf32>, vector<3x128xf32>, vector<3x128xf32> -> vector<3x128xf32>
    %139 = vector.extract_strided_slice %138 {offsets = [0, 0], sizes = [1, 128], strides = [1, 1]} : vector<3x128xf32> to vector<1x128xf32>
    %140 = vector.extract_strided_slice %135 {offsets = [0, 0], sizes = [1, 128], strides = [1, 1]} : vector<3x128xf32> to vector<1x128xf32>
    %141 = arith.mulf %139, %140 : vector<1x128xf32>
    %142 = vector.extract_strided_slice %138 {offsets = [1, 0], sizes = [1, 128], strides = [1, 1]} : vector<3x128xf32> to vector<1x128xf32>
    %143 = vector.extract_strided_slice %135 {offsets = [1, 0], sizes = [1, 128], strides = [1, 1]} : vector<3x128xf32> to vector<1x128xf32>
    %144 = arith.mulf %142, %143 : vector<1x128xf32>
    %145 = arith.addf %141, %144 : vector<1x128xf32>
    %146 = vector.extract_strided_slice %138 {offsets = [2, 0], sizes = [1, 128], strides = [1, 1]} : vector<3x128xf32> to vector<1x128xf32>
    %147 = vector.extract_strided_slice %135 {offsets = [2, 0], sizes = [1, 128], strides = [1, 1]} : vector<3x128xf32> to vector<1x128xf32>
    %148 = arith.mulf %146, %147 : vector<1x128xf32>
    %149 = arith.addf %145, %148 : vector<1x128xf32>
    %150 = vector.extract_strided_slice %5 {offsets = [0, 2], sizes = [1, 1], strides = [1, 1]} : vector<1x12xf32> to vector<1x1xf32>
    %cst_57 = arith.constant -5.000000e-01 : f32
    %151 = vector.broadcast %cst_57 : f32 to vector<1x128xf32>
    %152 = arith.mulf %151, %149 : vector<1x128xf32>
    %153 = math.exp %152 : vector<1x128xf32>
    %154 = vector.broadcast %150 : vector<1x1xf32> to vector<1x128xf32>
    %155 = arith.mulf %154, %153 : vector<1x128xf32>
    %c0_58 = arith.constant 0 : index
    %c2_59 = arith.constant 2 : index
    %c0_60 = arith.constant 0 : index
    %c0_61 = arith.constant 0 : index
    %156 = vector.load %arg6[%c0_58, %c2_59, %c0_60, %c0_61] : memref<1x12x32x8xf32, #tpu.memory_space<vmem>>, vector<1x1x32x8xf32>
    %157 = vector.shape_cast %156 : vector<1x1x32x8xf32> to vector<32x8xf32>
    %158 = vector.extract_strided_slice %157 {offsets = [0, 0], sizes = [32, 3], strides = [1, 1]} : vector<32x8xf32> to vector<32x3xf32>
    %cst_62 = arith.constant dense<0.000000e+00> : vector<32x128xf32>
    %159 = tpu.matmul %158, %1, %cst_62 {dimension_numbers = #tpu.dot_dimension_numbers<[1], [0], [0], [1], [0, 0, 1, 1], [], []>} : vector<32x3xf32>, vector<3x128xf32>, vector<32x128xf32> -> vector<32x128xf32>
    %160 = vector.extract_strided_slice %157 {offsets = [0, 3], sizes = [32, 1], strides = [1, 1]} : vector<32x8xf32> to vector<32x1xf32>
    %161 = vector.broadcast %160 : vector<32x1xf32> to vector<32x128xf32>
    %162 = arith.addf %159, %161 : vector<32x128xf32>
    %163 = vector.extract_strided_slice %157 {offsets = [0, 4], sizes = [32, 1], strides = [1, 1]} : vector<32x8xf32> to vector<32x1xf32>
    %164 = vector.broadcast %163 : vector<32x1xf32> to vector<32x128xf32>
    %165 = arith.mulf %164, %162 : vector<32x128xf32>
    %166 = vector.extract_strided_slice %157 {offsets = [0, 5], sizes = [32, 1], strides = [1, 1]} : vector<32x8xf32> to vector<32x1xf32>
    %167 = vector.broadcast %166 : vector<32x1xf32> to vector<32x128xf32>
    %168 = arith.addf %165, %167 : vector<32x128xf32>
    %cst_63 = arith.constant 0.000000e+00 : f32
    %169 = vector.broadcast %cst_63 : f32 to vector<32x128xf32>
    %170 = arith.maximumf %168, %169 : vector<32x128xf32>
    %cst_64 = arith.constant dense<0.000000e+00> : vector<32x128xf32>
    %171 = tpu.matmul %6, %170, %cst_64 {dimension_numbers = #tpu.dot_dimension_numbers<[1], [0], [0], [1], [0, 0, 1, 1], [], []>} : vector<32x32xf32>, vector<32x128xf32>, vector<32x128xf32> -> vector<32x128xf32>
    %172 = vector.broadcast %7 : vector<32x1xf32> to vector<32x128xf32>
    %173 = arith.addf %171, %172 : vector<32x128xf32>
    %174 = vector.extract_strided_slice %157 {offsets = [0, 6], sizes = [32, 1], strides = [1, 1]} : vector<32x8xf32> to vector<32x1xf32>
    %175 = vector.broadcast %174 : vector<32x1xf32> to vector<32x128xf32>
    %176 = arith.mulf %175, %173 : vector<32x128xf32>
    %177 = vector.extract_strided_slice %157 {offsets = [0, 7], sizes = [32, 1], strides = [1, 1]} : vector<32x8xf32> to vector<32x1xf32>
    %178 = vector.broadcast %177 : vector<32x1xf32> to vector<32x128xf32>
    %179 = arith.addf %176, %178 : vector<32x128xf32>
    %cst_65 = arith.constant 0.000000e+00 : f32
    %180 = vector.broadcast %cst_65 : f32 to vector<32x128xf32>
    %181 = arith.maximumf %179, %180 : vector<32x128xf32>
    %cst_66 = arith.constant dense<0.000000e+00> : vector<32x128xf32>
    %182 = tpu.matmul %8, %181, %cst_66 {dimension_numbers = #tpu.dot_dimension_numbers<[1], [0], [0], [1], [0, 0, 1, 1], [], []>} : vector<32x32xf32>, vector<32x128xf32>, vector<32x128xf32> -> vector<32x128xf32>
    %183 = vector.broadcast %9 : vector<32x1xf32> to vector<32x128xf32>
    %184 = arith.addf %182, %183 : vector<32x128xf32>
    %185 = arith.addf %162, %184 : vector<32x128xf32>
    %cst_67 = arith.constant dense<0.000000e+00> : vector<1x128xf32>
    %186 = tpu.matmul %10, %185, %cst_67 {dimension_numbers = #tpu.dot_dimension_numbers<[1], [0], [0], [1], [0, 0, 1, 1], [], []>} : vector<1x32xf32>, vector<32x128xf32>, vector<1x128xf32> -> vector<1x128xf32>
    %187 = vector.broadcast %11 : vector<1x1xf32> to vector<1x128xf32>
    %188 = arith.addf %186, %187 : vector<1x128xf32>
    %cst_68 = arith.constant 1.000000e+00 : f32
    %189 = vector.broadcast %cst_68 : f32 to vector<1x128xf32>
    %190 = arith.addf %189, %188 : vector<1x128xf32>
    %191 = arith.mulf %155, %190 : vector<1x128xf32>
    %192 = arith.addf %132, %191 : vector<1x128xf32>
    %193 = vector.extract_strided_slice %3 {offsets = [0, 3], sizes = [3, 1], strides = [1, 1]} : vector<3x12xf32> to vector<3x1xf32>
    %194 = vector.broadcast %193 : vector<3x1xf32> to vector<3x128xf32>
    %195 = arith.subf %1, %194 : vector<3x128xf32>
    %c0_69 = arith.constant 0 : index
    %c3 = arith.constant 3 : index
    %c0_70 = arith.constant 0 : index
    %c0_71 = arith.constant 0 : index
    %196 = vector.load %arg4[%c0_69, %c3, %c0_70, %c0_71] : memref<1x12x3x3xf32, #tpu.memory_space<vmem>>, vector<1x1x3x3xf32>
    %197 = vector.shape_cast %196 : vector<1x1x3x3xf32> to vector<3x3xf32>
    %cst_72 = arith.constant dense<0.000000e+00> : vector<3x128xf32>
    %198 = tpu.matmul %197, %195, %cst_72 {dimension_numbers = #tpu.dot_dimension_numbers<[1], [0], [0], [1], [0, 0, 1, 1], [], []>} : vector<3x3xf32>, vector<3x128xf32>, vector<3x128xf32> -> vector<3x128xf32>
    %199 = vector.extract_strided_slice %198 {offsets = [0, 0], sizes = [1, 128], strides = [1, 1]} : vector<3x128xf32> to vector<1x128xf32>
    %200 = vector.extract_strided_slice %195 {offsets = [0, 0], sizes = [1, 128], strides = [1, 1]} : vector<3x128xf32> to vector<1x128xf32>
    %201 = arith.mulf %199, %200 : vector<1x128xf32>
    %202 = vector.extract_strided_slice %198 {offsets = [1, 0], sizes = [1, 128], strides = [1, 1]} : vector<3x128xf32> to vector<1x128xf32>
    %203 = vector.extract_strided_slice %195 {offsets = [1, 0], sizes = [1, 128], strides = [1, 1]} : vector<3x128xf32> to vector<1x128xf32>
    %204 = arith.mulf %202, %203 : vector<1x128xf32>
    %205 = arith.addf %201, %204 : vector<1x128xf32>
    %206 = vector.extract_strided_slice %198 {offsets = [2, 0], sizes = [1, 128], strides = [1, 1]} : vector<3x128xf32> to vector<1x128xf32>
    %207 = vector.extract_strided_slice %195 {offsets = [2, 0], sizes = [1, 128], strides = [1, 1]} : vector<3x128xf32> to vector<1x128xf32>
    %208 = arith.mulf %206, %207 : vector<1x128xf32>
    %209 = arith.addf %205, %208 : vector<1x128xf32>
    %210 = vector.extract_strided_slice %5 {offsets = [0, 3], sizes = [1, 1], strides = [1, 1]} : vector<1x12xf32> to vector<1x1xf32>
    %cst_73 = arith.constant -5.000000e-01 : f32
    %211 = vector.broadcast %cst_73 : f32 to vector<1x128xf32>
    %212 = arith.mulf %211, %209 : vector<1x128xf32>
    %213 = math.exp %212 : vector<1x128xf32>
    %214 = vector.broadcast %210 : vector<1x1xf32> to vector<1x128xf32>
    %215 = arith.mulf %214, %213 : vector<1x128xf32>
    %c0_74 = arith.constant 0 : index
    %c3_75 = arith.constant 3 : index
    %c0_76 = arith.constant 0 : index
    %c0_77 = arith.constant 0 : index
    %216 = vector.load %arg6[%c0_74, %c3_75, %c0_76, %c0_77] : memref<1x12x32x8xf32, #tpu.memory_space<vmem>>, vector<1x1x32x8xf32>
    %217 = vector.shape_cast %216 : vector<1x1x32x8xf32> to vector<32x8xf32>
    %218 = vector.extract_strided_slice %217 {offsets = [0, 0], sizes = [32, 3], strides = [1, 1]} : vector<32x8xf32> to vector<32x3xf32>
    %cst_78 = arith.constant dense<0.000000e+00> : vector<32x128xf32>
    %219 = tpu.matmul %218, %1, %cst_78 {dimension_numbers = #tpu.dot_dimension_numbers<[1], [0], [0], [1], [0, 0, 1, 1], [], []>} : vector<32x3xf32>, vector<3x128xf32>, vector<32x128xf32> -> vector<32x128xf32>
    %220 = vector.extract_strided_slice %217 {offsets = [0, 3], sizes = [32, 1], strides = [1, 1]} : vector<32x8xf32> to vector<32x1xf32>
    %221 = vector.broadcast %220 : vector<32x1xf32> to vector<32x128xf32>
    %222 = arith.addf %219, %221 : vector<32x128xf32>
    %223 = vector.extract_strided_slice %217 {offsets = [0, 4], sizes = [32, 1], strides = [1, 1]} : vector<32x8xf32> to vector<32x1xf32>
    %224 = vector.broadcast %223 : vector<32x1xf32> to vector<32x128xf32>
    %225 = arith.mulf %224, %222 : vector<32x128xf32>
    %226 = vector.extract_strided_slice %217 {offsets = [0, 5], sizes = [32, 1], strides = [1, 1]} : vector<32x8xf32> to vector<32x1xf32>
    %227 = vector.broadcast %226 : vector<32x1xf32> to vector<32x128xf32>
    %228 = arith.addf %225, %227 : vector<32x128xf32>
    %cst_79 = arith.constant 0.000000e+00 : f32
    %229 = vector.broadcast %cst_79 : f32 to vector<32x128xf32>
    %230 = arith.maximumf %228, %229 : vector<32x128xf32>
    %cst_80 = arith.constant dense<0.000000e+00> : vector<32x128xf32>
    %231 = tpu.matmul %6, %230, %cst_80 {dimension_numbers = #tpu.dot_dimension_numbers<[1], [0], [0], [1], [0, 0, 1, 1], [], []>} : vector<32x32xf32>, vector<32x128xf32>, vector<32x128xf32> -> vector<32x128xf32>
    %232 = vector.broadcast %7 : vector<32x1xf32> to vector<32x128xf32>
    %233 = arith.addf %231, %232 : vector<32x128xf32>
    %234 = vector.extract_strided_slice %217 {offsets = [0, 6], sizes = [32, 1], strides = [1, 1]} : vector<32x8xf32> to vector<32x1xf32>
    %235 = vector.broadcast %234 : vector<32x1xf32> to vector<32x128xf32>
    %236 = arith.mulf %235, %233 : vector<32x128xf32>
    %237 = vector.extract_strided_slice %217 {offsets = [0, 7], sizes = [32, 1], strides = [1, 1]} : vector<32x8xf32> to vector<32x1xf32>
    %238 = vector.broadcast %237 : vector<32x1xf32> to vector<32x128xf32>
    %239 = arith.addf %236, %238 : vector<32x128xf32>
    %cst_81 = arith.constant 0.000000e+00 : f32
    %240 = vector.broadcast %cst_81 : f32 to vector<32x128xf32>
    %241 = arith.maximumf %239, %240 : vector<32x128xf32>
    %cst_82 = arith.constant dense<0.000000e+00> : vector<32x128xf32>
    %242 = tpu.matmul %8, %241, %cst_82 {dimension_numbers = #tpu.dot_dimension_numbers<[1], [0], [0], [1], [0, 0, 1, 1], [], []>} : vector<32x32xf32>, vector<32x128xf32>, vector<32x128xf32> -> vector<32x128xf32>
    %243 = vector.broadcast %9 : vector<32x1xf32> to vector<32x128xf32>
    %244 = arith.addf %242, %243 : vector<32x128xf32>
    %245 = arith.addf %222, %244 : vector<32x128xf32>
    %cst_83 = arith.constant dense<0.000000e+00> : vector<1x128xf32>
    %246 = tpu.matmul %10, %245, %cst_83 {dimension_numbers = #tpu.dot_dimension_numbers<[1], [0], [0], [1], [0, 0, 1, 1], [], []>} : vector<1x32xf32>, vector<32x128xf32>, vector<1x128xf32> -> vector<1x128xf32>
    %247 = vector.broadcast %11 : vector<1x1xf32> to vector<1x128xf32>
    %248 = arith.addf %246, %247 : vector<1x128xf32>
    %cst_84 = arith.constant 1.000000e+00 : f32
    %249 = vector.broadcast %cst_84 : f32 to vector<1x128xf32>
    %250 = arith.addf %249, %248 : vector<1x128xf32>
    %251 = arith.mulf %215, %250 : vector<1x128xf32>
    %252 = arith.addf %192, %251 : vector<1x128xf32>
    %253 = vector.extract_strided_slice %3 {offsets = [0, 4], sizes = [3, 1], strides = [1, 1]} : vector<3x12xf32> to vector<3x1xf32>
    %254 = vector.broadcast %253 : vector<3x1xf32> to vector<3x128xf32>
    %255 = arith.subf %1, %254 : vector<3x128xf32>
    %c0_85 = arith.constant 0 : index
    %c4 = arith.constant 4 : index
    %c0_86 = arith.constant 0 : index
    %c0_87 = arith.constant 0 : index
    %256 = vector.load %arg4[%c0_85, %c4, %c0_86, %c0_87] : memref<1x12x3x3xf32, #tpu.memory_space<vmem>>, vector<1x1x3x3xf32>
    %257 = vector.shape_cast %256 : vector<1x1x3x3xf32> to vector<3x3xf32>
    %cst_88 = arith.constant dense<0.000000e+00> : vector<3x128xf32>
    %258 = tpu.matmul %257, %255, %cst_88 {dimension_numbers = #tpu.dot_dimension_numbers<[1], [0], [0], [1], [0, 0, 1, 1], [], []>} : vector<3x3xf32>, vector<3x128xf32>, vector<3x128xf32> -> vector<3x128xf32>
    %259 = vector.extract_strided_slice %258 {offsets = [0, 0], sizes = [1, 128], strides = [1, 1]} : vector<3x128xf32> to vector<1x128xf32>
    %260 = vector.extract_strided_slice %255 {offsets = [0, 0], sizes = [1, 128], strides = [1, 1]} : vector<3x128xf32> to vector<1x128xf32>
    %261 = arith.mulf %259, %260 : vector<1x128xf32>
    %262 = vector.extract_strided_slice %258 {offsets = [1, 0], sizes = [1, 128], strides = [1, 1]} : vector<3x128xf32> to vector<1x128xf32>
    %263 = vector.extract_strided_slice %255 {offsets = [1, 0], sizes = [1, 128], strides = [1, 1]} : vector<3x128xf32> to vector<1x128xf32>
    %264 = arith.mulf %262, %263 : vector<1x128xf32>
    %265 = arith.addf %261, %264 : vector<1x128xf32>
    %266 = vector.extract_strided_slice %258 {offsets = [2, 0], sizes = [1, 128], strides = [1, 1]} : vector<3x128xf32> to vector<1x128xf32>
    %267 = vector.extract_strided_slice %255 {offsets = [2, 0], sizes = [1, 128], strides = [1, 1]} : vector<3x128xf32> to vector<1x128xf32>
    %268 = arith.mulf %266, %267 : vector<1x128xf32>
    %269 = arith.addf %265, %268 : vector<1x128xf32>
    %270 = vector.extract_strided_slice %5 {offsets = [0, 4], sizes = [1, 1], strides = [1, 1]} : vector<1x12xf32> to vector<1x1xf32>
    %cst_89 = arith.constant -5.000000e-01 : f32
    %271 = vector.broadcast %cst_89 : f32 to vector<1x128xf32>
    %272 = arith.mulf %271, %269 : vector<1x128xf32>
    %273 = math.exp %272 : vector<1x128xf32>
    %274 = vector.broadcast %270 : vector<1x1xf32> to vector<1x128xf32>
    %275 = arith.mulf %274, %273 : vector<1x128xf32>
    %c0_90 = arith.constant 0 : index
    %c4_91 = arith.constant 4 : index
    %c0_92 = arith.constant 0 : index
    %c0_93 = arith.constant 0 : index
    %276 = vector.load %arg6[%c0_90, %c4_91, %c0_92, %c0_93] : memref<1x12x32x8xf32, #tpu.memory_space<vmem>>, vector<1x1x32x8xf32>
    %277 = vector.shape_cast %276 : vector<1x1x32x8xf32> to vector<32x8xf32>
    %278 = vector.extract_strided_slice %277 {offsets = [0, 0], sizes = [32, 3], strides = [1, 1]} : vector<32x8xf32> to vector<32x3xf32>
    %cst_94 = arith.constant dense<0.000000e+00> : vector<32x128xf32>
    %279 = tpu.matmul %278, %1, %cst_94 {dimension_numbers = #tpu.dot_dimension_numbers<[1], [0], [0], [1], [0, 0, 1, 1], [], []>} : vector<32x3xf32>, vector<3x128xf32>, vector<32x128xf32> -> vector<32x128xf32>
    %280 = vector.extract_strided_slice %277 {offsets = [0, 3], sizes = [32, 1], strides = [1, 1]} : vector<32x8xf32> to vector<32x1xf32>
    %281 = vector.broadcast %280 : vector<32x1xf32> to vector<32x128xf32>
    %282 = arith.addf %279, %281 : vector<32x128xf32>
    %283 = vector.extract_strided_slice %277 {offsets = [0, 4], sizes = [32, 1], strides = [1, 1]} : vector<32x8xf32> to vector<32x1xf32>
    %284 = vector.broadcast %283 : vector<32x1xf32> to vector<32x128xf32>
    %285 = arith.mulf %284, %282 : vector<32x128xf32>
    %286 = vector.extract_strided_slice %277 {offsets = [0, 5], sizes = [32, 1], strides = [1, 1]} : vector<32x8xf32> to vector<32x1xf32>
    %287 = vector.broadcast %286 : vector<32x1xf32> to vector<32x128xf32>
    %288 = arith.addf %285, %287 : vector<32x128xf32>
    %cst_95 = arith.constant 0.000000e+00 : f32
    %289 = vector.broadcast %cst_95 : f32 to vector<32x128xf32>
    %290 = arith.maximumf %288, %289 : vector<32x128xf32>
    %cst_96 = arith.constant dense<0.000000e+00> : vector<32x128xf32>
    %291 = tpu.matmul %6, %290, %cst_96 {dimension_numbers = #tpu.dot_dimension_numbers<[1], [0], [0], [1], [0, 0, 1, 1], [], []>} : vector<32x32xf32>, vector<32x128xf32>, vector<32x128xf32> -> vector<32x128xf32>
    %292 = vector.broadcast %7 : vector<32x1xf32> to vector<32x128xf32>
    %293 = arith.addf %291, %292 : vector<32x128xf32>
    %294 = vector.extract_strided_slice %277 {offsets = [0, 6], sizes = [32, 1], strides = [1, 1]} : vector<32x8xf32> to vector<32x1xf32>
    %295 = vector.broadcast %294 : vector<32x1xf32> to vector<32x128xf32>
    %296 = arith.mulf %295, %293 : vector<32x128xf32>
    %297 = vector.extract_strided_slice %277 {offsets = [0, 7], sizes = [32, 1], strides = [1, 1]} : vector<32x8xf32> to vector<32x1xf32>
    %298 = vector.broadcast %297 : vector<32x1xf32> to vector<32x128xf32>
    %299 = arith.addf %296, %298 : vector<32x128xf32>
    %cst_97 = arith.constant 0.000000e+00 : f32
    %300 = vector.broadcast %cst_97 : f32 to vector<32x128xf32>
    %301 = arith.maximumf %299, %300 : vector<32x128xf32>
    %cst_98 = arith.constant dense<0.000000e+00> : vector<32x128xf32>
    %302 = tpu.matmul %8, %301, %cst_98 {dimension_numbers = #tpu.dot_dimension_numbers<[1], [0], [0], [1], [0, 0, 1, 1], [], []>} : vector<32x32xf32>, vector<32x128xf32>, vector<32x128xf32> -> vector<32x128xf32>
    %303 = vector.broadcast %9 : vector<32x1xf32> to vector<32x128xf32>
    %304 = arith.addf %302, %303 : vector<32x128xf32>
    %305 = arith.addf %282, %304 : vector<32x128xf32>
    %cst_99 = arith.constant dense<0.000000e+00> : vector<1x128xf32>
    %306 = tpu.matmul %10, %305, %cst_99 {dimension_numbers = #tpu.dot_dimension_numbers<[1], [0], [0], [1], [0, 0, 1, 1], [], []>} : vector<1x32xf32>, vector<32x128xf32>, vector<1x128xf32> -> vector<1x128xf32>
    %307 = vector.broadcast %11 : vector<1x1xf32> to vector<1x128xf32>
    %308 = arith.addf %306, %307 : vector<1x128xf32>
    %cst_100 = arith.constant 1.000000e+00 : f32
    %309 = vector.broadcast %cst_100 : f32 to vector<1x128xf32>
    %310 = arith.addf %309, %308 : vector<1x128xf32>
    %311 = arith.mulf %275, %310 : vector<1x128xf32>
    %312 = arith.addf %252, %311 : vector<1x128xf32>
    %313 = vector.extract_strided_slice %3 {offsets = [0, 5], sizes = [3, 1], strides = [1, 1]} : vector<3x12xf32> to vector<3x1xf32>
    %314 = vector.broadcast %313 : vector<3x1xf32> to vector<3x128xf32>
    %315 = arith.subf %1, %314 : vector<3x128xf32>
    %c0_101 = arith.constant 0 : index
    %c5 = arith.constant 5 : index
    %c0_102 = arith.constant 0 : index
    %c0_103 = arith.constant 0 : index
    %316 = vector.load %arg4[%c0_101, %c5, %c0_102, %c0_103] : memref<1x12x3x3xf32, #tpu.memory_space<vmem>>, vector<1x1x3x3xf32>
    %317 = vector.shape_cast %316 : vector<1x1x3x3xf32> to vector<3x3xf32>
    %cst_104 = arith.constant dense<0.000000e+00> : vector<3x128xf32>
    %318 = tpu.matmul %317, %315, %cst_104 {dimension_numbers = #tpu.dot_dimension_numbers<[1], [0], [0], [1], [0, 0, 1, 1], [], []>} : vector<3x3xf32>, vector<3x128xf32>, vector<3x128xf32> -> vector<3x128xf32>
    %319 = vector.extract_strided_slice %318 {offsets = [0, 0], sizes = [1, 128], strides = [1, 1]} : vector<3x128xf32> to vector<1x128xf32>
    %320 = vector.extract_strided_slice %315 {offsets = [0, 0], sizes = [1, 128], strides = [1, 1]} : vector<3x128xf32> to vector<1x128xf32>
    %321 = arith.mulf %319, %320 : vector<1x128xf32>
    %322 = vector.extract_strided_slice %318 {offsets = [1, 0], sizes = [1, 128], strides = [1, 1]} : vector<3x128xf32> to vector<1x128xf32>
    %323 = vector.extract_strided_slice %315 {offsets = [1, 0], sizes = [1, 128], strides = [1, 1]} : vector<3x128xf32> to vector<1x128xf32>
    %324 = arith.mulf %322, %323 : vector<1x128xf32>
    %325 = arith.addf %321, %324 : vector<1x128xf32>
    %326 = vector.extract_strided_slice %318 {offsets = [2, 0], sizes = [1, 128], strides = [1, 1]} : vector<3x128xf32> to vector<1x128xf32>
    %327 = vector.extract_strided_slice %315 {offsets = [2, 0], sizes = [1, 128], strides = [1, 1]} : vector<3x128xf32> to vector<1x128xf32>
    %328 = arith.mulf %326, %327 : vector<1x128xf32>
    %329 = arith.addf %325, %328 : vector<1x128xf32>
    %330 = vector.extract_strided_slice %5 {offsets = [0, 5], sizes = [1, 1], strides = [1, 1]} : vector<1x12xf32> to vector<1x1xf32>
    %cst_105 = arith.constant -5.000000e-01 : f32
    %331 = vector.broadcast %cst_105 : f32 to vector<1x128xf32>
    %332 = arith.mulf %331, %329 : vector<1x128xf32>
    %333 = math.exp %332 : vector<1x128xf32>
    %334 = vector.broadcast %330 : vector<1x1xf32> to vector<1x128xf32>
    %335 = arith.mulf %334, %333 : vector<1x128xf32>
    %c0_106 = arith.constant 0 : index
    %c5_107 = arith.constant 5 : index
    %c0_108 = arith.constant 0 : index
    %c0_109 = arith.constant 0 : index
    %336 = vector.load %arg6[%c0_106, %c5_107, %c0_108, %c0_109] : memref<1x12x32x8xf32, #tpu.memory_space<vmem>>, vector<1x1x32x8xf32>
    %337 = vector.shape_cast %336 : vector<1x1x32x8xf32> to vector<32x8xf32>
    %338 = vector.extract_strided_slice %337 {offsets = [0, 0], sizes = [32, 3], strides = [1, 1]} : vector<32x8xf32> to vector<32x3xf32>
    %cst_110 = arith.constant dense<0.000000e+00> : vector<32x128xf32>
    %339 = tpu.matmul %338, %1, %cst_110 {dimension_numbers = #tpu.dot_dimension_numbers<[1], [0], [0], [1], [0, 0, 1, 1], [], []>} : vector<32x3xf32>, vector<3x128xf32>, vector<32x128xf32> -> vector<32x128xf32>
    %340 = vector.extract_strided_slice %337 {offsets = [0, 3], sizes = [32, 1], strides = [1, 1]} : vector<32x8xf32> to vector<32x1xf32>
    %341 = vector.broadcast %340 : vector<32x1xf32> to vector<32x128xf32>
    %342 = arith.addf %339, %341 : vector<32x128xf32>
    %343 = vector.extract_strided_slice %337 {offsets = [0, 4], sizes = [32, 1], strides = [1, 1]} : vector<32x8xf32> to vector<32x1xf32>
    %344 = vector.broadcast %343 : vector<32x1xf32> to vector<32x128xf32>
    %345 = arith.mulf %344, %342 : vector<32x128xf32>
    %346 = vector.extract_strided_slice %337 {offsets = [0, 5], sizes = [32, 1], strides = [1, 1]} : vector<32x8xf32> to vector<32x1xf32>
    %347 = vector.broadcast %346 : vector<32x1xf32> to vector<32x128xf32>
    %348 = arith.addf %345, %347 : vector<32x128xf32>
    %cst_111 = arith.constant 0.000000e+00 : f32
    %349 = vector.broadcast %cst_111 : f32 to vector<32x128xf32>
    %350 = arith.maximumf %348, %349 : vector<32x128xf32>
    %cst_112 = arith.constant dense<0.000000e+00> : vector<32x128xf32>
    %351 = tpu.matmul %6, %350, %cst_112 {dimension_numbers = #tpu.dot_dimension_numbers<[1], [0], [0], [1], [0, 0, 1, 1], [], []>} : vector<32x32xf32>, vector<32x128xf32>, vector<32x128xf32> -> vector<32x128xf32>
    %352 = vector.broadcast %7 : vector<32x1xf32> to vector<32x128xf32>
    %353 = arith.addf %351, %352 : vector<32x128xf32>
    %354 = vector.extract_strided_slice %337 {offsets = [0, 6], sizes = [32, 1], strides = [1, 1]} : vector<32x8xf32> to vector<32x1xf32>
    %355 = vector.broadcast %354 : vector<32x1xf32> to vector<32x128xf32>
    %356 = arith.mulf %355, %353 : vector<32x128xf32>
    %357 = vector.extract_strided_slice %337 {offsets = [0, 7], sizes = [32, 1], strides = [1, 1]} : vector<32x8xf32> to vector<32x1xf32>
    %358 = vector.broadcast %357 : vector<32x1xf32> to vector<32x128xf32>
    %359 = arith.addf %356, %358 : vector<32x128xf32>
    %cst_113 = arith.constant 0.000000e+00 : f32
    %360 = vector.broadcast %cst_113 : f32 to vector<32x128xf32>
    %361 = arith.maximumf %359, %360 : vector<32x128xf32>
    %cst_114 = arith.constant dense<0.000000e+00> : vector<32x128xf32>
    %362 = tpu.matmul %8, %361, %cst_114 {dimension_numbers = #tpu.dot_dimension_numbers<[1], [0], [0], [1], [0, 0, 1, 1], [], []>} : vector<32x32xf32>, vector<32x128xf32>, vector<32x128xf32> -> vector<32x128xf32>
    %363 = vector.broadcast %9 : vector<32x1xf32> to vector<32x128xf32>
    %364 = arith.addf %362, %363 : vector<32x128xf32>
    %365 = arith.addf %342, %364 : vector<32x128xf32>
    %cst_115 = arith.constant dense<0.000000e+00> : vector<1x128xf32>
    %366 = tpu.matmul %10, %365, %cst_115 {dimension_numbers = #tpu.dot_dimension_numbers<[1], [0], [0], [1], [0, 0, 1, 1], [], []>} : vector<1x32xf32>, vector<32x128xf32>, vector<1x128xf32> -> vector<1x128xf32>
    %367 = vector.broadcast %11 : vector<1x1xf32> to vector<1x128xf32>
    %368 = arith.addf %366, %367 : vector<1x128xf32>
    %cst_116 = arith.constant 1.000000e+00 : f32
    %369 = vector.broadcast %cst_116 : f32 to vector<1x128xf32>
    %370 = arith.addf %369, %368 : vector<1x128xf32>
    %371 = arith.mulf %335, %370 : vector<1x128xf32>
    %372 = arith.addf %312, %371 : vector<1x128xf32>
    %373 = vector.extract_strided_slice %3 {offsets = [0, 6], sizes = [3, 1], strides = [1, 1]} : vector<3x12xf32> to vector<3x1xf32>
    %374 = vector.broadcast %373 : vector<3x1xf32> to vector<3x128xf32>
    %375 = arith.subf %1, %374 : vector<3x128xf32>
    %c0_117 = arith.constant 0 : index
    %c6 = arith.constant 6 : index
    %c0_118 = arith.constant 0 : index
    %c0_119 = arith.constant 0 : index
    %376 = vector.load %arg4[%c0_117, %c6, %c0_118, %c0_119] : memref<1x12x3x3xf32, #tpu.memory_space<vmem>>, vector<1x1x3x3xf32>
    %377 = vector.shape_cast %376 : vector<1x1x3x3xf32> to vector<3x3xf32>
    %cst_120 = arith.constant dense<0.000000e+00> : vector<3x128xf32>
    %378 = tpu.matmul %377, %375, %cst_120 {dimension_numbers = #tpu.dot_dimension_numbers<[1], [0], [0], [1], [0, 0, 1, 1], [], []>} : vector<3x3xf32>, vector<3x128xf32>, vector<3x128xf32> -> vector<3x128xf32>
    %379 = vector.extract_strided_slice %378 {offsets = [0, 0], sizes = [1, 128], strides = [1, 1]} : vector<3x128xf32> to vector<1x128xf32>
    %380 = vector.extract_strided_slice %375 {offsets = [0, 0], sizes = [1, 128], strides = [1, 1]} : vector<3x128xf32> to vector<1x128xf32>
    %381 = arith.mulf %379, %380 : vector<1x128xf32>
    %382 = vector.extract_strided_slice %378 {offsets = [1, 0], sizes = [1, 128], strides = [1, 1]} : vector<3x128xf32> to vector<1x128xf32>
    %383 = vector.extract_strided_slice %375 {offsets = [1, 0], sizes = [1, 128], strides = [1, 1]} : vector<3x128xf32> to vector<1x128xf32>
    %384 = arith.mulf %382, %383 : vector<1x128xf32>
    %385 = arith.addf %381, %384 : vector<1x128xf32>
    %386 = vector.extract_strided_slice %378 {offsets = [2, 0], sizes = [1, 128], strides = [1, 1]} : vector<3x128xf32> to vector<1x128xf32>
    %387 = vector.extract_strided_slice %375 {offsets = [2, 0], sizes = [1, 128], strides = [1, 1]} : vector<3x128xf32> to vector<1x128xf32>
    %388 = arith.mulf %386, %387 : vector<1x128xf32>
    %389 = arith.addf %385, %388 : vector<1x128xf32>
    %390 = vector.extract_strided_slice %5 {offsets = [0, 6], sizes = [1, 1], strides = [1, 1]} : vector<1x12xf32> to vector<1x1xf32>
    %cst_121 = arith.constant -5.000000e-01 : f32
    %391 = vector.broadcast %cst_121 : f32 to vector<1x128xf32>
    %392 = arith.mulf %391, %389 : vector<1x128xf32>
    %393 = math.exp %392 : vector<1x128xf32>
    %394 = vector.broadcast %390 : vector<1x1xf32> to vector<1x128xf32>
    %395 = arith.mulf %394, %393 : vector<1x128xf32>
    %c0_122 = arith.constant 0 : index
    %c6_123 = arith.constant 6 : index
    %c0_124 = arith.constant 0 : index
    %c0_125 = arith.constant 0 : index
    %396 = vector.load %arg6[%c0_122, %c6_123, %c0_124, %c0_125] : memref<1x12x32x8xf32, #tpu.memory_space<vmem>>, vector<1x1x32x8xf32>
    %397 = vector.shape_cast %396 : vector<1x1x32x8xf32> to vector<32x8xf32>
    %398 = vector.extract_strided_slice %397 {offsets = [0, 0], sizes = [32, 3], strides = [1, 1]} : vector<32x8xf32> to vector<32x3xf32>
    %cst_126 = arith.constant dense<0.000000e+00> : vector<32x128xf32>
    %399 = tpu.matmul %398, %1, %cst_126 {dimension_numbers = #tpu.dot_dimension_numbers<[1], [0], [0], [1], [0, 0, 1, 1], [], []>} : vector<32x3xf32>, vector<3x128xf32>, vector<32x128xf32> -> vector<32x128xf32>
    %400 = vector.extract_strided_slice %397 {offsets = [0, 3], sizes = [32, 1], strides = [1, 1]} : vector<32x8xf32> to vector<32x1xf32>
    %401 = vector.broadcast %400 : vector<32x1xf32> to vector<32x128xf32>
    %402 = arith.addf %399, %401 : vector<32x128xf32>
    %403 = vector.extract_strided_slice %397 {offsets = [0, 4], sizes = [32, 1], strides = [1, 1]} : vector<32x8xf32> to vector<32x1xf32>
    %404 = vector.broadcast %403 : vector<32x1xf32> to vector<32x128xf32>
    %405 = arith.mulf %404, %402 : vector<32x128xf32>
    %406 = vector.extract_strided_slice %397 {offsets = [0, 5], sizes = [32, 1], strides = [1, 1]} : vector<32x8xf32> to vector<32x1xf32>
    %407 = vector.broadcast %406 : vector<32x1xf32> to vector<32x128xf32>
    %408 = arith.addf %405, %407 : vector<32x128xf32>
    %cst_127 = arith.constant 0.000000e+00 : f32
    %409 = vector.broadcast %cst_127 : f32 to vector<32x128xf32>
    %410 = arith.maximumf %408, %409 : vector<32x128xf32>
    %cst_128 = arith.constant dense<0.000000e+00> : vector<32x128xf32>
    %411 = tpu.matmul %6, %410, %cst_128 {dimension_numbers = #tpu.dot_dimension_numbers<[1], [0], [0], [1], [0, 0, 1, 1], [], []>} : vector<32x32xf32>, vector<32x128xf32>, vector<32x128xf32> -> vector<32x128xf32>
    %412 = vector.broadcast %7 : vector<32x1xf32> to vector<32x128xf32>
    %413 = arith.addf %411, %412 : vector<32x128xf32>
    %414 = vector.extract_strided_slice %397 {offsets = [0, 6], sizes = [32, 1], strides = [1, 1]} : vector<32x8xf32> to vector<32x1xf32>
    %415 = vector.broadcast %414 : vector<32x1xf32> to vector<32x128xf32>
    %416 = arith.mulf %415, %413 : vector<32x128xf32>
    %417 = vector.extract_strided_slice %397 {offsets = [0, 7], sizes = [32, 1], strides = [1, 1]} : vector<32x8xf32> to vector<32x1xf32>
    %418 = vector.broadcast %417 : vector<32x1xf32> to vector<32x128xf32>
    %419 = arith.addf %416, %418 : vector<32x128xf32>
    %cst_129 = arith.constant 0.000000e+00 : f32
    %420 = vector.broadcast %cst_129 : f32 to vector<32x128xf32>
    %421 = arith.maximumf %419, %420 : vector<32x128xf32>
    %cst_130 = arith.constant dense<0.000000e+00> : vector<32x128xf32>
    %422 = tpu.matmul %8, %421, %cst_130 {dimension_numbers = #tpu.dot_dimension_numbers<[1], [0], [0], [1], [0, 0, 1, 1], [], []>} : vector<32x32xf32>, vector<32x128xf32>, vector<32x128xf32> -> vector<32x128xf32>
    %423 = vector.broadcast %9 : vector<32x1xf32> to vector<32x128xf32>
    %424 = arith.addf %422, %423 : vector<32x128xf32>
    %425 = arith.addf %402, %424 : vector<32x128xf32>
    %cst_131 = arith.constant dense<0.000000e+00> : vector<1x128xf32>
    %426 = tpu.matmul %10, %425, %cst_131 {dimension_numbers = #tpu.dot_dimension_numbers<[1], [0], [0], [1], [0, 0, 1, 1], [], []>} : vector<1x32xf32>, vector<32x128xf32>, vector<1x128xf32> -> vector<1x128xf32>
    %427 = vector.broadcast %11 : vector<1x1xf32> to vector<1x128xf32>
    %428 = arith.addf %426, %427 : vector<1x128xf32>
    %cst_132 = arith.constant 1.000000e+00 : f32
    %429 = vector.broadcast %cst_132 : f32 to vector<1x128xf32>
    %430 = arith.addf %429, %428 : vector<1x128xf32>
    %431 = arith.mulf %395, %430 : vector<1x128xf32>
    %432 = arith.addf %372, %431 : vector<1x128xf32>
    %433 = vector.extract_strided_slice %3 {offsets = [0, 7], sizes = [3, 1], strides = [1, 1]} : vector<3x12xf32> to vector<3x1xf32>
    %434 = vector.broadcast %433 : vector<3x1xf32> to vector<3x128xf32>
    %435 = arith.subf %1, %434 : vector<3x128xf32>
    %c0_133 = arith.constant 0 : index
    %c7 = arith.constant 7 : index
    %c0_134 = arith.constant 0 : index
    %c0_135 = arith.constant 0 : index
    %436 = vector.load %arg4[%c0_133, %c7, %c0_134, %c0_135] : memref<1x12x3x3xf32, #tpu.memory_space<vmem>>, vector<1x1x3x3xf32>
    %437 = vector.shape_cast %436 : vector<1x1x3x3xf32> to vector<3x3xf32>
    %cst_136 = arith.constant dense<0.000000e+00> : vector<3x128xf32>
    %438 = tpu.matmul %437, %435, %cst_136 {dimension_numbers = #tpu.dot_dimension_numbers<[1], [0], [0], [1], [0, 0, 1, 1], [], []>} : vector<3x3xf32>, vector<3x128xf32>, vector<3x128xf32> -> vector<3x128xf32>
    %439 = vector.extract_strided_slice %438 {offsets = [0, 0], sizes = [1, 128], strides = [1, 1]} : vector<3x128xf32> to vector<1x128xf32>
    %440 = vector.extract_strided_slice %435 {offsets = [0, 0], sizes = [1, 128], strides = [1, 1]} : vector<3x128xf32> to vector<1x128xf32>
    %441 = arith.mulf %439, %440 : vector<1x128xf32>
    %442 = vector.extract_strided_slice %438 {offsets = [1, 0], sizes = [1, 128], strides = [1, 1]} : vector<3x128xf32> to vector<1x128xf32>
    %443 = vector.extract_strided_slice %435 {offsets = [1, 0], sizes = [1, 128], strides = [1, 1]} : vector<3x128xf32> to vector<1x128xf32>
    %444 = arith.mulf %442, %443 : vector<1x128xf32>
    %445 = arith.addf %441, %444 : vector<1x128xf32>
    %446 = vector.extract_strided_slice %438 {offsets = [2, 0], sizes = [1, 128], strides = [1, 1]} : vector<3x128xf32> to vector<1x128xf32>
    %447 = vector.extract_strided_slice %435 {offsets = [2, 0], sizes = [1, 128], strides = [1, 1]} : vector<3x128xf32> to vector<1x128xf32>
    %448 = arith.mulf %446, %447 : vector<1x128xf32>
    %449 = arith.addf %445, %448 : vector<1x128xf32>
    %450 = vector.extract_strided_slice %5 {offsets = [0, 7], sizes = [1, 1], strides = [1, 1]} : vector<1x12xf32> to vector<1x1xf32>
    %cst_137 = arith.constant -5.000000e-01 : f32
    %451 = vector.broadcast %cst_137 : f32 to vector<1x128xf32>
    %452 = arith.mulf %451, %449 : vector<1x128xf32>
    %453 = math.exp %452 : vector<1x128xf32>
    %454 = vector.broadcast %450 : vector<1x1xf32> to vector<1x128xf32>
    %455 = arith.mulf %454, %453 : vector<1x128xf32>
    %c0_138 = arith.constant 0 : index
    %c7_139 = arith.constant 7 : index
    %c0_140 = arith.constant 0 : index
    %c0_141 = arith.constant 0 : index
    %456 = vector.load %arg6[%c0_138, %c7_139, %c0_140, %c0_141] : memref<1x12x32x8xf32, #tpu.memory_space<vmem>>, vector<1x1x32x8xf32>
    %457 = vector.shape_cast %456 : vector<1x1x32x8xf32> to vector<32x8xf32>
    %458 = vector.extract_strided_slice %457 {offsets = [0, 0], sizes = [32, 3], strides = [1, 1]} : vector<32x8xf32> to vector<32x3xf32>
    %cst_142 = arith.constant dense<0.000000e+00> : vector<32x128xf32>
    %459 = tpu.matmul %458, %1, %cst_142 {dimension_numbers = #tpu.dot_dimension_numbers<[1], [0], [0], [1], [0, 0, 1, 1], [], []>} : vector<32x3xf32>, vector<3x128xf32>, vector<32x128xf32> -> vector<32x128xf32>
    %460 = vector.extract_strided_slice %457 {offsets = [0, 3], sizes = [32, 1], strides = [1, 1]} : vector<32x8xf32> to vector<32x1xf32>
    %461 = vector.broadcast %460 : vector<32x1xf32> to vector<32x128xf32>
    %462 = arith.addf %459, %461 : vector<32x128xf32>
    %463 = vector.extract_strided_slice %457 {offsets = [0, 4], sizes = [32, 1], strides = [1, 1]} : vector<32x8xf32> to vector<32x1xf32>
    %464 = vector.broadcast %463 : vector<32x1xf32> to vector<32x128xf32>
    %465 = arith.mulf %464, %462 : vector<32x128xf32>
    %466 = vector.extract_strided_slice %457 {offsets = [0, 5], sizes = [32, 1], strides = [1, 1]} : vector<32x8xf32> to vector<32x1xf32>
    %467 = vector.broadcast %466 : vector<32x1xf32> to vector<32x128xf32>
    %468 = arith.addf %465, %467 : vector<32x128xf32>
    %cst_143 = arith.constant 0.000000e+00 : f32
    %469 = vector.broadcast %cst_143 : f32 to vector<32x128xf32>
    %470 = arith.maximumf %468, %469 : vector<32x128xf32>
    %cst_144 = arith.constant dense<0.000000e+00> : vector<32x128xf32>
    %471 = tpu.matmul %6, %470, %cst_144 {dimension_numbers = #tpu.dot_dimension_numbers<[1], [0], [0], [1], [0, 0, 1, 1], [], []>} : vector<32x32xf32>, vector<32x128xf32>, vector<32x128xf32> -> vector<32x128xf32>
    %472 = vector.broadcast %7 : vector<32x1xf32> to vector<32x128xf32>
    %473 = arith.addf %471, %472 : vector<32x128xf32>
    %474 = vector.extract_strided_slice %457 {offsets = [0, 6], sizes = [32, 1], strides = [1, 1]} : vector<32x8xf32> to vector<32x1xf32>
    %475 = vector.broadcast %474 : vector<32x1xf32> to vector<32x128xf32>
    %476 = arith.mulf %475, %473 : vector<32x128xf32>
    %477 = vector.extract_strided_slice %457 {offsets = [0, 7], sizes = [32, 1], strides = [1, 1]} : vector<32x8xf32> to vector<32x1xf32>
    %478 = vector.broadcast %477 : vector<32x1xf32> to vector<32x128xf32>
    %479 = arith.addf %476, %478 : vector<32x128xf32>
    %cst_145 = arith.constant 0.000000e+00 : f32
    %480 = vector.broadcast %cst_145 : f32 to vector<32x128xf32>
    %481 = arith.maximumf %479, %480 : vector<32x128xf32>
    %cst_146 = arith.constant dense<0.000000e+00> : vector<32x128xf32>
    %482 = tpu.matmul %8, %481, %cst_146 {dimension_numbers = #tpu.dot_dimension_numbers<[1], [0], [0], [1], [0, 0, 1, 1], [], []>} : vector<32x32xf32>, vector<32x128xf32>, vector<32x128xf32> -> vector<32x128xf32>
    %483 = vector.broadcast %9 : vector<32x1xf32> to vector<32x128xf32>
    %484 = arith.addf %482, %483 : vector<32x128xf32>
    %485 = arith.addf %462, %484 : vector<32x128xf32>
    %cst_147 = arith.constant dense<0.000000e+00> : vector<1x128xf32>
    %486 = tpu.matmul %10, %485, %cst_147 {dimension_numbers = #tpu.dot_dimension_numbers<[1], [0], [0], [1], [0, 0, 1, 1], [], []>} : vector<1x32xf32>, vector<32x128xf32>, vector<1x128xf32> -> vector<1x128xf32>
    %487 = vector.broadcast %11 : vector<1x1xf32> to vector<1x128xf32>
    %488 = arith.addf %486, %487 : vector<1x128xf32>
    %cst_148 = arith.constant 1.000000e+00 : f32
    %489 = vector.broadcast %cst_148 : f32 to vector<1x128xf32>
    %490 = arith.addf %489, %488 : vector<1x128xf32>
    %491 = arith.mulf %455, %490 : vector<1x128xf32>
    %492 = arith.addf %432, %491 : vector<1x128xf32>
    %493 = vector.extract_strided_slice %3 {offsets = [0, 8], sizes = [3, 1], strides = [1, 1]} : vector<3x12xf32> to vector<3x1xf32>
    %494 = vector.broadcast %493 : vector<3x1xf32> to vector<3x128xf32>
    %495 = arith.subf %1, %494 : vector<3x128xf32>
    %c0_149 = arith.constant 0 : index
    %c8 = arith.constant 8 : index
    %c0_150 = arith.constant 0 : index
    %c0_151 = arith.constant 0 : index
    %496 = vector.load %arg4[%c0_149, %c8, %c0_150, %c0_151] : memref<1x12x3x3xf32, #tpu.memory_space<vmem>>, vector<1x1x3x3xf32>
    %497 = vector.shape_cast %496 : vector<1x1x3x3xf32> to vector<3x3xf32>
    %cst_152 = arith.constant dense<0.000000e+00> : vector<3x128xf32>
    %498 = tpu.matmul %497, %495, %cst_152 {dimension_numbers = #tpu.dot_dimension_numbers<[1], [0], [0], [1], [0, 0, 1, 1], [], []>} : vector<3x3xf32>, vector<3x128xf32>, vector<3x128xf32> -> vector<3x128xf32>
    %499 = vector.extract_strided_slice %498 {offsets = [0, 0], sizes = [1, 128], strides = [1, 1]} : vector<3x128xf32> to vector<1x128xf32>
    %500 = vector.extract_strided_slice %495 {offsets = [0, 0], sizes = [1, 128], strides = [1, 1]} : vector<3x128xf32> to vector<1x128xf32>
    %501 = arith.mulf %499, %500 : vector<1x128xf32>
    %502 = vector.extract_strided_slice %498 {offsets = [1, 0], sizes = [1, 128], strides = [1, 1]} : vector<3x128xf32> to vector<1x128xf32>
    %503 = vector.extract_strided_slice %495 {offsets = [1, 0], sizes = [1, 128], strides = [1, 1]} : vector<3x128xf32> to vector<1x128xf32>
    %504 = arith.mulf %502, %503 : vector<1x128xf32>
    %505 = arith.addf %501, %504 : vector<1x128xf32>
    %506 = vector.extract_strided_slice %498 {offsets = [2, 0], sizes = [1, 128], strides = [1, 1]} : vector<3x128xf32> to vector<1x128xf32>
    %507 = vector.extract_strided_slice %495 {offsets = [2, 0], sizes = [1, 128], strides = [1, 1]} : vector<3x128xf32> to vector<1x128xf32>
    %508 = arith.mulf %506, %507 : vector<1x128xf32>
    %509 = arith.addf %505, %508 : vector<1x128xf32>
    %510 = vector.extract_strided_slice %5 {offsets = [0, 8], sizes = [1, 1], strides = [1, 1]} : vector<1x12xf32> to vector<1x1xf32>
    %cst_153 = arith.constant -5.000000e-01 : f32
    %511 = vector.broadcast %cst_153 : f32 to vector<1x128xf32>
    %512 = arith.mulf %511, %509 : vector<1x128xf32>
    %513 = math.exp %512 : vector<1x128xf32>
    %514 = vector.broadcast %510 : vector<1x1xf32> to vector<1x128xf32>
    %515 = arith.mulf %514, %513 : vector<1x128xf32>
    %c0_154 = arith.constant 0 : index
    %c8_155 = arith.constant 8 : index
    %c0_156 = arith.constant 0 : index
    %c0_157 = arith.constant 0 : index
    %516 = vector.load %arg6[%c0_154, %c8_155, %c0_156, %c0_157] : memref<1x12x32x8xf32, #tpu.memory_space<vmem>>, vector<1x1x32x8xf32>
    %517 = vector.shape_cast %516 : vector<1x1x32x8xf32> to vector<32x8xf32>
    %518 = vector.extract_strided_slice %517 {offsets = [0, 0], sizes = [32, 3], strides = [1, 1]} : vector<32x8xf32> to vector<32x3xf32>
    %cst_158 = arith.constant dense<0.000000e+00> : vector<32x128xf32>
    %519 = tpu.matmul %518, %1, %cst_158 {dimension_numbers = #tpu.dot_dimension_numbers<[1], [0], [0], [1], [0, 0, 1, 1], [], []>} : vector<32x3xf32>, vector<3x128xf32>, vector<32x128xf32> -> vector<32x128xf32>
    %520 = vector.extract_strided_slice %517 {offsets = [0, 3], sizes = [32, 1], strides = [1, 1]} : vector<32x8xf32> to vector<32x1xf32>
    %521 = vector.broadcast %520 : vector<32x1xf32> to vector<32x128xf32>
    %522 = arith.addf %519, %521 : vector<32x128xf32>
    %523 = vector.extract_strided_slice %517 {offsets = [0, 4], sizes = [32, 1], strides = [1, 1]} : vector<32x8xf32> to vector<32x1xf32>
    %524 = vector.broadcast %523 : vector<32x1xf32> to vector<32x128xf32>
    %525 = arith.mulf %524, %522 : vector<32x128xf32>
    %526 = vector.extract_strided_slice %517 {offsets = [0, 5], sizes = [32, 1], strides = [1, 1]} : vector<32x8xf32> to vector<32x1xf32>
    %527 = vector.broadcast %526 : vector<32x1xf32> to vector<32x128xf32>
    %528 = arith.addf %525, %527 : vector<32x128xf32>
    %cst_159 = arith.constant 0.000000e+00 : f32
    %529 = vector.broadcast %cst_159 : f32 to vector<32x128xf32>
    %530 = arith.maximumf %528, %529 : vector<32x128xf32>
    %cst_160 = arith.constant dense<0.000000e+00> : vector<32x128xf32>
    %531 = tpu.matmul %6, %530, %cst_160 {dimension_numbers = #tpu.dot_dimension_numbers<[1], [0], [0], [1], [0, 0, 1, 1], [], []>} : vector<32x32xf32>, vector<32x128xf32>, vector<32x128xf32> -> vector<32x128xf32>
    %532 = vector.broadcast %7 : vector<32x1xf32> to vector<32x128xf32>
    %533 = arith.addf %531, %532 : vector<32x128xf32>
    %534 = vector.extract_strided_slice %517 {offsets = [0, 6], sizes = [32, 1], strides = [1, 1]} : vector<32x8xf32> to vector<32x1xf32>
    %535 = vector.broadcast %534 : vector<32x1xf32> to vector<32x128xf32>
    %536 = arith.mulf %535, %533 : vector<32x128xf32>
    %537 = vector.extract_strided_slice %517 {offsets = [0, 7], sizes = [32, 1], strides = [1, 1]} : vector<32x8xf32> to vector<32x1xf32>
    %538 = vector.broadcast %537 : vector<32x1xf32> to vector<32x128xf32>
    %539 = arith.addf %536, %538 : vector<32x128xf32>
    %cst_161 = arith.constant 0.000000e+00 : f32
    %540 = vector.broadcast %cst_161 : f32 to vector<32x128xf32>
    %541 = arith.maximumf %539, %540 : vector<32x128xf32>
    %cst_162 = arith.constant dense<0.000000e+00> : vector<32x128xf32>
    %542 = tpu.matmul %8, %541, %cst_162 {dimension_numbers = #tpu.dot_dimension_numbers<[1], [0], [0], [1], [0, 0, 1, 1], [], []>} : vector<32x32xf32>, vector<32x128xf32>, vector<32x128xf32> -> vector<32x128xf32>
    %543 = vector.broadcast %9 : vector<32x1xf32> to vector<32x128xf32>
    %544 = arith.addf %542, %543 : vector<32x128xf32>
    %545 = arith.addf %522, %544 : vector<32x128xf32>
    %cst_163 = arith.constant dense<0.000000e+00> : vector<1x128xf32>
    %546 = tpu.matmul %10, %545, %cst_163 {dimension_numbers = #tpu.dot_dimension_numbers<[1], [0], [0], [1], [0, 0, 1, 1], [], []>} : vector<1x32xf32>, vector<32x128xf32>, vector<1x128xf32> -> vector<1x128xf32>
    %547 = vector.broadcast %11 : vector<1x1xf32> to vector<1x128xf32>
    %548 = arith.addf %546, %547 : vector<1x128xf32>
    %cst_164 = arith.constant 1.000000e+00 : f32
    %549 = vector.broadcast %cst_164 : f32 to vector<1x128xf32>
    %550 = arith.addf %549, %548 : vector<1x128xf32>
    %551 = arith.mulf %515, %550 : vector<1x128xf32>
    %552 = arith.addf %492, %551 : vector<1x128xf32>
    %553 = vector.extract_strided_slice %3 {offsets = [0, 9], sizes = [3, 1], strides = [1, 1]} : vector<3x12xf32> to vector<3x1xf32>
    %554 = vector.broadcast %553 : vector<3x1xf32> to vector<3x128xf32>
    %555 = arith.subf %1, %554 : vector<3x128xf32>
    %c0_165 = arith.constant 0 : index
    %c9 = arith.constant 9 : index
    %c0_166 = arith.constant 0 : index
    %c0_167 = arith.constant 0 : index
    %556 = vector.load %arg4[%c0_165, %c9, %c0_166, %c0_167] : memref<1x12x3x3xf32, #tpu.memory_space<vmem>>, vector<1x1x3x3xf32>
    %557 = vector.shape_cast %556 : vector<1x1x3x3xf32> to vector<3x3xf32>
    %cst_168 = arith.constant dense<0.000000e+00> : vector<3x128xf32>
    %558 = tpu.matmul %557, %555, %cst_168 {dimension_numbers = #tpu.dot_dimension_numbers<[1], [0], [0], [1], [0, 0, 1, 1], [], []>} : vector<3x3xf32>, vector<3x128xf32>, vector<3x128xf32> -> vector<3x128xf32>
    %559 = vector.extract_strided_slice %558 {offsets = [0, 0], sizes = [1, 128], strides = [1, 1]} : vector<3x128xf32> to vector<1x128xf32>
    %560 = vector.extract_strided_slice %555 {offsets = [0, 0], sizes = [1, 128], strides = [1, 1]} : vector<3x128xf32> to vector<1x128xf32>
    %561 = arith.mulf %559, %560 : vector<1x128xf32>
    %562 = vector.extract_strided_slice %558 {offsets = [1, 0], sizes = [1, 128], strides = [1, 1]} : vector<3x128xf32> to vector<1x128xf32>
    %563 = vector.extract_strided_slice %555 {offsets = [1, 0], sizes = [1, 128], strides = [1, 1]} : vector<3x128xf32> to vector<1x128xf32>
    %564 = arith.mulf %562, %563 : vector<1x128xf32>
    %565 = arith.addf %561, %564 : vector<1x128xf32>
    %566 = vector.extract_strided_slice %558 {offsets = [2, 0], sizes = [1, 128], strides = [1, 1]} : vector<3x128xf32> to vector<1x128xf32>
    %567 = vector.extract_strided_slice %555 {offsets = [2, 0], sizes = [1, 128], strides = [1, 1]} : vector<3x128xf32> to vector<1x128xf32>
    %568 = arith.mulf %566, %567 : vector<1x128xf32>
    %569 = arith.addf %565, %568 : vector<1x128xf32>
    %570 = vector.extract_strided_slice %5 {offsets = [0, 9], sizes = [1, 1], strides = [1, 1]} : vector<1x12xf32> to vector<1x1xf32>
    %cst_169 = arith.constant -5.000000e-01 : f32
    %571 = vector.broadcast %cst_169 : f32 to vector<1x128xf32>
    %572 = arith.mulf %571, %569 : vector<1x128xf32>
    %573 = math.exp %572 : vector<1x128xf32>
    %574 = vector.broadcast %570 : vector<1x1xf32> to vector<1x128xf32>
    %575 = arith.mulf %574, %573 : vector<1x128xf32>
    %c0_170 = arith.constant 0 : index
    %c9_171 = arith.constant 9 : index
    %c0_172 = arith.constant 0 : index
    %c0_173 = arith.constant 0 : index
    %576 = vector.load %arg6[%c0_170, %c9_171, %c0_172, %c0_173] : memref<1x12x32x8xf32, #tpu.memory_space<vmem>>, vector<1x1x32x8xf32>
    %577 = vector.shape_cast %576 : vector<1x1x32x8xf32> to vector<32x8xf32>
    %578 = vector.extract_strided_slice %577 {offsets = [0, 0], sizes = [32, 3], strides = [1, 1]} : vector<32x8xf32> to vector<32x3xf32>
    %cst_174 = arith.constant dense<0.000000e+00> : vector<32x128xf32>
    %579 = tpu.matmul %578, %1, %cst_174 {dimension_numbers = #tpu.dot_dimension_numbers<[1], [0], [0], [1], [0, 0, 1, 1], [], []>} : vector<32x3xf32>, vector<3x128xf32>, vector<32x128xf32> -> vector<32x128xf32>
    %580 = vector.extract_strided_slice %577 {offsets = [0, 3], sizes = [32, 1], strides = [1, 1]} : vector<32x8xf32> to vector<32x1xf32>
    %581 = vector.broadcast %580 : vector<32x1xf32> to vector<32x128xf32>
    %582 = arith.addf %579, %581 : vector<32x128xf32>
    %583 = vector.extract_strided_slice %577 {offsets = [0, 4], sizes = [32, 1], strides = [1, 1]} : vector<32x8xf32> to vector<32x1xf32>
    %584 = vector.broadcast %583 : vector<32x1xf32> to vector<32x128xf32>
    %585 = arith.mulf %584, %582 : vector<32x128xf32>
    %586 = vector.extract_strided_slice %577 {offsets = [0, 5], sizes = [32, 1], strides = [1, 1]} : vector<32x8xf32> to vector<32x1xf32>
    %587 = vector.broadcast %586 : vector<32x1xf32> to vector<32x128xf32>
    %588 = arith.addf %585, %587 : vector<32x128xf32>
    %cst_175 = arith.constant 0.000000e+00 : f32
    %589 = vector.broadcast %cst_175 : f32 to vector<32x128xf32>
    %590 = arith.maximumf %588, %589 : vector<32x128xf32>
    %cst_176 = arith.constant dense<0.000000e+00> : vector<32x128xf32>
    %591 = tpu.matmul %6, %590, %cst_176 {dimension_numbers = #tpu.dot_dimension_numbers<[1], [0], [0], [1], [0, 0, 1, 1], [], []>} : vector<32x32xf32>, vector<32x128xf32>, vector<32x128xf32> -> vector<32x128xf32>
    %592 = vector.broadcast %7 : vector<32x1xf32> to vector<32x128xf32>
    %593 = arith.addf %591, %592 : vector<32x128xf32>
    %594 = vector.extract_strided_slice %577 {offsets = [0, 6], sizes = [32, 1], strides = [1, 1]} : vector<32x8xf32> to vector<32x1xf32>
    %595 = vector.broadcast %594 : vector<32x1xf32> to vector<32x128xf32>
    %596 = arith.mulf %595, %593 : vector<32x128xf32>
    %597 = vector.extract_strided_slice %577 {offsets = [0, 7], sizes = [32, 1], strides = [1, 1]} : vector<32x8xf32> to vector<32x1xf32>
    %598 = vector.broadcast %597 : vector<32x1xf32> to vector<32x128xf32>
    %599 = arith.addf %596, %598 : vector<32x128xf32>
    %cst_177 = arith.constant 0.000000e+00 : f32
    %600 = vector.broadcast %cst_177 : f32 to vector<32x128xf32>
    %601 = arith.maximumf %599, %600 : vector<32x128xf32>
    %cst_178 = arith.constant dense<0.000000e+00> : vector<32x128xf32>
    %602 = tpu.matmul %8, %601, %cst_178 {dimension_numbers = #tpu.dot_dimension_numbers<[1], [0], [0], [1], [0, 0, 1, 1], [], []>} : vector<32x32xf32>, vector<32x128xf32>, vector<32x128xf32> -> vector<32x128xf32>
    %603 = vector.broadcast %9 : vector<32x1xf32> to vector<32x128xf32>
    %604 = arith.addf %602, %603 : vector<32x128xf32>
    %605 = arith.addf %582, %604 : vector<32x128xf32>
    %cst_179 = arith.constant dense<0.000000e+00> : vector<1x128xf32>
    %606 = tpu.matmul %10, %605, %cst_179 {dimension_numbers = #tpu.dot_dimension_numbers<[1], [0], [0], [1], [0, 0, 1, 1], [], []>} : vector<1x32xf32>, vector<32x128xf32>, vector<1x128xf32> -> vector<1x128xf32>
    %607 = vector.broadcast %11 : vector<1x1xf32> to vector<1x128xf32>
    %608 = arith.addf %606, %607 : vector<1x128xf32>
    %cst_180 = arith.constant 1.000000e+00 : f32
    %609 = vector.broadcast %cst_180 : f32 to vector<1x128xf32>
    %610 = arith.addf %609, %608 : vector<1x128xf32>
    %611 = arith.mulf %575, %610 : vector<1x128xf32>
    %612 = arith.addf %552, %611 : vector<1x128xf32>
    %613 = vector.extract_strided_slice %3 {offsets = [0, 10], sizes = [3, 1], strides = [1, 1]} : vector<3x12xf32> to vector<3x1xf32>
    %614 = vector.broadcast %613 : vector<3x1xf32> to vector<3x128xf32>
    %615 = arith.subf %1, %614 : vector<3x128xf32>
    %c0_181 = arith.constant 0 : index
    %c10 = arith.constant 10 : index
    %c0_182 = arith.constant 0 : index
    %c0_183 = arith.constant 0 : index
    %616 = vector.load %arg4[%c0_181, %c10, %c0_182, %c0_183] : memref<1x12x3x3xf32, #tpu.memory_space<vmem>>, vector<1x1x3x3xf32>
    %617 = vector.shape_cast %616 : vector<1x1x3x3xf32> to vector<3x3xf32>
    %cst_184 = arith.constant dense<0.000000e+00> : vector<3x128xf32>
    %618 = tpu.matmul %617, %615, %cst_184 {dimension_numbers = #tpu.dot_dimension_numbers<[1], [0], [0], [1], [0, 0, 1, 1], [], []>} : vector<3x3xf32>, vector<3x128xf32>, vector<3x128xf32> -> vector<3x128xf32>
    %619 = vector.extract_strided_slice %618 {offsets = [0, 0], sizes = [1, 128], strides = [1, 1]} : vector<3x128xf32> to vector<1x128xf32>
    %620 = vector.extract_strided_slice %615 {offsets = [0, 0], sizes = [1, 128], strides = [1, 1]} : vector<3x128xf32> to vector<1x128xf32>
    %621 = arith.mulf %619, %620 : vector<1x128xf32>
    %622 = vector.extract_strided_slice %618 {offsets = [1, 0], sizes = [1, 128], strides = [1, 1]} : vector<3x128xf32> to vector<1x128xf32>
    %623 = vector.extract_strided_slice %615 {offsets = [1, 0], sizes = [1, 128], strides = [1, 1]} : vector<3x128xf32> to vector<1x128xf32>
    %624 = arith.mulf %622, %623 : vector<1x128xf32>
    %625 = arith.addf %621, %624 : vector<1x128xf32>
    %626 = vector.extract_strided_slice %618 {offsets = [2, 0], sizes = [1, 128], strides = [1, 1]} : vector<3x128xf32> to vector<1x128xf32>
    %627 = vector.extract_strided_slice %615 {offsets = [2, 0], sizes = [1, 128], strides = [1, 1]} : vector<3x128xf32> to vector<1x128xf32>
    %628 = arith.mulf %626, %627 : vector<1x128xf32>
    %629 = arith.addf %625, %628 : vector<1x128xf32>
    %630 = vector.extract_strided_slice %5 {offsets = [0, 10], sizes = [1, 1], strides = [1, 1]} : vector<1x12xf32> to vector<1x1xf32>
    %cst_185 = arith.constant -5.000000e-01 : f32
    %631 = vector.broadcast %cst_185 : f32 to vector<1x128xf32>
    %632 = arith.mulf %631, %629 : vector<1x128xf32>
    %633 = math.exp %632 : vector<1x128xf32>
    %634 = vector.broadcast %630 : vector<1x1xf32> to vector<1x128xf32>
    %635 = arith.mulf %634, %633 : vector<1x128xf32>
    %c0_186 = arith.constant 0 : index
    %c10_187 = arith.constant 10 : index
    %c0_188 = arith.constant 0 : index
    %c0_189 = arith.constant 0 : index
    %636 = vector.load %arg6[%c0_186, %c10_187, %c0_188, %c0_189] : memref<1x12x32x8xf32, #tpu.memory_space<vmem>>, vector<1x1x32x8xf32>
    %637 = vector.shape_cast %636 : vector<1x1x32x8xf32> to vector<32x8xf32>
    %638 = vector.extract_strided_slice %637 {offsets = [0, 0], sizes = [32, 3], strides = [1, 1]} : vector<32x8xf32> to vector<32x3xf32>
    %cst_190 = arith.constant dense<0.000000e+00> : vector<32x128xf32>
    %639 = tpu.matmul %638, %1, %cst_190 {dimension_numbers = #tpu.dot_dimension_numbers<[1], [0], [0], [1], [0, 0, 1, 1], [], []>} : vector<32x3xf32>, vector<3x128xf32>, vector<32x128xf32> -> vector<32x128xf32>
    %640 = vector.extract_strided_slice %637 {offsets = [0, 3], sizes = [32, 1], strides = [1, 1]} : vector<32x8xf32> to vector<32x1xf32>
    %641 = vector.broadcast %640 : vector<32x1xf32> to vector<32x128xf32>
    %642 = arith.addf %639, %641 : vector<32x128xf32>
    %643 = vector.extract_strided_slice %637 {offsets = [0, 4], sizes = [32, 1], strides = [1, 1]} : vector<32x8xf32> to vector<32x1xf32>
    %644 = vector.broadcast %643 : vector<32x1xf32> to vector<32x128xf32>
    %645 = arith.mulf %644, %642 : vector<32x128xf32>
    %646 = vector.extract_strided_slice %637 {offsets = [0, 5], sizes = [32, 1], strides = [1, 1]} : vector<32x8xf32> to vector<32x1xf32>
    %647 = vector.broadcast %646 : vector<32x1xf32> to vector<32x128xf32>
    %648 = arith.addf %645, %647 : vector<32x128xf32>
    %cst_191 = arith.constant 0.000000e+00 : f32
    %649 = vector.broadcast %cst_191 : f32 to vector<32x128xf32>
    %650 = arith.maximumf %648, %649 : vector<32x128xf32>
    %cst_192 = arith.constant dense<0.000000e+00> : vector<32x128xf32>
    %651 = tpu.matmul %6, %650, %cst_192 {dimension_numbers = #tpu.dot_dimension_numbers<[1], [0], [0], [1], [0, 0, 1, 1], [], []>} : vector<32x32xf32>, vector<32x128xf32>, vector<32x128xf32> -> vector<32x128xf32>
    %652 = vector.broadcast %7 : vector<32x1xf32> to vector<32x128xf32>
    %653 = arith.addf %651, %652 : vector<32x128xf32>
    %654 = vector.extract_strided_slice %637 {offsets = [0, 6], sizes = [32, 1], strides = [1, 1]} : vector<32x8xf32> to vector<32x1xf32>
    %655 = vector.broadcast %654 : vector<32x1xf32> to vector<32x128xf32>
    %656 = arith.mulf %655, %653 : vector<32x128xf32>
    %657 = vector.extract_strided_slice %637 {offsets = [0, 7], sizes = [32, 1], strides = [1, 1]} : vector<32x8xf32> to vector<32x1xf32>
    %658 = vector.broadcast %657 : vector<32x1xf32> to vector<32x128xf32>
    %659 = arith.addf %656, %658 : vector<32x128xf32>
    %cst_193 = arith.constant 0.000000e+00 : f32
    %660 = vector.broadcast %cst_193 : f32 to vector<32x128xf32>
    %661 = arith.maximumf %659, %660 : vector<32x128xf32>
    %cst_194 = arith.constant dense<0.000000e+00> : vector<32x128xf32>
    %662 = tpu.matmul %8, %661, %cst_194 {dimension_numbers = #tpu.dot_dimension_numbers<[1], [0], [0], [1], [0, 0, 1, 1], [], []>} : vector<32x32xf32>, vector<32x128xf32>, vector<32x128xf32> -> vector<32x128xf32>
    %663 = vector.broadcast %9 : vector<32x1xf32> to vector<32x128xf32>
    %664 = arith.addf %662, %663 : vector<32x128xf32>
    %665 = arith.addf %642, %664 : vector<32x128xf32>
    %cst_195 = arith.constant dense<0.000000e+00> : vector<1x128xf32>
    %666 = tpu.matmul %10, %665, %cst_195 {dimension_numbers = #tpu.dot_dimension_numbers<[1], [0], [0], [1], [0, 0, 1, 1], [], []>} : vector<1x32xf32>, vector<32x128xf32>, vector<1x128xf32> -> vector<1x128xf32>
    %667 = vector.broadcast %11 : vector<1x1xf32> to vector<1x128xf32>
    %668 = arith.addf %666, %667 : vector<1x128xf32>
    %cst_196 = arith.constant 1.000000e+00 : f32
    %669 = vector.broadcast %cst_196 : f32 to vector<1x128xf32>
    %670 = arith.addf %669, %668 : vector<1x128xf32>
    %671 = arith.mulf %635, %670 : vector<1x128xf32>
    %672 = arith.addf %612, %671 : vector<1x128xf32>
    %673 = vector.extract_strided_slice %3 {offsets = [0, 11], sizes = [3, 1], strides = [1, 1]} : vector<3x12xf32> to vector<3x1xf32>
    %674 = vector.broadcast %673 : vector<3x1xf32> to vector<3x128xf32>
    %675 = arith.subf %1, %674 : vector<3x128xf32>
    %c0_197 = arith.constant 0 : index
    %c11 = arith.constant 11 : index
    %c0_198 = arith.constant 0 : index
    %c0_199 = arith.constant 0 : index
    %676 = vector.load %arg4[%c0_197, %c11, %c0_198, %c0_199] : memref<1x12x3x3xf32, #tpu.memory_space<vmem>>, vector<1x1x3x3xf32>
    %677 = vector.shape_cast %676 : vector<1x1x3x3xf32> to vector<3x3xf32>
    %cst_200 = arith.constant dense<0.000000e+00> : vector<3x128xf32>
    %678 = tpu.matmul %677, %675, %cst_200 {dimension_numbers = #tpu.dot_dimension_numbers<[1], [0], [0], [1], [0, 0, 1, 1], [], []>} : vector<3x3xf32>, vector<3x128xf32>, vector<3x128xf32> -> vector<3x128xf32>
    %679 = vector.extract_strided_slice %678 {offsets = [0, 0], sizes = [1, 128], strides = [1, 1]} : vector<3x128xf32> to vector<1x128xf32>
    %680 = vector.extract_strided_slice %675 {offsets = [0, 0], sizes = [1, 128], strides = [1, 1]} : vector<3x128xf32> to vector<1x128xf32>
    %681 = arith.mulf %679, %680 : vector<1x128xf32>
    %682 = vector.extract_strided_slice %678 {offsets = [1, 0], sizes = [1, 128], strides = [1, 1]} : vector<3x128xf32> to vector<1x128xf32>
    %683 = vector.extract_strided_slice %675 {offsets = [1, 0], sizes = [1, 128], strides = [1, 1]} : vector<3x128xf32> to vector<1x128xf32>
    %684 = arith.mulf %682, %683 : vector<1x128xf32>
    %685 = arith.addf %681, %684 : vector<1x128xf32>
    %686 = vector.extract_strided_slice %678 {offsets = [2, 0], sizes = [1, 128], strides = [1, 1]} : vector<3x128xf32> to vector<1x128xf32>
    %687 = vector.extract_strided_slice %675 {offsets = [2, 0], sizes = [1, 128], strides = [1, 1]} : vector<3x128xf32> to vector<1x128xf32>
    %688 = arith.mulf %686, %687 : vector<1x128xf32>
    %689 = arith.addf %685, %688 : vector<1x128xf32>
    %690 = vector.extract_strided_slice %5 {offsets = [0, 11], sizes = [1, 1], strides = [1, 1]} : vector<1x12xf32> to vector<1x1xf32>
    %cst_201 = arith.constant -5.000000e-01 : f32
    %691 = vector.broadcast %cst_201 : f32 to vector<1x128xf32>
    %692 = arith.mulf %691, %689 : vector<1x128xf32>
    %693 = math.exp %692 : vector<1x128xf32>
    %694 = vector.broadcast %690 : vector<1x1xf32> to vector<1x128xf32>
    %695 = arith.mulf %694, %693 : vector<1x128xf32>
    %c0_202 = arith.constant 0 : index
    %c11_203 = arith.constant 11 : index
    %c0_204 = arith.constant 0 : index
    %c0_205 = arith.constant 0 : index
    %696 = vector.load %arg6[%c0_202, %c11_203, %c0_204, %c0_205] : memref<1x12x32x8xf32, #tpu.memory_space<vmem>>, vector<1x1x32x8xf32>
    %697 = vector.shape_cast %696 : vector<1x1x32x8xf32> to vector<32x8xf32>
    %698 = vector.extract_strided_slice %697 {offsets = [0, 0], sizes = [32, 3], strides = [1, 1]} : vector<32x8xf32> to vector<32x3xf32>
    %cst_206 = arith.constant dense<0.000000e+00> : vector<32x128xf32>
    %699 = tpu.matmul %698, %1, %cst_206 {dimension_numbers = #tpu.dot_dimension_numbers<[1], [0], [0], [1], [0, 0, 1, 1], [], []>} : vector<32x3xf32>, vector<3x128xf32>, vector<32x128xf32> -> vector<32x128xf32>
    %700 = vector.extract_strided_slice %697 {offsets = [0, 3], sizes = [32, 1], strides = [1, 1]} : vector<32x8xf32> to vector<32x1xf32>
    %701 = vector.broadcast %700 : vector<32x1xf32> to vector<32x128xf32>
    %702 = arith.addf %699, %701 : vector<32x128xf32>
    %703 = vector.extract_strided_slice %697 {offsets = [0, 4], sizes = [32, 1], strides = [1, 1]} : vector<32x8xf32> to vector<32x1xf32>
    %704 = vector.broadcast %703 : vector<32x1xf32> to vector<32x128xf32>
    %705 = arith.mulf %704, %702 : vector<32x128xf32>
    %706 = vector.extract_strided_slice %697 {offsets = [0, 5], sizes = [32, 1], strides = [1, 1]} : vector<32x8xf32> to vector<32x1xf32>
    %707 = vector.broadcast %706 : vector<32x1xf32> to vector<32x128xf32>
    %708 = arith.addf %705, %707 : vector<32x128xf32>
    %cst_207 = arith.constant 0.000000e+00 : f32
    %709 = vector.broadcast %cst_207 : f32 to vector<32x128xf32>
    %710 = arith.maximumf %708, %709 : vector<32x128xf32>
    %cst_208 = arith.constant dense<0.000000e+00> : vector<32x128xf32>
    %711 = tpu.matmul %6, %710, %cst_208 {dimension_numbers = #tpu.dot_dimension_numbers<[1], [0], [0], [1], [0, 0, 1, 1], [], []>} : vector<32x32xf32>, vector<32x128xf32>, vector<32x128xf32> -> vector<32x128xf32>
    %712 = vector.broadcast %7 : vector<32x1xf32> to vector<32x128xf32>
    %713 = arith.addf %711, %712 : vector<32x128xf32>
    %714 = vector.extract_strided_slice %697 {offsets = [0, 6], sizes = [32, 1], strides = [1, 1]} : vector<32x8xf32> to vector<32x1xf32>
    %715 = vector.broadcast %714 : vector<32x1xf32> to vector<32x128xf32>
    %716 = arith.mulf %715, %713 : vector<32x128xf32>
    %717 = vector.extract_strided_slice %697 {offsets = [0, 7], sizes = [32, 1], strides = [1, 1]} : vector<32x8xf32> to vector<32x1xf32>
    %718 = vector.broadcast %717 : vector<32x1xf32> to vector<32x128xf32>
    %719 = arith.addf %716, %718 : vector<32x128xf32>
    %cst_209 = arith.constant 0.000000e+00 : f32
    %720 = vector.broadcast %cst_209 : f32 to vector<32x128xf32>
    %721 = arith.maximumf %719, %720 : vector<32x128xf32>
    %cst_210 = arith.constant dense<0.000000e+00> : vector<32x128xf32>
    %722 = tpu.matmul %8, %721, %cst_210 {dimension_numbers = #tpu.dot_dimension_numbers<[1], [0], [0], [1], [0, 0, 1, 1], [], []>} : vector<32x32xf32>, vector<32x128xf32>, vector<32x128xf32> -> vector<32x128xf32>
    %723 = vector.broadcast %9 : vector<32x1xf32> to vector<32x128xf32>
    %724 = arith.addf %722, %723 : vector<32x128xf32>
    %725 = arith.addf %702, %724 : vector<32x128xf32>
    %cst_211 = arith.constant dense<0.000000e+00> : vector<1x128xf32>
    %726 = tpu.matmul %10, %725, %cst_211 {dimension_numbers = #tpu.dot_dimension_numbers<[1], [0], [0], [1], [0, 0, 1, 1], [], []>} : vector<1x32xf32>, vector<32x128xf32>, vector<1x128xf32> -> vector<1x128xf32>
    %727 = vector.broadcast %11 : vector<1x1xf32> to vector<1x128xf32>
    %728 = arith.addf %726, %727 : vector<1x128xf32>
    %cst_212 = arith.constant 1.000000e+00 : f32
    %729 = vector.broadcast %cst_212 : f32 to vector<1x128xf32>
    %730 = arith.addf %729, %728 : vector<1x128xf32>
    %731 = arith.mulf %695, %730 : vector<1x128xf32>
    %732 = arith.addf %672, %731 : vector<1x128xf32>
    %cst_213 = arith.constant -7.000000e-02 : f32
    %733 = vector.broadcast %cst_213 : f32 to vector<1x128xf32>
    %734 = arith.subf %732, %733 : vector<1x128xf32>
    %cst_214 = arith.constant 1.000000e+02 : f32
    %735 = vector.broadcast %cst_214 : f32 to vector<1x128xf32>
    %736 = arith.mulf %735, %734 : vector<1x128xf32>
    %737 = arith.negf %736 : vector<1x128xf32>
    %738 = math.exp %737 : vector<1x128xf32>
    %cst_215 = arith.constant 1.000000e+00 : f32
    %739 = vector.broadcast %cst_215 : f32 to vector<1x128xf32>
    %740 = arith.addf %739, %738 : vector<1x128xf32>
    %741 = arith.divf %739, %740 : vector<1x128xf32>
    %c0_216 = arith.constant 0 : index
    %c0_217 = arith.constant 0 : index
    %c0_218 = arith.constant 0 : index
    %742 = vector.load %arg13[%c0_216, %c0_217, %c0_218] : memref<1x1x128xf32, #tpu.memory_space<vmem>>, vector<1x1x128xf32>
    %743 = vector.shape_cast %742 : vector<1x1x128xf32> to vector<1x128xf32>
    %744 = vector.shape_cast %741 : vector<1x128xf32> to vector<1x1x128xf32>
    tpu.vector_store %arg13[%c0_216, %c0_217, %c0_218], %744 {strides = array<i32>} : memref<1x1x128xf32, #tpu.memory_space<vmem>>, vector<1x1x128xf32>,
    return
  }
  func.func @transform_0(%arg0: i32, %arg1: i32) -> (i32, i32, i32) {
    %c0_i32 = arith.constant 0 : i32
    %c0_i32_0 = arith.constant 0 : i32
    return %arg0, %c0_i32, %arg1 : i32, i32, i32
  }
  func.func @transform_1(%arg0: i32, %arg1: i32) -> (i32, i32, i32) {
    %c0_i32 = arith.constant 0 : i32
    %c0_i32_0 = arith.constant 0 : i32
    %c0_i32_1 = arith.constant 0 : i32
    return %arg0, %c0_i32, %c0_i32_0 : i32, i32, i32
  }
  func.func @transform_2(%arg0: i32, %arg1: i32) -> (i32, i32, i32, i32) {
    %c0_i32 = arith.constant 0 : i32
    %c0_i32_0 = arith.constant 0 : i32
    %c0_i32_1 = arith.constant 0 : i32
    %c0_i32_2 = arith.constant 0 : i32
    return %arg0, %c0_i32, %c0_i32_0, %c0_i32_1 : i32, i32, i32, i32
  }
  func.func @transform_3(%arg0: i32, %arg1: i32) -> (i32, i32, i32) {
    %c0_i32 = arith.constant 0 : i32
    %c0_i32_0 = arith.constant 0 : i32
    %c0_i32_1 = arith.constant 0 : i32
    return %arg0, %c0_i32, %c0_i32_0 : i32, i32, i32
  }
  func.func @transform_4(%arg0: i32, %arg1: i32) -> (i32, i32, i32, i32) {
    %c0_i32 = arith.constant 0 : i32
    %c0_i32_0 = arith.constant 0 : i32
    %c0_i32_1 = arith.constant 0 : i32
    %c0_i32_2 = arith.constant 0 : i32
    return %arg0, %c0_i32, %c0_i32_0, %c0_i32_1 : i32, i32, i32, i32
  }
  func.func @transform_5(%arg0: i32, %arg1: i32) -> (i32, i32) {
    %c0_i32 = arith.constant 0 : i32
    %c0_i32_0 = arith.constant 0 : i32
    %c0_i32_1 = arith.constant 0 : i32
    return %c0_i32, %c0_i32_0 : i32, i32
  }
  func.func @transform_6(%arg0: i32, %arg1: i32) -> (i32, i32) {
    %c0_i32 = arith.constant 0 : i32
    %c0_i32_0 = arith.constant 0 : i32
    %c0_i32_1 = arith.constant 0 : i32
    return %c0_i32, %c0_i32_0 : i32, i32
  }
  func.func @transform_7(%arg0: i32, %arg1: i32) -> (i32, i32) {
    %c0_i32 = arith.constant 0 : i32
    %c0_i32_0 = arith.constant 0 : i32
    %c0_i32_1 = arith.constant 0 : i32
    return %c0_i32, %c0_i32_0 : i32, i32
  }
  func.func @transform_8(%arg0: i32, %arg1: i32) -> (i32, i32) {
    %c0_i32 = arith.constant 0 : i32
    %c0_i32_0 = arith.constant 0 : i32
    %c0_i32_1 = arith.constant 0 : i32
    return %c0_i32, %c0_i32_0 : i32, i32
  }
  func.func @transform_9(%arg0: i32, %arg1: i32) -> (i32, i32) {
    %c0_i32 = arith.constant 0 : i32
    %c0_i32_0 = arith.constant 0 : i32
    %c0_i32_1 = arith.constant 0 : i32
    return %c0_i32, %c0_i32_0 : i32, i32
  }
  func.func @transform_10(%arg0: i32, %arg1: i32) -> (i32, i32) {
    %c0_i32 = arith.constant 0 : i32
    %c0_i32_0 = arith.constant 0 : i32
    %c0_i32_1 = arith.constant 0 : i32
    return %c0_i32, %c0_i32_0 : i32, i32
  }
  func.func @transform_11(%arg0: i32, %arg1: i32) -> (i32, i32, i32) {
    %c0_i32 = arith.constant 0 : i32
    %c0_i32_0 = arith.constant 0 : i32
    return %arg0, %c0_i32, %arg1 : i32, i32, i32
  }
}

</mosaic_0001>

<llo_original>
// kernel: neg.7
$region0: #{neg.7}
  #allocation0 [shape = 's32[1]{0}', space=sflag, size = 0x4, scoped, tag = 'scoped memory for neg.7']
  %s0 = inlined_call_operand.vmem [shape: f32[2,8,3], index: 0, kind: input, shape index: {}]
  %s1 = inlined_call_operand.vmem [shape: f32[2,8,3], index: 1, kind: output, shape index: {}]
  %v2 = vld [vmem:[%s0] sm:$0x7]
  %3 = xla_tuple %v2
  %4 = xla_tuple %3
  %v5 = vxor.u32 %v2, 2147483648
  %6 = xla_tuple %v5
  %7 = vst [vmem:[%s1] sm:$0xf] %v5
  %s8 = scalar_lea.vmem %s0, 4
  %v9 = vld [vmem:[%s8] sm:$0x7]
  %10 = xla_tuple %v9
  %11 = xla_tuple %10
  %v12 = vxor.u32 %v9, 2147483648
  %13 = xla_tuple %v12
  %s14 = scalar_lea.vmem %s1, 4
  %15 = vst [vmem:[%s14] sm:$0xf] %v12

// kernel: ldif_decoder_forward.1
$region0: #{ldif_decoder_forward.1}
  #allocation0 [shape = 'u32[]', space=smem, size = 0x4, offset = 0x4, fixed_abs, tag = 'smem constant byte address 0x4 - core index']
  #allocation1 [shape = 'u32[144,128]{1,0:T(1,128)}', space=vmem, size = 0x12000, scoped, tag = 'internal scratch']
  #allocation2 [shape = 'f32[1,1]{1,0:T(1,128)S(1)}', space=vmem, size = 0x200, scoped, tag = 'scoped memory for ldif_decoder_forward.1']
  %s0 = inlined_call_operand.vmem [shape: f32[2,3,128], index: 0, kind: input, shape index: {}]
  %s1 = inlined_call_operand.vmem [shape: f32[2,3,12], index: 1, kind: input, shape index: {}]
  %s2 = inlined_call_operand.vmem [shape: f32[2,12,3,3], index: 2, kind: input, shape index: {}]
  %s3 = inlined_call_operand.vmem [shape: f32[2,1,12], index: 3, kind: input, shape index: {}]
  %s4 = inlined_call_operand.vmem [shape: f32[2,12,32,8], index: 4, kind: input, shape index: {}]
  %s5 = inlined_call_operand.vmem [shape: f32[32,32], index: 5, kind: input, shape index: {}]
  %s6 = inlined_call_operand.vmem [shape: f32[32,1], index: 6, kind: input, shape index: {}]
  %s7 = inlined_call_operand.vmem [shape: f32[32,32], index: 7, kind: input, shape index: {}]
  %s8 = inlined_call_operand.vmem [shape: f32[32,1], index: 8, kind: input, shape index: {}]
  %s9 = inlined_call_operand.vmem [shape: f32[1,32], index: 9, kind: input, shape index: {}]
  %s10 = inlined_call_operand.<no memory space> [shape: f32[1,1], index: 10, kind: input, shape index: {}]
  %s11 = inlined_call_operand.hbm [shape: f32[2,1,128], index: 11, kind: output, shape index: {}]
  %s12 = sld [smem:[#allocation0]]
  $region77: #{ldif_decoder_forward.1} parent=0
    _
  %s14 = ssub.s32 1, %s12
  %s15 = scalar_select 0, %s14, %s12
  %v16 = vstv %s10
  %17 = vst [vmem:[#allocation2] sm:$0x1] %v16
  $region1: #{ldif_decoder_forward.1} parent=0
    #allocation3 [shape = 'u8[1024]{0}', space=vmem, size = 0x400, scoped, tag = 'output window, operand 0']
    #allocation4 [shape = 's32[2]{0}', space=sflag, size = 0x8, scoped, tag = 'scoped memory for ldif_decoder_forward.1']
    %18 = vsyncpa [#allocation4], 0
    %s19 = scalar_lea.sflag [#allocation4], 1
    %20 = vsyncpa %s19, 0
    loop: start=0, step=1, limit=4
    $region2: #{ldif_decoder_forward.1} parent=1 // loop_pre_header
      _
    $region3: #{ldif_decoder_forward.1} parent=1 // loop_header
      %s22 = sphi 0, %s26
      %p23 = scmp.ge.s32.totalorder %s22, 4
      %s29 = sphi 0, %s41
      %s30 = sphi 0, %s37
      %s31 = sphi 0, %s29
      %s32 = sphi 0, %s30
      %s33 = sphi 0, %s31
      %s34 = sphi 0, %s32
      %s46 = sphi 0, %s48
      %s49 = sphi 0, %s46
      %s50 = sphi 0, %s49
      %s66 = sphi 0, %s50
      %s72 = sphi 0, %s74
      %s75 = sphi 0, %s72
      %s76 = sphi 0, %s75
      %s92 = sphi 0, %s76
      %s98 = sphi 0, %s100
      %s101 = sphi 0, %s98
      %s102 = sphi 0, %s101
      %s118 = sphi 0, %s102
      %s124 = sphi 0, %s126
      %s127 = sphi 0, %s124
      %s128 = sphi 0, %s127
      %s144 = sphi 0, %s128
      %s150 = sphi 0, %s152
      %s153 = sphi 0, %s150
      %s154 = sphi 0, %s153
      %s170 = sphi 0, %s154
      %s174 = sphi 0, %s174
      %s176 = sphi 0, %s174
      %s177 = sphi 0, %s176
      %s191 = sphi 0, %s177
      %s195 = sphi 0, %s195
      %s197 = sphi 0, %s195
      %s198 = sphi 0, %s197
      %s212 = sphi 0, %s198
      %s216 = sphi 0, %s216
      %s218 = sphi 0, %s216
      %s219 = sphi 0, %s218
      %s233 = sphi 0, %s219
      %s237 = sphi 0, %s237
      %s239 = sphi 0, %s237
      %s240 = sphi 0, %s239
      %s254 = sphi 0, %s240
      %s258 = sphi 0, %s258
      %s260 = sphi 0, %s258
      %s261 = sphi 0, %s260
      %s275 = sphi 0, %s261
      %s279 = sphi 0, %s279
      %s281 = sphi 0, %s279
      %s282 = sphi 0, %s281
      %s296 = sphi 0, %s282
      %s304 = sphi 0, %s306
      %s307 = sphi 0, %s304
      %s308 = sphi 0, %s307
      %s324 = sphi 0, %s308
    $region4: #{ldif_decoder_forward.1} parent=1 // loop_header_branch
      %25 = sbr.rel (%p23) target = $region8
    $region5: #{ldif_decoder_forward.1} parent=1 // loop_body
      %s27 = ssub.s32 %s22, 1
      %s28 = ssub.s32 %s22, 2
      %s35 = sadd.s32 1, %s30
      %p36 = scmp.ge.s32.totalorder %s35, 1
      %s37 = scalar_select %p36, 0, %s35
      %s38 = sadd.s32 1, %s29
      %s39 = scalar_select %p36, %s38, %s29
      %p40 = scmp.ge.s32.totalorder %s39, 2
      %s41 = scalar_select %p40, 0, %s39
      %s42 = ssub.s32 %s29, %s41
      %s43 = ssub.s32 %s30, %s37
      %s44 = sor.u32 %s42, %s43
      %p45 = scmp.eq.s32.totalorder %s44, 0
      %s47 = sadd.s32 %s46, 1
      %s48 = scalar_select %p45, %s46, %s47
      %p51 = pneg %p45
      %p52 = scmp.eq.s32.totalorder %s22, 1
      %p53 = por %p51, %p52
      %p54 = scmp.ne.s32.totalorder %s46, %s49
      %p55 = scmp.eq.s32.totalorder %s22, 0
      %p56 = por %p54, %p55
      %p57 = scmp.ne.s32.totalorder %s46, %s49
      %p58 = scmp.eq.s32.totalorder %s27, 1
      %p59 = por %p57, %p58
      %p60 = scmp.ne.s32.totalorder %s49, %s50
      %p61 = scmp.eq.s32.totalorder %s27, 0
      %p62 = por %p60, %p61
      %p63 = scmp.ne.s32.totalorder %s49, %s50
      %p64 = scmp.eq.s32.totalorder %s28, 1
      %p65 = por %p63, %p64
      %p67 = scmp.ne.s32.totalorder %s50, %s66
      %p68 = scmp.eq.s32.totalorder %s28, 0
      %p69 = por %p67, %p68
      %s70 = ssub.s32 %s29, %s41
      %p71 = scmp.eq.s32.totalorder %s70, 0
      %s73 = sadd.s32 %s72, 1
      %s74 = scalar_select %p71, %s72, %s73
      %p77 = pneg %p71
      %p78 = scmp.eq.s32.totalorder %s22, 1
      %p79 = por %p77, %p78
      %p80 = scmp.ne.s32.totalorder %s72, %s75
      %p81 = scmp.eq.s32.totalorder %s22, 0
      %p82 = por %p80, %p81
      %p83 = scmp.ne.s32.totalorder %s72, %s75
      %p84 = scmp.eq.s32.totalorder %s27, 1
      %p85 = por %p83, %p84
      %p86 = scmp.ne.s32.totalorder %s75, %s76
      %p87 = scmp.eq.s32.totalorder %s27, 0
      %p88 = por %p86, %p87
      %p89 = scmp.ne.s32.totalorder %s75, %s76
      %p90 = scmp.eq.s32.totalorder %s28, 1
      %p91 = por %p89, %p90
      %p93 = scmp.ne.s32.totalorder %s76, %s92
      %p94 = scmp.eq.s32.totalorder %s28, 0
      %p95 = por %p93, %p94
      %s96 = ssub.s32 %s29, %s41
      %p97 = scmp.eq.s32.totalorder %s96, 0
      %s99 = sadd.s32 %s98, 1
      %s100 = scalar_select %p97, %s98, %s99
      %p103 = pneg %p97
      %p104 = scmp.eq.s32.totalorder %s22, 1
      %p105 = por %p103, %p104
      %p106 = scmp.ne.s32.totalorder %s98, %s101
      %p107 = scmp.eq.s32.totalorder %s22, 0
      %p108 = por %p106, %p107
      %p109 = scmp.ne.s32.totalorder %s98, %s101
      %p110 = scmp.eq.s32.totalorder %s27, 1
      %p111 = por %p109, %p110
      %p112 = scmp.ne.s32.totalorder %s101, %s102
      %p113 = scmp.eq.s32.totalorder %s27, 0
      %p114 = por %p112, %p113
      %p115 = scmp.ne.s32.totalorder %s101, %s102
      %p116 = scmp.eq.s32.totalorder %s28, 1
      %p117 = por %p115, %p116
      %p119 = scmp.ne.s32.totalorder %s102, %s118
      %p120 = scmp.eq.s32.totalorder %s28, 0
      %p121 = por %p119, %p120
      %s122 = ssub.s32 %s29, %s41
      %p123 = scmp.eq.s32.totalorder %s122, 0
      %s125 = sadd.s32 %s124, 1
      %s126 = scalar_select %p123, %s124, %s125
      %p129 = pneg %p123
      %p130 = scmp.eq.s32.totalorder %s22, 1
      %p131 = por %p129, %p130
      %p132 = scmp.ne.s32.totalorder %s124, %s127
      %p133 = scmp.eq.s32.totalorder %s22, 0
      %p134 = por %p132, %p133
      %p135 = scmp.ne.s32.totalorder %s124, %s127
      %p136 = scmp.eq.s32.totalorder %s27, 1
      %p137 = por %p135, %p136
      %p138 = scmp.ne.s32.totalorder %s127, %s128
      %p139 = scmp.eq.s32.totalorder %s27, 0
      %p140 = por %p138, %p139
      %p141 = scmp.ne.s32.totalorder %s127, %s128
      %p142 = scmp.eq.s32.totalorder %s28, 1
      %p143 = por %p141, %p142
      %p145 = scmp.ne.s32.totalorder %s128, %s144
      %p146 = scmp.eq.s32.totalorder %s28, 0
      %p147 = por %p145, %p146
      %s148 = ssub.s32 %s29, %s41
      %p149 = scmp.eq.s32.totalorder %s148, 0
      %s151 = sadd.s32 %s150, 1
      %s152 = scalar_select %p149, %s150, %s151
      %p155 = pneg %p149
      %p156 = scmp.eq.s32.totalorder %s22, 1
      %p157 = por %p155, %p156
      %p158 = scmp.ne.s32.totalorder %s150, %s153
      %p159 = scmp.eq.s32.totalorder %s22, 0
      %p160 = por %p158, %p159
      %p161 = scmp.ne.s32.totalorder %s150, %s153
      %p162 = scmp.eq.s32.totalorder %s27, 1
      %p163 = por %p161, %p162
      %p164 = scmp.ne.s32.totalorder %s153, %s154
      %p165 = scmp.eq.s32.totalorder %s27, 0
      %p166 = por %p164, %p165
      %p167 = scmp.ne.s32.totalorder %s153, %s154
      %p168 = scmp.eq.s32.totalorder %s28, 1
      %p169 = por %p167, %p168
      %p171 = scmp.ne.s32.totalorder %s154, %s170
      %p172 = scmp.eq.s32.totalorder %s28, 0
      %p173 = por %p171, %p172
      %s175 = sadd.s32 %s174, 1
      %p178 = scmp.eq.s32.totalorder %s22, 1
      %p179 = scmp.ne.s32.totalorder %s174, %s176
      %p180 = scmp.eq.s32.totalorder %s22, 0
      %p181 = por %p179, %p180
      %p182 = scmp.ne.s32.totalorder %s174, %s176
      %p183 = scmp.eq.s32.totalorder %s27, 1
      %p184 = por %p182, %p183
      %p185 = scmp.ne.s32.totalorder %s176, %s177
      %p186 = scmp.eq.s32.totalorder %s27, 0
      %p187 = por %p185, %p186
      %p188 = scmp.ne.s32.totalorder %s176, %s177
      %p189 = scmp.eq.s32.totalorder %s28, 1
      %p190 = por %p188, %p189
      %p192 = scmp.ne.s32.totalorder %s177, %s191
      %p193 = scmp.eq.s32.totalorder %s28, 0
      %p194 = por %p192, %p193
      %s196 = sadd.s32 %s195, 1
      %p199 = scmp.eq.s32.totalorder %s22, 1
      %p200 = scmp.ne.s32.totalorder %s195, %s197
      %p201 = scmp.eq.s32.totalorder %s22, 0
      %p202 = por %p200, %p201
      %p203 = scmp.ne.s32.totalorder %s195, %s197
      %p204 = scmp.eq.s32.totalorder %s27, 1
      %p205 = por %p203, %p204
      %p206 = scmp.ne.s32.totalorder %s197, %s198
      %p207 = scmp.eq.s32.totalorder %s27, 0
      %p208 = por %p206, %p207
      %p209 = scmp.ne.s32.totalorder %s197, %s198
      %p210 = scmp.eq.s32.totalorder %s28, 1
      %p211 = por %p209, %p210
      %p213 = scmp.ne.s32.totalorder %s198, %s212
      %p214 = scmp.eq.s32.totalorder %s28, 0
      %p215 = por %p213, %p214
      %s217 = sadd.s32 %s216, 1
      %p220 = scmp.eq.s32.totalorder %s22, 1
      %p221 = scmp.ne.s32.totalorder %s216, %s218
      %p222 = scmp.eq.s32.totalorder %s22, 0
      %p223 = por %p221, %p222
      %p224 = scmp.ne.s32.totalorder %s216, %s218
      %p225 = scmp.eq.s32.totalorder %s27, 1
      %p226 = por %p224, %p225
      %p227 = scmp.ne.s32.totalorder %s218, %s219
      %p228 = scmp.eq.s32.totalorder %s27, 0
      %p229 = por %p227, %p228
      %p230 = scmp.ne.s32.totalorder %s218, %s219
      %p231 = scmp.eq.s32.totalorder %s28, 1
      %p232 = por %p230, %p231
      %p234 = scmp.ne.s32.totalorder %s219, %s233
      %p235 = scmp.eq.s32.totalorder %s28, 0
      %p236 = por %p234, %p235
      %s238 = sadd.s32 %s237, 1
      %p241 = scmp.eq.s32.totalorder %s22, 1
      %p242 = scmp.ne.s32.totalorder %s237, %s239
      %p243 = scmp.eq.s32.totalorder %s22, 0
      %p244 = por %p242, %p243
      %p245 = scmp.ne.s32.totalorder %s237, %s239
      %p246 = scmp.eq.s32.totalorder %s27, 1
      %p247 = por %p245, %p246
      %p248 = scmp.ne.s32.totalorder %s239, %s240
      %p249 = scmp.eq.s32.totalorder %s27, 0
      %p250 = por %p248, %p249
      %p251 = scmp.ne.s32.totalorder %s239, %s240
      %p252 = scmp.eq.s32.totalorder %s28, 1
      %p253 = por %p251, %p252
      %p255 = scmp.ne.s32.totalorder %s240, %s254
      %p256 = scmp.eq.s32.totalorder %s28, 0
      %p257 = por %p255, %p256
      %s259 = sadd.s32 %s258, 1
      %p262 = scmp.eq.s32.totalorder %s22, 1
      %p263 = scmp.ne.s32.totalorder %s258, %s260
      %p264 = scmp.eq.s32.totalorder %s22, 0
      %p265 = por %p263, %p264
      %p266 = scmp.ne.s32.totalorder %s258, %s260
      %p267 = scmp.eq.s32.totalorder %s27, 1
      %p268 = por %p266, %p267
      %p269 = scmp.ne.s32.totalorder %s260, %s261
      %p270 = scmp.eq.s32.totalorder %s27, 0
      %p271 = por %p269, %p270
      %p272 = scmp.ne.s32.totalorder %s260, %s261
      %p273 = scmp.eq.s32.totalorder %s28, 1
      %p274 = por %p272, %p273
      %p276 = scmp.ne.s32.totalorder %s261, %s275
      %p277 = scmp.eq.s32.totalorder %s28, 0
      %p278 = por %p276, %p277
      %s280 = sadd.s32 %s279, 1
      %p283 = scmp.eq.s32.totalorder %s22, 1
      %p284 = scmp.ne.s32.totalorder %s279, %s281
      %p285 = scmp.eq.s32.totalorder %s22, 0
      %p286 = por %p284, %p285
      %p287 = scmp.ne.s32.totalorder %s279, %s281
      %p288 = scmp.eq.s32.totalorder %s27, 1
      %p289 = por %p287, %p288
      %p290 = scmp.ne.s32.totalorder %s281, %s282
      %p291 = scmp.eq.s32.totalorder %s27, 0
      %p292 = por %p290, %p291
      %p293 = scmp.ne.s32.totalorder %s281, %s282
      %p294 = scmp.eq.s32.totalorder %s28, 1
      %p295 = por %p293, %p294
      %p297 = scmp.ne.s32.totalorder %s282, %s296
      %p298 = scmp.eq.s32.totalorder %s28, 0
      %p299 = por %p297, %p298
      %s300 = ssub.s32 %s29, %s41
      %s301 = ssub.s32 %s30, %s37
      %s302 = sor.u32 %s300, %s301
      %p303 = scmp.eq.s32.totalorder %s302, 0
      %s305 = sadd.s32 %s304, 1
      %s306 = scalar_select %p303, %s304, %s305
      %p309 = pneg %p303
      %p310 = scmp.eq.s32.totalorder %s22, 1
      %p311 = por %p309, %p310
      %p312 = scmp.ne.s32.totalorder %s304, %s307
      %p313 = scmp.eq.s32.totalorder %s22, 0
      %p314 = por %p312, %p313
      %p315 = scmp.ne.s32.totalorder %s304, %s307
      %p316 = scmp.eq.s32.totalorder %s27, 1
      %p317 = por %p315, %p316
      %p318 = scmp.ne.s32.totalorder %s307, %s308
      %p319 = scmp.eq.s32.totalorder %s27, 0
      %p320 = por %p318, %p319
      %p321 = scmp.ne.s32.totalorder %s307, %s308
      %p322 = scmp.eq.s32.totalorder %s28, 1
      %p323 = por %p321, %p322
      %p325 = scmp.ne.s32.totalorder %s308, %s324
      %p326 = scmp.eq.s32.totalorder %s28, 0
      %p327 = por %p325, %p326
      %p328 = scmp.le.s32.totalorder 1, %s22
      %p329 = scmp.lt.s32.totalorder %s22, 3
      %p330 = pnand %p328, %p329
      %p331 = pneg %p330
      // Predicated region
      $region9: #{ldif_decoder_forward.1} parent=5 // pred_check
        _
      $region10: #{ldif_decoder_forward.1} parent=5 // pred_check_branch
        %333 = sbr.rel (%p330) target = $region12
      $region11: #{ldif_decoder_forward.1} parent=5 // pred_region
        %s334 = ssub.s32 %s22, 1
        // Predicated region
        $region13: #{ldif_decoder_forward.1} parent=11 // pred_check
          %p335 = pneg %p187
        $region14: #{ldif_decoder_forward.1} parent=11 // pred_check_branch
          %337 = sbr.rel (%p335) target = $region16
        $region15: #{ldif_decoder_forward.1} parent=11 // pred_region
          _
        $region16: #{ldif_decoder_forward.1} parent=11 // pred_fallthru
          _
        // Predicated region
        $region17: #{ldif_decoder_forward.1} parent=11 // pred_check
          %p338 = pneg %p208
        $region18: #{ldif_decoder_forward.1} parent=11 // pred_check_branch
          %340 = sbr.rel (%p338) target = $region20
        $region19: #{ldif_decoder_forward.1} parent=11 // pred_region
          _
        $region20: #{ldif_decoder_forward.1} parent=11 // pred_fallthru
          _
        // Predicated region
        $region21: #{ldif_decoder_forward.1} parent=11 // pred_check
          %p341 = pneg %p229
        $region22: #{ldif_decoder_forward.1} parent=11 // pred_check_branch
          %343 = sbr.rel (%p341) target = $region24
        $region23: #{ldif_decoder_forward.1} parent=11 // pred_region
          _
        $region24: #{ldif_decoder_forward.1} parent=11 // pred_fallthru
          _
        // Predicated region
        $region25: #{ldif_decoder_forward.1} parent=11 // pred_check
          %p344 = pneg %p250
        $region26: #{ldif_decoder_forward.1} parent=11 // pred_check_branch
          %346 = sbr.rel (%p344) target = $region28
        $region27: #{ldif_decoder_forward.1} parent=11 // pred_region
          _
        $region28: #{ldif_decoder_forward.1} parent=11 // pred_fallthru
          _
        // Predicated region
        $region29: #{ldif_decoder_forward.1} parent=11 // pred_check
          %p347 = pneg %p271
        $region30: #{ldif_decoder_forward.1} parent=11 // pred_check_branch
          %349 = sbr.rel (%p347) target = $region32
        $region31: #{ldif_decoder_forward.1} parent=11 // pred_region
          _
        $region32: #{ldif_decoder_forward.1} parent=11 // pred_fallthru
          _
        // Predicated region
        $region33: #{ldif_decoder_forward.1} parent=11 // pred_check
          %p350 = pneg %p292
        $region34: #{ldif_decoder_forward.1} parent=11 // pred_check_branch
          %352 = sbr.rel (%p350) target = $region36
        $region35: #{ldif_decoder_forward.1} parent=11 // pred_region
          _
        $region36: #{ldif_decoder_forward.1} parent=11 // pred_fallthru
          _
      $region12: #{ldif_decoder_forward.1} parent=5 // pred_fallthru
        _
      %p353 = scmp.lt.s32.totalorder %s22, 2
      // Predicated region
      $region37: #{ldif_decoder_forward.1} parent=5 // pred_check
        %p354 = pneg %p353
      $region38: #{ldif_decoder_forward.1} parent=5 // pred_check_branch
        %356 = sbr.rel (%p354) target = $region40
      $region39: #{ldif_decoder_forward.1} parent=5 // pred_region
        // Predicated region
        $region41: #{ldif_decoder_forward.1} parent=39 // pred_check
          %p357 = pneg %p56
        $region42: #{ldif_decoder_forward.1} parent=39 // pred_check_branch
          %359 = sbr.rel (%p357) target = $region44
        $region43: #{ldif_decoder_forward.1} parent=39 // pred_region
          %p360 = scmp.lt.s32.totalorder %s29, 1
          %s361 = scalar_select %p360, %s29, 1
          %p362 = scmp.lt.s32.totalorder %s30, 0
          %s363 = scalar_select %p362, %s30, 0
          %s364 = sadd.s32 %s363, %s361
          %s365 = smul.addr %s364, 4
          %s366 = scalar_lea.vmem %s0, %s365
        $region44: #{ldif_decoder_forward.1} parent=39 // pred_fallthru
          _
        // Predicated region
        $region45: #{ldif_decoder_forward.1} parent=39 // pred_check
          %p367 = pneg %p82
        $region46: #{ldif_decoder_forward.1} parent=39 // pred_check_branch
          %369 = sbr.rel (%p367) target = $region48
        $region47: #{ldif_decoder_forward.1} parent=39 // pred_region
          %p370 = scmp.lt.s32.totalorder %s29, 1
          %s371 = scalar_select %p370, %s29, 1
          %s372 = smul.addr %s371, 4
          %s373 = scalar_lea.vmem %s1, %s372
        $region48: #{ldif_decoder_forward.1} parent=39 // pred_fallthru
          _
        // Predicated region
        $region49: #{ldif_decoder_forward.1} parent=39 // pred_check
          %p374 = pneg %p108
        $region50: #{ldif_decoder_forward.1} parent=39 // pred_check_branch
          %376 = sbr.rel (%p374) target = $region52
        $region51: #{ldif_decoder_forward.1} parent=39 // pred_region
          %p377 = scmp.lt.s32.totalorder %s29, 1
          %s378 = scalar_select %p377, %s29, 1
          %s379 = smul.addr %s378, 12
          %s380 = smul.addr %s379, 4
          %s381 = scalar_lea.vmem %s2, %s380
        $region52: #{ldif_decoder_forward.1} parent=39 // pred_fallthru
          _
        // Predicated region
        $region53: #{ldif_decoder_forward.1} parent=39 // pred_check
          %p382 = pneg %p134
        $region54: #{ldif_decoder_forward.1} parent=39 // pred_check_branch
          %384 = sbr.rel (%p382) target = $region56
        $region55: #{ldif_decoder_forward.1} parent=39 // pred_region
          %p385 = scmp.lt.s32.totalorder %s29, 1
          %s386 = scalar_select %p385, %s29, 1
          %s387 = scalar_lea.vmem %s3, %s386
        $region56: #{ldif_decoder_forward.1} parent=39 // pred_fallthru
          _
        // Predicated region
        $region57: #{ldif_decoder_forward.1} parent=39 // pred_check
          %p388 = pneg %p160
        $region58: #{ldif_decoder_forward.1} parent=39 // pred_check_branch
          %390 = sbr.rel (%p388) target = $region60
        $region59: #{ldif_decoder_forward.1} parent=39 // pred_region
          %p391 = scmp.lt.s32.totalorder %s29, 1
          %s392 = scalar_select %p391, %s29, 1
          %s393 = smul.addr %s392, 48
          %s394 = smul.addr %s393, 8
          %s395 = scalar_lea.vmem %s4, %s394
        $region60: #{ldif_decoder_forward.1} parent=39 // pred_fallthru
          _
      $region40: #{ldif_decoder_forward.1} parent=5 // pred_fallthru
        _
      %p396 = scmp.le.s32.totalorder 1, %s22
      %p397 = scmp.lt.s32.totalorder %s22, 3
      %p398 = pnand %p396, %p397
      %p399 = pneg %p398
      // Predicated region
      $region61: #{ldif_decoder_forward.1} parent=5 // pred_check
        _
      $region62: #{ldif_decoder_forward.1} parent=5 // pred_check_branch
        %401 = sbr.rel (%p398) target = $region64
      $region63: #{ldif_decoder_forward.1} parent=5 // pred_region
        %s402 = ssub.s32 %s22, 1
        %p403 = scmp.lt.s32.totalorder %s31, 1
        %s404 = scalar_select %p403, %s31, 1
        %p405 = scmp.lt.s32.totalorder %s32, 0
        %s406 = scalar_select %p405, %s32, 0
        %s407 = sadd.s32 %s406, %s404
        %s408 = smul.addr %s407, 4
        %s409 = scalar_lea.vmem %s0, %s408
        %p410 = pneg %p62
        %p411 = pneg %p59
        %p412 = scmp.lt.s32.totalorder %s31, 1
        %s413 = scalar_select %p412, %s31, 1
        %s414 = smul.addr %s413, 4
        %s415 = scalar_lea.vmem %s1, %s414
        %p416 = pneg %p88
        %p417 = pneg %p85
        %p418 = scmp.lt.s32.totalorder %s31, 1
        %s419 = scalar_select %p418, %s31, 1
        %s420 = smul.addr %s419, 12
        %s421 = smul.addr %s420, 4
        %s422 = scalar_lea.vmem %s2, %s421
        %p423 = pneg %p114
        %p424 = pneg %p111
        %p425 = scmp.lt.s32.totalorder %s31, 1
        %s426 = scalar_select %p425, %s31, 1
        %s427 = scalar_lea.vmem %s3, %s426
        %p428 = pneg %p140
        %p429 = pneg %p137
        %p430 = scmp.lt.s32.totalorder %s31, 1
        %s431 = scalar_select %p430, %s31, 1
        %s432 = smul.addr %s431, 48
        %s433 = smul.addr %s432, 8
        %s434 = scalar_lea.vmem %s4, %s433
        %p435 = pneg %p166
        %p436 = pneg %p163
        %p437 = pneg %p187
        %p438 = pneg %p184
        %p439 = pneg %p208
        %p440 = pneg %p205
        %p441 = pneg %p229
        %p442 = pneg %p226
        %p443 = pneg %p250
        %p444 = pneg %p247
        %p445 = pneg %p271
        %p446 = pneg %p268
        %p447 = pneg %p292
        %p448 = pneg %p289
        %p449 = pneg %p320
        %p450 = pneg %p317
        %s451 = sand.u32 %s307, 1
        %s452 = scalar_lea.sflag [#allocation4], %s451
        %s453 = sand.u32 %s307, 1
        %s454 = scalar_lea.vmem [#allocation3], %s453
        %p455 = scmp.lt.s32.totalorder %s31, 1
        %s456 = scalar_select %p455, %s31, 1
        %p457 = scmp.lt.s32.totalorder %s32, 0
        %s458 = scalar_select %p457, %s32, 0
        %s459 = sadd.s32 %s458, %s456
        %s460 = smul.addr %s459, 4
        %s461 = scalar_lea.vmem %s0, %s460
        %p462 = scmp.lt.s32.totalorder %s31, 1
        %s463 = scalar_select %p462, %s31, 1
        %s464 = smul.addr %s463, 4
        %s465 = scalar_lea.vmem %s1, %s464
        %p466 = scmp.lt.s32.totalorder %s31, 1
        %s467 = scalar_select %p466, %s31, 1
        %s468 = smul.addr %s467, 12
        %s469 = smul.addr %s468, 4
        %s470 = scalar_lea.vmem %s2, %s469
        %p471 = scmp.lt.s32.totalorder %s31, 1
        %s472 = scalar_select %p471, %s31, 1
        %s473 = scalar_lea.vmem %s3, %s472
        %p474 = scmp.lt.s32.totalorder %s31, 1
        %s475 = scalar_select %p474, %s31, 1
        %s476 = smul.addr %s475, 48
        %s477 = smul.addr %s476, 8
        %s478 = scalar_lea.vmem %s4, %s477
        %v479 = vld [vmem:[%s461] sm:$0x7]
        %v480 = vld [vmem:[%s465] sm:$0x7]
        %v481 = vld [vmem:[%s473] sm:$0x1]
        %v482 = vld [vmem:[%s5] sm:$0xff]
        %v483 = vld [vmem:[%s5 + $0x8] sm:$0xff]
        %v484 = vld [vmem:[%s5 + $0x10] sm:$0xff]
        %v485 = vld [vmem:[%s5 + $0x18] sm:$0xff]
        %v486 = vld [vmem:[%s6] sm:$0xff]
        %v487 = vld [vmem:[%s6 + $0x8] sm:$0xff]
        %v488 = vld [vmem:[%s6 + $0x10] sm:$0xff]
        %v489 = vld [vmem:[%s6 + $0x18] sm:$0xff]
        %v490 = vld [vmem:[%s7] sm:$0xff]
        %v491 = vld [vmem:[%s7 + $0x8] sm:$0xff]
        %v492 = vld [vmem:[%s7 + $0x10] sm:$0xff]
        %v493 = vld [vmem:[%s7 + $0x18] sm:$0xff]
        %v494 = vld [vmem:[%s8] sm:$0xff]
        %v495 = vld [vmem:[%s8 + $0x8] sm:$0xff]
        %v496 = vld [vmem:[%s8 + $0x10] sm:$0xff]
        %v497 = vld [vmem:[%s8 + $0x18] sm:$0xff]
        %v498 = vld [vmem:[%s9] sm:$0x1]
        %v499 = vld [vmem:[#allocation2] sm:$0x1]
        %501 = vset.pattern.permute.xlu0 0
        %502 = vperm.xlu0 %501, %v480
        %v503 = vpop.permute.xlu0 %502
        %v505 = vsub.f32 %v479, %v503
        %v506 = vld [vmem:[%s470] sm:$0x7]
        %vm507 = vcmask 23552
        %v509 = vsel %vm507, %v506, 0
        %vm511 = vcmask 1042432
        %v513 = vsel %vm511, %v505, 0
        %515 = vmatprep.subr.mxu0 0.0
        %516 = vmatpush1.msra.mxu0 0.0
        %517 = vmatprep.subr.mxu0 0.0
        %518 = vmatpush1.msra.mxu0 0.0
        %519 = vmatprep.subr.mxu0 0.0
        %520 = vmatpush1.msra.mxu0 0.0
        %521 = vmatprep.subr.mxu0 0.0
        %522 = vmatpush1.msra.mxu0 0.0
        %523 = vmatprep.subr.mxu0 0.0
        %524 = vmatpush1.msra.mxu0 0.0
        %525 = vmatprep.subr.mxu0 0.0
        %526 = vmatpush1.msra.mxu0 0.0
        %527 = vmatprep.subr.mxu0 0.0
        %528 = vmatpush1.msra.mxu0 0.0
        %529 = vmatprep.subr.mxu0 0.0
        %530 = vmatpush1.msra.mxu0 0.0
        %531 = vmatprep.subr.mxu0 0.0
        %532 = vmatpush1.msra.mxu0 0.0
        %533 = vmatprep.subr.mxu0 0.0
        %534 = vmatpush1.msra.mxu0 0.0
        %535 = vmatprep.subr.mxu0 0.0
        %536 = vmatpush1.msra.mxu0 0.0
        %537 = vmatprep.subr.mxu0 0.0
        %538 = vmatpush1.msra.mxu0 0.0
        %539 = vmatprep.subr.mxu0 0.0
        %540 = vmatpush1.msra.mxu0 0.0
        %541 = vmatprep.subr.mxu0 0.0
        %542 = vmatpush1.msra.mxu0 0.0
        %543 = vmatprep.subr.mxu0 0.0
        %544 = vmatpush1.msra.mxu0 0.0
        %545 = vmatprep.subr.mxu0 0.0
        %546 = vmatpush1.msra.mxu0 %v513
        %547 = vmatprep.subr.mxu0 0.0
        %548 = vmatpush2.msra.mxu0 0.0
        %549 = vmatprep.subr.mxu0 0.0
        %550 = vmatpush2.msra.mxu0 0.0
        %551 = vmatprep.subr.mxu0 0.0
        %552 = vmatpush2.msra.mxu0 0.0
        %553 = vmatprep.subr.mxu0 0.0
        %554 = vmatpush2.msra.mxu0 0.0
        %555 = vmatprep.subr.mxu0 0.0
        %556 = vmatpush2.msra.mxu0 0.0
        %557 = vmatprep.subr.mxu0 0.0
        %558 = vmatpush2.msra.mxu0 0.0
        %559 = vmatprep.subr.mxu0 0.0
        %560 = vmatpush2.msra.mxu0 0.0
        %561 = vmatprep.subr.mxu0 0.0
        %562 = vmatpush2.msra.mxu0 0.0
        %563 = vmatprep.subr.mxu0 0.0
        %564 = vmatpush2.msra.mxu0 0.0
        %565 = vmatprep.subr.mxu0 0.0
        %566 = vmatpush2.msra.mxu0 0.0
        %567 = vmatprep.subr.mxu0 0.0
        %568 = vmatpush2.msra.mxu0 0.0
        %569 = vmatprep.subr.mxu0 0.0
        %570 = vmatpush2.msra.mxu0 0.0
        %571 = vmatprep.subr.mxu0 0.0
        %572 = vmatpush2.msra.mxu0 0.0
        %573 = vmatprep.subr.mxu0 0.0
        %574 = vmatpush2.msra.mxu0 0.0
        %575 = vmatprep.subr.mxu0 0.0
        %576 = vmatpush2.msra.mxu0 0.0
        %577 = vmatprep.subr.mxu0 0.0
        %578 = vmatpush2.msra.mxu0 0.0
        %579 = vmatprep.mubr.f32.mxu0 0.0
        %580 = vmatmul.mubr.f32.gmra.mxu0 %v509
        %v581 = vpop.f32.mrf.mxu0
        %v582 = vadd.f32 0.0, %v581
        %v583 = vpop.f32.mrf.mxu0
        %584 = vdwg.mxu0
        %v585 = vmul.f32 %v582, %v505
        %v587 = vrot.slane %v585, 1
        %v589 = vadd.f32 %v585, %v587
        %v590 = vrot.slane %v585, 2
        %v592 = vadd.f32 %v589, %v590
        %v593 = vmul.f32 %v592, -0.5
        %v594 = vmul.f32 %v593, 1.442695
        %v595 = vpow.pop %v594
        %597 = vset.pattern.permute.xlu0 0
        %598 = vperm.xlu0 %597, %v481
        %v599 = vpop.permute.xlu0 %598
        %v601 = vlaneseq
        %v602 = vshrl.u32 %v601, 7
        %v603 = vsub.s32 0, %v602
        %v604 = vrot.slane %v599, %v603
        %v605 = vmul.f32 %v604, %v595
        %v606 = vld [vmem:[%s478] sm:$0xff]
        %v607 = vld [vmem:[%s478 + $0x8] sm:$0xff]
        %v608 = vld [vmem:[%s478 + $0x10] sm:$0xff]
        %v609 = vld [vmem:[%s478 + $0x18] sm:$0xff]
        %611 = vset.pattern.permute.xlu0 3
        %612 = vperm.xlu0 %611, %v606
        %v613 = vpop.permute.xlu0 %612
        %616 = vset.pattern.permute.xlu0 3
        %617 = vperm.xlu0 %616, %v607
        %v618 = vpop.permute.xlu0 %617
        %621 = vset.pattern.permute.xlu0 3
        %622 = vperm.xlu0 %621, %v608
        %v623 = vpop.permute.xlu0 %622
        %626 = vset.pattern.permute.xlu0 3
        %627 = vperm.xlu0 %626, %v609
        %v628 = vpop.permute.xlu0 %627
        %v630 = vsel %vm507, %v606, 0
        %v632 = vsel %vm507, %v607, 0
        %v634 = vsel %vm507, %v608, 0
        %v636 = vsel %vm507, %v609, 0
        %v639 = vsel %vm511, %v479, 0
        %641 = vmatprep.subr.mxu0 0.0
        %642 = vmatpush1.msra.mxu0 0.0
        %643 = vmatprep.subr.mxu0 0.0
        %644 = vmatpush1.msra.mxu0 0.0
        %645 = vmatprep.subr.mxu0 0.0
        %646 = vmatpush1.msra.mxu0 0.0
        %647 = vmatprep.subr.mxu0 0.0
        %648 = vmatpush1.msra.mxu0 0.0
        %649 = vmatprep.subr.mxu0 0.0
        %650 = vmatpush1.msra.mxu0 0.0
        %651 = vmatprep.subr.mxu0 0.0
        %652 = vmatpush1.msra.mxu0 0.0
        %653 = vmatprep.subr.mxu0 0.0
        %654 = vmatpush1.msra.mxu0 0.0
        %655 = vmatprep.subr.mxu0 0.0
        %656 = vmatpush1.msra.mxu0 0.0
        %657 = vmatprep.subr.mxu0 0.0
        %658 = vmatpush1.msra.mxu0 0.0
        %659 = vmatprep.subr.mxu0 0.0
        %660 = vmatpush1.msra.mxu0 0.0
        %661 = vmatprep.subr.mxu0 0.0
        %662 = vmatpush1.msra.mxu0 0.0
        %663 = vmatprep.subr.mxu0 0.0
        %664 = vmatpush1.msra.mxu0 0.0
        %665 = vmatprep.subr.mxu0 0.0
        %666 = vmatpush1.msra.mxu0 0.0
        %667 = vmatprep.subr.mxu0 0.0
        %668 = vmatpush1.msra.mxu0 0.0
        %669 = vmatprep.subr.mxu0 0.0
        %670 = vmatpush1.msra.mxu0 0.0
        %671 = vmatprep.subr.mxu0 0.0
        %672 = vmatpush1.msra.mxu0 %v639
        %673 = vmatprep.subr.mxu0 0.0
        %674 = vmatpush2.msra.mxu0 0.0
        %675 = vmatprep.subr.mxu0 0.0
        %676 = vmatpush2.msra.mxu0 0.0
        %677 = vmatprep.subr.mxu0 0.0
        %678 = vmatpush2.msra.mxu0 0.0
        %679 = vmatprep.subr.mxu0 0.0
        %680 = vmatpush2.msra.mxu0 0.0
        %681 = vmatprep.subr.mxu0 0.0
        %682 = vmatpush2.msra.mxu0 0.0
        %683 = vmatprep.subr.mxu0 0.0
        %684 = vmatpush2.msra.mxu0 0.0
        %685 = vmatprep.subr.mxu0 0.0
        %686 = vmatpush2.msra.mxu0 0.0
        %687 = vmatprep.subr.mxu0 0.0
        %688 = vmatpush2.msra.mxu0 0.0
        %689 = vmatprep.subr.mxu0 0.0
        %690 = vmatpush2.msra.mxu0 0.0
        %691 = vmatprep.subr.mxu0 0.0
        %692 = vmatpush2.msra.mxu0 0.0
        %693 = vmatprep.subr.mxu0 0.0
        %694 = vmatpush2.msra.mxu0 0.0
        %695 = vmatprep.subr.mxu0 0.0
        %696 = vmatpush2.msra.mxu0 0.0
        %697 = vmatprep.subr.mxu0 0.0
        %698 = vmatpush2.msra.mxu0 0.0
        %699 = vmatprep.subr.mxu0 0.0
        %700 = vmatpush2.msra.mxu0 0.0
        %701 = vmatprep.subr.mxu0 0.0
        %702 = vmatpush2.msra.mxu0 0.0
        %703 = vmatprep.subr.mxu0 0.0
        %704 = vmatpush2.msra.mxu0 0.0
        %705 = vmatprep.mubr.f32.mxu0 0.0
        %706 = vmatmul.mubr.f32.gmra.mxu0 %v630
        %v707 = vpop.f32.mrf.mxu0
        %v708 = vadd.f32 %v613, %v707
        %v709 = vpop.f32.mrf.mxu0
        %710 = vmatprep.mubr.f32.mxu0 0.0
        %711 = vmatmul.mubr.f32.gmra.mxu0 %v632
        %v712 = vpop.f32.mrf.mxu0
        %v713 = vadd.f32 %v618, %v712
        %v714 = vpop.f32.mrf.mxu0
        %715 = vmatprep.mubr.f32.mxu0 0.0
        %716 = vmatmul.mubr.f32.gmra.mxu0 %v634
        %v717 = vpop.f32.mrf.mxu0
        %v718 = vadd.f32 %v623, %v717
        %v719 = vpop.f32.mrf.mxu0
        %720 = vmatprep.mubr.f32.mxu0 0.0
        %721 = vmatmul.mubr.f32.gmra.mxu0 %v636
        %v722 = vpop.f32.mrf.mxu0
        %v723 = vadd.f32 %v628, %v722
        %v724 = vpop.f32.mrf.mxu0
        %725 = vdwg.mxu0
        %726 = vset.pattern.permute.xlu0 4
        %727 = vperm.xlu0 %726, %v606
        %v728 = vpop.permute.xlu0 %727
        %730 = vset.pattern.permute.xlu0 4
        %731 = vperm.xlu0 %730, %v607
        %v732 = vpop.permute.xlu0 %731
        %734 = vset.pattern.permute.xlu0 4
        %735 = vperm.xlu0 %734, %v608
        %v736 = vpop.permute.xlu0 %735
        %738 = vset.pattern.permute.xlu0 4
        %739 = vperm.xlu0 %738, %v609
        %v740 = vpop.permute.xlu0 %739
        %v742 = vmul.f32 %v728, %v708
        %v743 = vmul.f32 %v732, %v713
        %v744 = vmul.f32 %v736, %v718
        %v745 = vmul.f32 %v740, %v723
        %746 = vset.pattern.permute.xlu0 5
        %747 = vperm.xlu0 %746, %v606
        %v748 = vpop.permute.xlu0 %747
        %750 = vset.pattern.permute.xlu0 5
        %751 = vperm.xlu0 %750, %v607
        %v752 = vpop.permute.xlu0 %751
        %754 = vset.pattern.permute.xlu0 5
        %755 = vperm.xlu0 %754, %v608
        %v756 = vpop.permute.xlu0 %755
        %758 = vset.pattern.permute.xlu0 5
        %759 = vperm.xlu0 %758, %v609
        %v760 = vpop.permute.xlu0 %759
        %v762 = vadd.f32 %v742, %v748
        %v763 = vadd.f32 %v743, %v752
        %v764 = vadd.f32 %v744, %v756
        %v765 = vadd.f32 %v745, %v760
        %v766 = vmax.f32 %v762, 0.0
        %v767 = vmax.f32 %v763, 0.0
        %v768 = vmax.f32 %v764, 0.0
        %v769 = vmax.f32 %v765, 0.0
        %771 = vset.pattern.permute.xlu0 0
        %772 = vperm.xlu0 %771, %v486
        %v773 = vpop.permute.xlu0 %772
        %776 = vset.pattern.permute.xlu0 0
        %777 = vperm.xlu0 %776, %v487
        %v778 = vpop.permute.xlu0 %777
        %781 = vset.pattern.permute.xlu0 0
        %782 = vperm.xlu0 %781, %v488
        %v783 = vpop.permute.xlu0 %782
        %786 = vset.pattern.permute.xlu0 0
        %787 = vperm.xlu0 %786, %v489
        %v788 = vpop.permute.xlu0 %787
        %vm790 = vcmask 261120
        %v792 = vsel %vm790, %v482, 0
        %v795 = vsel %vm790, %v483, 0
        %v798 = vsel %vm790, %v484, 0
        %v801 = vsel %vm790, %v485, 0
        %803 = vmatprep.subr.mxu0 0.0
        %804 = vmatpush1.msra.mxu0 0.0
        %805 = vmatprep.subr.mxu0 0.0
        %806 = vmatpush1.msra.mxu0 0.0
        %807 = vmatprep.subr.mxu0 0.0
        %808 = vmatpush1.msra.mxu0 0.0
        %809 = vmatprep.subr.mxu0 0.0
        %810 = vmatpush1.msra.mxu0 0.0
        %811 = vmatprep.subr.mxu0 0.0
        %812 = vmatpush1.msra.mxu0 0.0
        %813 = vmatprep.subr.mxu0 0.0
        %814 = vmatpush1.msra.mxu0 0.0
        %815 = vmatprep.subr.mxu0 0.0
        %816 = vmatpush1.msra.mxu0 0.0
        %817 = vmatprep.subr.mxu0 0.0
        %818 = vmatpush1.msra.mxu0 0.0
        %819 = vmatprep.subr.mxu0 0.0
        %820 = vmatpush1.msra.mxu0 0.0
        %821 = vmatprep.subr.mxu0 0.0
        %822 = vmatpush1.msra.mxu0 0.0
        %823 = vmatprep.subr.mxu0 0.0
        %824 = vmatpush1.msra.mxu0 0.0
        %825 = vmatprep.subr.mxu0 0.0
        %826 = vmatpush1.msra.mxu0 0.0
        %827 = vmatprep.subr.mxu0 0.0
        %828 = vmatpush1.msra.mxu0 %v769
        %829 = vmatprep.subr.mxu0 0.0
        %830 = vmatpush1.msra.mxu0 %v768
        %831 = vmatprep.subr.mxu0 0.0
        %832 = vmatpush1.msra.mxu0 %v767
        %833 = vmatprep.subr.mxu0 0.0
        %834 = vmatpush1.msra.mxu0 %v766
        %835 = vmatprep.subr.mxu0 0.0
        %836 = vmatpush2.msra.mxu0 0.0
        %837 = vmatprep.subr.mxu0 0.0
        %838 = vmatpush2.msra.mxu0 0.0
        %839 = vmatprep.subr.mxu0 0.0
        %840 = vmatpush2.msra.mxu0 0.0
        %841 = vmatprep.subr.mxu0 0.0
        %842 = vmatpush2.msra.mxu0 0.0
        %843 = vmatprep.subr.mxu0 0.0
        %844 = vmatpush2.msra.mxu0 0.0
        %845 = vmatprep.subr.mxu0 0.0
        %846 = vmatpush2.msra.mxu0 0.0
        %847 = vmatprep.subr.mxu0 0.0
        %848 = vmatpush2.msra.mxu0 0.0
        %849 = vmatprep.subr.mxu0 0.0
        %850 = vmatpush2.msra.mxu0 0.0
        %851 = vmatprep.subr.mxu0 0.0
        %852 = vmatpush2.msra.mxu0 0.0
        %853 = vmatprep.subr.mxu0 0.0
        %854 = vmatpush2.msra.mxu0 0.0
        %855 = vmatprep.subr.mxu0 0.0
        %856 = vmatpush2.msra.mxu0 0.0
        %857 = vmatprep.subr.mxu0 0.0
        %858 = vmatpush2.msra.mxu0 0.0
        %859 = vmatprep.subr.mxu0 0.0
        %860 = vmatpush2.msra.mxu0 0.0
        %861 = vmatprep.subr.mxu0 0.0
        %862 = vmatpush2.msra.mxu0 0.0
        %863 = vmatprep.subr.mxu0 0.0
        %864 = vmatpush2.msra.mxu0 0.0
        %865 = vmatprep.subr.mxu0 0.0
        %866 = vmatpush2.msra.mxu0 0.0
        %867 = vmatprep.mubr.f32.mxu0 0.0
        %868 = vmatmul.mubr.f32.gmra.mxu0 %v792
        %v869 = vpop.f32.mrf.mxu0
        %v870 = vadd.f32 %v773, %v869
        %v871 = vpop.f32.mrf.mxu0
        %872 = vmatprep.mubr.f32.mxu0 0.0
        %873 = vmatmul.mubr.f32.gmra.mxu0 %v795
        %v874 = vpop.f32.mrf.mxu0
        %v875 = vadd.f32 %v778, %v874
        %v876 = vpop.f32.mrf.mxu0
        %877 = vmatprep.mubr.f32.mxu0 0.0
        %878 = vmatmul.mubr.f32.gmra.mxu0 %v798
        %v879 = vpop.f32.mrf.mxu0
        %v880 = vadd.f32 %v783, %v879
        %v881 = vpop.f32.mrf.mxu0
        %882 = vmatprep.mubr.f32.mxu0 0.0
        %883 = vmatmul.mubr.f32.gmra.mxu0 %v801
        %v884 = vpop.f32.mrf.mxu0
        %v885 = vadd.f32 %v788, %v884
        %v886 = vpop.f32.mrf.mxu0
        %887 = vdwg.mxu0
        %888 = vset.pattern.permute.xlu0 6
        %889 = vperm.xlu0 %888, %v606
        %v890 = vpop.permute.xlu0 %889
        %892 = vset.pattern.permute.xlu0 6
        %893 = vperm.xlu0 %892, %v607
        %v894 = vpop.permute.xlu0 %893
        %896 = vset.pattern.permute.xlu0 6
        %897 = vperm.xlu0 %896, %v608
        %v898 = vpop.permute.xlu0 %897
        %900 = vset.pattern.permute.xlu0 6
        %901 = vperm.xlu0 %900, %v609
        %v902 = vpop.permute.xlu0 %901
        %v904 = vmul.f32 %v890, %v870
        %v905 = vmul.f32 %v894, %v875
        %v906 = vmul.f32 %v898, %v880
        %v907 = vmul.f32 %v902, %v885
        %908 = vset.pattern.permute.xlu0 7
        %909 = vperm.xlu0 %908, %v606
        %v910 = vpop.permute.xlu0 %909
        %912 = vset.pattern.permute.xlu0 7
        %913 = vperm.xlu0 %912, %v607
        %v914 = vpop.permute.xlu0 %913
        %916 = vset.pattern.permute.xlu0 7
        %917 = vperm.xlu0 %916, %v608
        %v918 = vpop.permute.xlu0 %917
        %920 = vset.pattern.permute.xlu0 7
        %921 = vperm.xlu0 %920, %v609
        %v922 = vpop.permute.xlu0 %921
        %v924 = vadd.f32 %v904, %v910
        %v925 = vadd.f32 %v905, %v914
        %v926 = vadd.f32 %v906, %v918
        %v927 = vadd.f32 %v907, %v922
        %v928 = vmax.f32 %v924, 0.0
        %v929 = vmax.f32 %v925, 0.0
        %v930 = vmax.f32 %v926, 0.0
        %v931 = vmax.f32 %v927, 0.0
        %933 = vset.pattern.permute.xlu0 0
        %934 = vperm.xlu0 %933, %v494
        %v935 = vpop.permute.xlu0 %934
        %938 = vset.pattern.permute.xlu0 0
        %939 = vperm.xlu0 %938, %v495
        %v940 = vpop.permute.xlu0 %939
        %943 = vset.pattern.permute.xlu0 0
        %944 = vperm.xlu0 %943, %v496
        %v945 = vpop.permute.xlu0 %944
        %948 = vset.pattern.permute.xlu0 0
        %949 = vperm.xlu0 %948, %v497
        %v950 = vpop.permute.xlu0 %949
        %v953 = vsel %vm790, %v490, 0
        %v956 = vsel %vm790, %v491, 0
        %v959 = vsel %vm790, %v492, 0
        %v962 = vsel %vm790, %v493, 0
        %964 = vmatprep.subr.mxu0 0.0
        %965 = vmatpush1.msra.mxu0 0.0
        %966 = vmatprep.subr.mxu0 0.0
        %967 = vmatpush1.msra.mxu0 0.0
        %968 = vmatprep.subr.mxu0 0.0
        %969 = vmatpush1.msra.mxu0 0.0
        %970 = vmatprep.subr.mxu0 0.0
        %971 = vmatpush1.msra.mxu0 0.0
        %972 = vmatprep.subr.mxu0 0.0
        %973 = vmatpush1.msra.mxu0 0.0
        %974 = vmatprep.subr.mxu0 0.0
        %975 = vmatpush1.msra.mxu0 0.0
        %976 = vmatprep.subr.mxu0 0.0
        %977 = vmatpush1.msra.mxu0 0.0
        %978 = vmatprep.subr.mxu0 0.0
        %979 = vmatpush1.msra.mxu0 0.0
        %980 = vmatprep.subr.mxu0 0.0
        %981 = vmatpush1.msra.mxu0 0.0
        %982 = vmatprep.subr.mxu0 0.0
        %983 = vmatpush1.msra.mxu0 0.0
        %984 = vmatprep.subr.mxu0 0.0
        %985 = vmatpush1.msra.mxu0 0.0
        %986 = vmatprep.subr.mxu0 0.0
        %987 = vmatpush1.msra.mxu0 0.0
        %988 = vmatprep.subr.mxu0 0.0
        %989 = vmatpush1.msra.mxu0 %v931
        %990 = vmatprep.subr.mxu0 0.0
        %991 = vmatpush1.msra.mxu0 %v930
        %992 = vmatprep.subr.mxu0 0.0
        %993 = vmatpush1.msra.mxu0 %v929
        %994 = vmatprep.subr.mxu0 0.0
        %995 = vmatpush1.msra.mxu0 %v928
        %996 = vmatprep.subr.mxu0 0.0
        %997 = vmatpush2.msra.mxu0 0.0
        %998 = vmatprep.subr.mxu0 0.0
        %999 = vmatpush2.msra.mxu0 0.0
        %1000 = vmatprep.subr.mxu0 0.0
        %1001 = vmatpush2.msra.mxu0 0.0
        %1002 = vmatprep.subr.mxu0 0.0
        %1003 = vmatpush2.msra.mxu0 0.0
        %1004 = vmatprep.subr.mxu0 0.0
        %1005 = vmatpush2.msra.mxu0 0.0
        %1006 = vmatprep.subr.mxu0 0.0
        %1007 = vmatpush2.msra.mxu0 0.0
        %1008 = vmatprep.subr.mxu0 0.0
        %1009 = vmatpush2.msra.mxu0 0.0
        %1010 = vmatprep.subr.mxu0 0.0
        %1011 = vmatpush2.msra.mxu0 0.0
        %1012 = vmatprep.subr.mxu0 0.0
        %1013 = vmatpush2.msra.mxu0 0.0
        %1014 = vmatprep.subr.mxu0 0.0
        %1015 = vmatpush2.msra.mxu0 0.0
        %1016 = vmatprep.subr.mxu0 0.0
        %1017 = vmatpush2.msra.mxu0 0.0
        %1018 = vmatprep.subr.mxu0 0.0
        %1019 = vmatpush2.msra.mxu0 0.0
        %1020 = vmatprep.subr.mxu0 0.0
        %1021 = vmatpush2.msra.mxu0 0.0
        %1022 = vmatprep.subr.mxu0 0.0
        %1023 = vmatpush2.msra.mxu0 0.0
        %1024 = vmatprep.subr.mxu0 0.0
        %1025 = vmatpush2.msra.mxu0 0.0
        %1026 = vmatprep.subr.mxu0 0.0
        %1027 = vmatpush2.msra.mxu0 0.0
        %1028 = vmatprep.mubr.f32.mxu0 0.0
        %1029 = vmatmul.mubr.f32.gmra.mxu0 %v953
        %v1030 = vpop.f32.mrf.mxu0
        %v1031 = vadd.f32 %v935, %v1030
        %v1032 = vpop.f32.mrf.mxu0
        %1033 = vmatprep.mubr.f32.mxu0 0.0
        %1034 = vmatmul.mubr.f32.gmra.mxu0 %v956
        %v1035 = vpop.f32.mrf.mxu0
        %v1036 = vadd.f32 %v940, %v1035
        %v1037 = vpop.f32.mrf.mxu0
        %1038 = vmatprep.mubr.f32.mxu0 0.0
        %1039 = vmatmul.mubr.f32.gmra.mxu0 %v959
        %v1040 = vpop.f32.mrf.mxu0
        %v1041 = vadd.f32 %v945, %v1040
        %v1042 = vpop.f32.mrf.mxu0
        %1043 = vmatprep.mubr.f32.mxu0 0.0
        %1044 = vmatmul.mubr.f32.gmra.mxu0 %v962
        %v1045 = vpop.f32.mrf.mxu0
        %v1046 = vadd.f32 %v950, %v1045
        %v1047 = vpop.f32.mrf.mxu0
        %1048 = vdwg.mxu0
        %v1049 = vadd.f32 %v708, %v1031
        %v1050 = vadd.f32 %v713, %v1036
        %v1051 = vadd.f32 %v718, %v1041
        %v1052 = vadd.f32 %v723, %v1046
        %1054 = vset.pattern.permute.xlu0 0
        %1055 = vperm.xlu0 %1054, %v499
        %v1056 = vpop.permute.xlu0 %1055
        %v1058 = vlaneseq
        %v1059 = vshrl.u32 %v1058, 7
        %v1060 = vsub.s32 0, %v1059
        %v1061 = vrot.slane %v1056, %v1060
        %v1063 = vsel %vm790, %v498, 0
        %1065 = vmatprep.subr.mxu0 0.0
        %1066 = vmatpush1.msra.mxu0 0.0
        %1067 = vmatprep.subr.mxu0 0.0
        %1068 = vmatpush1.msra.mxu0 0.0
        %1069 = vmatprep.subr.mxu0 0.0
        %1070 = vmatpush1.msra.mxu0 0.0
        %1071 = vmatprep.subr.mxu0 0.0
        %1072 = vmatpush1.msra.mxu0 0.0
        %1073 = vmatprep.subr.mxu0 0.0
        %1074 = vmatpush1.msra.mxu0 0.0
        %1075 = vmatprep.subr.mxu0 0.0
        %1076 = vmatpush1.msra.mxu0 0.0
        %1077 = vmatprep.subr.mxu0 0.0
        %1078 = vmatpush1.msra.mxu0 0.0
        %1079 = vmatprep.subr.mxu0 0.0
        %1080 = vmatpush1.msra.mxu0 0.0
        %1081 = vmatprep.subr.mxu0 0.0
        %1082 = vmatpush1.msra.mxu0 0.0
        %1083 = vmatprep.subr.mxu0 0.0
        %1084 = vmatpush1.msra.mxu0 0.0
        %1085 = vmatprep.subr.mxu0 0.0
        %1086 = vmatpush1.msra.mxu0 0.0
        %1087 = vmatprep.subr.mxu0 0.0
        %1088 = vmatpush1.msra.mxu0 0.0
        %1089 = vmatprep.subr.mxu0 0.0
        %1090 = vmatpush1.msra.mxu0 %v1052
        %1091 = vmatprep.subr.mxu0 0.0
        %1092 = vmatpush1.msra.mxu0 %v1051
        %1093 = vmatprep.subr.mxu0 0.0
        %1094 = vmatpush1.msra.mxu0 %v1050
        %1095 = vmatprep.subr.mxu0 0.0
        %1096 = vmatpush1.msra.mxu0 %v1049
        %1097 = vmatprep.subr.mxu0 0.0
        %1098 = vmatpush2.msra.mxu0 0.0
        %1099 = vmatprep.subr.mxu0 0.0
        %1100 = vmatpush2.msra.mxu0 0.0
        %1101 = vmatprep.subr.mxu0 0.0
        %1102 = vmatpush2.msra.mxu0 0.0
        %1103 = vmatprep.subr.mxu0 0.0
        %1104 = vmatpush2.msra.mxu0 0.0
        %1105 = vmatprep.subr.mxu0 0.0
        %1106 = vmatpush2.msra.mxu0 0.0
        %1107 = vmatprep.subr.mxu0 0.0
        %1108 = vmatpush2.msra.mxu0 0.0
        %1109 = vmatprep.subr.mxu0 0.0
        %1110 = vmatpush2.msra.mxu0 0.0
        %1111 = vmatprep.subr.mxu0 0.0
        %1112 = vmatpush2.msra.mxu0 0.0
        %1113 = vmatprep.subr.mxu0 0.0
        %1114 = vmatpush2.msra.mxu0 0.0
        %1115 = vmatprep.subr.mxu0 0.0
        %1116 = vmatpush2.msra.mxu0 0.0
        %1117 = vmatprep.subr.mxu0 0.0
        %1118 = vmatpush2.msra.mxu0 0.0
        %1119 = vmatprep.subr.mxu0 0.0
        %1120 = vmatpush2.msra.mxu0 0.0
        %1121 = vmatprep.subr.mxu0 0.0
        %1122 = vmatpush2.msra.mxu0 0.0
        %1123 = vmatprep.subr.mxu0 0.0
        %1124 = vmatpush2.msra.mxu0 0.0
        %1125 = vmatprep.subr.mxu0 0.0
        %1126 = vmatpush2.msra.mxu0 0.0
        %1127 = vmatprep.subr.mxu0 0.0
        %1128 = vmatpush2.msra.mxu0 0.0
        %1129 = vmatprep.mubr.f32.mxu0 0.0
        %1130 = vmatmul.mubr.f32.gmra.mxu0 %v1063
        %v1131 = vpop.f32.mrf.mxu0
        %v1132 = vadd.f32 %v1061, %v1131
        %v1133 = vpop.f32.mrf.mxu0
        %1134 = vdwg.mxu0
        %v1135 = vadd.f32 %v1132, 1.0
        %v1136 = vmul.f32 %v605, %v1135
        %v1137 = vadd.f32 %v1136, 0.0
        %1138 = vset.pattern.permute.xlu0 1
        %1139 = vperm.xlu0 %1138, %v480
        %v1140 = vpop.permute.xlu0 %1139
        %v1142 = vsub.f32 %v479, %v1140
        %s1143 = scalar_lea.vmem %s470, 4
        %v1144 = vld [vmem:[%s1143] sm:$0x7]
        %v1146 = vsel %vm507, %v1144, 0
        %v1149 = vsel %vm511, %v1142, 0
        %1151 = vmatprep.subr.mxu0 0.0
        %1152 = vmatpush1.msra.mxu0 0.0
        %1153 = vmatprep.subr.mxu0 0.0
        %1154 = vmatpush1.msra.mxu0 0.0
        %1155 = vmatprep.subr.mxu0 0.0
        %1156 = vmatpush1.msra.mxu0 0.0
        %1157 = vmatprep.subr.mxu0 0.0
        %1158 = vmatpush1.msra.mxu0 0.0
        %1159 = vmatprep.subr.mxu0 0.0
        %1160 = vmatpush1.msra.mxu0 0.0
        %1161 = vmatprep.subr.mxu0 0.0
        %1162 = vmatpush1.msra.mxu0 0.0
        %1163 = vmatprep.subr.mxu0 0.0
        %1164 = vmatpush1.msra.mxu0 0.0
        %1165 = vmatprep.subr.mxu0 0.0
        %1166 = vmatpush1.msra.mxu0 0.0
        %1167 = vmatprep.subr.mxu0 0.0
        %1168 = vmatpush1.msra.mxu0 0.0
        %1169 = vmatprep.subr.mxu0 0.0
        %1170 = vmatpush1.msra.mxu0 0.0
        %1171 = vmatprep.subr.mxu0 0.0
        %1172 = vmatpush1.msra.mxu0 0.0
        %1173 = vmatprep.subr.mxu0 0.0
        %1174 = vmatpush1.msra.mxu0 0.0
        %1175 = vmatprep.subr.mxu0 0.0
        %1176 = vmatpush1.msra.mxu0 0.0
        %1177 = vmatprep.subr.mxu0 0.0
        %1178 = vmatpush1.msra.mxu0 0.0
        %1179 = vmatprep.subr.mxu0 0.0
        %1180 = vmatpush1.msra.mxu0 0.0
        %1181 = vmatprep.subr.mxu0 0.0
        %1182 = vmatpush1.msra.mxu0 %v1149
        %1183 = vmatprep.subr.mxu0 0.0
        %1184 = vmatpush2.msra.mxu0 0.0
        %1185 = vmatprep.subr.mxu0 0.0
        %1186 = vmatpush2.msra.mxu0 0.0
        %1187 = vmatprep.subr.mxu0 0.0
        %1188 = vmatpush2.msra.mxu0 0.0
        %1189 = vmatprep.subr.mxu0 0.0
        %1190 = vmatpush2.msra.mxu0 0.0
        %1191 = vmatprep.subr.mxu0 0.0
        %1192 = vmatpush2.msra.mxu0 0.0
        %1193 = vmatprep.subr.mxu0 0.0
        %1194 = vmatpush2.msra.mxu0 0.0
        %1195 = vmatprep.subr.mxu0 0.0
        %1196 = vmatpush2.msra.mxu0 0.0
        %1197 = vmatprep.subr.mxu0 0.0
        %1198 = vmatpush2.msra.mxu0 0.0
        %1199 = vmatprep.subr.mxu0 0.0
        %1200 = vmatpush2.msra.mxu0 0.0
        %1201 = vmatprep.subr.mxu0 0.0
        %1202 = vmatpush2.msra.mxu0 0.0
        %1203 = vmatprep.subr.mxu0 0.0
        %1204 = vmatpush2.msra.mxu0 0.0
        %1205 = vmatprep.subr.mxu0 0.0
        %1206 = vmatpush2.msra.mxu0 0.0
        %1207 = vmatprep.subr.mxu0 0.0
        %1208 = vmatpush2.msra.mxu0 0.0
        %1209 = vmatprep.subr.mxu0 0.0
        %1210 = vmatpush2.msra.mxu0 0.0
        %1211 = vmatprep.subr.mxu0 0.0
        %1212 = vmatpush2.msra.mxu0 0.0
        %1213 = vmatprep.subr.mxu0 0.0
        %1214 = vmatpush2.msra.mxu0 0.0
        %1215 = vmatprep.mubr.f32.mxu0 0.0
        %1216 = vmatmul.mubr.f32.gmra.mxu0 %v1146
        %v1217 = vpop.f32.mrf.mxu0
        %v1218 = vadd.f32 0.0, %v1217
        %v1219 = vpop.f32.mrf.mxu0
        %1220 = vdwg.mxu0
        %v1221 = vmul.f32 %v1218, %v1142
        %v1223 = vrot.slane %v1221, 1
        %v1225 = vadd.f32 %v1221, %v1223
        %v1226 = vrot.slane %v1221, 2
        %v1228 = vadd.f32 %v1225, %v1226
        %v1229 = vmul.f32 %v1228, -0.5
        %v1230 = vmul.f32 %v1229, 1.442695
        %v1231 = vpow.pop %v1230
        %1232 = vset.pattern.permute.xlu0 1
        %1233 = vperm.xlu0 %1232, %v481
        %v1234 = vpop.permute.xlu0 %1233
        %v1236 = vlaneseq
        %v1237 = vshrl.u32 %v1236, 7
        %v1238 = vsub.s32 0, %v1237
        %v1239 = vrot.slane %v1234, %v1238
        %v1240 = vmul.f32 %v1239, %v1231
        %s1241 = scalar_lea.vmem %s478, 32
        %v1242 = vld [vmem:[%s1241] sm:$0xff]
        %v1243 = vld [vmem:[%s1241 + $0x8] sm:$0xff]
        %v1244 = vld [vmem:[%s1241 + $0x10] sm:$0xff]
        %v1245 = vld [vmem:[%s1241 + $0x18] sm:$0xff]
        %1247 = vset.pattern.permute.xlu0 3
        %1248 = vperm.xlu0 %1247, %v1242
        %v1249 = vpop.permute.xlu0 %1248
        %1252 = vset.pattern.permute.xlu0 3
        %1253 = vperm.xlu0 %1252, %v1243
        %v1254 = vpop.permute.xlu0 %1253
        %1257 = vset.pattern.permute.xlu0 3
        %1258 = vperm.xlu0 %1257, %v1244
        %v1259 = vpop.permute.xlu0 %1258
        %1262 = vset.pattern.permute.xlu0 3
        %1263 = vperm.xlu0 %1262, %v1245
        %v1264 = vpop.permute.xlu0 %1263
        %v1266 = vsel %vm507, %v1242, 0
        %v1268 = vsel %vm507, %v1243, 0
        %v1270 = vsel %vm507, %v1244, 0
        %v1272 = vsel %vm507, %v1245, 0
        %1274 = vmatprep.subr.mxu0 0.0
        %1275 = vmatpush1.msra.mxu0 0.0
        %1276 = vmatprep.subr.mxu0 0.0
        %1277 = vmatpush1.msra.mxu0 0.0
        %1278 = vmatprep.subr.mxu0 0.0
        %1279 = vmatpush1.msra.mxu0 0.0
        %1280 = vmatprep.subr.mxu0 0.0
        %1281 = vmatpush1.msra.mxu0 0.0
        %1282 = vmatprep.subr.mxu0 0.0
        %1283 = vmatpush1.msra.mxu0 0.0
        %1284 = vmatprep.subr.mxu0 0.0
        %1285 = vmatpush1.msra.mxu0 0.0
        %1286 = vmatprep.subr.mxu0 0.0
        %1287 = vmatpush1.msra.mxu0 0.0
        %1288 = vmatprep.subr.mxu0 0.0
        %1289 = vmatpush1.msra.mxu0 0.0
        %1290 = vmatprep.subr.mxu0 0.0
        %1291 = vmatpush1.msra.mxu0 0.0
        %1292 = vmatprep.subr.mxu0 0.0
        %1293 = vmatpush1.msra.mxu0 0.0
        %1294 = vmatprep.subr.mxu0 0.0
        %1295 = vmatpush1.msra.mxu0 0.0
        %1296 = vmatprep.subr.mxu0 0.0
        %1297 = vmatpush1.msra.mxu0 0.0
        %1298 = vmatprep.subr.mxu0 0.0
        %1299 = vmatpush1.msra.mxu0 0.0
        %1300 = vmatprep.subr.mxu0 0.0
        %1301 = vmatpush1.msra.mxu0 0.0
        %1302 = vmatprep.subr.mxu0 0.0
        %1303 = vmatpush1.msra.mxu0 0.0
        %1304 = vmatprep.subr.mxu0 0.0
        %1305 = vmatpush1.msra.mxu0 %v639
        %1306 = vmatprep.subr.mxu0 0.0
        %1307 = vmatpush2.msra.mxu0 0.0
        %1308 = vmatprep.subr.mxu0 0.0
        %1309 = vmatpush2.msra.mxu0 0.0
        %1310 = vmatprep.subr.mxu0 0.0
        %1311 = vmatpush2.msra.mxu0 0.0
        %1312 = vmatprep.subr.mxu0 0.0
        %1313 = vmatpush2.msra.mxu0 0.0
        %1314 = vmatprep.subr.mxu0 0.0
        %1315 = vmatpush2.msra.mxu0 0.0
        %1316 = vmatprep.subr.mxu0 0.0
        %1317 = vmatpush2.msra.mxu0 0.0
        %1318 = vmatprep.subr.mxu0 0.0
        %1319 = vmatpush2.msra.mxu0 0.0
        %1320 = vmatprep.subr.mxu0 0.0
        %1321 = vmatpush2.msra.mxu0 0.0
        %1322 = vmatprep.subr.mxu0 0.0
        %1323 = vmatpush2.msra.mxu0 0.0
        %1324 = vmatprep.subr.mxu0 0.0
        %1325 = vmatpush2.msra.mxu0 0.0
        %1326 = vmatprep.subr.mxu0 0.0
        %1327 = vmatpush2.msra.mxu0 0.0
        %1328 = vmatprep.subr.mxu0 0.0
        %1329 = vmatpush2.msra.mxu0 0.0
        %1330 = vmatprep.subr.mxu0 0.0
        %1331 = vmatpush2.msra.mxu0 0.0
        %1332 = vmatprep.subr.mxu0 0.0
        %1333 = vmatpush2.msra.mxu0 0.0
        %1334 = vmatprep.subr.mxu0 0.0
        %1335 = vmatpush2.msra.mxu0 0.0
        %1336 = vmatprep.subr.mxu0 0.0
        %1337 = vmatpush2.msra.mxu0 0.0
        %1338 = vmatprep.mubr.f32.mxu0 0.0
        %1339 = vmatmul.mubr.f32.gmra.mxu0 %v1266
        %v1340 = vpop.f32.mrf.mxu0
        %v1341 = vadd.f32 %v1249, %v1340
        %v1342 = vpop.f32.mrf.mxu0
        %1343 = vmatprep.mubr.f32.mxu0 0.0
        %1344 = vmatmul.mubr.f32.gmra.mxu0 %v1268
        %v1345 = vpop.f32.mrf.mxu0
        %v1346 = vadd.f32 %v1254, %v1345
        %v1347 = vpop.f32.mrf.mxu0
        %1348 = vmatprep.mubr.f32.mxu0 0.0
        %1349 = vmatmul.mubr.f32.gmra.mxu0 %v1270
        %v1350 = vpop.f32.mrf.mxu0
        %v1351 = vadd.f32 %v1259, %v1350
        %v1352 = vpop.f32.mrf.mxu0
        %1353 = vmatprep.mubr.f32.mxu0 0.0
        %1354 = vmatmul.mubr.f32.gmra.mxu0 %v1272
        %v1355 = vpop.f32.mrf.mxu0
        %v1356 = vadd.f32 %v1264, %v1355
        %v1357 = vpop.f32.mrf.mxu0
        %1358 = vdwg.mxu0
        %1359 = vset.pattern.permute.xlu0 4
        %1360 = vperm.xlu0 %1359, %v1242
        %v1361 = vpop.permute.xlu0 %1360
        %1363 = vset.pattern.permute.xlu0 4
        %1364 = vperm.xlu0 %1363, %v1243
        %v1365 = vpop.permute.xlu0 %1364
        %1367 = vset.pattern.permute.xlu0 4
        %1368 = vperm.xlu0 %1367, %v1244
        %v1369 = vpop.permute.xlu0 %1368
        %1371 = vset.pattern.permute.xlu0 4
        %1372 = vperm.xlu0 %1371, %v1245
        %v1373 = vpop.permute.xlu0 %1372
        %v1375 = vmul.f32 %v1361, %v1341
        %v1376 = vmul.f32 %v1365, %v1346
        %v1377 = vmul.f32 %v1369, %v1351
        %v1378 = vmul.f32 %v1373, %v1356
        %1379 = vset.pattern.permute.xlu0 5
        %1380 = vperm.xlu0 %1379, %v1242
        %v1381 = vpop.permute.xlu0 %1380
        %1383 = vset.pattern.permute.xlu0 5
        %1384 = vperm.xlu0 %1383, %v1243
        %v1385 = vpop.permute.xlu0 %1384
        %1387 = vset.pattern.permute.xlu0 5
        %1388 = vperm.xlu0 %1387, %v1244
        %v1389 = vpop.permute.xlu0 %1388
        %1391 = vset.pattern.permute.xlu0 5
        %1392 = vperm.xlu0 %1391, %v1245
        %v1393 = vpop.permute.xlu0 %1392
        %v1395 = vadd.f32 %v1375, %v1381
        %v1396 = vadd.f32 %v1376, %v1385
        %v1397 = vadd.f32 %v1377, %v1389
        %v1398 = vadd.f32 %v1378, %v1393
        %v1399 = vmax.f32 %v1395, 0.0
        %v1400 = vmax.f32 %v1396, 0.0
        %v1401 = vmax.f32 %v1397, 0.0
        %v1402 = vmax.f32 %v1398, 0.0
        %1403 = vmatprep.subr.mxu0 0.0
        %1404 = vmatpush1.msra.mxu0 0.0
        %1405 = vmatprep.subr.mxu0 0.0
        %1406 = vmatpush1.msra.mxu0 0.0
        %1407 = vmatprep.subr.mxu0 0.0
        %1408 = vmatpush1.msra.mxu0 0.0
        %1409 = vmatprep.subr.mxu0 0.0
        %1410 = vmatpush1.msra.mxu0 0.0
        %1411 = vmatprep.subr.mxu0 0.0
        %1412 = vmatpush1.msra.mxu0 0.0
        %1413 = vmatprep.subr.mxu0 0.0
        %1414 = vmatpush1.msra.mxu0 0.0
        %1415 = vmatprep.subr.mxu0 0.0
        %1416 = vmatpush1.msra.mxu0 0.0
        %1417 = vmatprep.subr.mxu0 0.0
        %1418 = vmatpush1.msra.mxu0 0.0
        %1419 = vmatprep.subr.mxu0 0.0
        %1420 = vmatpush1.msra.mxu0 0.0
        %1421 = vmatprep.subr.mxu0 0.0
        %1422 = vmatpush1.msra.mxu0 0.0
        %1423 = vmatprep.subr.mxu0 0.0
        %1424 = vmatpush1.msra.mxu0 0.0
        %1425 = vmatprep.subr.mxu0 0.0
        %1426 = vmatpush1.msra.mxu0 0.0
        %1427 = vmatprep.subr.mxu0 0.0
        %1428 = vmatpush1.msra.mxu0 %v1402
        %1429 = vmatprep.subr.mxu0 0.0
        %1430 = vmatpush1.msra.mxu0 %v1401
        %1431 = vmatprep.subr.mxu0 0.0
        %1432 = vmatpush1.msra.mxu0 %v1400
        %1433 = vmatprep.subr.mxu0 0.0
        %1434 = vmatpush1.msra.mxu0 %v1399
        %1435 = vmatprep.subr.mxu0 0.0
        %1436 = vmatpush2.msra.mxu0 0.0
        %1437 = vmatprep.subr.mxu0 0.0
        %1438 = vmatpush2.msra.mxu0 0.0
        %1439 = vmatprep.subr.mxu0 0.0
        %1440 = vmatpush2.msra.mxu0 0.0
        %1441 = vmatprep.subr.mxu0 0.0
        %1442 = vmatpush2.msra.mxu0 0.0
        %1443 = vmatprep.subr.mxu0 0.0
        %1444 = vmatpush2.msra.mxu0 0.0
        %1445 = vmatprep.subr.mxu0 0.0
        %1446 = vmatpush2.msra.mxu0 0.0
        %1447 = vmatprep.subr.mxu0 0.0
        %1448 = vmatpush2.msra.mxu0 0.0
        %1449 = vmatprep.subr.mxu0 0.0
        %1450 = vmatpush2.msra.mxu0 0.0
        %1451 = vmatprep.subr.mxu0 0.0
        %1452 = vmatpush2.msra.mxu0 0.0
        %1453 = vmatprep.subr.mxu0 0.0
        %1454 = vmatpush2.msra.mxu0 0.0
        %1455 = vmatprep.subr.mxu0 0.0
        %1456 = vmatpush2.msra.mxu0 0.0
        %1457 = vmatprep.subr.mxu0 0.0
        %1458 = vmatpush2.msra.mxu0 0.0
        %1459 = vmatprep.subr.mxu0 0.0
        %1460 = vmatpush2.msra.mxu0 0.0
        %1461 = vmatprep.subr.mxu0 0.0
        %1462 = vmatpush2.msra.mxu0 0.0
        %1463 = vmatprep.subr.mxu0 0.0
        %1464 = vmatpush2.msra.mxu0 0.0
        %1465 = vmatprep.subr.mxu0 0.0
        %1466 = vmatpush2.msra.mxu0 0.0
        %1467 = vmatprep.mubr.f32.mxu0 0.0
        %1468 = vmatmul.mubr.f32.gmra.mxu0 %v792
        %v1469 = vpop.f32.mrf.mxu0
        %v1470 = vadd.f32 %v773, %v1469
        %v1471 = vpop.f32.mrf.mxu0
        %1472 = vmatprep.mubr.f32.mxu0 0.0
        %1473 = vmatmul.mubr.f32.gmra.mxu0 %v795
        %v1474 = vpop.f32.mrf.mxu0
        %v1475 = vadd.f32 %v778, %v1474
        %v1476 = vpop.f32.mrf.mxu0
        %1477 = vmatprep.mubr.f32.mxu0 0.0
        %1478 = vmatmul.mubr.f32.gmra.mxu0 %v798
        %v1479 = vpop.f32.mrf.mxu0
        %v1480 = vadd.f32 %v783, %v1479
        %v1481 = vpop.f32.mrf.mxu0
        %1482 = vmatprep.mubr.f32.mxu0 0.0
        %1483 = vmatmul.mubr.f32.gmra.mxu0 %v801
        %v1484 = vpop.f32.mrf.mxu0
        %v1485 = vadd.f32 %v788, %v1484
        %v1486 = vpop.f32.mrf.mxu0
        %1487 = vdwg.mxu0
        %1488 = vset.pattern.permute.xlu0 6
        %1489 = vperm.xlu0 %1488, %v1242
        %v1490 = vpop.permute.xlu0 %1489
        %1492 = vset.pattern.permute.xlu0 6
        %1493 = vperm.xlu0 %1492, %v1243
        %v1494 = vpop.permute.xlu0 %1493
        %1496 = vset.pattern.permute.xlu0 6
        %1497 = vperm.xlu0 %1496, %v1244
        %v1498 = vpop.permute.xlu0 %1497
        %1500 = vset.pattern.permute.xlu0 6
        %1501 = vperm.xlu0 %1500, %v1245
        %v1502 = vpop.permute.xlu0 %1501
        %v1504 = vmul.f32 %v1490, %v1470
        %v1505 = vmul.f32 %v1494, %v1475
        %v1506 = vmul.f32 %v1498, %v1480
        %v1507 = vmul.f32 %v1502, %v1485
        %1508 = vset.pattern.permute.xlu0 7
        %1509 = vperm.xlu0 %1508, %v1242
        %v1510 = vpop.permute.xlu0 %1509
        %1512 = vset.pattern.permute.xlu0 7
        %1513 = vperm.xlu0 %1512, %v1243
        %v1514 = vpop.permute.xlu0 %1513
        %1516 = vset.pattern.permute.xlu0 7
        %1517 = vperm.xlu0 %1516, %v1244
        %v1518 = vpop.permute.xlu0 %1517
        %1520 = vset.pattern.permute.xlu0 7
        %1521 = vperm.xlu0 %1520, %v1245
        %v1522 = vpop.permute.xlu0 %1521
        %v1524 = vadd.f32 %v1504, %v1510
        %v1525 = vadd.f32 %v1505, %v1514
        %v1526 = vadd.f32 %v1506, %v1518
        %v1527 = vadd.f32 %v1507, %v1522
        %v1528 = vmax.f32 %v1524, 0.0
        %v1529 = vmax.f32 %v1525, 0.0
        %v1530 = vmax.f32 %v1526, 0.0
        %v1531 = vmax.f32 %v1527, 0.0
        %1532 = vmatprep.subr.mxu0 0.0
        %1533 = vmatpush1.msra.mxu0 0.0
        %1534 = vmatprep.subr.mxu0 0.0
        %1535 = vmatpush1.msra.mxu0 0.0
        %1536 = vmatprep.subr.mxu0 0.0
        %1537 = vmatpush1.msra.mxu0 0.0
        %1538 = vmatprep.subr.mxu0 0.0
        %1539 = vmatpush1.msra.mxu0 0.0
        %1540 = vmatprep.subr.mxu0 0.0
        %1541 = vmatpush1.msra.mxu0 0.0
        %1542 = vmatprep.subr.mxu0 0.0
        %1543 = vmatpush1.msra.mxu0 0.0
        %1544 = vmatprep.subr.mxu0 0.0
        %1545 = vmatpush1.msra.mxu0 0.0
        %1546 = vmatprep.subr.mxu0 0.0
        %1547 = vmatpush1.msra.mxu0 0.0
        %1548 = vmatprep.subr.mxu0 0.0
        %1549 = vmatpush1.msra.mxu0 0.0
        %1550 = vmatprep.subr.mxu0 0.0
        %1551 = vmatpush1.msra.mxu0 0.0
        %1552 = vmatprep.subr.mxu0 0.0
        %1553 = vmatpush1.msra.mxu0 0.0
        %1554 = vmatprep.subr.mxu0 0.0
        %1555 = vmatpush1.msra.mxu0 0.0
        %1556 = vmatprep.subr.mxu0 0.0
        %1557 = vmatpush1.msra.mxu0 %v1531
        %1558 = vmatprep.subr.mxu0 0.0
        %1559 = vmatpush1.msra.mxu0 %v1530
        %1560 = vmatprep.subr.mxu0 0.0
        %1561 = vmatpush1.msra.mxu0 %v1529
        %1562 = vmatprep.subr.mxu0 0.0
        %1563 = vmatpush1.msra.mxu0 %v1528
        %1564 = vmatprep.subr.mxu0 0.0
        %1565 = vmatpush2.msra.mxu0 0.0
        %1566 = vmatprep.subr.mxu0 0.0
        %1567 = vmatpush2.msra.mxu0 0.0
        %1568 = vmatprep.subr.mxu0 0.0
        %1569 = vmatpush2.msra.mxu0 0.0
        %1570 = vmatprep.subr.mxu0 0.0
        %1571 = vmatpush2.msra.mxu0 0.0
        %1572 = vmatprep.subr.mxu0 0.0
        %1573 = vmatpush2.msra.mxu0 0.0
        %1574 = vmatprep.subr.mxu0 0.0
        %1575 = vmatpush2.msra.mxu0 0.0
        %1576 = vmatprep.subr.mxu0 0.0
        %1577 = vmatpush2.msra.mxu0 0.0
        %1578 = vmatprep.subr.mxu0 0.0
        %1579 = vmatpush2.msra.mxu0 0.0
        %1580 = vmatprep.subr.mxu0 0.0
        %1581 = vmatpush2.msra.mxu0 0.0
        %1582 = vmatprep.subr.mxu0 0.0
        %1583 = vmatpush2.msra.mxu0 0.0
        %1584 = vmatprep.subr.mxu0 0.0
        %1585 = vmatpush2.msra.mxu0 0.0
        %1586 = vmatprep.subr.mxu0 0.0
        %1587 = vmatpush2.msra.mxu0 0.0
        %1588 = vmatprep.subr.mxu0 0.0
        %1589 = vmatpush2.msra.mxu0 0.0
        %1590 = vmatprep.subr.mxu0 0.0
        %1591 = vmatpush2.msra.mxu0 0.0
        %1592 = vmatprep.subr.mxu0 0.0
        %1593 = vmatpush2.msra.mxu0 0.0
        %1594 = vmatprep.subr.mxu0 0.0
        %1595 = vmatpush2.msra.mxu0 0.0
        %1596 = vmatprep.mubr.f32.mxu0 0.0
        %1597 = vmatmul.mubr.f32.gmra.mxu0 %v953
        %v1598 = vpop.f32.mrf.mxu0
        %v1599 = vadd.f32 %v935, %v1598
        %v1600 = vpop.f32.mrf.mxu0
        %1601 = vmatprep.mubr.f32.mxu0 0.0
        %1602 = vmatmul.mubr.f32.gmra.mxu0 %v956
        %v1603 = vpop.f32.mrf.mxu0
        %v1604 = vadd.f32 %v940, %v1603
        %v1605 = vpop.f32.mrf.mxu0
        %1606 = vmatprep.mubr.f32.mxu0 0.0
        %1607 = vmatmul.mubr.f32.gmra.mxu0 %v959
        %v1608 = vpop.f32.mrf.mxu0
        %v1609 = vadd.f32 %v945, %v1608
        %v1610 = vpop.f32.mrf.mxu0
        %1611 = vmatprep.mubr.f32.mxu0 0.0
        %1612 = vmatmul.mubr.f32.gmra.mxu0 %v962
        %v1613 = vpop.f32.mrf.mxu0
        %v1614 = vadd.f32 %v950, %v1613
        %v1615 = vpop.f32.mrf.mxu0
        %1616 = vdwg.mxu0
        %v1617 = vadd.f32 %v1341, %v1599
        %v1618 = vadd.f32 %v1346, %v1604
        %v1619 = vadd.f32 %v1351, %v1609
        %v1620 = vadd.f32 %v1356, %v1614
        %1621 = vmatprep.subr.mxu0 0.0
        %1622 = vmatpush1.msra.mxu0 0.0
        %1623 = vmatprep.subr.mxu0 0.0
        %1624 = vmatpush1.msra.mxu0 0.0
        %1625 = vmatprep.subr.mxu0 0.0
        %1626 = vmatpush1.msra.mxu0 0.0
        %1627 = vmatprep.subr.mxu0 0.0
        %1628 = vmatpush1.msra.mxu0 0.0
        %1629 = vmatprep.subr.mxu0 0.0
        %1630 = vmatpush1.msra.mxu0 0.0
        %1631 = vmatprep.subr.mxu0 0.0
        %1632 = vmatpush1.msra.mxu0 0.0
        %1633 = vmatprep.subr.mxu0 0.0
        %1634 = vmatpush1.msra.mxu0 0.0
        %1635 = vmatprep.subr.mxu0 0.0
        %1636 = vmatpush1.msra.mxu0 0.0
        %1637 = vmatprep.subr.mxu0 0.0
        %1638 = vmatpush1.msra.mxu0 0.0
        %1639 = vmatprep.subr.mxu0 0.0
        %1640 = vmatpush1.msra.mxu0 0.0
        %1641 = vmatprep.subr.mxu0 0.0
        %1642 = vmatpush1.msra.mxu0 0.0
        %1643 = vmatprep.subr.mxu0 0.0
        %1644 = vmatpush1.msra.mxu0 0.0
        %1645 = vmatprep.subr.mxu0 0.0
        %1646 = vmatpush1.msra.mxu0 %v1620
        %1647 = vmatprep.subr.mxu0 0.0
        %1648 = vmatpush1.msra.mxu0 %v1619
        %1649 = vmatprep.subr.mxu0 0.0
        %1650 = vmatpush1.msra.mxu0 %v1618
        %1651 = vmatprep.subr.mxu0 0.0
        %1652 = vmatpush1.msra.mxu0 %v1617
        %1653 = vmatprep.subr.mxu0 0.0
        %1654 = vmatpush2.msra.mxu0 0.0
        %1655 = vmatprep.subr.mxu0 0.0
        %1656 = vmatpush2.msra.mxu0 0.0
        %1657 = vmatprep.subr.mxu0 0.0
        %1658 = vmatpush2.msra.mxu0 0.0
        %1659 = vmatprep.subr.mxu0 0.0
        %1660 = vmatpush2.msra.mxu0 0.0
        %1661 = vmatprep.subr.mxu0 0.0
        %1662 = vmatpush2.msra.mxu0 0.0
        %1663 = vmatprep.subr.mxu0 0.0
        %1664 = vmatpush2.msra.mxu0 0.0
        %1665 = vmatprep.subr.mxu0 0.0
        %1666 = vmatpush2.msra.mxu0 0.0
        %1667 = vmatprep.subr.mxu0 0.0
        %1668 = vmatpush2.msra.mxu0 0.0
        %1669 = vmatprep.subr.mxu0 0.0
        %1670 = vmatpush2.msra.mxu0 0.0
        %1671 = vmatprep.subr.mxu0 0.0
        %1672 = vmatpush2.msra.mxu0 0.0
        %1673 = vmatprep.subr.mxu0 0.0
        %1674 = vmatpush2.msra.mxu0 0.0
        %1675 = vmatprep.subr.mxu0 0.0
        %1676 = vmatpush2.msra.mxu0 0.0
        %1677 = vmatprep.subr.mxu0 0.0
        %1678 = vmatpush2.msra.mxu0 0.0
        %1679 = vmatprep.subr.mxu0 0.0
        %1680 = vmatpush2.msra.mxu0 0.0
        %1681 = vmatprep.subr.mxu0 0.0
        %1682 = vmatpush2.msra.mxu0 0.0
        %1683 = vmatprep.subr.mxu0 0.0
        %1684 = vmatpush2.msra.mxu0 0.0
        %1685 = vmatprep.mubr.f32.mxu0 0.0
        %1686 = vmatmul.mubr.f32.gmra.mxu0 %v1063
        %v1687 = vpop.f32.mrf.mxu0
        %v1688 = vadd.f32 %v1061, %v1687
        %v1689 = vpop.f32.mrf.mxu0
        %1690 = vdwg.mxu0
        %v1691 = vadd.f32 %v1688, 1.0
        %v1692 = vmul.f32 %v1240, %v1691
        %v1693 = vadd.f32 %v1137, %v1692
        %1694 = vset.pattern.permute.xlu0 2
        %1695 = vperm.xlu0 %1694, %v480
        %v1696 = vpop.permute.xlu0 %1695
        %v1698 = vsub.f32 %v479, %v1696
        %s1699 = scalar_lea.vmem %s470, 8
        %v1700 = vld [vmem:[%s1699] sm:$0x7]
        %v1702 = vsel %vm507, %v1700, 0
        %v1705 = vsel %vm511, %v1698, 0
        %1707 = vmatprep.subr.mxu0 0.0
        %1708 = vmatpush1.msra.mxu0 0.0
        %1709 = vmatprep.subr.mxu0 0.0
        %1710 = vmatpush1.msra.mxu0 0.0
        %1711 = vmatprep.subr.mxu0 0.0
        %1712 = vmatpush1.msra.mxu0 0.0
        %1713 = vmatprep.subr.mxu0 0.0
        %1714 = vmatpush1.msra.mxu0 0.0
        %1715 = vmatprep.subr.mxu0 0.0
        %1716 = vmatpush1.msra.mxu0 0.0
        %1717 = vmatprep.subr.mxu0 0.0
        %1718 = vmatpush1.msra.mxu0 0.0
        %1719 = vmatprep.subr.mxu0 0.0
        %1720 = vmatpush1.msra.mxu0 0.0
        %1721 = vmatprep.subr.mxu0 0.0
        %1722 = vmatpush1.msra.mxu0 0.0
        %1723 = vmatprep.subr.mxu0 0.0
        %1724 = vmatpush1.msra.mxu0 0.0
        %1725 = vmatprep.subr.mxu0 0.0
        %1726 = vmatpush1.msra.mxu0 0.0
        %1727 = vmatprep.subr.mxu0 0.0
        %1728 = vmatpush1.msra.mxu0 0.0
        %1729 = vmatprep.subr.mxu0 0.0
        %1730 = vmatpush1.msra.mxu0 0.0
        %1731 = vmatprep.subr.mxu0 0.0
        %1732 = vmatpush1.msra.mxu0 0.0
        %1733 = vmatprep.subr.mxu0 0.0
        %1734 = vmatpush1.msra.mxu0 0.0
        %1735 = vmatprep.subr.mxu0 0.0
        %1736 = vmatpush1.msra.mxu0 0.0
        %1737 = vmatprep.subr.mxu0 0.0
        %1738 = vmatpush1.msra.mxu0 %v1705
        %1739 = vmatprep.subr.mxu0 0.0
        %1740 = vmatpush2.msra.mxu0 0.0
        %1741 = vmatprep.subr.mxu0 0.0
        %1742 = vmatpush2.msra.mxu0 0.0
        %1743 = vmatprep.subr.mxu0 0.0
        %1744 = vmatpush2.msra.mxu0 0.0
        %1745 = vmatprep.subr.mxu0 0.0
        %1746 = vmatpush2.msra.mxu0 0.0
        %1747 = vmatprep.subr.mxu0 0.0
        %1748 = vmatpush2.msra.mxu0 0.0
        %1749 = vmatprep.subr.mxu0 0.0
        %1750 = vmatpush2.msra.mxu0 0.0
        %1751 = vmatprep.subr.mxu0 0.0
        %1752 = vmatpush2.msra.mxu0 0.0
        %1753 = vmatprep.subr.mxu0 0.0
        %1754 = vmatpush2.msra.mxu0 0.0
        %1755 = vmatprep.subr.mxu0 0.0
        %1756 = vmatpush2.msra.mxu0 0.0
        %1757 = vmatprep.subr.mxu0 0.0
        %1758 = vmatpush2.msra.mxu0 0.0
        %1759 = vmatprep.subr.mxu0 0.0
        %1760 = vmatpush2.msra.mxu0 0.0
        %1761 = vmatprep.subr.mxu0 0.0
        %1762 = vmatpush2.msra.mxu0 0.0
        %1763 = vmatprep.subr.mxu0 0.0
        %1764 = vmatpush2.msra.mxu0 0.0
        %1765 = vmatprep.subr.mxu0 0.0
        %1766 = vmatpush2.msra.mxu0 0.0
        %1767 = vmatprep.subr.mxu0 0.0
        %1768 = vmatpush2.msra.mxu0 0.0
        %1769 = vmatprep.subr.mxu0 0.0
        %1770 = vmatpush2.msra.mxu0 0.0
        %1771 = vmatprep.mubr.f32.mxu0 0.0
        %1772 = vmatmul.mubr.f32.gmra.mxu0 %v1702
        %v1773 = vpop.f32.mrf.mxu0
        %v1774 = vadd.f32 0.0, %v1773
        %v1775 = vpop.f32.mrf.mxu0
        %1776 = vdwg.mxu0
        %v1777 = vmul.f32 %v1774, %v1698
        %v1779 = vrot.slane %v1777, 1
        %v1781 = vadd.f32 %v1777, %v1779
        %v1782 = vrot.slane %v1777, 2
        %v1784 = vadd.f32 %v1781, %v1782
        %v1785 = vmul.f32 %v1784, -0.5
        %v1786 = vmul.f32 %v1785, 1.442695
        %v1787 = vpow.pop %v1786
        %1788 = vset.pattern.permute.xlu0 2
        %1789 = vperm.xlu0 %1788, %v481
        %v1790 = vpop.permute.xlu0 %1789
        %v1792 = vlaneseq
        %v1793 = vshrl.u32 %v1792, 7
        %v1794 = vsub.s32 0, %v1793
        %v1795 = vrot.slane %v1790, %v1794
        %v1796 = vmul.f32 %v1795, %v1787
        %s1797 = scalar_lea.vmem %s478, 64
        %v1798 = vld [vmem:[%s1797] sm:$0xff]
        %v1799 = vld [vmem:[%s1797 + $0x8] sm:$0xff]
        %v1800 = vld [vmem:[%s1797 + $0x10] sm:$0xff]
        %v1801 = vld [vmem:[%s1797 + $0x18] sm:$0xff]
        %1803 = vset.pattern.permute.xlu0 3
        %1804 = vperm.xlu0 %1803, %v1798
        %v1805 = vpop.permute.xlu0 %1804
        %1808 = vset.pattern.permute.xlu0 3
        %1809 = vperm.xlu0 %1808, %v1799
        %v1810 = vpop.permute.xlu0 %1809
        %1813 = vset.pattern.permute.xlu0 3
        %1814 = vperm.xlu0 %1813, %v1800
        %v1815 = vpop.permute.xlu0 %1814
        %1818 = vset.pattern.permute.xlu0 3
        %1819 = vperm.xlu0 %1818, %v1801
        %v1820 = vpop.permute.xlu0 %1819
        %v1822 = vsel %vm507, %v1798, 0
        %v1824 = vsel %vm507, %v1799, 0
        %v1826 = vsel %vm507, %v1800, 0
        %v1828 = vsel %vm507, %v1801, 0
        %1830 = vmatprep.subr.mxu0 0.0
        %1831 = vmatpush1.msra.mxu0 0.0
        %1832 = vmatprep.subr.mxu0 0.0
        %1833 = vmatpush1.msra.mxu0 0.0
        %1834 = vmatprep.subr.mxu0 0.0
        %1835 = vmatpush1.msra.mxu0 0.0
        %1836 = vmatprep.subr.mxu0 0.0
        %1837 = vmatpush1.msra.mxu0 0.0
        %1838 = vmatprep.subr.mxu0 0.0
        %1839 = vmatpush1.msra.mxu0 0.0
        %1840 = vmatprep.subr.mxu0 0.0
        %1841 = vmatpush1.msra.mxu0 0.0
        %1842 = vmatprep.subr.mxu0 0.0
        %1843 = vmatpush1.msra.mxu0 0.0
        %1844 = vmatprep.subr.mxu0 0.0
        %1845 = vmatpush1.msra.mxu0 0.0
        %1846 = vmatprep.subr.mxu0 0.0
        %1847 = vmatpush1.msra.mxu0 0.0
        %1848 = vmatprep.subr.mxu0 0.0
        %1849 = vmatpush1.msra.mxu0 0.0
        %1850 = vmatprep.subr.mxu0 0.0
        %1851 = vmatpush1.msra.mxu0 0.0
        %1852 = vmatprep.subr.mxu0 0.0
        %1853 = vmatpush1.msra.mxu0 0.0
        %1854 = vmatprep.subr.mxu0 0.0
        %1855 = vmatpush1.msra.mxu0 0.0
        %1856 = vmatprep.subr.mxu0 0.0
        %1857 = vmatpush1.msra.mxu0 0.0
        %1858 = vmatprep.subr.mxu0 0.0
        %1859 = vmatpush1.msra.mxu0 0.0
        %1860 = vmatprep.subr.mxu0 0.0
        %1861 = vmatpush1.msra.mxu0 %v639
        %1862 = vmatprep.subr.mxu0 0.0
        %1863 = vmatpush2.msra.mxu0 0.0
        %1864 = vmatprep.subr.mxu0 0.0
        %1865 = vmatpush2.msra.mxu0 0.0
        %1866 = vmatprep.subr.mxu0 0.0
        %1867 = vmatpush2.msra.mxu0 0.0
        %1868 = vmatprep.subr.mxu0 0.0
        %1869 = vmatpush2.msra.mxu0 0.0
        %1870 = vmatprep.subr.mxu0 0.0
        %1871 = vmatpush2.msra.mxu0 0.0
        %1872 = vmatprep.subr.mxu0 0.0
        %1873 = vmatpush2.msra.mxu0 0.0
        %1874 = vmatprep.subr.mxu0 0.0
        %1875 = vmatpush2.msra.mxu0 0.0
        %1876 = vmatprep.subr.mxu0 0.0
        %1877 = vmatpush2.msra.mxu0 0.0
        %1878 = vmatprep.subr.mxu0 0.0
        %1879 = vmatpush2.msra.mxu0 0.0
        %1880 = vmatprep.subr.mxu0 0.0
        %1881 = vmatpush2.msra.mxu0 0.0
        %1882 = vmatprep.subr.mxu0 0.0
        %1883 = vmatpush2.msra.mxu0 0.0
        %1884 = vmatprep.subr.mxu0 0.0
        %1885 = vmatpush2.msra.mxu0 0.0
        %1886 = vmatprep.subr.mxu0 0.0
        %1887 = vmatpush2.msra.mxu0 0.0
        %1888 = vmatprep.subr.mxu0 0.0
        %1889 = vmatpush2.msra.mxu0 0.0
        %1890 = vmatprep.subr.mxu0 0.0
        %1891 = vmatpush2.msra.mxu0 0.0
        %1892 = vmatprep.subr.mxu0 0.0
        %1893 = vmatpush2.msra.mxu0 0.0
        %1894 = vmatprep.mubr.f32.mxu0 0.0
        %1895 = vmatmul.mubr.f32.gmra.mxu0 %v1822
        %v1896 = vpop.f32.mrf.mxu0
        %v1897 = vadd.f32 %v1805, %v1896
        %v1898 = vpop.f32.mrf.mxu0
        %1899 = vmatprep.mubr.f32.mxu0 0.0
        %1900 = vmatmul.mubr.f32.gmra.mxu0 %v1824
        %v1901 = vpop.f32.mrf.mxu0
        %v1902 = vadd.f32 %v1810, %v1901
        %v1903 = vpop.f32.mrf.mxu0
        %1904 = vmatprep.mubr.f32.mxu0 0.0
        %1905 = vmatmul.mubr.f32.gmra.mxu0 %v1826
        %v1906 = vpop.f32.mrf.mxu0
        %v1907 = vadd.f32 %v1815, %v1906
        %v1908 = vpop.f32.mrf.mxu0
        %1909 = vmatprep.mubr.f32.mxu0 0.0
        %1910 = vmatmul.mubr.f32.gmra.mxu0 %v1828
        %v1911 = vpop.f32.mrf.mxu0
        %v1912 = vadd.f32 %v1820, %v1911
        %v1913 = vpop.f32.mrf.mxu0
        %1914 = vdwg.mxu0
        %1915 = vset.pattern.permute.xlu0 4
        %1916 = vperm.xlu0 %1915, %v1798
        %v1917 = vpop.permute.xlu0 %1916
        %1919 = vset.pattern.permute.xlu0 4
        %1920 = vperm.xlu0 %1919, %v1799
        %v1921 = vpop.permute.xlu0 %1920
        %1923 = vset.pattern.permute.xlu0 4
        %1924 = vperm.xlu0 %1923, %v1800
        %v1925 = vpop.permute.xlu0 %1924
        %1927 = vset.pattern.permute.xlu0 4
        %1928 = vperm.xlu0 %1927, %v1801
        %v1929 = vpop.permute.xlu0 %1928
        %v1931 = vmul.f32 %v1917, %v1897
        %v1932 = vmul.f32 %v1921, %v1902
        %v1933 = vmul.f32 %v1925, %v1907
        %v1934 = vmul.f32 %v1929, %v1912
        %1935 = vset.pattern.permute.xlu0 5
        %1936 = vperm.xlu0 %1935, %v1798
        %v1937 = vpop.permute.xlu0 %1936
        %1939 = vset.pattern.permute.xlu0 5
        %1940 = vperm.xlu0 %1939, %v1799
        %v1941 = vpop.permute.xlu0 %1940
        %1943 = vset.pattern.permute.xlu0 5
        %1944 = vperm.xlu0 %1943, %v1800
        %v1945 = vpop.permute.xlu0 %1944
        %1947 = vset.pattern.permute.xlu0 5
        %1948 = vperm.xlu0 %1947, %v1801
        %v1949 = vpop.permute.xlu0 %1948
        %v1951 = vadd.f32 %v1931, %v1937
        %v1952 = vadd.f32 %v1932, %v1941
        %v1953 = vadd.f32 %v1933, %v1945
        %v1954 = vadd.f32 %v1934, %v1949
        %v1955 = vmax.f32 %v1951, 0.0
        %v1956 = vmax.f32 %v1952, 0.0
        %v1957 = vmax.f32 %v1953, 0.0
        %v1958 = vmax.f32 %v1954, 0.0
        %1959 = vmatprep.subr.mxu0 0.0
        %1960 = vmatpush1.msra.mxu0 0.0
        %1961 = vmatprep.subr.mxu0 0.0
        %1962 = vmatpush1.msra.mxu0 0.0
        %1963 = vmatprep.subr.mxu0 0.0
        %1964 = vmatpush1.msra.mxu0 0.0
        %1965 = vmatprep.subr.mxu0 0.0
        %1966 = vmatpush1.msra.mxu0 0.0
        %1967 = vmatprep.subr.mxu0 0.0
        %1968 = vmatpush1.msra.mxu0 0.0
        %1969 = vmatprep.subr.mxu0 0.0
        %1970 = vmatpush1.msra.mxu0 0.0
        %1971 = vmatprep.subr.mxu0 0.0
        %1972 = vmatpush1.msra.mxu0 0.0
        %1973 = vmatprep.subr.mxu0 0.0
        %1974 = vmatpush1.msra.mxu0 0.0
        %1975 = vmatprep.subr.mxu0 0.0
        %1976 = vmatpush1.msra.mxu0 0.0
        %1977 = vmatprep.subr.mxu0 0.0
        %1978 = vmatpush1.msra.mxu0 0.0
        %1979 = vmatprep.subr.mxu0 0.0
        %1980 = vmatpush1.msra.mxu0 0.0
        %1981 = vmatprep.subr.mxu0 0.0
        %1982 = vmatpush1.msra.mxu0 0.0
        %1983 = vmatprep.subr.mxu0 0.0
        %1984 = vmatpush1.msra.mxu0 %v1958
        %1985 = vmatprep.subr.mxu0 0.0
        %1986 = vmatpush1.msra.mxu0 %v1957
        %1987 = vmatprep.subr.mxu0 0.0
        %1988 = vmatpush1.msra.mxu0 %v1956
        %1989 = vmatprep.subr.mxu0 0.0
        %1990 = vmatpush1.msra.mxu0 %v1955
        %1991 = vmatprep.subr.mxu0 0.0
        %1992 = vmatpush2.msra.mxu0 0.0
        %1993 = vmatprep.subr.mxu0 0.0
        %1994 = vmatpush2.msra.mxu0 0.0
        %1995 = vmatprep.subr.mxu0 0.0
        %1996 = vmatpush2.msra.mxu0 0.0
        %1997 = vmatprep.subr.mxu0 0.0
        %1998 = vmatpush2.msra.mxu0 0.0
        %1999 = vmatprep.subr.mxu0 0.0
        %2000 = vmatpush2.msra.mxu0 0.0
        %2001 = vmatprep.subr.mxu0 0.0
        %2002 = vmatpush2.msra.mxu0 0.0
        %2003 = vmatprep.subr.mxu0 0.0
        %2004 = vmatpush2.msra.mxu0 0.0
        %2005 = vmatprep.subr.mxu0 0.0
        %2006 = vmatpush2.msra.mxu0 0.0
        %2007 = vmatprep.subr.mxu0 0.0
        %2008 = vmatpush2.msra.mxu0 0.0
        %2009 = vmatprep.subr.mxu0 0.0
        %2010 = vmatpush2.msra.mxu0 0.0
        %2011 = vmatprep.subr.mxu0 0.0
        %2012 = vmatpush2.msra.mxu0 0.0
        %2013 = vmatprep.subr.mxu0 0.0
        %2014 = vmatpush2.msra.mxu0 0.0
        %2015 = vmatprep.subr.mxu0 0.0
        %2016 = vmatpush2.msra.mxu0 0.0
        %2017 = vmatprep.subr.mxu0 0.0
        %2018 = vmatpush2.msra.mxu0 0.0
        %2019 = vmatprep.subr.mxu0 0.0
        %2020 = vmatpush2.msra.mxu0 0.0
        %2021 = vmatprep.subr.mxu0 0.0
        %2022 = vmatpush2.msra.mxu0 0.0
        %2023 = vmatprep.mubr.f32.mxu0 0.0
        %2024 = vmatmul.mubr.f32.gmra.mxu0 %v792
        %v2025 = vpop.f32.mrf.mxu0
        %v2026 = vadd.f32 %v773, %v2025
        %v2027 = vpop.f32.mrf.mxu0
        %2028 = vmatprep.mubr.f32.mxu0 0.0
        %2029 = vmatmul.mubr.f32.gmra.mxu0 %v795
        %v2030 = vpop.f32.mrf.mxu0
        %v2031 = vadd.f32 %v778, %v2030
        %v2032 = vpop.f32.mrf.mxu0
        %2033 = vmatprep.mubr.f32.mxu0 0.0
        %2034 = vmatmul.mubr.f32.gmra.mxu0 %v798
        %v2035 = vpop.f32.mrf.mxu0
        %v2036 = vadd.f32 %v783, %v2035
        %v2037 = vpop.f32.mrf.mxu0
        %2038 = vmatprep.mubr.f32.mxu0 0.0
        %2039 = vmatmul.mubr.f32.gmra.mxu0 %v801
        %v2040 = vpop.f32.mrf.mxu0
        %v2041 = vadd.f32 %v788, %v2040
        %v2042 = vpop.f32.mrf.mxu0
        %2043 = vdwg.mxu0
        %2044 = vset.pattern.permute.xlu0 6
        %2045 = vperm.xlu0 %2044, %v1798
        %v2046 = vpop.permute.xlu0 %2045
        %2048 = vset.pattern.permute.xlu0 6
        %2049 = vperm.xlu0 %2048, %v1799
        %v2050 = vpop.permute.xlu0 %2049
        %2052 = vset.pattern.permute.xlu0 6
        %2053 = vperm.xlu0 %2052, %v1800
        %v2054 = vpop.permute.xlu0 %2053
        %2056 = vset.pattern.permute.xlu0 6
        %2057 = vperm.xlu0 %2056, %v1801
        %v2058 = vpop.permute.xlu0 %2057
        %v2060 = vmul.f32 %v2046, %v2026
        %v2061 = vmul.f32 %v2050, %v2031
        %v2062 = vmul.f32 %v2054, %v2036
        %v2063 = vmul.f32 %v2058, %v2041
        %2064 = vset.pattern.permute.xlu0 7
        %2065 = vperm.xlu0 %2064, %v1798
        %v2066 = vpop.permute.xlu0 %2065
        %2068 = vset.pattern.permute.xlu0 7
        %2069 = vperm.xlu0 %2068, %v1799
        %v2070 = vpop.permute.xlu0 %2069
        %2072 = vset.pattern.permute.xlu0 7
        %2073 = vperm.xlu0 %2072, %v1800
        %v2074 = vpop.permute.xlu0 %2073
        %2076 = vset.pattern.permute.xlu0 7
        %2077 = vperm.xlu0 %2076, %v1801
        %v2078 = vpop.permute.xlu0 %2077
        %v2080 = vadd.f32 %v2060, %v2066
        %v2081 = vadd.f32 %v2061, %v2070
        %v2082 = vadd.f32 %v2062, %v2074
        %v2083 = vadd.f32 %v2063, %v2078
        %v2084 = vmax.f32 %v2080, 0.0
        %v2085 = vmax.f32 %v2081, 0.0
        %v2086 = vmax.f32 %v2082, 0.0
        %v2087 = vmax.f32 %v2083, 0.0
        %2088 = vmatprep.subr.mxu0 0.0
        %2089 = vmatpush1.msra.mxu0 0.0
        %2090 = vmatprep.subr.mxu0 0.0
        %2091 = vmatpush1.msra.mxu0 0.0
        %2092 = vmatprep.subr.mxu0 0.0
        %2093 = vmatpush1.msra.mxu0 0.0
        %2094 = vmatprep.subr.mxu0 0.0
        %2095 = vmatpush1.msra.mxu0 0.0
        %2096 = vmatprep.subr.mxu0 0.0
        %2097 = vmatpush1.msra.mxu0 0.0
        %2098 = vmatprep.subr.mxu0 0.0
        %2099 = vmatpush1.msra.mxu0 0.0
        %2100 = vmatprep.subr.mxu0 0.0
        %2101 = vmatpush1.msra.mxu0 0.0
        %2102 = vmatprep.subr.mxu0 0.0
        %2103 = vmatpush1.msra.mxu0 0.0
        %2104 = vmatprep.subr.mxu0 0.0
        %2105 = vmatpush1.msra.mxu0 0.0
        %2106 = vmatprep.subr.mxu0 0.0
        %2107 = vmatpush1.msra.mxu0 0.0
        %2108 = vmatprep.subr.mxu0 0.0
        %2109 = vmatpush1.msra.mxu0 0.0
        %2110 = vmatprep.subr.mxu0 0.0
        %2111 = vmatpush1.msra.mxu0 0.0
        %2112 = vmatprep.subr.mxu0 0.0
        %2113 = vmatpush1.msra.mxu0 %v2087
        %2114 = vmatprep.subr.mxu0 0.0
        %2115 = vmatpush1.msra.mxu0 %v2086
        %2116 = vmatprep.subr.mxu0 0.0
        %2117 = vmatpush1.msra.mxu0 %v2085
        %2118 = vmatprep.subr.mxu0 0.0
        %2119 = vmatpush1.msra.mxu0 %v2084
        %2120 = vmatprep.subr.mxu0 0.0
        %2121 = vmatpush2.msra.mxu0 0.0
        %2122 = vmatprep.subr.mxu0 0.0
        %2123 = vmatpush2.msra.mxu0 0.0
        %2124 = vmatprep.subr.mxu0 0.0
        %2125 = vmatpush2.msra.mxu0 0.0
        %2126 = vmatprep.subr.mxu0 0.0
        %2127 = vmatpush2.msra.mxu0 0.0
        %2128 = vmatprep.subr.mxu0 0.0
        %2129 = vmatpush2.msra.mxu0 0.0
        %2130 = vmatprep.subr.mxu0 0.0
        %2131 = vmatpush2.msra.mxu0 0.0
        %2132 = vmatprep.subr.mxu0 0.0
        %2133 = vmatpush2.msra.mxu0 0.0
        %2134 = vmatprep.subr.mxu0 0.0
        %2135 = vmatpush2.msra.mxu0 0.0
        %2136 = vmatprep.subr.mxu0 0.0
        %2137 = vmatpush2.msra.mxu0 0.0
        %2138 = vmatprep.subr.mxu0 0.0
        %2139 = vmatpush2.msra.mxu0 0.0
        %2140 = vmatprep.subr.mxu0 0.0
        %2141 = vmatpush2.msra.mxu0 0.0
        %2142 = vmatprep.subr.mxu0 0.0
        %2143 = vmatpush2.msra.mxu0 0.0
        %2144 = vmatprep.subr.mxu0 0.0
        %2145 = vmatpush2.msra.mxu0 0.0
        %2146 = vmatprep.subr.mxu0 0.0
        %2147 = vmatpush2.msra.mxu0 0.0
        %2148 = vmatprep.subr.mxu0 0.0
        %2149 = vmatpush2.msra.mxu0 0.0
        %2150 = vmatprep.subr.mxu0 0.0
        %2151 = vmatpush2.msra.mxu0 0.0
        %2152 = vmatprep.mubr.f32.mxu0 0.0
        %2153 = vmatmul.mubr.f32.gmra.mxu0 %v953
        %v2154 = vpop.f32.mrf.mxu0
        %v2155 = vadd.f32 %v935, %v2154
        %v2156 = vpop.f32.mrf.mxu0
        %2157 = vmatprep.mubr.f32.mxu0 0.0
        %2158 = vmatmul.mubr.f32.gmra.mxu0 %v956
        %v2159 = vpop.f32.mrf.mxu0
        %v2160 = vadd.f32 %v940, %v2159
        %v2161 = vpop.f32.mrf.mxu0
        %2162 = vmatprep.mubr.f32.mxu0 0.0
        %2163 = vmatmul.mubr.f32.gmra.mxu0 %v959
        %v2164 = vpop.f32.mrf.mxu0
        %v2165 = vadd.f32 %v945, %v2164
        %v2166 = vpop.f32.mrf.mxu0
        %2167 = vmatprep.mubr.f32.mxu0 0.0
        %2168 = vmatmul.mubr.f32.gmra.mxu0 %v962
        %v2169 = vpop.f32.mrf.mxu0
        %v2170 = vadd.f32 %v950, %v2169
        %v2171 = vpop.f32.mrf.mxu0
        %2172 = vdwg.mxu0
        %v2173 = vadd.f32 %v1897, %v2155
        %v2174 = vadd.f32 %v1902, %v2160
        %v2175 = vadd.f32 %v1907, %v2165
        %v2176 = vadd.f32 %v1912, %v2170
        %2177 = vmatprep.subr.mxu0 0.0
        %2178 = vmatpush1.msra.mxu0 0.0
        %2179 = vmatprep.subr.mxu0 0.0
        %2180 = vmatpush1.msra.mxu0 0.0
        %2181 = vmatprep.subr.mxu0 0.0
        %2182 = vmatpush1.msra.mxu0 0.0
        %2183 = vmatprep.subr.mxu0 0.0
        %2184 = vmatpush1.msra.mxu0 0.0
        %2185 = vmatprep.subr.mxu0 0.0
        %2186 = vmatpush1.msra.mxu0 0.0
        %2187 = vmatprep.subr.mxu0 0.0
        %2188 = vmatpush1.msra.mxu0 0.0
        %2189 = vmatprep.subr.mxu0 0.0
        %2190 = vmatpush1.msra.mxu0 0.0
        %2191 = vmatprep.subr.mxu0 0.0
        %2192 = vmatpush1.msra.mxu0 0.0
        %2193 = vmatprep.subr.mxu0 0.0
        %2194 = vmatpush1.msra.mxu0 0.0
        %2195 = vmatprep.subr.mxu0 0.0
        %2196 = vmatpush1.msra.mxu0 0.0
        %2197 = vmatprep.subr.mxu0 0.0
        %2198 = vmatpush1.msra.mxu0 0.0
        %2199 = vmatprep.subr.mxu0 0.0
        %2200 = vmatpush1.msra.mxu0 0.0
        %2201 = vmatprep.subr.mxu0 0.0
        %2202 = vmatpush1.msra.mxu0 %v2176
        %2203 = vmatprep.subr.mxu0 0.0
        %2204 = vmatpush1.msra.mxu0 %v2175
        %2205 = vmatprep.subr.mxu0 0.0
        %2206 = vmatpush1.msra.mxu0 %v2174
        %2207 = vmatprep.subr.mxu0 0.0
        %2208 = vmatpush1.msra.mxu0 %v2173
        %2209 = vmatprep.subr.mxu0 0.0
        %2210 = vmatpush2.msra.mxu0 0.0
        %2211 = vmatprep.subr.mxu0 0.0
        %2212 = vmatpush2.msra.mxu0 0.0
        %2213 = vmatprep.subr.mxu0 0.0
        %2214 = vmatpush2.msra.mxu0 0.0
        %2215 = vmatprep.subr.mxu0 0.0
        %2216 = vmatpush2.msra.mxu0 0.0
        %2217 = vmatprep.subr.mxu0 0.0
        %2218 = vmatpush2.msra.mxu0 0.0
        %2219 = vmatprep.subr.mxu0 0.0
        %2220 = vmatpush2.msra.mxu0 0.0
        %2221 = vmatprep.subr.mxu0 0.0
        %2222 = vmatpush2.msra.mxu0 0.0
        %2223 = vmatprep.subr.mxu0 0.0
        %2224 = vmatpush2.msra.mxu0 0.0
        %2225 = vmatprep.subr.mxu0 0.0
        %2226 = vmatpush2.msra.mxu0 0.0
        %2227 = vmatprep.subr.mxu0 0.0
        %2228 = vmatpush2.msra.mxu0 0.0
        %2229 = vmatprep.subr.mxu0 0.0
        %2230 = vmatpush2.msra.mxu0 0.0
        %2231 = vmatprep.subr.mxu0 0.0
        %2232 = vmatpush2.msra.mxu0 0.0
        %2233 = vmatprep.subr.mxu0 0.0
        %2234 = vmatpush2.msra.mxu0 0.0
        %2235 = vmatprep.subr.mxu0 0.0
        %2236 = vmatpush2.msra.mxu0 0.0
        %2237 = vmatprep.subr.mxu0 0.0
        %2238 = vmatpush2.msra.mxu0 0.0
        %2239 = vmatprep.subr.mxu0 0.0
        %2240 = vmatpush2.msra.mxu0 0.0
        %2241 = vmatprep.mubr.f32.mxu0 0.0
        %2242 = vmatmul.mubr.f32.gmra.mxu0 %v1063
        %v2243 = vpop.f32.mrf.mxu0
        %v2244 = vadd.f32 %v1061, %v2243
        %v2245 = vpop.f32.mrf.mxu0
        %2246 = vdwg.mxu0
        %v2247 = vadd.f32 %v2244, 1.0
        %v2248 = vmul.f32 %v1796, %v2247
        %v2249 = vadd.f32 %v1693, %v2248
        %2250 = vset.pattern.permute.xlu0 3
        %2251 = vperm.xlu0 %2250, %v480
        %v2252 = vpop.permute.xlu0 %2251
        %v2254 = vsub.f32 %v479, %v2252
        %s2255 = scalar_lea.vmem %s470, 12
        %v2256 = vld [vmem:[%s2255] sm:$0x7]
        %v2258 = vsel %vm507, %v2256, 0
        %v2261 = vsel %vm511, %v2254, 0
        %2263 = vmatprep.subr.mxu0 0.0
        %2264 = vmatpush1.msra.mxu0 0.0
        %2265 = vmatprep.subr.mxu0 0.0
        %2266 = vmatpush1.msra.mxu0 0.0
        %2267 = vmatprep.subr.mxu0 0.0
        %2268 = vmatpush1.msra.mxu0 0.0
        %2269 = vmatprep.subr.mxu0 0.0
        %2270 = vmatpush1.msra.mxu0 0.0
        %2271 = vmatprep.subr.mxu0 0.0
        %2272 = vmatpush1.msra.mxu0 0.0
        %2273 = vmatprep.subr.mxu0 0.0
        %2274 = vmatpush1.msra.mxu0 0.0
        %2275 = vmatprep.subr.mxu0 0.0
        %2276 = vmatpush1.msra.mxu0 0.0
        %2277 = vmatprep.subr.mxu0 0.0
        %2278 = vmatpush1.msra.mxu0 0.0
        %2279 = vmatprep.subr.mxu0 0.0
        %2280 = vmatpush1.msra.mxu0 0.0
        %2281 = vmatprep.subr.mxu0 0.0
        %2282 = vmatpush1.msra.mxu0 0.0
        %2283 = vmatprep.subr.mxu0 0.0
        %2284 = vmatpush1.msra.mxu0 0.0
        %2285 = vmatprep.subr.mxu0 0.0
        %2286 = vmatpush1.msra.mxu0 0.0
        %2287 = vmatprep.subr.mxu0 0.0
        %2288 = vmatpush1.msra.mxu0 0.0
        %2289 = vmatprep.subr.mxu0 0.0
        %2290 = vmatpush1.msra.mxu0 0.0
        %2291 = vmatprep.subr.mxu0 0.0
        %2292 = vmatpush1.msra.mxu0 0.0
        %2293 = vmatprep.subr.mxu0 0.0
        %2294 = vmatpush1.msra.mxu0 %v2261
        %2295 = vmatprep.subr.mxu0 0.0
        %2296 = vmatpush2.msra.mxu0 0.0
        %2297 = vmatprep.subr.mxu0 0.0
        %2298 = vmatpush2.msra.mxu0 0.0
        %2299 = vmatprep.subr.mxu0 0.0
        %2300 = vmatpush2.msra.mxu0 0.0
        %2301 = vmatprep.subr.mxu0 0.0
        %2302 = vmatpush2.msra.mxu0 0.0
        %2303 = vmatprep.subr.mxu0 0.0
        %2304 = vmatpush2.msra.mxu0 0.0
        %2305 = vmatprep.subr.mxu0 0.0
        %2306 = vmatpush2.msra.mxu0 0.0
        %2307 = vmatprep.subr.mxu0 0.0
        %2308 = vmatpush2.msra.mxu0 0.0
        %2309 = vmatprep.subr.mxu0 0.0
        %2310 = vmatpush2.msra.mxu0 0.0
        %2311 = vmatprep.subr.mxu0 0.0
        %2312 = vmatpush2.msra.mxu0 0.0
        %2313 = vmatprep.subr.mxu0 0.0
        %2314 = vmatpush2.msra.mxu0 0.0
        %2315 = vmatprep.subr.mxu0 0.0
        %2316 = vmatpush2.msra.mxu0 0.0
        %2317 = vmatprep.subr.mxu0 0.0
        %2318 = vmatpush2.msra.mxu0 0.0
        %2319 = vmatprep.subr.mxu0 0.0
        %2320 = vmatpush2.msra.mxu0 0.0
        %2321 = vmatprep.subr.mxu0 0.0
        %2322 = vmatpush2.msra.mxu0 0.0
        %2323 = vmatprep.subr.mxu0 0.0
        %2324 = vmatpush2.msra.mxu0 0.0
        %2325 = vmatprep.subr.mxu0 0.0
        %2326 = vmatpush2.msra.mxu0 0.0
        %2327 = vmatprep.mubr.f32.mxu0 0.0
        %2328 = vmatmul.mubr.f32.gmra.mxu0 %v2258
        %v2329 = vpop.f32.mrf.mxu0
        %v2330 = vadd.f32 0.0, %v2329
        %v2331 = vpop.f32.mrf.mxu0
        %2332 = vdwg.mxu0
        %v2333 = vmul.f32 %v2330, %v2254
        %v2335 = vrot.slane %v2333, 1
        %v2337 = vadd.f32 %v2333, %v2335
        %v2338 = vrot.slane %v2333, 2
        %v2340 = vadd.f32 %v2337, %v2338
        %v2341 = vmul.f32 %v2340, -0.5
        %v2342 = vmul.f32 %v2341, 1.442695
        %v2343 = vpow.pop %v2342
        %2344 = vset.pattern.permute.xlu0 3
        %2345 = vperm.xlu0 %2344, %v481
        %v2346 = vpop.permute.xlu0 %2345
        %v2348 = vlaneseq
        %v2349 = vshrl.u32 %v2348, 7
        %v2350 = vsub.s32 0, %v2349
        %v2351 = vrot.slane %v2346, %v2350
        %v2352 = vmul.f32 %v2351, %v2343
        %s2353 = scalar_lea.vmem %s478, 96
        %v2354 = vld [vmem:[%s2353] sm:$0xff]
        %v2355 = vld [vmem:[%s2353 + $0x8] sm:$0xff]
        %v2356 = vld [vmem:[%s2353 + $0x10] sm:$0xff]
        %v2357 = vld [vmem:[%s2353 + $0x18] sm:$0xff]
        %2359 = vset.pattern.permute.xlu0 3
        %2360 = vperm.xlu0 %2359, %v2354
        %v2361 = vpop.permute.xlu0 %2360
        %2364 = vset.pattern.permute.xlu0 3
        %2365 = vperm.xlu0 %2364, %v2355
        %v2366 = vpop.permute.xlu0 %2365
        %2369 = vset.pattern.permute.xlu0 3
        %2370 = vperm.xlu0 %2369, %v2356
        %v2371 = vpop.permute.xlu0 %2370
        %2374 = vset.pattern.permute.xlu0 3
        %2375 = vperm.xlu0 %2374, %v2357
        %v2376 = vpop.permute.xlu0 %2375
        %v2378 = vsel %vm507, %v2354, 0
        %v2380 = vsel %vm507, %v2355, 0
        %v2382 = vsel %vm507, %v2356, 0
        %v2384 = vsel %vm507, %v2357, 0
        %2386 = vmatprep.subr.mxu0 0.0
        %2387 = vmatpush1.msra.mxu0 0.0
        %2388 = vmatprep.subr.mxu0 0.0
        %2389 = vmatpush1.msra.mxu0 0.0
        %2390 = vmatprep.subr.mxu0 0.0
        %2391 = vmatpush1.msra.mxu0 0.0
        %2392 = vmatprep.subr.mxu0 0.0
        %2393 = vmatpush1.msra.mxu0 0.0
        %2394 = vmatprep.subr.mxu0 0.0
        %2395 = vmatpush1.msra.mxu0 0.0
        %2396 = vmatprep.subr.mxu0 0.0
        %2397 = vmatpush1.msra.mxu0 0.0
        %2398 = vmatprep.subr.mxu0 0.0
        %2399 = vmatpush1.msra.mxu0 0.0
        %2400 = vmatprep.subr.mxu0 0.0
        %2401 = vmatpush1.msra.mxu0 0.0
        %2402 = vmatprep.subr.mxu0 0.0
        %2403 = vmatpush1.msra.mxu0 0.0
        %2404 = vmatprep.subr.mxu0 0.0
        %2405 = vmatpush1.msra.mxu0 0.0
        %2406 = vmatprep.subr.mxu0 0.0
        %2407 = vmatpush1.msra.mxu0 0.0
        %2408 = vmatprep.subr.mxu0 0.0
        %2409 = vmatpush1.msra.mxu0 0.0
        %2410 = vmatprep.subr.mxu0 0.0
        %2411 = vmatpush1.msra.mxu0 0.0
        %2412 = vmatprep.subr.mxu0 0.0
        %2413 = vmatpush1.msra.mxu0 0.0
        %2414 = vmatprep.subr.mxu0 0.0
        %2415 = vmatpush1.msra.mxu0 0.0
        %2416 = vmatprep.subr.mxu0 0.0
        %2417 = vmatpush1.msra.mxu0 %v639
        %2418 = vmatprep.subr.mxu0 0.0
        %2419 = vmatpush2.msra.mxu0 0.0
        %2420 = vmatprep.subr.mxu0 0.0
        %2421 = vmatpush2.msra.mxu0 0.0
        %2422 = vmatprep.subr.mxu0 0.0
        %2423 = vmatpush2.msra.mxu0 0.0
        %2424 = vmatprep.subr.mxu0 0.0
        %2425 = vmatpush2.msra.mxu0 0.0
        %2426 = vmatprep.subr.mxu0 0.0
        %2427 = vmatpush2.msra.mxu0 0.0
        %2428 = vmatprep.subr.mxu0 0.0
        %2429 = vmatpush2.msra.mxu0 0.0
        %2430 = vmatprep.subr.mxu0 0.0
        %2431 = vmatpush2.msra.mxu0 0.0
        %2432 = vmatprep.subr.mxu0 0.0
        %2433 = vmatpush2.msra.mxu0 0.0
        %2434 = vmatprep.subr.mxu0 0.0
        %2435 = vmatpush2.msra.mxu0 0.0
        %2436 = vmatprep.subr.mxu0 0.0
        %2437 = vmatpush2.msra.mxu0 0.0
        %2438 = vmatprep.subr.mxu0 0.0
        %2439 = vmatpush2.msra.mxu0 0.0
        %2440 = vmatprep.subr.mxu0 0.0
        %2441 = vmatpush2.msra.mxu0 0.0
        %2442 = vmatprep.subr.mxu0 0.0
        %2443 = vmatpush2.msra.mxu0 0.0
        %2444 = vmatprep.subr.mxu0 0.0
        %2445 = vmatpush2.msra.mxu0 0.0
        %2446 = vmatprep.subr.mxu0 0.0
        %2447 = vmatpush2.msra.mxu0 0.0
        %2448 = vmatprep.subr.mxu0 0.0
        %2449 = vmatpush2.msra.mxu0 0.0
        %2450 = vmatprep.mubr.f32.mxu0 0.0
        %2451 = vmatmul.mubr.f32.gmra.mxu0 %v2378
        %v2452 = vpop.f32.mrf.mxu0
        %v2453 = vadd.f32 %v2361, %v2452
        %v2454 = vpop.f32.mrf.mxu0
        %2455 = vmatprep.mubr.f32.mxu0 0.0
        %2456 = vmatmul.mubr.f32.gmra.mxu0 %v2380
        %v2457 = vpop.f32.mrf.mxu0
        %v2458 = vadd.f32 %v2366, %v2457
        %v2459 = vpop.f32.mrf.mxu0
        %2460 = vmatprep.mubr.f32.mxu0 0.0
        %2461 = vmatmul.mubr.f32.gmra.mxu0 %v2382
        %v2462 = vpop.f32.mrf.mxu0
        %v2463 = vadd.f32 %v2371, %v2462
        %v2464 = vpop.f32.mrf.mxu0
        %2465 = vmatprep.mubr.f32.mxu0 0.0
        %2466 = vmatmul.mubr.f32.gmra.mxu0 %v2384
        %v2467 = vpop.f32.mrf.mxu0
        %v2468 = vadd.f32 %v2376, %v2467
        %v2469 = vpop.f32.mrf.mxu0
        %2470 = vdwg.mxu0
        %2471 = vset.pattern.permute.xlu0 4
        %2472 = vperm.xlu0 %2471, %v2354
        %v2473 = vpop.permute.xlu0 %2472
        %2475 = vset.pattern.permute.xlu0 4
        %2476 = vperm.xlu0 %2475, %v2355
        %v2477 = vpop.permute.xlu0 %2476
        %2479 = vset.pattern.permute.xlu0 4
        %2480 = vperm.xlu0 %2479, %v2356
        %v2481 = vpop.permute.xlu0 %2480
        %2483 = vset.pattern.permute.xlu0 4
        %2484 = vperm.xlu0 %2483, %v2357
        %v2485 = vpop.permute.xlu0 %2484
        %v2487 = vmul.f32 %v2473, %v2453
        %v2488 = vmul.f32 %v2477, %v2458
        %v2489 = vmul.f32 %v2481, %v2463
        %v2490 = vmul.f32 %v2485, %v2468
        %2491 = vset.pattern.permute.xlu0 5
        %2492 = vperm.xlu0 %2491, %v2354
        %v2493 = vpop.permute.xlu0 %2492
        %2495 = vset.pattern.permute.xlu0 5
        %2496 = vperm.xlu0 %2495, %v2355
        %v2497 = vpop.permute.xlu0 %2496
        %2499 = vset.pattern.permute.xlu0 5
        %2500 = vperm.xlu0 %2499, %v2356
        %v2501 = vpop.permute.xlu0 %2500
        %2503 = vset.pattern.permute.xlu0 5
        %2504 = vperm.xlu0 %2503, %v2357
        %v2505 = vpop.permute.xlu0 %2504
        %v2507 = vadd.f32 %v2487, %v2493
        %v2508 = vadd.f32 %v2488, %v2497
        %v2509 = vadd.f32 %v2489, %v2501
        %v2510 = vadd.f32 %v2490, %v2505
        %v2511 = vmax.f32 %v2507, 0.0
        %v2512 = vmax.f32 %v2508, 0.0
        %v2513 = vmax.f32 %v2509, 0.0
        %v2514 = vmax.f32 %v2510, 0.0
        %2515 = vmatprep.subr.mxu0 0.0
        %2516 = vmatpush1.msra.mxu0 0.0
        %2517 = vmatprep.subr.mxu0 0.0
        %2518 = vmatpush1.msra.mxu0 0.0
        %2519 = vmatprep.subr.mxu0 0.0
        %2520 = vmatpush1.msra.mxu0 0.0
        %2521 = vmatprep.subr.mxu0 0.0
        %2522 = vmatpush1.msra.mxu0 0.0
        %2523 = vmatprep.subr.mxu0 0.0
        %2524 = vmatpush1.msra.mxu0 0.0
        %2525 = vmatprep.subr.mxu0 0.0
        %2526 = vmatpush1.msra.mxu0 0.0
        %2527 = vmatprep.subr.mxu0 0.0
        %2528 = vmatpush1.msra.mxu0 0.0
        %2529 = vmatprep.subr.mxu0 0.0
        %2530 = vmatpush1.msra.mxu0 0.0
        %2531 = vmatprep.subr.mxu0 0.0
        %2532 = vmatpush1.msra.mxu0 0.0
        %2533 = vmatprep.subr.mxu0 0.0
        %2534 = vmatpush1.msra.mxu0 0.0
        %2535 = vmatprep.subr.mxu0 0.0
        %2536 = vmatpush1.msra.mxu0 0.0
        %2537 = vmatprep.subr.mxu0 0.0
        %2538 = vmatpush1.msra.mxu0 0.0
        %2539 = vmatprep.subr.mxu0 0.0
        %2540 = vmatpush1.msra.mxu0 %v2514
        %2541 = vmatprep.subr.mxu0 0.0
        %2542 = vmatpush1.msra.mxu0 %v2513
        %2543 = vmatprep.subr.mxu0 0.0
        %2544 = vmatpush1.msra.mxu0 %v2512
        %2545 = vmatprep.subr.mxu0 0.0
        %2546 = vmatpush1.msra.mxu0 %v2511
        %2547 = vmatprep.subr.mxu0 0.0
        %2548 = vmatpush2.msra.mxu0 0.0
        %2549 = vmatprep.subr.mxu0 0.0
        %2550 = vmatpush2.msra.mxu0 0.0
        %2551 = vmatprep.subr.mxu0 0.0
        %2552 = vmatpush2.msra.mxu0 0.0
        %2553 = vmatprep.subr.mxu0 0.0
        %2554 = vmatpush2.msra.mxu0 0.0
        %2555 = vmatprep.subr.mxu0 0.0
        %2556 = vmatpush2.msra.mxu0 0.0
        %2557 = vmatprep.subr.mxu0 0.0
        %2558 = vmatpush2.msra.mxu0 0.0
        %2559 = vmatprep.subr.mxu0 0.0
        %2560 = vmatpush2.msra.mxu0 0.0
        %2561 = vmatprep.subr.mxu0 0.0
        %2562 = vmatpush2.msra.mxu0 0.0
        %2563 = vmatprep.subr.mxu0 0.0
        %2564 = vmatpush2.msra.mxu0 0.0
        %2565 = vmatprep.subr.mxu0 0.0
        %2566 = vmatpush2.msra.mxu0 0.0
        %2567 = vmatprep.subr.mxu0 0.0
        %2568 = vmatpush2.msra.mxu0 0.0
        %2569 = vmatprep.subr.mxu0 0.0
        %2570 = vmatpush2.msra.mxu0 0.0
        %2571 = vmatprep.subr.mxu0 0.0
        %2572 = vmatpush2.msra.mxu0 0.0
        %2573 = vmatprep.subr.mxu0 0.0
        %2574 = vmatpush2.msra.mxu0 0.0
        %2575 = vmatprep.subr.mxu0 0.0
        %2576 = vmatpush2.msra.mxu0 0.0
        %2577 = vmatprep.subr.mxu0 0.0
        %2578 = vmatpush2.msra.mxu0 0.0
        %2579 = vmatprep.mubr.f32.mxu0 0.0
        %2580 = vmatmul.mubr.f32.gmra.mxu0 %v792
        %v2581 = vpop.f32.mrf.mxu0
        %v2582 = vadd.f32 %v773, %v2581
        %v2583 = vpop.f32.mrf.mxu0
        %2584 = vmatprep.mubr.f32.mxu0 0.0
        %2585 = vmatmul.mubr.f32.gmra.mxu0 %v795
        %v2586 = vpop.f32.mrf.mxu0
        %v2587 = vadd.f32 %v778, %v2586
        %v2588 = vpop.f32.mrf.mxu0
        %2589 = vmatprep.mubr.f32.mxu0 0.0
        %2590 = vmatmul.mubr.f32.gmra.mxu0 %v798
        %v2591 = vpop.f32.mrf.mxu0
        %v2592 = vadd.f32 %v783, %v2591
        %v2593 = vpop.f32.mrf.mxu0
        %2594 = vmatprep.mubr.f32.mxu0 0.0
        %2595 = vmatmul.mubr.f32.gmra.mxu0 %v801
        %v2596 = vpop.f32.mrf.mxu0
        %v2597 = vadd.f32 %v788, %v2596
        %v2598 = vpop.f32.mrf.mxu0
        %2599 = vdwg.mxu0
        %2600 = vset.pattern.permute.xlu0 6
        %2601 = vperm.xlu0 %2600, %v2354
        %v2602 = vpop.permute.xlu0 %2601
        %2604 = vset.pattern.permute.xlu0 6
        %2605 = vperm.xlu0 %2604, %v2355
        %v2606 = vpop.permute.xlu0 %2605
        %2608 = vset.pattern.permute.xlu0 6
        %2609 = vperm.xlu0 %2608, %v2356
        %v2610 = vpop.permute.xlu0 %2609
        %2612 = vset.pattern.permute.xlu0 6
        %2613 = vperm.xlu0 %2612, %v2357
        %v2614 = vpop.permute.xlu0 %2613
        %v2616 = vmul.f32 %v2602, %v2582
        %v2617 = vmul.f32 %v2606, %v2587
        %v2618 = vmul.f32 %v2610, %v2592
        %v2619 = vmul.f32 %v2614, %v2597
        %2620 = vset.pattern.permute.xlu0 7
        %2621 = vperm.xlu0 %2620, %v2354
        %v2622 = vpop.permute.xlu0 %2621
        %2624 = vset.pattern.permute.xlu0 7
        %2625 = vperm.xlu0 %2624, %v2355
        %v2626 = vpop.permute.xlu0 %2625
        %2628 = vset.pattern.permute.xlu0 7
        %2629 = vperm.xlu0 %2628, %v2356
        %v2630 = vpop.permute.xlu0 %2629
        %2632 = vset.pattern.permute.xlu0 7
        %2633 = vperm.xlu0 %2632, %v2357
        %v2634 = vpop.permute.xlu0 %2633
        %v2636 = vadd.f32 %v2616, %v2622
        %v2637 = vadd.f32 %v2617, %v2626
        %v2638 = vadd.f32 %v2618, %v2630
        %v2639 = vadd.f32 %v2619, %v2634
        %v2640 = vmax.f32 %v2636, 0.0
        %v2641 = vmax.f32 %v2637, 0.0
        %v2642 = vmax.f32 %v2638, 0.0
        %v2643 = vmax.f32 %v2639, 0.0
        %2644 = vmatprep.subr.mxu0 0.0
        %2645 = vmatpush1.msra.mxu0 0.0
        %2646 = vmatprep.subr.mxu0 0.0
        %2647 = vmatpush1.msra.mxu0 0.0
        %2648 = vmatprep.subr.mxu0 0.0
        %2649 = vmatpush1.msra.mxu0 0.0
        %2650 = vmatprep.subr.mxu0 0.0
        %2651 = vmatpush1.msra.mxu0 0.0
        %2652 = vmatprep.subr.mxu0 0.0
        %2653 = vmatpush1.msra.mxu0 0.0
        %2654 = vmatprep.subr.mxu0 0.0
        %2655 = vmatpush1.msra.mxu0 0.0
        %2656 = vmatprep.subr.mxu0 0.0
        %2657 = vmatpush1.msra.mxu0 0.0
        %2658 = vmatprep.subr.mxu0 0.0
        %2659 = vmatpush1.msra.mxu0 0.0
        %2660 = vmatprep.subr.mxu0 0.0
        %2661 = vmatpush1.msra.mxu0 0.0
        %2662 = vmatprep.subr.mxu0 0.0
        %2663 = vmatpush1.msra.mxu0 0.0
        %2664 = vmatprep.subr.mxu0 0.0
        %2665 = vmatpush1.msra.mxu0 0.0
        %2666 = vmatprep.subr.mxu0 0.0
        %2667 = vmatpush1.msra.mxu0 0.0
        %2668 = vmatprep.subr.mxu0 0.0
        %2669 = vmatpush1.msra.mxu0 %v2643
        %2670 = vmatprep.subr.mxu0 0.0
        %2671 = vmatpush1.msra.mxu0 %v2642
        %2672 = vmatprep.subr.mxu0 0.0
        %2673 = vmatpush1.msra.mxu0 %v2641
        %2674 = vmatprep.subr.mxu0 0.0
        %2675 = vmatpush1.msra.mxu0 %v2640
        %2676 = vmatprep.subr.mxu0 0.0
        %2677 = vmatpush2.msra.mxu0 0.0
        %2678 = vmatprep.subr.mxu0 0.0
        %2679 = vmatpush2.msra.mxu0 0.0
        %2680 = vmatprep.subr.mxu0 0.0
        %2681 = vmatpush2.msra.mxu0 0.0
        %2682 = vmatprep.subr.mxu0 0.0
        %2683 = vmatpush2.msra.mxu0 0.0
        %2684 = vmatprep.subr.mxu0 0.0
        %2685 = vmatpush2.msra.mxu0 0.0
        %2686 = vmatprep.subr.mxu0 0.0
        %2687 = vmatpush2.msra.mxu0 0.0
        %2688 = vmatprep.subr.mxu0 0.0
        %2689 = vmatpush2.msra.mxu0 0.0
        %2690 = vmatprep.subr.mxu0 0.0
        %2691 = vmatpush2.msra.mxu0 0.0
        %2692 = vmatprep.subr.mxu0 0.0
        %2693 = vmatpush2.msra.mxu0 0.0
        %2694 = vmatprep.subr.mxu0 0.0
        %2695 = vmatpush2.msra.mxu0 0.0
        %2696 = vmatprep.subr.mxu0 0.0
        %2697 = vmatpush2.msra.mxu0 0.0
        %2698 = vmatprep.subr.mxu0 0.0
        %2699 = vmatpush2.msra.mxu0 0.0
        %2700 = vmatprep.subr.mxu0 0.0
        %2701 = vmatpush2.msra.mxu0 0.0
        %2702 = vmatprep.subr.mxu0 0.0
        %2703 = vmatpush2.msra.mxu0 0.0
        %2704 = vmatprep.subr.mxu0 0.0
        %2705 = vmatpush2.msra.mxu0 0.0
        %2706 = vmatprep.subr.mxu0 0.0
        %2707 = vmatpush2.msra.mxu0 0.0
        %2708 = vmatprep.mubr.f32.mxu0 0.0
        %2709 = vmatmul.mubr.f32.gmra.mxu0 %v953
        %v2710 = vpop.f32.mrf.mxu0
        %v2711 = vadd.f32 %v935, %v2710
        %v2712 = vpop.f32.mrf.mxu0
        %2713 = vmatprep.mubr.f32.mxu0 0.0
        %2714 = vmatmul.mubr.f32.gmra.mxu0 %v956
        %v2715 = vpop.f32.mrf.mxu0
        %v2716 = vadd.f32 %v940, %v2715
        %v2717 = vpop.f32.mrf.mxu0
        %2718 = vmatprep.mubr.f32.mxu0 0.0
        %2719 = vmatmul.mubr.f32.gmra.mxu0 %v959
        %v2720 = vpop.f32.mrf.mxu0
        %v2721 = vadd.f32 %v945, %v2720
        %v2722 = vpop.f32.mrf.mxu0
        %2723 = vmatprep.mubr.f32.mxu0 0.0
        %2724 = vmatmul.mubr.f32.gmra.mxu0 %v962
        %v2725 = vpop.f32.mrf.mxu0
        %v2726 = vadd.f32 %v950, %v2725
        %v2727 = vpop.f32.mrf.mxu0
        %2728 = vdwg.mxu0
        %v2729 = vadd.f32 %v2453, %v2711
        %v2730 = vadd.f32 %v2458, %v2716
        %v2731 = vadd.f32 %v2463, %v2721
        %v2732 = vadd.f32 %v2468, %v2726
        %2733 = vmatprep.subr.mxu0 0.0
        %2734 = vmatpush1.msra.mxu0 0.0
        %2735 = vmatprep.subr.mxu0 0.0
        %2736 = vmatpush1.msra.mxu0 0.0
        %2737 = vmatprep.subr.mxu0 0.0
        %2738 = vmatpush1.msra.mxu0 0.0
        %2739 = vmatprep.subr.mxu0 0.0
        %2740 = vmatpush1.msra.mxu0 0.0
        %2741 = vmatprep.subr.mxu0 0.0
        %2742 = vmatpush1.msra.mxu0 0.0
        %2743 = vmatprep.subr.mxu0 0.0
        %2744 = vmatpush1.msra.mxu0 0.0
        %2745 = vmatprep.subr.mxu0 0.0
        %2746 = vmatpush1.msra.mxu0 0.0
        %2747 = vmatprep.subr.mxu0 0.0
        %2748 = vmatpush1.msra.mxu0 0.0
        %2749 = vmatprep.subr.mxu0 0.0
        %2750 = vmatpush1.msra.mxu0 0.0
        %2751 = vmatprep.subr.mxu0 0.0
        %2752 = vmatpush1.msra.mxu0 0.0
        %2753 = vmatprep.subr.mxu0 0.0
        %2754 = vmatpush1.msra.mxu0 0.0
        %2755 = vmatprep.subr.mxu0 0.0
        %2756 = vmatpush1.msra.mxu0 0.0
        %2757 = vmatprep.subr.mxu0 0.0
        %2758 = vmatpush1.msra.mxu0 %v2732
        %2759 = vmatprep.subr.mxu0 0.0
        %2760 = vmatpush1.msra.mxu0 %v2731
        %2761 = vmatprep.subr.mxu0 0.0
        %2762 = vmatpush1.msra.mxu0 %v2730
        %2763 = vmatprep.subr.mxu0 0.0
        %2764 = vmatpush1.msra.mxu0 %v2729
        %2765 = vmatprep.subr.mxu0 0.0
        %2766 = vmatpush2.msra.mxu0 0.0
        %2767 = vmatprep.subr.mxu0 0.0
        %2768 = vmatpush2.msra.mxu0 0.0
        %2769 = vmatprep.subr.mxu0 0.0
        %2770 = vmatpush2.msra.mxu0 0.0
        %2771 = vmatprep.subr.mxu0 0.0
        %2772 = vmatpush2.msra.mxu0 0.0
        %2773 = vmatprep.subr.mxu0 0.0
        %2774 = vmatpush2.msra.mxu0 0.0
        %2775 = vmatprep.subr.mxu0 0.0
        %2776 = vmatpush2.msra.mxu0 0.0
        %2777 = vmatprep.subr.mxu0 0.0
        %2778 = vmatpush2.msra.mxu0 0.0
        %2779 = vmatprep.subr.mxu0 0.0
        %2780 = vmatpush2.msra.mxu0 0.0
        %2781 = vmatprep.subr.mxu0 0.0
        %2782 = vmatpush2.msra.mxu0 0.0
        %2783 = vmatprep.subr.mxu0 0.0
        %2784 = vmatpush2.msra.mxu0 0.0
        %2785 = vmatprep.subr.mxu0 0.0
        %2786 = vmatpush2.msra.mxu0 0.0
        %2787 = vmatprep.subr.mxu0 0.0
        %2788 = vmatpush2.msra.mxu0 0.0
        %2789 = vmatprep.subr.mxu0 0.0
        %2790 = vmatpush2.msra.mxu0 0.0
        %2791 = vmatprep.subr.mxu0 0.0
        %2792 = vmatpush2.msra.mxu0 0.0
        %2793 = vmatprep.subr.mxu0 0.0
        %2794 = vmatpush2.msra.mxu0 0.0
        %2795 = vmatprep.subr.mxu0 0.0
        %2796 = vmatpush2.msra.mxu0 0.0
        %2797 = vmatprep.mubr.f32.mxu0 0.0
        %2798 = vmatmul.mubr.f32.gmra.mxu0 %v1063
        %v2799 = vpop.f32.mrf.mxu0
        %v2800 = vadd.f32 %v1061, %v2799
        %v2801 = vpop.f32.mrf.mxu0
        %2802 = vdwg.mxu0
        %v2803 = vadd.f32 %v2800, 1.0
        %v2804 = vmul.f32 %v2352, %v2803
        %v2805 = vadd.f32 %v2249, %v2804
        %2806 = vset.pattern.permute.xlu0 4
        %2807 = vperm.xlu0 %2806, %v480
        %v2808 = vpop.permute.xlu0 %2807
        %v2810 = vsub.f32 %v479, %v2808
        %s2811 = scalar_lea.vmem %s470, 16
        %v2812 = vld [vmem:[%s2811] sm:$0x7]
        %v2814 = vsel %vm507, %v2812, 0
        %v2817 = vsel %vm511, %v2810, 0
        %2819 = vmatprep.subr.mxu0 0.0
        %2820 = vmatpush1.msra.mxu0 0.0
        %2821 = vmatprep.subr.mxu0 0.0
        %2822 = vmatpush1.msra.mxu0 0.0
        %2823 = vmatprep.subr.mxu0 0.0
        %2824 = vmatpush1.msra.mxu0 0.0
        %2825 = vmatprep.subr.mxu0 0.0
        %2826 = vmatpush1.msra.mxu0 0.0
        %2827 = vmatprep.subr.mxu0 0.0
        %2828 = vmatpush1.msra.mxu0 0.0
        %2829 = vmatprep.subr.mxu0 0.0
        %2830 = vmatpush1.msra.mxu0 0.0
        %2831 = vmatprep.subr.mxu0 0.0
        %2832 = vmatpush1.msra.mxu0 0.0
        %2833 = vmatprep.subr.mxu0 0.0
        %2834 = vmatpush1.msra.mxu0 0.0
        %2835 = vmatprep.subr.mxu0 0.0
        %2836 = vmatpush1.msra.mxu0 0.0
        %2837 = vmatprep.subr.mxu0 0.0
        %2838 = vmatpush1.msra.mxu0 0.0
        %2839 = vmatprep.subr.mxu0 0.0
        %2840 = vmatpush1.msra.mxu0 0.0
        %2841 = vmatprep.subr.mxu0 0.0
        %2842 = vmatpush1.msra.mxu0 0.0
        %2843 = vmatprep.subr.mxu0 0.0
        %2844 = vmatpush1.msra.mxu0 0.0
        %2845 = vmatprep.subr.mxu0 0.0
        %2846 = vmatpush1.msra.mxu0 0.0
        %2847 = vmatprep.subr.mxu0 0.0
        %2848 = vmatpush1.msra.mxu0 0.0
        %2849 = vmatprep.subr.mxu0 0.0
        %2850 = vmatpush1.msra.mxu0 %v2817
        %2851 = vmatprep.subr.mxu0 0.0
        %2852 = vmatpush2.msra.mxu0 0.0
        %2853 = vmatprep.subr.mxu0 0.0
        %2854 = vmatpush2.msra.mxu0 0.0
        %2855 = vmatprep.subr.mxu0 0.0
        %2856 = vmatpush2.msra.mxu0 0.0
        %2857 = vmatprep.subr.mxu0 0.0
        %2858 = vmatpush2.msra.mxu0 0.0
        %2859 = vmatprep.subr.mxu0 0.0
        %2860 = vmatpush2.msra.mxu0 0.0
        %2861 = vmatprep.subr.mxu0 0.0
        %2862 = vmatpush2.msra.mxu0 0.0
        %2863 = vmatprep.subr.mxu0 0.0
        %2864 = vmatpush2.msra.mxu0 0.0
        %2865 = vmatprep.subr.mxu0 0.0
        %2866 = vmatpush2.msra.mxu0 0.0
        %2867 = vmatprep.subr.mxu0 0.0
        %2868 = vmatpush2.msra.mxu0 0.0
        %2869 = vmatprep.subr.mxu0 0.0
        %2870 = vmatpush2.msra.mxu0 0.0
        %2871 = vmatprep.subr.mxu0 0.0
        %2872 = vmatpush2.msra.mxu0 0.0
        %2873 = vmatprep.subr.mxu0 0.0
        %2874 = vmatpush2.msra.mxu0 0.0
        %2875 = vmatprep.subr.mxu0 0.0
        %2876 = vmatpush2.msra.mxu0 0.0
        %2877 = vmatprep.subr.mxu0 0.0
        %2878 = vmatpush2.msra.mxu0 0.0
        %2879 = vmatprep.subr.mxu0 0.0
        %2880 = vmatpush2.msra.mxu0 0.0
        %2881 = vmatprep.subr.mxu0 0.0
        %2882 = vmatpush2.msra.mxu0 0.0
        %2883 = vmatprep.mubr.f32.mxu0 0.0
        %2884 = vmatmul.mubr.f32.gmra.mxu0 %v2814
        %v2885 = vpop.f32.mrf.mxu0
        %v2886 = vadd.f32 0.0, %v2885
        %v2887 = vpop.f32.mrf.mxu0
        %2888 = vdwg.mxu0
        %v2889 = vmul.f32 %v2886, %v2810
        %v2891 = vrot.slane %v2889, 1
        %v2893 = vadd.f32 %v2889, %v2891
        %v2894 = vrot.slane %v2889, 2
        %v2896 = vadd.f32 %v2893, %v2894
        %v2897 = vmul.f32 %v2896, -0.5
        %v2898 = vmul.f32 %v2897, 1.442695
        %v2899 = vpow.pop %v2898
        %2900 = vset.pattern.permute.xlu0 4
        %2901 = vperm.xlu0 %2900, %v481
        %v2902 = vpop.permute.xlu0 %2901
        %v2904 = vlaneseq
        %v2905 = vshrl.u32 %v2904, 7
        %v2906 = vsub.s32 0, %v2905
        %v2907 = vrot.slane %v2902, %v2906
        %v2908 = vmul.f32 %v2907, %v2899
        %s2909 = scalar_lea.vmem %s478, 128
        %v2910 = vld [vmem:[%s2909] sm:$0xff]
        %v2911 = vld [vmem:[%s2909 + $0x8] sm:$0xff]
        %v2912 = vld [vmem:[%s2909 + $0x10] sm:$0xff]
        %v2913 = vld [vmem:[%s2909 + $0x18] sm:$0xff]
        %2915 = vset.pattern.permute.xlu0 3
        %2916 = vperm.xlu0 %2915, %v2910
        %v2917 = vpop.permute.xlu0 %2916
        %2920 = vset.pattern.permute.xlu0 3
        %2921 = vperm.xlu0 %2920, %v2911
        %v2922 = vpop.permute.xlu0 %2921
        %2925 = vset.pattern.permute.xlu0 3
        %2926 = vperm.xlu0 %2925, %v2912
        %v2927 = vpop.permute.xlu0 %2926
        %2930 = vset.pattern.permute.xlu0 3
        %2931 = vperm.xlu0 %2930, %v2913
        %v2932 = vpop.permute.xlu0 %2931
        %v2934 = vsel %vm507, %v2910, 0
        %v2936 = vsel %vm507, %v2911, 0
        %v2938 = vsel %vm507, %v2912, 0
        %v2940 = vsel %vm507, %v2913, 0
        %2942 = vmatprep.subr.mxu0 0.0
        %2943 = vmatpush1.msra.mxu0 0.0
        %2944 = vmatprep.subr.mxu0 0.0
        %2945 = vmatpush1.msra.mxu0 0.0
        %2946 = vmatprep.subr.mxu0 0.0
        %2947 = vmatpush1.msra.mxu0 0.0
        %2948 = vmatprep.subr.mxu0 0.0
        %2949 = vmatpush1.msra.mxu0 0.0
        %2950 = vmatprep.subr.mxu0 0.0
        %2951 = vmatpush1.msra.mxu0 0.0
        %2952 = vmatprep.subr.mxu0 0.0
        %2953 = vmatpush1.msra.mxu0 0.0
        %2954 = vmatprep.subr.mxu0 0.0
        %2955 = vmatpush1.msra.mxu0 0.0
        %2956 = vmatprep.subr.mxu0 0.0
        %2957 = vmatpush1.msra.mxu0 0.0
        %2958 = vmatprep.subr.mxu0 0.0
        %2959 = vmatpush1.msra.mxu0 0.0
        %2960 = vmatprep.subr.mxu0 0.0
        %2961 = vmatpush1.msra.mxu0 0.0
        %2962 = vmatprep.subr.mxu0 0.0
        %2963 = vmatpush1.msra.mxu0 0.0
        %2964 = vmatprep.subr.mxu0 0.0
        %2965 = vmatpush1.msra.mxu0 0.0
        %2966 = vmatprep.subr.mxu0 0.0
        %2967 = vmatpush1.msra.mxu0 0.0
        %2968 = vmatprep.subr.mxu0 0.0
        %2969 = vmatpush1.msra.mxu0 0.0
        %2970 = vmatprep.subr.mxu0 0.0
        %2971 = vmatpush1.msra.mxu0 0.0
        %2972 = vmatprep.subr.mxu0 0.0
        %2973 = vmatpush1.msra.mxu0 %v639
        %2974 = vmatprep.subr.mxu0 0.0
        %2975 = vmatpush2.msra.mxu0 0.0
        %2976 = vmatprep.subr.mxu0 0.0
        %2977 = vmatpush2.msra.mxu0 0.0
        %2978 = vmatprep.subr.mxu0 0.0
        %2979 = vmatpush2.msra.mxu0 0.0
        %2980 = vmatprep.subr.mxu0 0.0
        %2981 = vmatpush2.msra.mxu0 0.0
        %2982 = vmatprep.subr.mxu0 0.0
        %2983 = vmatpush2.msra.mxu0 0.0
        %2984 = vmatprep.subr.mxu0 0.0
        %2985 = vmatpush2.msra.mxu0 0.0
        %2986 = vmatprep.subr.mxu0 0.0
        %2987 = vmatpush2.msra.mxu0 0.0
        %2988 = vmatprep.subr.mxu0 0.0
        %2989 = vmatpush2.msra.mxu0 0.0
        %2990 = vmatprep.subr.mxu0 0.0
        %2991 = vmatpush2.msra.mxu0 0.0
        %2992 = vmatprep.subr.mxu0 0.0
        %2993 = vmatpush2.msra.mxu0 0.0
        %2994 = vmatprep.subr.mxu0 0.0
        %2995 = vmatpush2.msra.mxu0 0.0
        %2996 = vmatprep.subr.mxu0 0.0
        %2997 = vmatpush2.msra.mxu0 0.0
        %2998 = vmatprep.subr.mxu0 0.0
        %2999 = vmatpush2.msra.mxu0 0.0
        %3000 = vmatprep.subr.mxu0 0.0
        %3001 = vmatpush2.msra.mxu0 0.0
        %3002 = vmatprep.subr.mxu0 0.0
        %3003 = vmatpush2.msra.mxu0 0.0
        %3004 = vmatprep.subr.mxu0 0.0
        %3005 = vmatpush2.msra.mxu0 0.0
        %3006 = vmatprep.mubr.f32.mxu0 0.0
        %3007 = vmatmul.mubr.f32.gmra.mxu0 %v2934
        %v3008 = vpop.f32.mrf.mxu0
        %v3009 = vadd.f32 %v2917, %v3008
        %v3010 = vpop.f32.mrf.mxu0
        %3011 = vmatprep.mubr.f32.mxu0 0.0
        %3012 = vmatmul.mubr.f32.gmra.mxu0 %v2936
        %v3013 = vpop.f32.mrf.mxu0
        %v3014 = vadd.f32 %v2922, %v3013
        %v3015 = vpop.f32.mrf.mxu0
        %3016 = vmatprep.mubr.f32.mxu0 0.0
        %3017 = vmatmul.mubr.f32.gmra.mxu0 %v2938
        %v3018 = vpop.f32.mrf.mxu0
        %v3019 = vadd.f32 %v2927, %v3018
        %v3020 = vpop.f32.mrf.mxu0
        %3021 = vmatprep.mubr.f32.mxu0 0.0
        %3022 = vmatmul.mubr.f32.gmra.mxu0 %v2940
        %v3023 = vpop.f32.mrf.mxu0
        %v3024 = vadd.f32 %v2932, %v3023
        %v3025 = vpop.f32.mrf.mxu0
        %3026 = vdwg.mxu0
        %3027 = vset.pattern.permute.xlu0 4
        %3028 = vperm.xlu0 %3027, %v2910
        %v3029 = vpop.permute.xlu0 %3028
        %3031 = vset.pattern.permute.xlu0 4
        %3032 = vperm.xlu0 %3031, %v2911
        %v3033 = vpop.permute.xlu0 %3032
        %3035 = vset.pattern.permute.xlu0 4
        %3036 = vperm.xlu0 %3035, %v2912
        %v3037 = vpop.permute.xlu0 %3036
        %3039 = vset.pattern.permute.xlu0 4
        %3040 = vperm.xlu0 %3039, %v2913
        %v3041 = vpop.permute.xlu0 %3040
        %v3043 = vmul.f32 %v3029, %v3009
        %v3044 = vmul.f32 %v3033, %v3014
        %v3045 = vmul.f32 %v3037, %v3019
        %v3046 = vmul.f32 %v3041, %v3024
        %3047 = vset.pattern.permute.xlu0 5
        %3048 = vperm.xlu0 %3047, %v2910
        %v3049 = vpop.permute.xlu0 %3048
        %3051 = vset.pattern.permute.xlu0 5
        %3052 = vperm.xlu0 %3051, %v2911
        %v3053 = vpop.permute.xlu0 %3052
        %3055 = vset.pattern.permute.xlu0 5
        %3056 = vperm.xlu0 %3055, %v2912
        %v3057 = vpop.permute.xlu0 %3056
        %3059 = vset.pattern.permute.xlu0 5
        %3060 = vperm.xlu0 %3059, %v2913
        %v3061 = vpop.permute.xlu0 %3060
        %v3063 = vadd.f32 %v3043, %v3049
        %v3064 = vadd.f32 %v3044, %v3053
        %v3065 = vadd.f32 %v3045, %v3057
        %v3066 = vadd.f32 %v3046, %v3061
        %v3067 = vmax.f32 %v3063, 0.0
        %v3068 = vmax.f32 %v3064, 0.0
        %v3069 = vmax.f32 %v3065, 0.0
        %v3070 = vmax.f32 %v3066, 0.0
        %3071 = vmatprep.subr.mxu0 0.0
        %3072 = vmatpush1.msra.mxu0 0.0
        %3073 = vmatprep.subr.mxu0 0.0
        %3074 = vmatpush1.msra.mxu0 0.0
        %3075 = vmatprep.subr.mxu0 0.0
        %3076 = vmatpush1.msra.mxu0 0.0
        %3077 = vmatprep.subr.mxu0 0.0
        %3078 = vmatpush1.msra.mxu0 0.0
        %3079 = vmatprep.subr.mxu0 0.0
        %3080 = vmatpush1.msra.mxu0 0.0
        %3081 = vmatprep.subr.mxu0 0.0
        %3082 = vmatpush1.msra.mxu0 0.0
        %3083 = vmatprep.subr.mxu0 0.0
        %3084 = vmatpush1.msra.mxu0 0.0
        %3085 = vmatprep.subr.mxu0 0.0
        %3086 = vmatpush1.msra.mxu0 0.0
        %3087 = vmatprep.subr.mxu0 0.0
        %3088 = vmatpush1.msra.mxu0 0.0
        %3089 = vmatprep.subr.mxu0 0.0
        %3090 = vmatpush1.msra.mxu0 0.0
        %3091 = vmatprep.subr.mxu0 0.0
        %3092 = vmatpush1.msra.mxu0 0.0
        %3093 = vmatprep.subr.mxu0 0.0
        %3094 = vmatpush1.msra.mxu0 0.0
        %3095 = vmatprep.subr.mxu0 0.0
        %3096 = vmatpush1.msra.mxu0 %v3070
        %3097 = vmatprep.subr.mxu0 0.0
        %3098 = vmatpush1.msra.mxu0 %v3069
        %3099 = vmatprep.subr.mxu0 0.0
        %3100 = vmatpush1.msra.mxu0 %v3068
        %3101 = vmatprep.subr.mxu0 0.0
        %3102 = vmatpush1.msra.mxu0 %v3067
        %3103 = vmatprep.subr.mxu0 0.0
        %3104 = vmatpush2.msra.mxu0 0.0
        %3105 = vmatprep.subr.mxu0 0.0
        %3106 = vmatpush2.msra.mxu0 0.0
        %3107 = vmatprep.subr.mxu0 0.0
        %3108 = vmatpush2.msra.mxu0 0.0
        %3109 = vmatprep.subr.mxu0 0.0
        %3110 = vmatpush2.msra.mxu0 0.0
        %3111 = vmatprep.subr.mxu0 0.0
        %3112 = vmatpush2.msra.mxu0 0.0
        %3113 = vmatprep.subr.mxu0 0.0
        %3114 = vmatpush2.msra.mxu0 0.0
        %3115 = vmatprep.subr.mxu0 0.0
        %3116 = vmatpush2.msra.mxu0 0.0
        %3117 = vmatprep.subr.mxu0 0.0
        %3118 = vmatpush2.msra.mxu0 0.0
        %3119 = vmatprep.subr.mxu0 0.0
        %3120 = vmatpush2.msra.mxu0 0.0
        %3121 = vmatprep.subr.mxu0 0.0
        %3122 = vmatpush2.msra.mxu0 0.0
        %3123 = vmatprep.subr.mxu0 0.0
        %3124 = vmatpush2.msra.mxu0 0.0
        %3125 = vmatprep.subr.mxu0 0.0
        %3126 = vmatpush2.msra.mxu0 0.0
        %3127 = vmatprep.subr.mxu0 0.0
        %3128 = vmatpush2.msra.mxu0 0.0
        %3129 = vmatprep.subr.mxu0 0.0
        %3130 = vmatpush2.msra.mxu0 0.0
        %3131 = vmatprep.subr.mxu0 0.0
        %3132 = vmatpush2.msra.mxu0 0.0
        %3133 = vmatprep.subr.mxu0 0.0
        %3134 = vmatpush2.msra.mxu0 0.0
        %3135 = vmatprep.mubr.f32.mxu0 0.0
        %3136 = vmatmul.mubr.f32.gmra.mxu0 %v792
        %v3137 = vpop.f32.mrf.mxu0
        %v3138 = vadd.f32 %v773, %v3137
        %v3139 = vpop.f32.mrf.mxu0
        %3140 = vmatprep.mubr.f32.mxu0 0.0
        %3141 = vmatmul.mubr.f32.gmra.mxu0 %v795
        %v3142 = vpop.f32.mrf.mxu0
        %v3143 = vadd.f32 %v778, %v3142
        %v3144 = vpop.f32.mrf.mxu0
        %3145 = vmatprep.mubr.f32.mxu0 0.0
        %3146 = vmatmul.mubr.f32.gmra.mxu0 %v798
        %v3147 = vpop.f32.mrf.mxu0
        %v3148 = vadd.f32 %v783, %v3147
        %v3149 = vpop.f32.mrf.mxu0
        %3150 = vmatprep.mubr.f32.mxu0 0.0
        %3151 = vmatmul.mubr.f32.gmra.mxu0 %v801
        %v3152 = vpop.f32.mrf.mxu0
        %v3153 = vadd.f32 %v788, %v3152
        %v3154 = vpop.f32.mrf.mxu0
        %3155 = vdwg.mxu0
        %3156 = vset.pattern.permute.xlu0 6
        %3157 = vperm.xlu0 %3156, %v2910
        %v3158 = vpop.permute.xlu0 %3157
        %3160 = vset.pattern.permute.xlu0 6
        %3161 = vperm.xlu0 %3160, %v2911
        %v3162 = vpop.permute.xlu0 %3161
        %3164 = vset.pattern.permute.xlu0 6
        %3165 = vperm.xlu0 %3164, %v2912
        %v3166 = vpop.permute.xlu0 %3165
        %3168 = vset.pattern.permute.xlu0 6
        %3169 = vperm.xlu0 %3168, %v2913
        %v3170 = vpop.permute.xlu0 %3169
        %v3172 = vmul.f32 %v3158, %v3138
        %v3173 = vmul.f32 %v3162, %v3143
        %v3174 = vmul.f32 %v3166, %v3148
        %v3175 = vmul.f32 %v3170, %v3153
        %3176 = vset.pattern.permute.xlu0 7
        %3177 = vperm.xlu0 %3176, %v2910
        %v3178 = vpop.permute.xlu0 %3177
        %3180 = vset.pattern.permute.xlu0 7
        %3181 = vperm.xlu0 %3180, %v2911
        %v3182 = vpop.permute.xlu0 %3181
        %3184 = vset.pattern.permute.xlu0 7
        %3185 = vperm.xlu0 %3184, %v2912
        %v3186 = vpop.permute.xlu0 %3185
        %3188 = vset.pattern.permute.xlu0 7
        %3189 = vperm.xlu0 %3188, %v2913
        %v3190 = vpop.permute.xlu0 %3189
        %v3192 = vadd.f32 %v3172, %v3178
        %v3193 = vadd.f32 %v3173, %v3182
        %v3194 = vadd.f32 %v3174, %v3186
        %v3195 = vadd.f32 %v3175, %v3190
        %v3196 = vmax.f32 %v3192, 0.0
        %v3197 = vmax.f32 %v3193, 0.0
        %v3198 = vmax.f32 %v3194, 0.0
        %v3199 = vmax.f32 %v3195, 0.0
        %3200 = vmatprep.subr.mxu0 0.0
        %3201 = vmatpush1.msra.mxu0 0.0
        %3202 = vmatprep.subr.mxu0 0.0
        %3203 = vmatpush1.msra.mxu0 0.0
        %3204 = vmatprep.subr.mxu0 0.0
        %3205 = vmatpush1.msra.mxu0 0.0
        %3206 = vmatprep.subr.mxu0 0.0
        %3207 = vmatpush1.msra.mxu0 0.0
        %3208 = vmatprep.subr.mxu0 0.0
        %3209 = vmatpush1.msra.mxu0 0.0
        %3210 = vmatprep.subr.mxu0 0.0
        %3211 = vmatpush1.msra.mxu0 0.0
        %3212 = vmatprep.subr.mxu0 0.0
        %3213 = vmatpush1.msra.mxu0 0.0
        %3214 = vmatprep.subr.mxu0 0.0
        %3215 = vmatpush1.msra.mxu0 0.0
        %3216 = vmatprep.subr.mxu0 0.0
        %3217 = vmatpush1.msra.mxu0 0.0
        %3218 = vmatprep.subr.mxu0 0.0
        %3219 = vmatpush1.msra.mxu0 0.0
        %3220 = vmatprep.subr.mxu0 0.0
        %3221 = vmatpush1.msra.mxu0 0.0
        %3222 = vmatprep.subr.mxu0 0.0
        %3223 = vmatpush1.msra.mxu0 0.0
        %3224 = vmatprep.subr.mxu0 0.0
        %3225 = vmatpush1.msra.mxu0 %v3199
        %3226 = vmatprep.subr.mxu0 0.0
        %3227 = vmatpush1.msra.mxu0 %v3198
        %3228 = vmatprep.subr.mxu0 0.0
        %3229 = vmatpush1.msra.mxu0 %v3197
        %3230 = vmatprep.subr.mxu0 0.0
        %3231 = vmatpush1.msra.mxu0 %v3196
        %3232 = vmatprep.subr.mxu0 0.0
        %3233 = vmatpush2.msra.mxu0 0.0
        %3234 = vmatprep.subr.mxu0 0.0
        %3235 = vmatpush2.msra.mxu0 0.0
        %3236 = vmatprep.subr.mxu0 0.0
        %3237 = vmatpush2.msra.mxu0 0.0
        %3238 = vmatprep.subr.mxu0 0.0
        %3239 = vmatpush2.msra.mxu0 0.0
        %3240 = vmatprep.subr.mxu0 0.0
        %3241 = vmatpush2.msra.mxu0 0.0
        %3242 = vmatprep.subr.mxu0 0.0
        %3243 = vmatpush2.msra.mxu0 0.0
        %3244 = vmatprep.subr.mxu0 0.0
        %3245 = vmatpush2.msra.mxu0 0.0
        %3246 = vmatprep.subr.mxu0 0.0
        %3247 = vmatpush2.msra.mxu0 0.0
        %3248 = vmatprep.subr.mxu0 0.0
        %3249 = vmatpush2.msra.mxu0 0.0
        %3250 = vmatprep.subr.mxu0 0.0
        %3251 = vmatpush2.msra.mxu0 0.0
        %3252 = vmatprep.subr.mxu0 0.0
        %3253 = vmatpush2.msra.mxu0 0.0
        %3254 = vmatprep.subr.mxu0 0.0
        %3255 = vmatpush2.msra.mxu0 0.0
        %3256 = vmatprep.subr.mxu0 0.0
        %3257 = vmatpush2.msra.mxu0 0.0
        %3258 = vmatprep.subr.mxu0 0.0
        %3259 = vmatpush2.msra.mxu0 0.0
        %3260 = vmatprep.subr.mxu0 0.0
        %3261 = vmatpush2.msra.mxu0 0.0
        %3262 = vmatprep.subr.mxu0 0.0
        %3263 = vmatpush2.msra.mxu0 0.0
        %3264 = vmatprep.mubr.f32.mxu0 0.0
        %3265 = vmatmul.mubr.f32.gmra.mxu0 %v953
        %v3266 = vpop.f32.mrf.mxu0
        %v3267 = vadd.f32 %v935, %v3266
        %v3268 = vpop.f32.mrf.mxu0
        %3269 = vmatprep.mubr.f32.mxu0 0.0
        %3270 = vmatmul.mubr.f32.gmra.mxu0 %v956
        %v3271 = vpop.f32.mrf.mxu0
        %v3272 = vadd.f32 %v940, %v3271
        %v3273 = vpop.f32.mrf.mxu0
        %3274 = vmatprep.mubr.f32.mxu0 0.0
        %3275 = vmatmul.mubr.f32.gmra.mxu0 %v959
        %v3276 = vpop.f32.mrf.mxu0
        %v3277 = vadd.f32 %v945, %v3276
        %v3278 = vpop.f32.mrf.mxu0
        %3279 = vmatprep.mubr.f32.mxu0 0.0
        %3280 = vmatmul.mubr.f32.gmra.mxu0 %v962
        %v3281 = vpop.f32.mrf.mxu0
        %v3282 = vadd.f32 %v950, %v3281
        %v3283 = vpop.f32.mrf.mxu0
        %3284 = vdwg.mxu0
        %v3285 = vadd.f32 %v3009, %v3267
        %v3286 = vadd.f32 %v3014, %v3272
        %v3287 = vadd.f32 %v3019, %v3277
        %v3288 = vadd.f32 %v3024, %v3282
        %3289 = vmatprep.subr.mxu0 0.0
        %3290 = vmatpush1.msra.mxu0 0.0
        %3291 = vmatprep.subr.mxu0 0.0
        %3292 = vmatpush1.msra.mxu0 0.0
        %3293 = vmatprep.subr.mxu0 0.0
        %3294 = vmatpush1.msra.mxu0 0.0
        %3295 = vmatprep.subr.mxu0 0.0
        %3296 = vmatpush1.msra.mxu0 0.0
        %3297 = vmatprep.subr.mxu0 0.0
        %3298 = vmatpush1.msra.mxu0 0.0
        %3299 = vmatprep.subr.mxu0 0.0
        %3300 = vmatpush1.msra.mxu0 0.0
        %3301 = vmatprep.subr.mxu0 0.0
        %3302 = vmatpush1.msra.mxu0 0.0
        %3303 = vmatprep.subr.mxu0 0.0
        %3304 = vmatpush1.msra.mxu0 0.0
        %3305 = vmatprep.subr.mxu0 0.0
        %3306 = vmatpush1.msra.mxu0 0.0
        %3307 = vmatprep.subr.mxu0 0.0
        %3308 = vmatpush1.msra.mxu0 0.0
        %3309 = vmatprep.subr.mxu0 0.0
        %3310 = vmatpush1.msra.mxu0 0.0
        %3311 = vmatprep.subr.mxu0 0.0
        %3312 = vmatpush1.msra.mxu0 0.0
        %3313 = vmatprep.subr.mxu0 0.0
        %3314 = vmatpush1.msra.mxu0 %v3288
        %3315 = vmatprep.subr.mxu0 0.0
        %3316 = vmatpush1.msra.mxu0 %v3287
        %3317 = vmatprep.subr.mxu0 0.0
        %3318 = vmatpush1.msra.mxu0 %v3286
        %3319 = vmatprep.subr.mxu0 0.0
        %3320 = vmatpush1.msra.mxu0 %v3285
        %3321 = vmatprep.subr.mxu0 0.0
        %3322 = vmatpush2.msra.mxu0 0.0
        %3323 = vmatprep.subr.mxu0 0.0
        %3324 = vmatpush2.msra.mxu0 0.0
        %3325 = vmatprep.subr.mxu0 0.0
        %3326 = vmatpush2.msra.mxu0 0.0
        %3327 = vmatprep.subr.mxu0 0.0
        %3328 = vmatpush2.msra.mxu0 0.0
        %3329 = vmatprep.subr.mxu0 0.0
        %3330 = vmatpush2.msra.mxu0 0.0
        %3331 = vmatprep.subr.mxu0 0.0
        %3332 = vmatpush2.msra.mxu0 0.0
        %3333 = vmatprep.subr.mxu0 0.0
        %3334 = vmatpush2.msra.mxu0 0.0
        %3335 = vmatprep.subr.mxu0 0.0
        %3336 = vmatpush2.msra.mxu0 0.0
        %3337 = vmatprep.subr.mxu0 0.0
        %3338 = vmatpush2.msra.mxu0 0.0
        %3339 = vmatprep.subr.mxu0 0.0
        %3340 = vmatpush2.msra.mxu0 0.0
        %3341 = vmatprep.subr.mxu0 0.0
        %3342 = vmatpush2.msra.mxu0 0.0
        %3343 = vmatprep.subr.mxu0 0.0
        %3344 = vmatpush2.msra.mxu0 0.0
        %3345 = vmatprep.subr.mxu0 0.0
        %3346 = vmatpush2.msra.mxu0 0.0
        %3347 = vmatprep.subr.mxu0 0.0
        %3348 = vmatpush2.msra.mxu0 0.0
        %3349 = vmatprep.subr.mxu0 0.0
        %3350 = vmatpush2.msra.mxu0 0.0
        %3351 = vmatprep.subr.mxu0 0.0
        %3352 = vmatpush2.msra.mxu0 0.0
        %3353 = vmatprep.mubr.f32.mxu0 0.0
        %3354 = vmatmul.mubr.f32.gmra.mxu0 %v1063
        %v3355 = vpop.f32.mrf.mxu0
        %v3356 = vadd.f32 %v1061, %v3355
        %v3357 = vpop.f32.mrf.mxu0
        %3358 = vdwg.mxu0
        %v3359 = vadd.f32 %v3356, 1.0
        %v3360 = vmul.f32 %v2908, %v3359
        %v3361 = vadd.f32 %v2805, %v3360
        %3362 = vset.pattern.permute.xlu0 5
        %3363 = vperm.xlu0 %3362, %v480
        %v3364 = vpop.permute.xlu0 %3363
        %v3366 = vsub.f32 %v479, %v3364
        %s3367 = scalar_lea.vmem %s470, 20
        %v3368 = vld [vmem:[%s3367] sm:$0x7]
        %v3370 = vsel %vm507, %v3368, 0
        %v3373 = vsel %vm511, %v3366, 0
        %3375 = vmatprep.subr.mxu0 0.0
        %3376 = vmatpush1.msra.mxu0 0.0
        %3377 = vmatprep.subr.mxu0 0.0
        %3378 = vmatpush1.msra.mxu0 0.0
        %3379 = vmatprep.subr.mxu0 0.0
        %3380 = vmatpush1.msra.mxu0 0.0
        %3381 = vmatprep.subr.mxu0 0.0
        %3382 = vmatpush1.msra.mxu0 0.0
        %3383 = vmatprep.subr.mxu0 0.0
        %3384 = vmatpush1.msra.mxu0 0.0
        %3385 = vmatprep.subr.mxu0 0.0
        %3386 = vmatpush1.msra.mxu0 0.0
        %3387 = vmatprep.subr.mxu0 0.0
        %3388 = vmatpush1.msra.mxu0 0.0
        %3389 = vmatprep.subr.mxu0 0.0
        %3390 = vmatpush1.msra.mxu0 0.0
        %3391 = vmatprep.subr.mxu0 0.0
        %3392 = vmatpush1.msra.mxu0 0.0
        %3393 = vmatprep.subr.mxu0 0.0
        %3394 = vmatpush1.msra.mxu0 0.0
        %3395 = vmatprep.subr.mxu0 0.0
        %3396 = vmatpush1.msra.mxu0 0.0
        %3397 = vmatprep.subr.mxu0 0.0
        %3398 = vmatpush1.msra.mxu0 0.0
        %3399 = vmatprep.subr.mxu0 0.0
        %3400 = vmatpush1.msra.mxu0 0.0
        %3401 = vmatprep.subr.mxu0 0.0
        %3402 = vmatpush1.msra.mxu0 0.0
        %3403 = vmatprep.subr.mxu0 0.0
        %3404 = vmatpush1.msra.mxu0 0.0
        %3405 = vmatprep.subr.mxu0 0.0
        %3406 = vmatpush1.msra.mxu0 %v3373
        %3407 = vmatprep.subr.mxu0 0.0
        %3408 = vmatpush2.msra.mxu0 0.0
        %3409 = vmatprep.subr.mxu0 0.0
        %3410 = vmatpush2.msra.mxu0 0.0
        %3411 = vmatprep.subr.mxu0 0.0
        %3412 = vmatpush2.msra.mxu0 0.0
        %3413 = vmatprep.subr.mxu0 0.0
        %3414 = vmatpush2.msra.mxu0 0.0
        %3415 = vmatprep.subr.mxu0 0.0
        %3416 = vmatpush2.msra.mxu0 0.0
        %3417 = vmatprep.subr.mxu0 0.0
        %3418 = vmatpush2.msra.mxu0 0.0
        %3419 = vmatprep.subr.mxu0 0.0
        %3420 = vmatpush2.msra.mxu0 0.0
        %3421 = vmatprep.subr.mxu0 0.0
        %3422 = vmatpush2.msra.mxu0 0.0
        %3423 = vmatprep.subr.mxu0 0.0
        %3424 = vmatpush2.msra.mxu0 0.0
        %3425 = vmatprep.subr.mxu0 0.0
        %3426 = vmatpush2.msra.mxu0 0.0
        %3427 = vmatprep.subr.mxu0 0.0
        %3428 = vmatpush2.msra.mxu0 0.0
        %3429 = vmatprep.subr.mxu0 0.0
        %3430 = vmatpush2.msra.mxu0 0.0
        %3431 = vmatprep.subr.mxu0 0.0
        %3432 = vmatpush2.msra.mxu0 0.0
        %3433 = vmatprep.subr.mxu0 0.0
        %3434 = vmatpush2.msra.mxu0 0.0
        %3435 = vmatprep.subr.mxu0 0.0
        %3436 = vmatpush2.msra.mxu0 0.0
        %3437 = vmatprep.subr.mxu0 0.0
        %3438 = vmatpush2.msra.mxu0 0.0
        %3439 = vmatprep.mubr.f32.mxu0 0.0
        %3440 = vmatmul.mubr.f32.gmra.mxu0 %v3370
        %v3441 = vpop.f32.mrf.mxu0
        %v3442 = vadd.f32 0.0, %v3441
        %v3443 = vpop.f32.mrf.mxu0
        %3444 = vdwg.mxu0
        %v3445 = vmul.f32 %v3442, %v3366
        %v3447 = vrot.slane %v3445, 1
        %v3449 = vadd.f32 %v3445, %v3447
        %v3450 = vrot.slane %v3445, 2
        %v3452 = vadd.f32 %v3449, %v3450
        %v3453 = vmul.f32 %v3452, -0.5
        %v3454 = vmul.f32 %v3453, 1.442695
        %v3455 = vpow.pop %v3454
        %3456 = vset.pattern.permute.xlu0 5
        %3457 = vperm.xlu0 %3456, %v481
        %v3458 = vpop.permute.xlu0 %3457
        %v3460 = vlaneseq
        %v3461 = vshrl.u32 %v3460, 7
        %v3462 = vsub.s32 0, %v3461
        %v3463 = vrot.slane %v3458, %v3462
        %v3464 = vmul.f32 %v3463, %v3455
        %s3465 = scalar_lea.vmem %s478, 160
        %v3466 = vld [vmem:[%s3465] sm:$0xff]
        %v3467 = vld [vmem:[%s3465 + $0x8] sm:$0xff]
        %v3468 = vld [vmem:[%s3465 + $0x10] sm:$0xff]
        %v3469 = vld [vmem:[%s3465 + $0x18] sm:$0xff]
        %3471 = vset.pattern.permute.xlu0 3
        %3472 = vperm.xlu0 %3471, %v3466
        %v3473 = vpop.permute.xlu0 %3472
        %3476 = vset.pattern.permute.xlu0 3
        %3477 = vperm.xlu0 %3476, %v3467
        %v3478 = vpop.permute.xlu0 %3477
        %3481 = vset.pattern.permute.xlu0 3
        %3482 = vperm.xlu0 %3481, %v3468
        %v3483 = vpop.permute.xlu0 %3482
        %3486 = vset.pattern.permute.xlu0 3
        %3487 = vperm.xlu0 %3486, %v3469
        %v3488 = vpop.permute.xlu0 %3487
        %v3490 = vsel %vm507, %v3466, 0
        %v3492 = vsel %vm507, %v3467, 0
        %v3494 = vsel %vm507, %v3468, 0
        %v3496 = vsel %vm507, %v3469, 0
        %3498 = vmatprep.subr.mxu0 0.0
        %3499 = vmatpush1.msra.mxu0 0.0
        %3500 = vmatprep.subr.mxu0 0.0
        %3501 = vmatpush1.msra.mxu0 0.0
        %3502 = vmatprep.subr.mxu0 0.0
        %3503 = vmatpush1.msra.mxu0 0.0
        %3504 = vmatprep.subr.mxu0 0.0
        %3505 = vmatpush1.msra.mxu0 0.0
        %3506 = vmatprep.subr.mxu0 0.0
        %3507 = vmatpush1.msra.mxu0 0.0
        %3508 = vmatprep.subr.mxu0 0.0
        %3509 = vmatpush1.msra.mxu0 0.0
        %3510 = vmatprep.subr.mxu0 0.0
        %3511 = vmatpush1.msra.mxu0 0.0
        %3512 = vmatprep.subr.mxu0 0.0
        %3513 = vmatpush1.msra.mxu0 0.0
        %3514 = vmatprep.subr.mxu0 0.0
        %3515 = vmatpush1.msra.mxu0 0.0
        %3516 = vmatprep.subr.mxu0 0.0
        %3517 = vmatpush1.msra.mxu0 0.0
        %3518 = vmatprep.subr.mxu0 0.0
        %3519 = vmatpush1.msra.mxu0 0.0
        %3520 = vmatprep.subr.mxu0 0.0
        %3521 = vmatpush1.msra.mxu0 0.0
        %3522 = vmatprep.subr.mxu0 0.0
        %3523 = vmatpush1.msra.mxu0 0.0
        %3524 = vmatprep.subr.mxu0 0.0
        %3525 = vmatpush1.msra.mxu0 0.0
        %3526 = vmatprep.subr.mxu0 0.0
        %3527 = vmatpush1.msra.mxu0 0.0
        %3528 = vmatprep.subr.mxu0 0.0
        %3529 = vmatpush1.msra.mxu0 %v639
        %3530 = vmatprep.subr.mxu0 0.0
        %3531 = vmatpush2.msra.mxu0 0.0
        %3532 = vmatprep.subr.mxu0 0.0
        %3533 = vmatpush2.msra.mxu0 0.0
        %3534 = vmatprep.subr.mxu0 0.0
        %3535 = vmatpush2.msra.mxu0 0.0
        %3536 = vmatprep.subr.mxu0 0.0
        %3537 = vmatpush2.msra.mxu0 0.0
        %3538 = vmatprep.subr.mxu0 0.0
        %3539 = vmatpush2.msra.mxu0 0.0
        %3540 = vmatprep.subr.mxu0 0.0
        %3541 = vmatpush2.msra.mxu0 0.0
        %3542 = vmatprep.subr.mxu0 0.0
        %3543 = vmatpush2.msra.mxu0 0.0
        %3544 = vmatprep.subr.mxu0 0.0
        %3545 = vmatpush2.msra.mxu0 0.0
        %3546 = vmatprep.subr.mxu0 0.0
        %3547 = vmatpush2.msra.mxu0 0.0
        %3548 = vmatprep.subr.mxu0 0.0
        %3549 = vmatpush2.msra.mxu0 0.0
        %3550 = vmatprep.subr.mxu0 0.0
        %3551 = vmatpush2.msra.mxu0 0.0
        %3552 = vmatprep.subr.mxu0 0.0
        %3553 = vmatpush2.msra.mxu0 0.0
        %3554 = vmatprep.subr.mxu0 0.0
        %3555 = vmatpush2.msra.mxu0 0.0
        %3556 = vmatprep.subr.mxu0 0.0
        %3557 = vmatpush2.msra.mxu0 0.0
        %3558 = vmatprep.subr.mxu0 0.0
        %3559 = vmatpush2.msra.mxu0 0.0
        %3560 = vmatprep.subr.mxu0 0.0
        %3561 = vmatpush2.msra.mxu0 0.0
        %3562 = vmatprep.mubr.f32.mxu0 0.0
        %3563 = vmatmul.mubr.f32.gmra.mxu0 %v3490
        %v3564 = vpop.f32.mrf.mxu0
        %v3565 = vadd.f32 %v3473, %v3564
        %v3566 = vpop.f32.mrf.mxu0
        %3567 = vmatprep.mubr.f32.mxu0 0.0
        %3568 = vmatmul.mubr.f32.gmra.mxu0 %v3492
        %v3569 = vpop.f32.mrf.mxu0
        %v3570 = vadd.f32 %v3478, %v3569
        %v3571 = vpop.f32.mrf.mxu0
        %3572 = vmatprep.mubr.f32.mxu0 0.0
        %3573 = vmatmul.mubr.f32.gmra.mxu0 %v3494
        %v3574 = vpop.f32.mrf.mxu0
        %v3575 = vadd.f32 %v3483, %v3574
        %v3576 = vpop.f32.mrf.mxu0
        %3577 = vmatprep.mubr.f32.mxu0 0.0
        %3578 = vmatmul.mubr.f32.gmra.mxu0 %v3496
        %v3579 = vpop.f32.mrf.mxu0
        %v3580 = vadd.f32 %v3488, %v3579
        %v3581 = vpop.f32.mrf.mxu0
        %3582 = vdwg.mxu0
        %3583 = vset.pattern.permute.xlu0 4
        %3584 = vperm.xlu0 %3583, %v3466
        %v3585 = vpop.permute.xlu0 %3584
        %3587 = vset.pattern.permute.xlu0 4
        %3588 = vperm.xlu0 %3587, %v3467
        %v3589 = vpop.permute.xlu0 %3588
        %3591 = vset.pattern.permute.xlu0 4
        %3592 = vperm.xlu0 %3591, %v3468
        %v3593 = vpop.permute.xlu0 %3592
        %3595 = vset.pattern.permute.xlu0 4
        %3596 = vperm.xlu0 %3595, %v3469
        %v3597 = vpop.permute.xlu0 %3596
        %v3599 = vmul.f32 %v3585, %v3565
        %v3600 = vmul.f32 %v3589, %v3570
        %v3601 = vmul.f32 %v3593, %v3575
        %v3602 = vmul.f32 %v3597, %v3580
        %3603 = vset.pattern.permute.xlu0 5
        %3604 = vperm.xlu0 %3603, %v3466
        %v3605 = vpop.permute.xlu0 %3604
        %3607 = vset.pattern.permute.xlu0 5
        %3608 = vperm.xlu0 %3607, %v3467
        %v3609 = vpop.permute.xlu0 %3608
        %3611 = vset.pattern.permute.xlu0 5
        %3612 = vperm.xlu0 %3611, %v3468
        %v3613 = vpop.permute.xlu0 %3612
        %3615 = vset.pattern.permute.xlu0 5
        %3616 = vperm.xlu0 %3615, %v3469
        %v3617 = vpop.permute.xlu0 %3616
        %v3619 = vadd.f32 %v3599, %v3605
        %v3620 = vadd.f32 %v3600, %v3609
        %v3621 = vadd.f32 %v3601, %v3613
        %v3622 = vadd.f32 %v3602, %v3617
        %v3623 = vmax.f32 %v3619, 0.0
        %v3624 = vmax.f32 %v3620, 0.0
        %v3625 = vmax.f32 %v3621, 0.0
        %v3626 = vmax.f32 %v3622, 0.0
        %3627 = vmatprep.subr.mxu0 0.0
        %3628 = vmatpush1.msra.mxu0 0.0
        %3629 = vmatprep.subr.mxu0 0.0
        %3630 = vmatpush1.msra.mxu0 0.0
        %3631 = vmatprep.subr.mxu0 0.0
        %3632 = vmatpush1.msra.mxu0 0.0
        %3633 = vmatprep.subr.mxu0 0.0
        %3634 = vmatpush1.msra.mxu0 0.0
        %3635 = vmatprep.subr.mxu0 0.0
        %3636 = vmatpush1.msra.mxu0 0.0
        %3637 = vmatprep.subr.mxu0 0.0
        %3638 = vmatpush1.msra.mxu0 0.0
        %3639 = vmatprep.subr.mxu0 0.0
        %3640 = vmatpush1.msra.mxu0 0.0
        %3641 = vmatprep.subr.mxu0 0.0
        %3642 = vmatpush1.msra.mxu0 0.0
        %3643 = vmatprep.subr.mxu0 0.0
        %3644 = vmatpush1.msra.mxu0 0.0
        %3645 = vmatprep.subr.mxu0 0.0
        %3646 = vmatpush1.msra.mxu0 0.0
        %3647 = vmatprep.subr.mxu0 0.0
        %3648 = vmatpush1.msra.mxu0 0.0
        %3649 = vmatprep.subr.mxu0 0.0
        %3650 = vmatpush1.msra.mxu0 0.0
        %3651 = vmatprep.subr.mxu0 0.0
        %3652 = vmatpush1.msra.mxu0 %v3626
        %3653 = vmatprep.subr.mxu0 0.0
        %3654 = vmatpush1.msra.mxu0 %v3625
        %3655 = vmatprep.subr.mxu0 0.0
        %3656 = vmatpush1.msra.mxu0 %v3624
        %3657 = vmatprep.subr.mxu0 0.0
        %3658 = vmatpush1.msra.mxu0 %v3623
        %3659 = vmatprep.subr.mxu0 0.0
        %3660 = vmatpush2.msra.mxu0 0.0
        %3661 = vmatprep.subr.mxu0 0.0
        %3662 = vmatpush2.msra.mxu0 0.0
        %3663 = vmatprep.subr.mxu0 0.0
        %3664 = vmatpush2.msra.mxu0 0.0
        %3665 = vmatprep.subr.mxu0 0.0
        %3666 = vmatpush2.msra.mxu0 0.0
        %3667 = vmatprep.subr.mxu0 0.0
        %3668 = vmatpush2.msra.mxu0 0.0
        %3669 = vmatprep.subr.mxu0 0.0
        %3670 = vmatpush2.msra.mxu0 0.0
        %3671 = vmatprep.subr.mxu0 0.0
        %3672 = vmatpush2.msra.mxu0 0.0
        %3673 = vmatprep.subr.mxu0 0.0
        %3674 = vmatpush2.msra.mxu0 0.0
        %3675 = vmatprep.subr.mxu0 0.0
        %3676 = vmatpush2.msra.mxu0 0.0
        %3677 = vmatprep.subr.mxu0 0.0
        %3678 = vmatpush2.msra.mxu0 0.0
        %3679 = vmatprep.subr.mxu0 0.0
        %3680 = vmatpush2.msra.mxu0 0.0
        %3681 = vmatprep.subr.mxu0 0.0
        %3682 = vmatpush2.msra.mxu0 0.0
        %3683 = vmatprep.subr.mxu0 0.0
        %3684 = vmatpush2.msra.mxu0 0.0
        %3685 = vmatprep.subr.mxu0 0.0
        %3686 = vmatpush2.msra.mxu0 0.0
        %3687 = vmatprep.subr.mxu0 0.0
        %3688 = vmatpush2.msra.mxu0 0.0
        %3689 = vmatprep.subr.mxu0 0.0
        %3690 = vmatpush2.msra.mxu0 0.0
        %3691 = vmatprep.mubr.f32.mxu0 0.0
        %3692 = vmatmul.mubr.f32.gmra.mxu0 %v792
        %v3693 = vpop.f32.mrf.mxu0
        %v3694 = vadd.f32 %v773, %v3693
        %v3695 = vpop.f32.mrf.mxu0
        %3696 = vmatprep.mubr.f32.mxu0 0.0
        %3697 = vmatmul.mubr.f32.gmra.mxu0 %v795
        %v3698 = vpop.f32.mrf.mxu0
        %v3699 = vadd.f32 %v778, %v3698
        %v3700 = vpop.f32.mrf.mxu0
        %3701 = vmatprep.mubr.f32.mxu0 0.0
        %3702 = vmatmul.mubr.f32.gmra.mxu0 %v798
        %v3703 = vpop.f32.mrf.mxu0
        %v3704 = vadd.f32 %v783, %v3703
        %v3705 = vpop.f32.mrf.mxu0
        %3706 = vmatprep.mubr.f32.mxu0 0.0
        %3707 = vmatmul.mubr.f32.gmra.mxu0 %v801
        %v3708 = vpop.f32.mrf.mxu0
        %v3709 = vadd.f32 %v788, %v3708
        %v3710 = vpop.f32.mrf.mxu0
        %3711 = vdwg.mxu0
        %3712 = vset.pattern.permute.xlu0 6
        %3713 = vperm.xlu0 %3712, %v3466
        %v3714 = vpop.permute.xlu0 %3713
        %3716 = vset.pattern.permute.xlu0 6
        %3717 = vperm.xlu0 %3716, %v3467
        %v3718 = vpop.permute.xlu0 %3717
        %3720 = vset.pattern.permute.xlu0 6
        %3721 = vperm.xlu0 %3720, %v3468
        %v3722 = vpop.permute.xlu0 %3721
        %3724 = vset.pattern.permute.xlu0 6
        %3725 = vperm.xlu0 %3724, %v3469
        %v3726 = vpop.permute.xlu0 %3725
        %v3728 = vmul.f32 %v3714, %v3694
        %v3729 = vmul.f32 %v3718, %v3699
        %v3730 = vmul.f32 %v3722, %v3704
        %v3731 = vmul.f32 %v3726, %v3709
        %3732 = vset.pattern.permute.xlu0 7
        %3733 = vperm.xlu0 %3732, %v3466
        %v3734 = vpop.permute.xlu0 %3733
        %3736 = vset.pattern.permute.xlu0 7
        %3737 = vperm.xlu0 %3736, %v3467
        %v3738 = vpop.permute.xlu0 %3737
        %3740 = vset.pattern.permute.xlu0 7
        %3741 = vperm.xlu0 %3740, %v3468
        %v3742 = vpop.permute.xlu0 %3741
        %3744 = vset.pattern.permute.xlu0 7
        %3745 = vperm.xlu0 %3744, %v3469
        %v3746 = vpop.permute.xlu0 %3745
        %v3748 = vadd.f32 %v3728, %v3734
        %v3749 = vadd.f32 %v3729, %v3738
        %v3750 = vadd.f32 %v3730, %v3742
        %v3751 = vadd.f32 %v3731, %v3746
        %v3752 = vmax.f32 %v3748, 0.0
        %v3753 = vmax.f32 %v3749, 0.0
        %v3754 = vmax.f32 %v3750, 0.0
        %v3755 = vmax.f32 %v3751, 0.0
        %3756 = vmatprep.subr.mxu0 0.0
        %3757 = vmatpush1.msra.mxu0 0.0
        %3758 = vmatprep.subr.mxu0 0.0
        %3759 = vmatpush1.msra.mxu0 0.0
        %3760 = vmatprep.subr.mxu0 0.0
        %3761 = vmatpush1.msra.mxu0 0.0
        %3762 = vmatprep.subr.mxu0 0.0
        %3763 = vmatpush1.msra.mxu0 0.0
        %3764 = vmatprep.subr.mxu0 0.0
        %3765 = vmatpush1.msra.mxu0 0.0
        %3766 = vmatprep.subr.mxu0 0.0
        %3767 = vmatpush1.msra.mxu0 0.0
        %3768 = vmatprep.subr.mxu0 0.0
        %3769 = vmatpush1.msra.mxu0 0.0
        %3770 = vmatprep.subr.mxu0 0.0
        %3771 = vmatpush1.msra.mxu0 0.0
        %3772 = vmatprep.subr.mxu0 0.0
        %3773 = vmatpush1.msra.mxu0 0.0
        %3774 = vmatprep.subr.mxu0 0.0
        %3775 = vmatpush1.msra.mxu0 0.0
        %3776 = vmatprep.subr.mxu0 0.0
        %3777 = vmatpush1.msra.mxu0 0.0
        %3778 = vmatprep.subr.mxu0 0.0
        %3779 = vmatpush1.msra.mxu0 0.0
        %3780 = vmatprep.subr.mxu0 0.0
        %3781 = vmatpush1.msra.mxu0 %v3755
        %3782 = vmatprep.subr.mxu0 0.0
        %3783 = vmatpush1.msra.mxu0 %v3754
        %3784 = vmatprep.subr.mxu0 0.0
        %3785 = vmatpush1.msra.mxu0 %v3753
        %3786 = vmatprep.subr.mxu0 0.0
        %3787 = vmatpush1.msra.mxu0 %v3752
        %3788 = vmatprep.subr.mxu0 0.0
        %3789 = vmatpush2.msra.mxu0 0.0
        %3790 = vmatprep.subr.mxu0 0.0
        %3791 = vmatpush2.msra.mxu0 0.0
        %3792 = vmatprep.subr.mxu0 0.0
        %3793 = vmatpush2.msra.mxu0 0.0
        %3794 = vmatprep.subr.mxu0 0.0
        %3795 = vmatpush2.msra.mxu0 0.0
        %3796 = vmatprep.subr.mxu0 0.0
        %3797 = vmatpush2.msra.mxu0 0.0
        %3798 = vmatprep.subr.mxu0 0.0
        %3799 = vmatpush2.msra.mxu0 0.0
        %3800 = vmatprep.subr.mxu0 0.0
        %3801 = vmatpush2.msra.mxu0 0.0
        %3802 = vmatprep.subr.mxu0 0.0
        %3803 = vmatpush2.msra.mxu0 0.0
        %3804 = vmatprep.subr.mxu0 0.0
        %3805 = vmatpush2.msra.mxu0 0.0
        %3806 = vmatprep.subr.mxu0 0.0
        %3807 = vmatpush2.msra.mxu0 0.0
        %3808 = vmatprep.subr.mxu0 0.0
        %3809 = vmatpush2.msra.mxu0 0.0
        %3810 = vmatprep.subr.mxu0 0.0
        %3811 = vmatpush2.msra.mxu0 0.0
        %3812 = vmatprep.subr.mxu0 0.0
        %3813 = vmatpush2.msra.mxu0 0.0
        %3814 = vmatprep.subr.mxu0 0.0
        %3815 = vmatpush2.msra.mxu0 0.0
        %3816 = vmatprep.subr.mxu0 0.0
        %3817 = vmatpush2.msra.mxu0 0.0
        %3818 = vmatprep.subr.mxu0 0.0
        %3819 = vmatpush2.msra.mxu0 0.0
        %3820 = vmatprep.mubr.f32.mxu0 0.0
        %3821 = vmatmul.mubr.f32.gmra.mxu0 %v953
        %v3822 = vpop.f32.mrf.mxu0
        %v3823 = vadd.f32 %v935, %v3822
        %v3824 = vpop.f32.mrf.mxu0
        %3825 = vmatprep.mubr.f32.mxu0 0.0
        %3826 = vmatmul.mubr.f32.gmra.mxu0 %v956
        %v3827 = vpop.f32.mrf.mxu0
        %v3828 = vadd.f32 %v940, %v3827
        %v3829 = vpop.f32.mrf.mxu0
        %3830 = vmatprep.mubr.f32.mxu0 0.0
        %3831 = vmatmul.mubr.f32.gmra.mxu0 %v959
        %v3832 = vpop.f32.mrf.mxu0
        %v3833 = vadd.f32 %v945, %v3832
        %v3834 = vpop.f32.mrf.mxu0
        %3835 = vmatprep.mubr.f32.mxu0 0.0
        %3836 = vmatmul.mubr.f32.gmra.mxu0 %v962
        %v3837 = vpop.f32.mrf.mxu0
        %v3838 = vadd.f32 %v950, %v3837
        %v3839 = vpop.f32.mrf.mxu0
        %3840 = vdwg.mxu0
        %v3841 = vadd.f32 %v3565, %v3823
        %v3842 = vadd.f32 %v3570, %v3828
        %v3843 = vadd.f32 %v3575, %v3833
        %v3844 = vadd.f32 %v3580, %v3838
        %3845 = vmatprep.subr.mxu0 0.0
        %3846 = vmatpush1.msra.mxu0 0.0
        %3847 = vmatprep.subr.mxu0 0.0
        %3848 = vmatpush1.msra.mxu0 0.0
        %3849 = vmatprep.subr.mxu0 0.0
        %3850 = vmatpush1.msra.mxu0 0.0
        %3851 = vmatprep.subr.mxu0 0.0
        %3852 = vmatpush1.msra.mxu0 0.0
        %3853 = vmatprep.subr.mxu0 0.0
        %3854 = vmatpush1.msra.mxu0 0.0
        %3855 = vmatprep.subr.mxu0 0.0
        %3856 = vmatpush1.msra.mxu0 0.0
        %3857 = vmatprep.subr.mxu0 0.0
        %3858 = vmatpush1.msra.mxu0 0.0
        %3859 = vmatprep.subr.mxu0 0.0
        %3860 = vmatpush1.msra.mxu0 0.0
        %3861 = vmatprep.subr.mxu0 0.0
        %3862 = vmatpush1.msra.mxu0 0.0
        %3863 = vmatprep.subr.mxu0 0.0
        %3864 = vmatpush1.msra.mxu0 0.0
        %3865 = vmatprep.subr.mxu0 0.0
        %3866 = vmatpush1.msra.mxu0 0.0
        %3867 = vmatprep.subr.mxu0 0.0
        %3868 = vmatpush1.msra.mxu0 0.0
        %3869 = vmatprep.subr.mxu0 0.0
        %3870 = vmatpush1.msra.mxu0 %v3844
        %3871 = vmatprep.subr.mxu0 0.0
        %3872 = vmatpush1.msra.mxu0 %v3843
        %3873 = vmatprep.subr.mxu0 0.0
        %3874 = vmatpush1.msra.mxu0 %v3842
        %3875 = vmatprep.subr.mxu0 0.0
        %3876 = vmatpush1.msra.mxu0 %v3841
        %3877 = vmatprep.subr.mxu0 0.0
        %3878 = vmatpush2.msra.mxu0 0.0
        %3879 = vmatprep.subr.mxu0 0.0
        %3880 = vmatpush2.msra.mxu0 0.0
        %3881 = vmatprep.subr.mxu0 0.0
        %3882 = vmatpush2.msra.mxu0 0.0
        %3883 = vmatprep.subr.mxu0 0.0
        %3884 = vmatpush2.msra.mxu0 0.0
        %3885 = vmatprep.subr.mxu0 0.0
        %3886 = vmatpush2.msra.mxu0 0.0
        %3887 = vmatprep.subr.mxu0 0.0
        %3888 = vmatpush2.msra.mxu0 0.0
        %3889 = vmatprep.subr.mxu0 0.0
        %3890 = vmatpush2.msra.mxu0 0.0
        %3891 = vmatprep.subr.mxu0 0.0
        %3892 = vmatpush2.msra.mxu0 0.0
        %3893 = vmatprep.subr.mxu0 0.0
        %3894 = vmatpush2.msra.mxu0 0.0
        %3895 = vmatprep.subr.mxu0 0.0
        %3896 = vmatpush2.msra.mxu0 0.0
        %3897 = vmatprep.subr.mxu0 0.0
        %3898 = vmatpush2.msra.mxu0 0.0
        %3899 = vmatprep.subr.mxu0 0.0
        %3900 = vmatpush2.msra.mxu0 0.0
        %3901 = vmatprep.subr.mxu0 0.0
        %3902 = vmatpush2.msra.mxu0 0.0
        %3903 = vmatprep.subr.mxu0 0.0
        %3904 = vmatpush2.msra.mxu0 0.0
        %3905 = vmatprep.subr.mxu0 0.0
        %3906 = vmatpush2.msra.mxu0 0.0
        %3907 = vmatprep.subr.mxu0 0.0
        %3908 = vmatpush2.msra.mxu0 0.0
        %3909 = vmatprep.mubr.f32.mxu0 0.0
        %3910 = vmatmul.mubr.f32.gmra.mxu0 %v1063
        %v3911 = vpop.f32.mrf.mxu0
        %v3912 = vadd.f32 %v1061, %v3911
        %v3913 = vpop.f32.mrf.mxu0
        %3914 = vdwg.mxu0
        %v3915 = vadd.f32 %v3912, 1.0
        %v3916 = vmul.f32 %v3464, %v3915
        %v3917 = vadd.f32 %v3361, %v3916
        %3918 = vset.pattern.permute.xlu0 6
        %3919 = vperm.xlu0 %3918, %v480
        %v3920 = vpop.permute.xlu0 %3919
        %v3922 = vsub.f32 %v479, %v3920
        %s3923 = scalar_lea.vmem %s470, 24
        %v3924 = vld [vmem:[%s3923] sm:$0x7]
        %v3926 = vsel %vm507, %v3924, 0
        %v3929 = vsel %vm511, %v3922, 0
        %3931 = vmatprep.subr.mxu0 0.0
        %3932 = vmatpush1.msra.mxu0 0.0
        %3933 = vmatprep.subr.mxu0 0.0
        %3934 = vmatpush1.msra.mxu0 0.0
        %3935 = vmatprep.subr.mxu0 0.0
        %3936 = vmatpush1.msra.mxu0 0.0
        %3937 = vmatprep.subr.mxu0 0.0
        %3938 = vmatpush1.msra.mxu0 0.0
        %3939 = vmatprep.subr.mxu0 0.0
        %3940 = vmatpush1.msra.mxu0 0.0
        %3941 = vmatprep.subr.mxu0 0.0
        %3942 = vmatpush1.msra.mxu0 0.0
        %3943 = vmatprep.subr.mxu0 0.0
        %3944 = vmatpush1.msra.mxu0 0.0
        %3945 = vmatprep.subr.mxu0 0.0
        %3946 = vmatpush1.msra.mxu0 0.0
        %3947 = vmatprep.subr.mxu0 0.0
        %3948 = vmatpush1.msra.mxu0 0.0
        %3949 = vmatprep.subr.mxu0 0.0
        %3950 = vmatpush1.msra.mxu0 0.0
        %3951 = vmatprep.subr.mxu0 0.0
        %3952 = vmatpush1.msra.mxu0 0.0
        %3953 = vmatprep.subr.mxu0 0.0
        %3954 = vmatpush1.msra.mxu0 0.0
        %3955 = vmatprep.subr.mxu0 0.0
        %3956 = vmatpush1.msra.mxu0 0.0
        %3957 = vmatprep.subr.mxu0 0.0
        %3958 = vmatpush1.msra.mxu0 0.0
        %3959 = vmatprep.subr.mxu0 0.0
        %3960 = vmatpush1.msra.mxu0 0.0
        %3961 = vmatprep.subr.mxu0 0.0
        %3962 = vmatpush1.msra.mxu0 %v3929
        %3963 = vmatprep.subr.mxu0 0.0
        %3964 = vmatpush2.msra.mxu0 0.0
        %3965 = vmatprep.subr.mxu0 0.0
        %3966 = vmatpush2.msra.mxu0 0.0
        %3967 = vmatprep.subr.mxu0 0.0
        %3968 = vmatpush2.msra.mxu0 0.0
        %3969 = vmatprep.subr.mxu0 0.0
        %3970 = vmatpush2.msra.mxu0 0.0
        %3971 = vmatprep.subr.mxu0 0.0
        %3972 = vmatpush2.msra.mxu0 0.0
        %3973 = vmatprep.subr.mxu0 0.0
        %3974 = vmatpush2.msra.mxu0 0.0
        %3975 = vmatprep.subr.mxu0 0.0
        %3976 = vmatpush2.msra.mxu0 0.0
        %3977 = vmatprep.subr.mxu0 0.0
        %3978 = vmatpush2.msra.mxu0 0.0
        %3979 = vmatprep.subr.mxu0 0.0
        %3980 = vmatpush2.msra.mxu0 0.0
        %3981 = vmatprep.subr.mxu0 0.0
        %3982 = vmatpush2.msra.mxu0 0.0
        %3983 = vmatprep.subr.mxu0 0.0
        %3984 = vmatpush2.msra.mxu0 0.0
        %3985 = vmatprep.subr.mxu0 0.0
        %3986 = vmatpush2.msra.mxu0 0.0
        %3987 = vmatprep.subr.mxu0 0.0
        %3988 = vmatpush2.msra.mxu0 0.0
        %3989 = vmatprep.subr.mxu0 0.0
        %3990 = vmatpush2.msra.mxu0 0.0
        %3991 = vmatprep.subr.mxu0 0.0
        %3992 = vmatpush2.msra.mxu0 0.0
        %3993 = vmatprep.subr.mxu0 0.0
        %3994 = vmatpush2.msra.mxu0 0.0
        %3995 = vmatprep.mubr.f32.mxu0 0.0
        %3996 = vmatmul.mubr.f32.gmra.mxu0 %v3926
        %v3997 = vpop.f32.mrf.mxu0
        %v3998 = vadd.f32 0.0, %v3997
        %v3999 = vpop.f32.mrf.mxu0
        %4000 = vdwg.mxu0
        %v4001 = vmul.f32 %v3998, %v3922
        %v4003 = vrot.slane %v4001, 1
        %v4005 = vadd.f32 %v4001, %v4003
        %v4006 = vrot.slane %v4001, 2
        %v4008 = vadd.f32 %v4005, %v4006
        %v4009 = vmul.f32 %v4008, -0.5
        %v4010 = vmul.f32 %v4009, 1.442695
        %v4011 = vpow.pop %v4010
        %4012 = vset.pattern.permute.xlu0 6
        %4013 = vperm.xlu0 %4012, %v481
        %v4014 = vpop.permute.xlu0 %4013
        %v4016 = vlaneseq
        %v4017 = vshrl.u32 %v4016, 7
        %v4018 = vsub.s32 0, %v4017
        %v4019 = vrot.slane %v4014, %v4018
        %v4020 = vmul.f32 %v4019, %v4011
        %s4021 = scalar_lea.vmem %s478, 192
        %v4022 = vld [vmem:[%s4021] sm:$0xff]
        %v4023 = vld [vmem:[%s4021 + $0x8] sm:$0xff]
        %v4024 = vld [vmem:[%s4021 + $0x10] sm:$0xff]
        %v4025 = vld [vmem:[%s4021 + $0x18] sm:$0xff]
        %4027 = vset.pattern.permute.xlu0 3
        %4028 = vperm.xlu0 %4027, %v4022
        %v4029 = vpop.permute.xlu0 %4028
        %4032 = vset.pattern.permute.xlu0 3
        %4033 = vperm.xlu0 %4032, %v4023
        %v4034 = vpop.permute.xlu0 %4033
        %4037 = vset.pattern.permute.xlu0 3
        %4038 = vperm.xlu0 %4037, %v4024
        %v4039 = vpop.permute.xlu0 %4038
        %4042 = vset.pattern.permute.xlu0 3
        %4043 = vperm.xlu0 %4042, %v4025
        %v4044 = vpop.permute.xlu0 %4043
        %v4046 = vsel %vm507, %v4022, 0
        %v4048 = vsel %vm507, %v4023, 0
        %v4050 = vsel %vm507, %v4024, 0
        %v4052 = vsel %vm507, %v4025, 0
        %4054 = vmatprep.subr.mxu0 0.0
        %4055 = vmatpush1.msra.mxu0 0.0
        %4056 = vmatprep.subr.mxu0 0.0
        %4057 = vmatpush1.msra.mxu0 0.0
        %4058 = vmatprep.subr.mxu0 0.0
        %4059 = vmatpush1.msra.mxu0 0.0
        %4060 = vmatprep.subr.mxu0 0.0
        %4061 = vmatpush1.msra.mxu0 0.0
        %4062 = vmatprep.subr.mxu0 0.0
        %4063 = vmatpush1.msra.mxu0 0.0
        %4064 = vmatprep.subr.mxu0 0.0
        %4065 = vmatpush1.msra.mxu0 0.0
        %4066 = vmatprep.subr.mxu0 0.0
        %4067 = vmatpush1.msra.mxu0 0.0
        %4068 = vmatprep.subr.mxu0 0.0
        %4069 = vmatpush1.msra.mxu0 0.0
        %4070 = vmatprep.subr.mxu0 0.0
        %4071 = vmatpush1.msra.mxu0 0.0
        %4072 = vmatprep.subr.mxu0 0.0
        %4073 = vmatpush1.msra.mxu0 0.0
        %4074 = vmatprep.subr.mxu0 0.0
        %4075 = vmatpush1.msra.mxu0 0.0
        %4076 = vmatprep.subr.mxu0 0.0
        %4077 = vmatpush1.msra.mxu0 0.0
        %4078 = vmatprep.subr.mxu0 0.0
        %4079 = vmatpush1.msra.mxu0 0.0
        %4080 = vmatprep.subr.mxu0 0.0
        %4081 = vmatpush1.msra.mxu0 0.0
        %4082 = vmatprep.subr.mxu0 0.0
        %4083 = vmatpush1.msra.mxu0 0.0
        %4084 = vmatprep.subr.mxu0 0.0
        %4085 = vmatpush1.msra.mxu0 %v639
        %4086 = vmatprep.subr.mxu0 0.0
        %4087 = vmatpush2.msra.mxu0 0.0
        %4088 = vmatprep.subr.mxu0 0.0
        %4089 = vmatpush2.msra.mxu0 0.0
        %4090 = vmatprep.subr.mxu0 0.0
        %4091 = vmatpush2.msra.mxu0 0.0
        %4092 = vmatprep.subr.mxu0 0.0
        %4093 = vmatpush2.msra.mxu0 0.0
        %4094 = vmatprep.subr.mxu0 0.0
        %4095 = vmatpush2.msra.mxu0 0.0
        %4096 = vmatprep.subr.mxu0 0.0
        %4097 = vmatpush2.msra.mxu0 0.0
        %4098 = vmatprep.subr.mxu0 0.0
        %4099 = vmatpush2.msra.mxu0 0.0
        %4100 = vmatprep.subr.mxu0 0.0
        %4101 = vmatpush2.msra.mxu0 0.0
        %4102 = vmatprep.subr.mxu0 0.0
        %4103 = vmatpush2.msra.mxu0 0.0
        %4104 = vmatprep.subr.mxu0 0.0
        %4105 = vmatpush2.msra.mxu0 0.0
        %4106 = vmatprep.subr.mxu0 0.0
        %4107 = vmatpush2.msra.mxu0 0.0
        %4108 = vmatprep.subr.mxu0 0.0
        %4109 = vmatpush2.msra.mxu0 0.0
        %4110 = vmatprep.subr.mxu0 0.0
        %4111 = vmatpush2.msra.mxu0 0.0
        %4112 = vmatprep.subr.mxu0 0.0
        %4113 = vmatpush2.msra.mxu0 0.0
        %4114 = vmatprep.subr.mxu0 0.0
        %4115 = vmatpush2.msra.mxu0 0.0
        %4116 = vmatprep.subr.mxu0 0.0
        %4117 = vmatpush2.msra.mxu0 0.0
        %4118 = vmatprep.mubr.f32.mxu0 0.0
        %4119 = vmatmul.mubr.f32.gmra.mxu0 %v4046
        %v4120 = vpop.f32.mrf.mxu0
        %v4121 = vadd.f32 %v4029, %v4120
        %v4122 = vpop.f32.mrf.mxu0
        %4123 = vmatprep.mubr.f32.mxu0 0.0
        %4124 = vmatmul.mubr.f32.gmra.mxu0 %v4048
        %v4125 = vpop.f32.mrf.mxu0
        %v4126 = vadd.f32 %v4034, %v4125
        %v4127 = vpop.f32.mrf.mxu0
        %4128 = vmatprep.mubr.f32.mxu0 0.0
        %4129 = vmatmul.mubr.f32.gmra.mxu0 %v4050
        %v4130 = vpop.f32.mrf.mxu0
        %v4131 = vadd.f32 %v4039, %v4130
        %v4132 = vpop.f32.mrf.mxu0
        %4133 = vmatprep.mubr.f32.mxu0 0.0
        %4134 = vmatmul.mubr.f32.gmra.mxu0 %v4052
        %v4135 = vpop.f32.mrf.mxu0
        %v4136 = vadd.f32 %v4044, %v4135
        %v4137 = vpop.f32.mrf.mxu0
        %4138 = vdwg.mxu0
        %4139 = vset.pattern.permute.xlu0 4
        %4140 = vperm.xlu0 %4139, %v4022
        %v4141 = vpop.permute.xlu0 %4140
        %4143 = vset.pattern.permute.xlu0 4
        %4144 = vperm.xlu0 %4143, %v4023
        %v4145 = vpop.permute.xlu0 %4144
        %4147 = vset.pattern.permute.xlu0 4
        %4148 = vperm.xlu0 %4147, %v4024
        %v4149 = vpop.permute.xlu0 %4148
        %4151 = vset.pattern.permute.xlu0 4
        %4152 = vperm.xlu0 %4151, %v4025
        %v4153 = vpop.permute.xlu0 %4152
        %v4155 = vmul.f32 %v4141, %v4121
        %v4156 = vmul.f32 %v4145, %v4126
        %v4157 = vmul.f32 %v4149, %v4131
        %v4158 = vmul.f32 %v4153, %v4136
        %4159 = vset.pattern.permute.xlu0 5
        %4160 = vperm.xlu0 %4159, %v4022
        %v4161 = vpop.permute.xlu0 %4160
        %4163 = vset.pattern.permute.xlu0 5
        %4164 = vperm.xlu0 %4163, %v4023
        %v4165 = vpop.permute.xlu0 %4164
        %4167 = vset.pattern.permute.xlu0 5
        %4168 = vperm.xlu0 %4167, %v4024
        %v4169 = vpop.permute.xlu0 %4168
        %4171 = vset.pattern.permute.xlu0 5
        %4172 = vperm.xlu0 %4171, %v4025
        %v4173 = vpop.permute.xlu0 %4172
        %v4175 = vadd.f32 %v4155, %v4161
        %v4176 = vadd.f32 %v4156, %v4165
        %v4177 = vadd.f32 %v4157, %v4169
        %v4178 = vadd.f32 %v4158, %v4173
        %v4179 = vmax.f32 %v4175, 0.0
        %v4180 = vmax.f32 %v4176, 0.0
        %v4181 = vmax.f32 %v4177, 0.0
        %v4182 = vmax.f32 %v4178, 0.0
        %4183 = vmatprep.subr.mxu0 0.0
        %4184 = vmatpush1.msra.mxu0 0.0
        %4185 = vmatprep.subr.mxu0 0.0
        %4186 = vmatpush1.msra.mxu0 0.0
        %4187 = vmatprep.subr.mxu0 0.0
        %4188 = vmatpush1.msra.mxu0 0.0
        %4189 = vmatprep.subr.mxu0 0.0
        %4190 = vmatpush1.msra.mxu0 0.0
        %4191 = vmatprep.subr.mxu0 0.0
        %4192 = vmatpush1.msra.mxu0 0.0
        %4193 = vmatprep.subr.mxu0 0.0
        %4194 = vmatpush1.msra.mxu0 0.0
        %4195 = vmatprep.subr.mxu0 0.0
        %4196 = vmatpush1.msra.mxu0 0.0
        %4197 = vmatprep.subr.mxu0 0.0
        %4198 = vmatpush1.msra.mxu0 0.0
        %4199 = vmatprep.subr.mxu0 0.0
        %4200 = vmatpush1.msra.mxu0 0.0
        %4201 = vmatprep.subr.mxu0 0.0
        %4202 = vmatpush1.msra.mxu0 0.0
        %4203 = vmatprep.subr.mxu0 0.0
        %4204 = vmatpush1.msra.mxu0 0.0
        %4205 = vmatprep.subr.mxu0 0.0
        %4206 = vmatpush1.msra.mxu0 0.0
        %4207 = vmatprep.subr.mxu0 0.0
        %4208 = vmatpush1.msra.mxu0 %v4182
        %4209 = vmatprep.subr.mxu0 0.0
        %4210 = vmatpush1.msra.mxu0 %v4181
        %4211 = vmatprep.subr.mxu0 0.0
        %4212 = vmatpush1.msra.mxu0 %v4180
        %4213 = vmatprep.subr.mxu0 0.0
        %4214 = vmatpush1.msra.mxu0 %v4179
        %4215 = vmatprep.subr.mxu0 0.0
        %4216 = vmatpush2.msra.mxu0 0.0
        %4217 = vmatprep.subr.mxu0 0.0
        %4218 = vmatpush2.msra.mxu0 0.0
        %4219 = vmatprep.subr.mxu0 0.0
        %4220 = vmatpush2.msra.mxu0 0.0
        %4221 = vmatprep.subr.mxu0 0.0
        %4222 = vmatpush2.msra.mxu0 0.0
        %4223 = vmatprep.subr.mxu0 0.0
        %4224 = vmatpush2.msra.mxu0 0.0
        %4225 = vmatprep.subr.mxu0 0.0
        %4226 = vmatpush2.msra.mxu0 0.0
        %4227 = vmatprep.subr.mxu0 0.0
        %4228 = vmatpush2.msra.mxu0 0.0
        %4229 = vmatprep.subr.mxu0 0.0
        %4230 = vmatpush2.msra.mxu0 0.0
        %4231 = vmatprep.subr.mxu0 0.0
        %4232 = vmatpush2.msra.mxu0 0.0
        %4233 = vmatprep.subr.mxu0 0.0
        %4234 = vmatpush2.msra.mxu0 0.0
        %4235 = vmatprep.subr.mxu0 0.0
        %4236 = vmatpush2.msra.mxu0 0.0
        %4237 = vmatprep.subr.mxu0 0.0
        %4238 = vmatpush2.msra.mxu0 0.0
        %4239 = vmatprep.subr.mxu0 0.0
        %4240 = vmatpush2.msra.mxu0 0.0
        %4241 = vmatprep.subr.mxu0 0.0
        %4242 = vmatpush2.msra.mxu0 0.0
        %4243 = vmatprep.subr.mxu0 0.0
        %4244 = vmatpush2.msra.mxu0 0.0
        %4245 = vmatprep.subr.mxu0 0.0
        %4246 = vmatpush2.msra.mxu0 0.0
        %4247 = vmatprep.mubr.f32.mxu0 0.0
        %4248 = vmatmul.mubr.f32.gmra.mxu0 %v792
        %v4249 = vpop.f32.mrf.mxu0
        %v4250 = vadd.f32 %v773, %v4249
        %v4251 = vpop.f32.mrf.mxu0
        %4252 = vmatprep.mubr.f32.mxu0 0.0
        %4253 = vmatmul.mubr.f32.gmra.mxu0 %v795
        %v4254 = vpop.f32.mrf.mxu0
        %v4255 = vadd.f32 %v778, %v4254
        %v4256 = vpop.f32.mrf.mxu0
        %4257 = vmatprep.mubr.f32.mxu0 0.0
        %4258 = vmatmul.mubr.f32.gmra.mxu0 %v798
        %v4259 = vpop.f32.mrf.mxu0
        %v4260 = vadd.f32 %v783, %v4259
        %v4261 = vpop.f32.mrf.mxu0
        %4262 = vmatprep.mubr.f32.mxu0 0.0
        %4263 = vmatmul.mubr.f32.gmra.mxu0 %v801
        %v4264 = vpop.f32.mrf.mxu0
        %v4265 = vadd.f32 %v788, %v4264
        %v4266 = vpop.f32.mrf.mxu0
        %4267 = vdwg.mxu0
        %4268 = vset.pattern.permute.xlu0 6
        %4269 = vperm.xlu0 %4268, %v4022
        %v4270 = vpop.permute.xlu0 %4269
        %4272 = vset.pattern.permute.xlu0 6
        %4273 = vperm.xlu0 %4272, %v4023
        %v4274 = vpop.permute.xlu0 %4273
        %4276 = vset.pattern.permute.xlu0 6
        %4277 = vperm.xlu0 %4276, %v4024
        %v4278 = vpop.permute.xlu0 %4277
        %4280 = vset.pattern.permute.xlu0 6
        %4281 = vperm.xlu0 %4280, %v4025
        %v4282 = vpop.permute.xlu0 %4281
        %v4284 = vmul.f32 %v4270, %v4250
        %v4285 = vmul.f32 %v4274, %v4255
        %v4286 = vmul.f32 %v4278, %v4260
        %v4287 = vmul.f32 %v4282, %v4265
        %4288 = vset.pattern.permute.xlu0 7
        %4289 = vperm.xlu0 %4288, %v4022
        %v4290 = vpop.permute.xlu0 %4289
        %4292 = vset.pattern.permute.xlu0 7
        %4293 = vperm.xlu0 %4292, %v4023
        %v4294 = vpop.permute.xlu0 %4293
        %4296 = vset.pattern.permute.xlu0 7
        %4297 = vperm.xlu0 %4296, %v4024
        %v4298 = vpop.permute.xlu0 %4297
        %4300 = vset.pattern.permute.xlu0 7
        %4301 = vperm.xlu0 %4300, %v4025
        %v4302 = vpop.permute.xlu0 %4301
        %v4304 = vadd.f32 %v4284, %v4290
        %v4305 = vadd.f32 %v4285, %v4294
        %v4306 = vadd.f32 %v4286, %v4298
        %v4307 = vadd.f32 %v4287, %v4302
        %v4308 = vmax.f32 %v4304, 0.0
        %v4309 = vmax.f32 %v4305, 0.0
        %v4310 = vmax.f32 %v4306, 0.0
        %v4311 = vmax.f32 %v4307, 0.0
        %4312 = vmatprep.subr.mxu0 0.0
        %4313 = vmatpush1.msra.mxu0 0.0
        %4314 = vmatprep.subr.mxu0 0.0
        %4315 = vmatpush1.msra.mxu0 0.0
        %4316 = vmatprep.subr.mxu0 0.0
        %4317 = vmatpush1.msra.mxu0 0.0
        %4318 = vmatprep.subr.mxu0 0.0
        %4319 = vmatpush1.msra.mxu0 0.0
        %4320 = vmatprep.subr.mxu0 0.0
        %4321 = vmatpush1.msra.mxu0 0.0
        %4322 = vmatprep.subr.mxu0 0.0
        %4323 = vmatpush1.msra.mxu0 0.0
        %4324 = vmatprep.subr.mxu0 0.0
        %4325 = vmatpush1.msra.mxu0 0.0
        %4326 = vmatprep.subr.mxu0 0.0
        %4327 = vmatpush1.msra.mxu0 0.0
        %4328 = vmatprep.subr.mxu0 0.0
        %4329 = vmatpush1.msra.mxu0 0.0
        %4330 = vmatprep.subr.mxu0 0.0
        %4331 = vmatpush1.msra.mxu0 0.0
        %4332 = vmatprep.subr.mxu0 0.0
        %4333 = vmatpush1.msra.mxu0 0.0
        %4334 = vmatprep.subr.mxu0 0.0
        %4335 = vmatpush1.msra.mxu0 0.0
        %4336 = vmatprep.subr.mxu0 0.0
        %4337 = vmatpush1.msra.mxu0 %v4311
        %4338 = vmatprep.subr.mxu0 0.0
        %4339 = vmatpush1.msra.mxu0 %v4310
        %4340 = vmatprep.subr.mxu0 0.0
        %4341 = vmatpush1.msra.mxu0 %v4309
        %4342 = vmatprep.subr.mxu0 0.0
        %4343 = vmatpush1.msra.mxu0 %v4308
        %4344 = vmatprep.subr.mxu0 0.0
        %4345 = vmatpush2.msra.mxu0 0.0
        %4346 = vmatprep.subr.mxu0 0.0
        %4347 = vmatpush2.msra.mxu0 0.0
        %4348 = vmatprep.subr.mxu0 0.0
        %4349 = vmatpush2.msra.mxu0 0.0
        %4350 = vmatprep.subr.mxu0 0.0
        %4351 = vmatpush2.msra.mxu0 0.0
        %4352 = vmatprep.subr.mxu0 0.0
        %4353 = vmatpush2.msra.mxu0 0.0
        %4354 = vmatprep.subr.mxu0 0.0
        %4355 = vmatpush2.msra.mxu0 0.0
        %4356 = vmatprep.subr.mxu0 0.0
        %4357 = vmatpush2.msra.mxu0 0.0
        %4358 = vmatprep.subr.mxu0 0.0
        %4359 = vmatpush2.msra.mxu0 0.0
        %4360 = vmatprep.subr.mxu0 0.0
        %4361 = vmatpush2.msra.mxu0 0.0
        %4362 = vmatprep.subr.mxu0 0.0
        %4363 = vmatpush2.msra.mxu0 0.0
        %4364 = vmatprep.subr.mxu0 0.0
        %4365 = vmatpush2.msra.mxu0 0.0
        %4366 = vmatprep.subr.mxu0 0.0
        %4367 = vmatpush2.msra.mxu0 0.0
        %4368 = vmatprep.subr.mxu0 0.0
        %4369 = vmatpush2.msra.mxu0 0.0
        %4370 = vmatprep.subr.mxu0 0.0
        %4371 = vmatpush2.msra.mxu0 0.0
        %4372 = vmatprep.subr.mxu0 0.0
        %4373 = vmatpush2.msra.mxu0 0.0
        %4374 = vmatprep.subr.mxu0 0.0
        %4375 = vmatpush2.msra.mxu0 0.0
        %4376 = vmatprep.mubr.f32.mxu0 0.0
        %4377 = vmatmul.mubr.f32.gmra.mxu0 %v953
        %v4378 = vpop.f32.mrf.mxu0
        %v4379 = vadd.f32 %v935, %v4378
        %v4380 = vpop.f32.mrf.mxu0
        %4381 = vmatprep.mubr.f32.mxu0 0.0
        %4382 = vmatmul.mubr.f32.gmra.mxu0 %v956
        %v4383 = vpop.f32.mrf.mxu0
        %v4384 = vadd.f32 %v940, %v4383
        %v4385 = vpop.f32.mrf.mxu0
        %4386 = vmatprep.mubr.f32.mxu0 0.0
        %4387 = vmatmul.mubr.f32.gmra.mxu0 %v959
        %v4388 = vpop.f32.mrf.mxu0
        %v4389 = vadd.f32 %v945, %v4388
        %v4390 = vpop.f32.mrf.mxu0
        %4391 = vmatprep.mubr.f32.mxu0 0.0
        %4392 = vmatmul.mubr.f32.gmra.mxu0 %v962
        %v4393 = vpop.f32.mrf.mxu0
        %v4394 = vadd.f32 %v950, %v4393
        %v4395 = vpop.f32.mrf.mxu0
        %4396 = vdwg.mxu0
        %v4397 = vadd.f32 %v4121, %v4379
        %v4398 = vadd.f32 %v4126, %v4384
        %v4399 = vadd.f32 %v4131, %v4389
        %v4400 = vadd.f32 %v4136, %v4394
        %4401 = vmatprep.subr.mxu0 0.0
        %4402 = vmatpush1.msra.mxu0 0.0
        %4403 = vmatprep.subr.mxu0 0.0
        %4404 = vmatpush1.msra.mxu0 0.0
        %4405 = vmatprep.subr.mxu0 0.0
        %4406 = vmatpush1.msra.mxu0 0.0
        %4407 = vmatprep.subr.mxu0 0.0
        %4408 = vmatpush1.msra.mxu0 0.0
        %4409 = vmatprep.subr.mxu0 0.0
        %4410 = vmatpush1.msra.mxu0 0.0
        %4411 = vmatprep.subr.mxu0 0.0
        %4412 = vmatpush1.msra.mxu0 0.0
        %4413 = vmatprep.subr.mxu0 0.0
        %4414 = vmatpush1.msra.mxu0 0.0
        %4415 = vmatprep.subr.mxu0 0.0
        %4416 = vmatpush1.msra.mxu0 0.0
        %4417 = vmatprep.subr.mxu0 0.0
        %4418 = vmatpush1.msra.mxu0 0.0
        %4419 = vmatprep.subr.mxu0 0.0
        %4420 = vmatpush1.msra.mxu0 0.0
        %4421 = vmatprep.subr.mxu0 0.0
        %4422 = vmatpush1.msra.mxu0 0.0
        %4423 = vmatprep.subr.mxu0 0.0
        %4424 = vmatpush1.msra.mxu0 0.0
        %4425 = vmatprep.subr.mxu0 0.0
        %4426 = vmatpush1.msra.mxu0 %v4400
        %4427 = vmatprep.subr.mxu0 0.0
        %4428 = vmatpush1.msra.mxu0 %v4399
        %4429 = vmatprep.subr.mxu0 0.0
        %4430 = vmatpush1.msra.mxu0 %v4398
        %4431 = vmatprep.subr.mxu0 0.0
        %4432 = vmatpush1.msra.mxu0 %v4397
        %4433 = vmatprep.subr.mxu0 0.0
        %4434 = vmatpush2.msra.mxu0 0.0
        %4435 = vmatprep.subr.mxu0 0.0
        %4436 = vmatpush2.msra.mxu0 0.0
        %4437 = vmatprep.subr.mxu0 0.0
        %4438 = vmatpush2.msra.mxu0 0.0
        %4439 = vmatprep.subr.mxu0 0.0
        %4440 = vmatpush2.msra.mxu0 0.0
        %4441 = vmatprep.subr.mxu0 0.0
        %4442 = vmatpush2.msra.mxu0 0.0
        %4443 = vmatprep.subr.mxu0 0.0
        %4444 = vmatpush2.msra.mxu0 0.0
        %4445 = vmatprep.subr.mxu0 0.0
        %4446 = vmatpush2.msra.mxu0 0.0
        %4447 = vmatprep.subr.mxu0 0.0
        %4448 = vmatpush2.msra.mxu0 0.0
        %4449 = vmatprep.subr.mxu0 0.0
        %4450 = vmatpush2.msra.mxu0 0.0
        %4451 = vmatprep.subr.mxu0 0.0
        %4452 = vmatpush2.msra.mxu0 0.0
        %4453 = vmatprep.subr.mxu0 0.0
        %4454 = vmatpush2.msra.mxu0 0.0
        %4455 = vmatprep.subr.mxu0 0.0
        %4456 = vmatpush2.msra.mxu0 0.0
        %4457 = vmatprep.subr.mxu0 0.0
        %4458 = vmatpush2.msra.mxu0 0.0
        %4459 = vmatprep.subr.mxu0 0.0
        %4460 = vmatpush2.msra.mxu0 0.0
        %4461 = vmatprep.subr.mxu0 0.0
        %4462 = vmatpush2.msra.mxu0 0.0
        %4463 = vmatprep.subr.mxu0 0.0
        %4464 = vmatpush2.msra.mxu0 0.0
        %4465 = vmatprep.mubr.f32.mxu0 0.0
        %4466 = vmatmul.mubr.f32.gmra.mxu0 %v1063
        %v4467 = vpop.f32.mrf.mxu0
        %v4468 = vadd.f32 %v1061, %v4467
        %v4469 = vpop.f32.mrf.mxu0
        %4470 = vdwg.mxu0
        %v4471 = vadd.f32 %v4468, 1.0
        %v4472 = vmul.f32 %v4020, %v4471
        %v4473 = vadd.f32 %v3917, %v4472
        %4474 = vset.pattern.permute.xlu0 7
        %4475 = vperm.xlu0 %4474, %v480
        %v4476 = vpop.permute.xlu0 %4475
        %v4478 = vsub.f32 %v479, %v4476
        %s4479 = scalar_lea.vmem %s470, 28
        %v4480 = vld [vmem:[%s4479] sm:$0x7]
        %v4482 = vsel %vm507, %v4480, 0
        %v4485 = vsel %vm511, %v4478, 0
        %4487 = vmatprep.subr.mxu0 0.0
        %4488 = vmatpush1.msra.mxu0 0.0
        %4489 = vmatprep.subr.mxu0 0.0
        %4490 = vmatpush1.msra.mxu0 0.0
        %4491 = vmatprep.subr.mxu0 0.0
        %4492 = vmatpush1.msra.mxu0 0.0
        %4493 = vmatprep.subr.mxu0 0.0
        %4494 = vmatpush1.msra.mxu0 0.0
        %4495 = vmatprep.subr.mxu0 0.0
        %4496 = vmatpush1.msra.mxu0 0.0
        %4497 = vmatprep.subr.mxu0 0.0
        %4498 = vmatpush1.msra.mxu0 0.0
        %4499 = vmatprep.subr.mxu0 0.0
        %4500 = vmatpush1.msra.mxu0 0.0
        %4501 = vmatprep.subr.mxu0 0.0
        %4502 = vmatpush1.msra.mxu0 0.0
        %4503 = vmatprep.subr.mxu0 0.0
        %4504 = vmatpush1.msra.mxu0 0.0
        %4505 = vmatprep.subr.mxu0 0.0
        %4506 = vmatpush1.msra.mxu0 0.0
        %4507 = vmatprep.subr.mxu0 0.0
        %4508 = vmatpush1.msra.mxu0 0.0
        %4509 = vmatprep.subr.mxu0 0.0
        %4510 = vmatpush1.msra.mxu0 0.0
        %4511 = vmatprep.subr.mxu0 0.0
        %4512 = vmatpush1.msra.mxu0 0.0
        %4513 = vmatprep.subr.mxu0 0.0
        %4514 = vmatpush1.msra.mxu0 0.0
        %4515 = vmatprep.subr.mxu0 0.0
        %4516 = vmatpush1.msra.mxu0 0.0
        %4517 = vmatprep.subr.mxu0 0.0
        %4518 = vmatpush1.msra.mxu0 %v4485
        %4519 = vmatprep.subr.mxu0 0.0
        %4520 = vmatpush2.msra.mxu0 0.0
        %4521 = vmatprep.subr.mxu0 0.0
        %4522 = vmatpush2.msra.mxu0 0.0
        %4523 = vmatprep.subr.mxu0 0.0
        %4524 = vmatpush2.msra.mxu0 0.0
        %4525 = vmatprep.subr.mxu0 0.0
        %4526 = vmatpush2.msra.mxu0 0.0
        %4527 = vmatprep.subr.mxu0 0.0
        %4528 = vmatpush2.msra.mxu0 0.0
        %4529 = vmatprep.subr.mxu0 0.0
        %4530 = vmatpush2.msra.mxu0 0.0
        %4531 = vmatprep.subr.mxu0 0.0
        %4532 = vmatpush2.msra.mxu0 0.0
        %4533 = vmatprep.subr.mxu0 0.0
        %4534 = vmatpush2.msra.mxu0 0.0
        %4535 = vmatprep.subr.mxu0 0.0
        %4536 = vmatpush2.msra.mxu0 0.0
        %4537 = vmatprep.subr.mxu0 0.0
        %4538 = vmatpush2.msra.mxu0 0.0
        %4539 = vmatprep.subr.mxu0 0.0
        %4540 = vmatpush2.msra.mxu0 0.0
        %4541 = vmatprep.subr.mxu0 0.0
        %4542 = vmatpush2.msra.mxu0 0.0
        %4543 = vmatprep.subr.mxu0 0.0
        %4544 = vmatpush2.msra.mxu0 0.0
        %4545 = vmatprep.subr.mxu0 0.0
        %4546 = vmatpush2.msra.mxu0 0.0
        %4547 = vmatprep.subr.mxu0 0.0
        %4548 = vmatpush2.msra.mxu0 0.0
        %4549 = vmatprep.subr.mxu0 0.0
        %4550 = vmatpush2.msra.mxu0 0.0
        %4551 = vmatprep.mubr.f32.mxu0 0.0
        %4552 = vmatmul.mubr.f32.gmra.mxu0 %v4482
        %v4553 = vpop.f32.mrf.mxu0
        %v4554 = vadd.f32 0.0, %v4553
        %v4555 = vpop.f32.mrf.mxu0
        %4556 = vdwg.mxu0
        %v4557 = vmul.f32 %v4554, %v4478
        %v4559 = vrot.slane %v4557, 1
        %v4561 = vadd.f32 %v4557, %v4559
        %v4562 = vrot.slane %v4557, 2
        %v4564 = vadd.f32 %v4561, %v4562
        %v4565 = vmul.f32 %v4564, -0.5
        %v4566 = vmul.f32 %v4565, 1.442695
        %v4567 = vpow.pop %v4566
        %4568 = vset.pattern.permute.xlu0 7
        %4569 = vperm.xlu0 %4568, %v481
        %v4570 = vpop.permute.xlu0 %4569
        %v4572 = vlaneseq
        %v4573 = vshrl.u32 %v4572, 7
        %v4574 = vsub.s32 0, %v4573
        %v4575 = vrot.slane %v4570, %v4574
        %v4576 = vmul.f32 %v4575, %v4567
        %s4577 = scalar_lea.vmem %s478, 224
        %v4578 = vld [vmem:[%s4577] sm:$0xff]
        %v4579 = vld [vmem:[%s4577 + $0x8] sm:$0xff]
        %v4580 = vld [vmem:[%s4577 + $0x10] sm:$0xff]
        %v4581 = vld [vmem:[%s4577 + $0x18] sm:$0xff]
        %4583 = vset.pattern.permute.xlu0 3
        %4584 = vperm.xlu0 %4583, %v4578
        %v4585 = vpop.permute.xlu0 %4584
        %4588 = vset.pattern.permute.xlu0 3
        %4589 = vperm.xlu0 %4588, %v4579
        %v4590 = vpop.permute.xlu0 %4589
        %4593 = vset.pattern.permute.xlu0 3
        %4594 = vperm.xlu0 %4593, %v4580
        %v4595 = vpop.permute.xlu0 %4594
        %4598 = vset.pattern.permute.xlu0 3
        %4599 = vperm.xlu0 %4598, %v4581
        %v4600 = vpop.permute.xlu0 %4599
        %v4602 = vsel %vm507, %v4578, 0
        %v4604 = vsel %vm507, %v4579, 0
        %v4606 = vsel %vm507, %v4580, 0
        %v4608 = vsel %vm507, %v4581, 0
        %4610 = vmatprep.subr.mxu0 0.0
        %4611 = vmatpush1.msra.mxu0 0.0
        %4612 = vmatprep.subr.mxu0 0.0
        %4613 = vmatpush1.msra.mxu0 0.0
        %4614 = vmatprep.subr.mxu0 0.0
        %4615 = vmatpush1.msra.mxu0 0.0
        %4616 = vmatprep.subr.mxu0 0.0
        %4617 = vmatpush1.msra.mxu0 0.0
        %4618 = vmatprep.subr.mxu0 0.0
        %4619 = vmatpush1.msra.mxu0 0.0
        %4620 = vmatprep.subr.mxu0 0.0
        %4621 = vmatpush1.msra.mxu0 0.0
        %4622 = vmatprep.subr.mxu0 0.0
        %4623 = vmatpush1.msra.mxu0 0.0
        %4624 = vmatprep.subr.mxu0 0.0
        %4625 = vmatpush1.msra.mxu0 0.0
        %4626 = vmatprep.subr.mxu0 0.0
        %4627 = vmatpush1.msra.mxu0 0.0
        %4628 = vmatprep.subr.mxu0 0.0
        %4629 = vmatpush1.msra.mxu0 0.0
        %4630 = vmatprep.subr.mxu0 0.0
        %4631 = vmatpush1.msra.mxu0 0.0
        %4632 = vmatprep.subr.mxu0 0.0
        %4633 = vmatpush1.msra.mxu0 0.0
        %4634 = vmatprep.subr.mxu0 0.0
        %4635 = vmatpush1.msra.mxu0 0.0
        %4636 = vmatprep.subr.mxu0 0.0
        %4637 = vmatpush1.msra.mxu0 0.0
        %4638 = vmatprep.subr.mxu0 0.0
        %4639 = vmatpush1.msra.mxu0 0.0
        %4640 = vmatprep.subr.mxu0 0.0
        %4641 = vmatpush1.msra.mxu0 %v639
        %4642 = vmatprep.subr.mxu0 0.0
        %4643 = vmatpush2.msra.mxu0 0.0
        %4644 = vmatprep.subr.mxu0 0.0
        %4645 = vmatpush2.msra.mxu0 0.0
        %4646 = vmatprep.subr.mxu0 0.0
        %4647 = vmatpush2.msra.mxu0 0.0
        %4648 = vmatprep.subr.mxu0 0.0
        %4649 = vmatpush2.msra.mxu0 0.0
        %4650 = vmatprep.subr.mxu0 0.0
        %4651 = vmatpush2.msra.mxu0 0.0
        %4652 = vmatprep.subr.mxu0 0.0
        %4653 = vmatpush2.msra.mxu0 0.0
        %4654 = vmatprep.subr.mxu0 0.0
        %4655 = vmatpush2.msra.mxu0 0.0
        %4656 = vmatprep.subr.mxu0 0.0
        %4657 = vmatpush2.msra.mxu0 0.0
        %4658 = vmatprep.subr.mxu0 0.0
        %4659 = vmatpush2.msra.mxu0 0.0
        %4660 = vmatprep.subr.mxu0 0.0
        %4661 = vmatpush2.msra.mxu0 0.0
        %4662 = vmatprep.subr.mxu0 0.0
        %4663 = vmatpush2.msra.mxu0 0.0
        %4664 = vmatprep.subr.mxu0 0.0
        %4665 = vmatpush2.msra.mxu0 0.0
        %4666 = vmatprep.subr.mxu0 0.0
        %4667 = vmatpush2.msra.mxu0 0.0
        %4668 = vmatprep.subr.mxu0 0.0
        %4669 = vmatpush2.msra.mxu0 0.0
        %4670 = vmatprep.subr.mxu0 0.0
        %4671 = vmatpush2.msra.mxu0 0.0
        %4672 = vmatprep.subr.mxu0 0.0
        %4673 = vmatpush2.msra.mxu0 0.0
        %4674 = vmatprep.mubr.f32.mxu0 0.0
        %4675 = vmatmul.mubr.f32.gmra.mxu0 %v4602
        %v4676 = vpop.f32.mrf.mxu0
        %v4677 = vadd.f32 %v4585, %v4676
        %v4678 = vpop.f32.mrf.mxu0
        %4679 = vmatprep.mubr.f32.mxu0 0.0
        %4680 = vmatmul.mubr.f32.gmra.mxu0 %v4604
        %v4681 = vpop.f32.mrf.mxu0
        %v4682 = vadd.f32 %v4590, %v4681
        %v4683 = vpop.f32.mrf.mxu0
        %4684 = vmatprep.mubr.f32.mxu0 0.0
        %4685 = vmatmul.mubr.f32.gmra.mxu0 %v4606
        %v4686 = vpop.f32.mrf.mxu0
        %v4687 = vadd.f32 %v4595, %v4686
        %v4688 = vpop.f32.mrf.mxu0
        %4689 = vmatprep.mubr.f32.mxu0 0.0
        %4690 = vmatmul.mubr.f32.gmra.mxu0 %v4608
        %v4691 = vpop.f32.mrf.mxu0
        %v4692 = vadd.f32 %v4600, %v4691
        %v4693 = vpop.f32.mrf.mxu0
        %4694 = vdwg.mxu0
        %4695 = vset.pattern.permute.xlu0 4
        %4696 = vperm.xlu0 %4695, %v4578
        %v4697 = vpop.permute.xlu0 %4696
        %4699 = vset.pattern.permute.xlu0 4
        %4700 = vperm.xlu0 %4699, %v4579
        %v4701 = vpop.permute.xlu0 %4700
        %4703 = vset.pattern.permute.xlu0 4
        %4704 = vperm.xlu0 %4703, %v4580
        %v4705 = vpop.permute.xlu0 %4704
        %4707 = vset.pattern.permute.xlu0 4
        %4708 = vperm.xlu0 %4707, %v4581
        %v4709 = vpop.permute.xlu0 %4708
        %v4711 = vmul.f32 %v4697, %v4677
        %v4712 = vmul.f32 %v4701, %v4682
        %v4713 = vmul.f32 %v4705, %v4687
        %v4714 = vmul.f32 %v4709, %v4692
        %4715 = vset.pattern.permute.xlu0 5
        %4716 = vperm.xlu0 %4715, %v4578
        %v4717 = vpop.permute.xlu0 %4716
        %4719 = vset.pattern.permute.xlu0 5
        %4720 = vperm.xlu0 %4719, %v4579
        %v4721 = vpop.permute.xlu0 %4720
        %4723 = vset.pattern.permute.xlu0 5
        %4724 = vperm.xlu0 %4723, %v4580
        %v4725 = vpop.permute.xlu0 %4724
        %4727 = vset.pattern.permute.xlu0 5
        %4728 = vperm.xlu0 %4727, %v4581
        %v4729 = vpop.permute.xlu0 %4728
        %v4731 = vadd.f32 %v4711, %v4717
        %v4732 = vadd.f32 %v4712, %v4721
        %v4733 = vadd.f32 %v4713, %v4725
        %v4734 = vadd.f32 %v4714, %v4729
        %v4735 = vmax.f32 %v4731, 0.0
        %v4736 = vmax.f32 %v4732, 0.0
        %v4737 = vmax.f32 %v4733, 0.0
        %v4738 = vmax.f32 %v4734, 0.0
        %4739 = vmatprep.subr.mxu0 0.0
        %4740 = vmatpush1.msra.mxu0 0.0
        %4741 = vmatprep.subr.mxu0 0.0
        %4742 = vmatpush1.msra.mxu0 0.0
        %4743 = vmatprep.subr.mxu0 0.0
        %4744 = vmatpush1.msra.mxu0 0.0
        %4745 = vmatprep.subr.mxu0 0.0
        %4746 = vmatpush1.msra.mxu0 0.0
        %4747 = vmatprep.subr.mxu0 0.0
        %4748 = vmatpush1.msra.mxu0 0.0
        %4749 = vmatprep.subr.mxu0 0.0
        %4750 = vmatpush1.msra.mxu0 0.0
        %4751 = vmatprep.subr.mxu0 0.0
        %4752 = vmatpush1.msra.mxu0 0.0
        %4753 = vmatprep.subr.mxu0 0.0
        %4754 = vmatpush1.msra.mxu0 0.0
        %4755 = vmatprep.subr.mxu0 0.0
        %4756 = vmatpush1.msra.mxu0 0.0
        %4757 = vmatprep.subr.mxu0 0.0
        %4758 = vmatpush1.msra.mxu0 0.0
        %4759 = vmatprep.subr.mxu0 0.0
        %4760 = vmatpush1.msra.mxu0 0.0
        %4761 = vmatprep.subr.mxu0 0.0
        %4762 = vmatpush1.msra.mxu0 0.0
        %4763 = vmatprep.subr.mxu0 0.0
        %4764 = vmatpush1.msra.mxu0 %v4738
        %4765 = vmatprep.subr.mxu0 0.0
        %4766 = vmatpush1.msra.mxu0 %v4737
        %4767 = vmatprep.subr.mxu0 0.0
        %4768 = vmatpush1.msra.mxu0 %v4736
        %4769 = vmatprep.subr.mxu0 0.0
        %4770 = vmatpush1.msra.mxu0 %v4735
        %4771 = vmatprep.subr.mxu0 0.0
        %4772 = vmatpush2.msra.mxu0 0.0
        %4773 = vmatprep.subr.mxu0 0.0
        %4774 = vmatpush2.msra.mxu0 0.0
        %4775 = vmatprep.subr.mxu0 0.0
        %4776 = vmatpush2.msra.mxu0 0.0
        %4777 = vmatprep.subr.mxu0 0.0
        %4778 = vmatpush2.msra.mxu0 0.0
        %4779 = vmatprep.subr.mxu0 0.0
        %4780 = vmatpush2.msra.mxu0 0.0
        %4781 = vmatprep.subr.mxu0 0.0
        %4782 = vmatpush2.msra.mxu0 0.0
        %4783 = vmatprep.subr.mxu0 0.0
        %4784 = vmatpush2.msra.mxu0 0.0
        %4785 = vmatprep.subr.mxu0 0.0
        %4786 = vmatpush2.msra.mxu0 0.0
        %4787 = vmatprep.subr.mxu0 0.0
        %4788 = vmatpush2.msra.mxu0 0.0
        %4789 = vmatprep.subr.mxu0 0.0
        %4790 = vmatpush2.msra.mxu0 0.0
        %4791 = vmatprep.subr.mxu0 0.0
        %4792 = vmatpush2.msra.mxu0 0.0
        %4793 = vmatprep.subr.mxu0 0.0
        %4794 = vmatpush2.msra.mxu0 0.0
        %4795 = vmatprep.subr.mxu0 0.0
        %4796 = vmatpush2.msra.mxu0 0.0
        %4797 = vmatprep.subr.mxu0 0.0
        %4798 = vmatpush2.msra.mxu0 0.0
        %4799 = vmatprep.subr.mxu0 0.0
        %4800 = vmatpush2.msra.mxu0 0.0
        %4801 = vmatprep.subr.mxu0 0.0
        %4802 = vmatpush2.msra.mxu0 0.0
        %4803 = vmatprep.mubr.f32.mxu0 0.0
        %4804 = vmatmul.mubr.f32.gmra.mxu0 %v792
        %v4805 = vpop.f32.mrf.mxu0
        %v4806 = vadd.f32 %v773, %v4805
        %v4807 = vpop.f32.mrf.mxu0
        %4808 = vmatprep.mubr.f32.mxu0 0.0
        %4809 = vmatmul.mubr.f32.gmra.mxu0 %v795
        %v4810 = vpop.f32.mrf.mxu0
        %v4811 = vadd.f32 %v778, %v4810
        %v4812 = vpop.f32.mrf.mxu0
        %4813 = vmatprep.mubr.f32.mxu0 0.0
        %4814 = vmatmul.mubr.f32.gmra.mxu0 %v798
        %v4815 = vpop.f32.mrf.mxu0
        %v4816 = vadd.f32 %v783, %v4815
        %v4817 = vpop.f32.mrf.mxu0
        %4818 = vmatprep.mubr.f32.mxu0 0.0
        %4819 = vmatmul.mubr.f32.gmra.mxu0 %v801
        %v4820 = vpop.f32.mrf.mxu0
        %v4821 = vadd.f32 %v788, %v4820
        %v4822 = vpop.f32.mrf.mxu0
        %4823 = vdwg.mxu0
        %4824 = vset.pattern.permute.xlu0 6
        %4825 = vperm.xlu0 %4824, %v4578
        %v4826 = vpop.permute.xlu0 %4825
        %4828 = vset.pattern.permute.xlu0 6
        %4829 = vperm.xlu0 %4828, %v4579
        %v4830 = vpop.permute.xlu0 %4829
        %4832 = vset.pattern.permute.xlu0 6
        %4833 = vperm.xlu0 %4832, %v4580
        %v4834 = vpop.permute.xlu0 %4833
        %4836 = vset.pattern.permute.xlu0 6
        %4837 = vperm.xlu0 %4836, %v4581
        %v4838 = vpop.permute.xlu0 %4837
        %v4840 = vmul.f32 %v4826, %v4806
        %v4841 = vmul.f32 %v4830, %v4811
        %v4842 = vmul.f32 %v4834, %v4816
        %v4843 = vmul.f32 %v4838, %v4821
        %4844 = vset.pattern.permute.xlu0 7
        %4845 = vperm.xlu0 %4844, %v4578
        %v4846 = vpop.permute.xlu0 %4845
        %4848 = vset.pattern.permute.xlu0 7
        %4849 = vperm.xlu0 %4848, %v4579
        %v4850 = vpop.permute.xlu0 %4849
        %4852 = vset.pattern.permute.xlu0 7
        %4853 = vperm.xlu0 %4852, %v4580
        %v4854 = vpop.permute.xlu0 %4853
        %4856 = vset.pattern.permute.xlu0 7
        %4857 = vperm.xlu0 %4856, %v4581
        %v4858 = vpop.permute.xlu0 %4857
        %v4860 = vadd.f32 %v4840, %v4846
        %v4861 = vadd.f32 %v4841, %v4850
        %v4862 = vadd.f32 %v4842, %v4854
        %v4863 = vadd.f32 %v4843, %v4858
        %v4864 = vmax.f32 %v4860, 0.0
        %v4865 = vmax.f32 %v4861, 0.0
        %v4866 = vmax.f32 %v4862, 0.0
        %v4867 = vmax.f32 %v4863, 0.0
        %4868 = vmatprep.subr.mxu0 0.0
        %4869 = vmatpush1.msra.mxu0 0.0
        %4870 = vmatprep.subr.mxu0 0.0
        %4871 = vmatpush1.msra.mxu0 0.0
        %4872 = vmatprep.subr.mxu0 0.0
        %4873 = vmatpush1.msra.mxu0 0.0
        %4874 = vmatprep.subr.mxu0 0.0
        %4875 = vmatpush1.msra.mxu0 0.0
        %4876 = vmatprep.subr.mxu0 0.0
        %4877 = vmatpush1.msra.mxu0 0.0
        %4878 = vmatprep.subr.mxu0 0.0
        %4879 = vmatpush1.msra.mxu0 0.0
        %4880 = vmatprep.subr.mxu0 0.0
        %4881 = vmatpush1.msra.mxu0 0.0
        %4882 = vmatprep.subr.mxu0 0.0
        %4883 = vmatpush1.msra.mxu0 0.0
        %4884 = vmatprep.subr.mxu0 0.0
        %4885 = vmatpush1.msra.mxu0 0.0
        %4886 = vmatprep.subr.mxu0 0.0
        %4887 = vmatpush1.msra.mxu0 0.0
        %4888 = vmatprep.subr.mxu0 0.0
        %4889 = vmatpush1.msra.mxu0 0.0
        %4890 = vmatprep.subr.mxu0 0.0
        %4891 = vmatpush1.msra.mxu0 0.0
        %4892 = vmatprep.subr.mxu0 0.0
        %4893 = vmatpush1.msra.mxu0 %v4867
        %4894 = vmatprep.subr.mxu0 0.0
        %4895 = vmatpush1.msra.mxu0 %v4866
        %4896 = vmatprep.subr.mxu0 0.0
        %4897 = vmatpush1.msra.mxu0 %v4865
        %4898 = vmatprep.subr.mxu0 0.0
        %4899 = vmatpush1.msra.mxu0 %v4864
        %4900 = vmatprep.subr.mxu0 0.0
        %4901 = vmatpush2.msra.mxu0 0.0
        %4902 = vmatprep.subr.mxu0 0.0
        %4903 = vmatpush2.msra.mxu0 0.0
        %4904 = vmatprep.subr.mxu0 0.0
        %4905 = vmatpush2.msra.mxu0 0.0
        %4906 = vmatprep.subr.mxu0 0.0
        %4907 = vmatpush2.msra.mxu0 0.0
        %4908 = vmatprep.subr.mxu0 0.0
        %4909 = vmatpush2.msra.mxu0 0.0
        %4910 = vmatprep.subr.mxu0 0.0
        %4911 = vmatpush2.msra.mxu0 0.0
        %4912 = vmatprep.subr.mxu0 0.0
        %4913 = vmatpush2.msra.mxu0 0.0
        %4914 = vmatprep.subr.mxu0 0.0
        %4915 = vmatpush2.msra.mxu0 0.0
        %4916 = vmatprep.subr.mxu0 0.0
        %4917 = vmatpush2.msra.mxu0 0.0
        %4918 = vmatprep.subr.mxu0 0.0
        %4919 = vmatpush2.msra.mxu0 0.0
        %4920 = vmatprep.subr.mxu0 0.0
        %4921 = vmatpush2.msra.mxu0 0.0
        %4922 = vmatprep.subr.mxu0 0.0
        %4923 = vmatpush2.msra.mxu0 0.0
        %4924 = vmatprep.subr.mxu0 0.0
        %4925 = vmatpush2.msra.mxu0 0.0
        %4926 = vmatprep.subr.mxu0 0.0
        %4927 = vmatpush2.msra.mxu0 0.0
        %4928 = vmatprep.subr.mxu0 0.0
        %4929 = vmatpush2.msra.mxu0 0.0
        %4930 = vmatprep.subr.mxu0 0.0
        %4931 = vmatpush2.msra.mxu0 0.0
        %4932 = vmatprep.mubr.f32.mxu0 0.0
        %4933 = vmatmul.mubr.f32.gmra.mxu0 %v953
        %v4934 = vpop.f32.mrf.mxu0
        %v4935 = vadd.f32 %v935, %v4934
        %v4936 = vpop.f32.mrf.mxu0
        %4937 = vmatprep.mubr.f32.mxu0 0.0
        %4938 = vmatmul.mubr.f32.gmra.mxu0 %v956
        %v4939 = vpop.f32.mrf.mxu0
        %v4940 = vadd.f32 %v940, %v4939
        %v4941 = vpop.f32.mrf.mxu0
        %4942 = vmatprep.mubr.f32.mxu0 0.0
        %4943 = vmatmul.mubr.f32.gmra.mxu0 %v959
        %v4944 = vpop.f32.mrf.mxu0
        %v4945 = vadd.f32 %v945, %v4944
        %v4946 = vpop.f32.mrf.mxu0
        %4947 = vmatprep.mubr.f32.mxu0 0.0
        %4948 = vmatmul.mubr.f32.gmra.mxu0 %v962
        %v4949 = vpop.f32.mrf.mxu0
        %v4950 = vadd.f32 %v950, %v4949
        %v4951 = vpop.f32.mrf.mxu0
        %4952 = vdwg.mxu0
        %v4953 = vadd.f32 %v4677, %v4935
        %v4954 = vadd.f32 %v4682, %v4940
        %v4955 = vadd.f32 %v4687, %v4945
        %v4956 = vadd.f32 %v4692, %v4950
        %4957 = vmatprep.subr.mxu0 0.0
        %4958 = vmatpush1.msra.mxu0 0.0
        %4959 = vmatprep.subr.mxu0 0.0
        %4960 = vmatpush1.msra.mxu0 0.0
        %4961 = vmatprep.subr.mxu0 0.0
        %4962 = vmatpush1.msra.mxu0 0.0
        %4963 = vmatprep.subr.mxu0 0.0
        %4964 = vmatpush1.msra.mxu0 0.0
        %4965 = vmatprep.subr.mxu0 0.0
        %4966 = vmatpush1.msra.mxu0 0.0
        %4967 = vmatprep.subr.mxu0 0.0
        %4968 = vmatpush1.msra.mxu0 0.0
        %4969 = vmatprep.subr.mxu0 0.0
        %4970 = vmatpush1.msra.mxu0 0.0
        %4971 = vmatprep.subr.mxu0 0.0
        %4972 = vmatpush1.msra.mxu0 0.0
        %4973 = vmatprep.subr.mxu0 0.0
        %4974 = vmatpush1.msra.mxu0 0.0
        %4975 = vmatprep.subr.mxu0 0.0
        %4976 = vmatpush1.msra.mxu0 0.0
        %4977 = vmatprep.subr.mxu0 0.0
        %4978 = vmatpush1.msra.mxu0 0.0
        %4979 = vmatprep.subr.mxu0 0.0
        %4980 = vmatpush1.msra.mxu0 0.0
        %4981 = vmatprep.subr.mxu0 0.0
        %4982 = vmatpush1.msra.mxu0 %v4956
        %4983 = vmatprep.subr.mxu0 0.0
        %4984 = vmatpush1.msra.mxu0 %v4955
        %4985 = vmatprep.subr.mxu0 0.0
        %4986 = vmatpush1.msra.mxu0 %v4954
        %4987 = vmatprep.subr.mxu0 0.0
        %4988 = vmatpush1.msra.mxu0 %v4953
        %4989 = vmatprep.subr.mxu0 0.0
        %4990 = vmatpush2.msra.mxu0 0.0
        %4991 = vmatprep.subr.mxu0 0.0
        %4992 = vmatpush2.msra.mxu0 0.0
        %4993 = vmatprep.subr.mxu0 0.0
        %4994 = vmatpush2.msra.mxu0 0.0
        %4995 = vmatprep.subr.mxu0 0.0
        %4996 = vmatpush2.msra.mxu0 0.0
        %4997 = vmatprep.subr.mxu0 0.0
        %4998 = vmatpush2.msra.mxu0 0.0
        %4999 = vmatprep.subr.mxu0 0.0
        %5000 = vmatpush2.msra.mxu0 0.0
        %5001 = vmatprep.subr.mxu0 0.0
        %5002 = vmatpush2.msra.mxu0 0.0
        %5003 = vmatprep.subr.mxu0 0.0
        %5004 = vmatpush2.msra.mxu0 0.0
        %5005 = vmatprep.subr.mxu0 0.0
        %5006 = vmatpush2.msra.mxu0 0.0
        %5007 = vmatprep.subr.mxu0 0.0
        %5008 = vmatpush2.msra.mxu0 0.0
        %5009 = vmatprep.subr.mxu0 0.0
        %5010 = vmatpush2.msra.mxu0 0.0
        %5011 = vmatprep.subr.mxu0 0.0
        %5012 = vmatpush2.msra.mxu0 0.0
        %5013 = vmatprep.subr.mxu0 0.0
        %5014 = vmatpush2.msra.mxu0 0.0
        %5015 = vmatprep.subr.mxu0 0.0
        %5016 = vmatpush2.msra.mxu0 0.0
        %5017 = vmatprep.subr.mxu0 0.0
        %5018 = vmatpush2.msra.mxu0 0.0
        %5019 = vmatprep.subr.mxu0 0.0
        %5020 = vmatpush2.msra.mxu0 0.0
        %5021 = vmatprep.mubr.f32.mxu0 0.0
        %5022 = vmatmul.mubr.f32.gmra.mxu0 %v1063
        %v5023 = vpop.f32.mrf.mxu0
        %v5024 = vadd.f32 %v1061, %v5023
        %v5025 = vpop.f32.mrf.mxu0
        %5026 = vdwg.mxu0
        %v5027 = vadd.f32 %v5024, 1.0
        %v5028 = vmul.f32 %v4576, %v5027
        %v5029 = vadd.f32 %v4473, %v5028
        %5030 = vset.pattern.permute.xlu0 8
        %5031 = vperm.xlu0 %5030, %v480
        %v5032 = vpop.permute.xlu0 %5031
        %v5034 = vsub.f32 %v479, %v5032
        %s5035 = scalar_lea.vmem %s470, 32
        %v5036 = vld [vmem:[%s5035] sm:$0x7]
        %v5038 = vsel %vm507, %v5036, 0
        %v5041 = vsel %vm511, %v5034, 0
        %5043 = vmatprep.subr.mxu0 0.0
        %5044 = vmatpush1.msra.mxu0 0.0
        %5045 = vmatprep.subr.mxu0 0.0
        %5046 = vmatpush1.msra.mxu0 0.0
        %5047 = vmatprep.subr.mxu0 0.0
        %5048 = vmatpush1.msra.mxu0 0.0
        %5049 = vmatprep.subr.mxu0 0.0
        %5050 = vmatpush1.msra.mxu0 0.0
        %5051 = vmatprep.subr.mxu0 0.0
        %5052 = vmatpush1.msra.mxu0 0.0
        %5053 = vmatprep.subr.mxu0 0.0
        %5054 = vmatpush1.msra.mxu0 0.0
        %5055 = vmatprep.subr.mxu0 0.0
        %5056 = vmatpush1.msra.mxu0 0.0
        %5057 = vmatprep.subr.mxu0 0.0
        %5058 = vmatpush1.msra.mxu0 0.0
        %5059 = vmatprep.subr.mxu0 0.0
        %5060 = vmatpush1.msra.mxu0 0.0
        %5061 = vmatprep.subr.mxu0 0.0
        %5062 = vmatpush1.msra.mxu0 0.0
        %5063 = vmatprep.subr.mxu0 0.0
        %5064 = vmatpush1.msra.mxu0 0.0
        %5065 = vmatprep.subr.mxu0 0.0
        %5066 = vmatpush1.msra.mxu0 0.0
        %5067 = vmatprep.subr.mxu0 0.0
        %5068 = vmatpush1.msra.mxu0 0.0
        %5069 = vmatprep.subr.mxu0 0.0
        %5070 = vmatpush1.msra.mxu0 0.0
        %5071 = vmatprep.subr.mxu0 0.0
        %5072 = vmatpush1.msra.mxu0 0.0
        %5073 = vmatprep.subr.mxu0 0.0
        %5074 = vmatpush1.msra.mxu0 %v5041
        %5075 = vmatprep.subr.mxu0 0.0
        %5076 = vmatpush2.msra.mxu0 0.0
        %5077 = vmatprep.subr.mxu0 0.0
        %5078 = vmatpush2.msra.mxu0 0.0
        %5079 = vmatprep.subr.mxu0 0.0
        %5080 = vmatpush2.msra.mxu0 0.0
        %5081 = vmatprep.subr.mxu0 0.0
        %5082 = vmatpush2.msra.mxu0 0.0
        %5083 = vmatprep.subr.mxu0 0.0
        %5084 = vmatpush2.msra.mxu0 0.0
        %5085 = vmatprep.subr.mxu0 0.0
        %5086 = vmatpush2.msra.mxu0 0.0
        %5087 = vmatprep.subr.mxu0 0.0
        %5088 = vmatpush2.msra.mxu0 0.0
        %5089 = vmatprep.subr.mxu0 0.0
        %5090 = vmatpush2.msra.mxu0 0.0
        %5091 = vmatprep.subr.mxu0 0.0
        %5092 = vmatpush2.msra.mxu0 0.0
        %5093 = vmatprep.subr.mxu0 0.0
        %5094 = vmatpush2.msra.mxu0 0.0
        %5095 = vmatprep.subr.mxu0 0.0
        %5096 = vmatpush2.msra.mxu0 0.0
        %5097 = vmatprep.subr.mxu0 0.0
        %5098 = vmatpush2.msra.mxu0 0.0
        %5099 = vmatprep.subr.mxu0 0.0
        %5100 = vmatpush2.msra.mxu0 0.0
        %5101 = vmatprep.subr.mxu0 0.0
        %5102 = vmatpush2.msra.mxu0 0.0
        %5103 = vmatprep.subr.mxu0 0.0
        %5104 = vmatpush2.msra.mxu0 0.0
        %5105 = vmatprep.subr.mxu0 0.0
        %5106 = vmatpush2.msra.mxu0 0.0
        %5107 = vmatprep.mubr.f32.mxu0 0.0
        %5108 = vmatmul.mubr.f32.gmra.mxu0 %v5038
        %v5109 = vpop.f32.mrf.mxu0
        %v5110 = vadd.f32 0.0, %v5109
        %v5111 = vpop.f32.mrf.mxu0
        %5112 = vdwg.mxu0
        %v5113 = vmul.f32 %v5110, %v5034
        %v5115 = vrot.slane %v5113, 1
        %v5117 = vadd.f32 %v5113, %v5115
        %v5118 = vrot.slane %v5113, 2
        %v5120 = vadd.f32 %v5117, %v5118
        %v5121 = vmul.f32 %v5120, -0.5
        %v5122 = vmul.f32 %v5121, 1.442695
        %v5123 = vpow.pop %v5122
        %5124 = vset.pattern.permute.xlu0 8
        %5125 = vperm.xlu0 %5124, %v481
        %v5126 = vpop.permute.xlu0 %5125
        %v5128 = vlaneseq
        %v5129 = vshrl.u32 %v5128, 7
        %v5130 = vsub.s32 0, %v5129
        %v5131 = vrot.slane %v5126, %v5130
        %v5132 = vmul.f32 %v5131, %v5123
        %s5133 = scalar_lea.vmem %s478, 256
        %v5134 = vld [vmem:[%s5133] sm:$0xff]
        %v5135 = vld [vmem:[%s5133 + $0x8] sm:$0xff]
        %v5136 = vld [vmem:[%s5133 + $0x10] sm:$0xff]
        %v5137 = vld [vmem:[%s5133 + $0x18] sm:$0xff]
        %5139 = vset.pattern.permute.xlu0 3
        %5140 = vperm.xlu0 %5139, %v5134
        %v5141 = vpop.permute.xlu0 %5140
        %5144 = vset.pattern.permute.xlu0 3
        %5145 = vperm.xlu0 %5144, %v5135
        %v5146 = vpop.permute.xlu0 %5145
        %5149 = vset.pattern.permute.xlu0 3
        %5150 = vperm.xlu0 %5149, %v5136
        %v5151 = vpop.permute.xlu0 %5150
        %5154 = vset.pattern.permute.xlu0 3
        %5155 = vperm.xlu0 %5154, %v5137
        %v5156 = vpop.permute.xlu0 %5155
        %v5158 = vsel %vm507, %v5134, 0
        %v5160 = vsel %vm507, %v5135, 0
        %v5162 = vsel %vm507, %v5136, 0
        %v5164 = vsel %vm507, %v5137, 0
        %5166 = vmatprep.subr.mxu0 0.0
        %5167 = vmatpush1.msra.mxu0 0.0
        %5168 = vmatprep.subr.mxu0 0.0
        %5169 = vmatpush1.msra.mxu0 0.0
        %5170 = vmatprep.subr.mxu0 0.0
        %5171 = vmatpush1.msra.mxu0 0.0
        %5172 = vmatprep.subr.mxu0 0.0
        %5173 = vmatpush1.msra.mxu0 0.0
        %5174 = vmatprep.subr.mxu0 0.0
        %5175 = vmatpush1.msra.mxu0 0.0
        %5176 = vmatprep.subr.mxu0 0.0
        %5177 = vmatpush1.msra.mxu0 0.0
        %5178 = vmatprep.subr.mxu0 0.0
        %5179 = vmatpush1.msra.mxu0 0.0
        %5180 = vmatprep.subr.mxu0 0.0
        %5181 = vmatpush1.msra.mxu0 0.0
        %5182 = vmatprep.subr.mxu0 0.0
        %5183 = vmatpush1.msra.mxu0 0.0
        %5184 = vmatprep.subr.mxu0 0.0
        %5185 = vmatpush1.msra.mxu0 0.0
        %5186 = vmatprep.subr.mxu0 0.0
        %5187 = vmatpush1.msra.mxu0 0.0
        %5188 = vmatprep.subr.mxu0 0.0
        %5189 = vmatpush1.msra.mxu0 0.0
        %5190 = vmatprep.subr.mxu0 0.0
        %5191 = vmatpush1.msra.mxu0 0.0
        %5192 = vmatprep.subr.mxu0 0.0
        %5193 = vmatpush1.msra.mxu0 0.0
        %5194 = vmatprep.subr.mxu0 0.0
        %5195 = vmatpush1.msra.mxu0 0.0
        %5196 = vmatprep.subr.mxu0 0.0
        %5197 = vmatpush1.msra.mxu0 %v639
        %5198 = vmatprep.subr.mxu0 0.0
        %5199 = vmatpush2.msra.mxu0 0.0
        %5200 = vmatprep.subr.mxu0 0.0
        %5201 = vmatpush2.msra.mxu0 0.0
        %5202 = vmatprep.subr.mxu0 0.0
        %5203 = vmatpush2.msra.mxu0 0.0
        %5204 = vmatprep.subr.mxu0 0.0
        %5205 = vmatpush2.msra.mxu0 0.0
        %5206 = vmatprep.subr.mxu0 0.0
        %5207 = vmatpush2.msra.mxu0 0.0
        %5208 = vmatprep.subr.mxu0 0.0
        %5209 = vmatpush2.msra.mxu0 0.0
        %5210 = vmatprep.subr.mxu0 0.0
        %5211 = vmatpush2.msra.mxu0 0.0
        %5212 = vmatprep.subr.mxu0 0.0
        %5213 = vmatpush2.msra.mxu0 0.0
        %5214 = vmatprep.subr.mxu0 0.0
        %5215 = vmatpush2.msra.mxu0 0.0
        %5216 = vmatprep.subr.mxu0 0.0
        %5217 = vmatpush2.msra.mxu0 0.0
        %5218 = vmatprep.subr.mxu0 0.0
        %5219 = vmatpush2.msra.mxu0 0.0
        %5220 = vmatprep.subr.mxu0 0.0
        %5221 = vmatpush2.msra.mxu0 0.0
        %5222 = vmatprep.subr.mxu0 0.0
        %5223 = vmatpush2.msra.mxu0 0.0
        %5224 = vmatprep.subr.mxu0 0.0
        %5225 = vmatpush2.msra.mxu0 0.0
        %5226 = vmatprep.subr.mxu0 0.0
        %5227 = vmatpush2.msra.mxu0 0.0
        %5228 = vmatprep.subr.mxu0 0.0
        %5229 = vmatpush2.msra.mxu0 0.0
        %5230 = vmatprep.mubr.f32.mxu0 0.0
        %5231 = vmatmul.mubr.f32.gmra.mxu0 %v5158
        %v5232 = vpop.f32.mrf.mxu0
        %v5233 = vadd.f32 %v5141, %v5232
        %v5234 = vpop.f32.mrf.mxu0
        %5235 = vmatprep.mubr.f32.mxu0 0.0
        %5236 = vmatmul.mubr.f32.gmra.mxu0 %v5160
        %v5237 = vpop.f32.mrf.mxu0
        %v5238 = vadd.f32 %v5146, %v5237
        %v5239 = vpop.f32.mrf.mxu0
        %5240 = vmatprep.mubr.f32.mxu0 0.0
        %5241 = vmatmul.mubr.f32.gmra.mxu0 %v5162
        %v5242 = vpop.f32.mrf.mxu0
        %v5243 = vadd.f32 %v5151, %v5242
        %v5244 = vpop.f32.mrf.mxu0
        %5245 = vmatprep.mubr.f32.mxu0 0.0
        %5246 = vmatmul.mubr.f32.gmra.mxu0 %v5164
        %v5247 = vpop.f32.mrf.mxu0
        %v5248 = vadd.f32 %v5156, %v5247
        %v5249 = vpop.f32.mrf.mxu0
        %5250 = vdwg.mxu0
        %5251 = vset.pattern.permute.xlu0 4
        %5252 = vperm.xlu0 %5251, %v5134
        %v5253 = vpop.permute.xlu0 %5252
        %5255 = vset.pattern.permute.xlu0 4
        %5256 = vperm.xlu0 %5255, %v5135
        %v5257 = vpop.permute.xlu0 %5256
        %5259 = vset.pattern.permute.xlu0 4
        %5260 = vperm.xlu0 %5259, %v5136
        %v5261 = vpop.permute.xlu0 %5260
        %5263 = vset.pattern.permute.xlu0 4
        %5264 = vperm.xlu0 %5263, %v5137
        %v5265 = vpop.permute.xlu0 %5264
        %v5267 = vmul.f32 %v5253, %v5233
        %v5268 = vmul.f32 %v5257, %v5238
        %v5269 = vmul.f32 %v5261, %v5243
        %v5270 = vmul.f32 %v5265, %v5248
        %5271 = vset.pattern.permute.xlu0 5
        %5272 = vperm.xlu0 %5271, %v5134
        %v5273 = vpop.permute.xlu0 %5272
        %5275 = vset.pattern.permute.xlu0 5
        %5276 = vperm.xlu0 %5275, %v5135
        %v5277 = vpop.permute.xlu0 %5276
        %5279 = vset.pattern.permute.xlu0 5
        %5280 = vperm.xlu0 %5279, %v5136
        %v5281 = vpop.permute.xlu0 %5280
        %5283 = vset.pattern.permute.xlu0 5
        %5284 = vperm.xlu0 %5283, %v5137
        %v5285 = vpop.permute.xlu0 %5284
        %v5287 = vadd.f32 %v5267, %v5273
        %v5288 = vadd.f32 %v5268, %v5277
        %v5289 = vadd.f32 %v5269, %v5281
        %v5290 = vadd.f32 %v5270, %v5285
        %v5291 = vmax.f32 %v5287, 0.0
        %v5292 = vmax.f32 %v5288, 0.0
        %v5293 = vmax.f32 %v5289, 0.0
        %v5294 = vmax.f32 %v5290, 0.0
        %5295 = vmatprep.subr.mxu0 0.0
        %5296 = vmatpush1.msra.mxu0 0.0
        %5297 = vmatprep.subr.mxu0 0.0
        %5298 = vmatpush1.msra.mxu0 0.0
        %5299 = vmatprep.subr.mxu0 0.0
        %5300 = vmatpush1.msra.mxu0 0.0
        %5301 = vmatprep.subr.mxu0 0.0
        %5302 = vmatpush1.msra.mxu0 0.0
        %5303 = vmatprep.subr.mxu0 0.0
        %5304 = vmatpush1.msra.mxu0 0.0
        %5305 = vmatprep.subr.mxu0 0.0
        %5306 = vmatpush1.msra.mxu0 0.0
        %5307 = vmatprep.subr.mxu0 0.0
        %5308 = vmatpush1.msra.mxu0 0.0
        %5309 = vmatprep.subr.mxu0 0.0
        %5310 = vmatpush1.msra.mxu0 0.0
        %5311 = vmatprep.subr.mxu0 0.0
        %5312 = vmatpush1.msra.mxu0 0.0
        %5313 = vmatprep.subr.mxu0 0.0
        %5314 = vmatpush1.msra.mxu0 0.0
        %5315 = vmatprep.subr.mxu0 0.0
        %5316 = vmatpush1.msra.mxu0 0.0
        %5317 = vmatprep.subr.mxu0 0.0
        %5318 = vmatpush1.msra.mxu0 0.0
        %5319 = vmatprep.subr.mxu0 0.0
        %5320 = vmatpush1.msra.mxu0 %v5294
        %5321 = vmatprep.subr.mxu0 0.0
        %5322 = vmatpush1.msra.mxu0 %v5293
        %5323 = vmatprep.subr.mxu0 0.0
        %5324 = vmatpush1.msra.mxu0 %v5292
        %5325 = vmatprep.subr.mxu0 0.0
        %5326 = vmatpush1.msra.mxu0 %v5291
        %5327 = vmatprep.subr.mxu0 0.0
        %5328 = vmatpush2.msra.mxu0 0.0
        %5329 = vmatprep.subr.mxu0 0.0
        %5330 = vmatpush2.msra.mxu0 0.0
        %5331 = vmatprep.subr.mxu0 0.0
        %5332 = vmatpush2.msra.mxu0 0.0
        %5333 = vmatprep.subr.mxu0 0.0
        %5334 = vmatpush2.msra.mxu0 0.0
        %5335 = vmatprep.subr.mxu0 0.0
        %5336 = vmatpush2.msra.mxu0 0.0
        %5337 = vmatprep.subr.mxu0 0.0
        %5338 = vmatpush2.msra.mxu0 0.0
        %5339 = vmatprep.subr.mxu0 0.0
        %5340 = vmatpush2.msra.mxu0 0.0
        %5341 = vmatprep.subr.mxu0 0.0
        %5342 = vmatpush2.msra.mxu0 0.0
        %5343 = vmatprep.subr.mxu0 0.0
        %5344 = vmatpush2.msra.mxu0 0.0
        %5345 = vmatprep.subr.mxu0 0.0
        %5346 = vmatpush2.msra.mxu0 0.0
        %5347 = vmatprep.subr.mxu0 0.0
        %5348 = vmatpush2.msra.mxu0 0.0
        %5349 = vmatprep.subr.mxu0 0.0
        %5350 = vmatpush2.msra.mxu0 0.0
        %5351 = vmatprep.subr.mxu0 0.0
        %5352 = vmatpush2.msra.mxu0 0.0
        %5353 = vmatprep.subr.mxu0 0.0
        %5354 = vmatpush2.msra.mxu0 0.0
        %5355 = vmatprep.subr.mxu0 0.0
        %5356 = vmatpush2.msra.mxu0 0.0
        %5357 = vmatprep.subr.mxu0 0.0
        %5358 = vmatpush2.msra.mxu0 0.0
        %5359 = vmatprep.mubr.f32.mxu0 0.0
        %5360 = vmatmul.mubr.f32.gmra.mxu0 %v792
        %v5361 = vpop.f32.mrf.mxu0
        %v5362 = vadd.f32 %v773, %v5361
        %v5363 = vpop.f32.mrf.mxu0
        %5364 = vmatprep.mubr.f32.mxu0 0.0
        %5365 = vmatmul.mubr.f32.gmra.mxu0 %v795
        %v5366 = vpop.f32.mrf.mxu0
        %v5367 = vadd.f32 %v778, %v5366
        %v5368 = vpop.f32.mrf.mxu0
        %5369 = vmatprep.mubr.f32.mxu0 0.0
        %5370 = vmatmul.mubr.f32.gmra.mxu0 %v798
        %v5371 = vpop.f32.mrf.mxu0
        %v5372 = vadd.f32 %v783, %v5371
        %v5373 = vpop.f32.mrf.mxu0
        %5374 = vmatprep.mubr.f32.mxu0 0.0
        %5375 = vmatmul.mubr.f32.gmra.mxu0 %v801
        %v5376 = vpop.f32.mrf.mxu0
        %v5377 = vadd.f32 %v788, %v5376
        %v5378 = vpop.f32.mrf.mxu0
        %5379 = vdwg.mxu0
        %5380 = vset.pattern.permute.xlu0 6
        %5381 = vperm.xlu0 %5380, %v5134
        %v5382 = vpop.permute.xlu0 %5381
        %5384 = vset.pattern.permute.xlu0 6
        %5385 = vperm.xlu0 %5384, %v5135
        %v5386 = vpop.permute.xlu0 %5385
        %5388 = vset.pattern.permute.xlu0 6
        %5389 = vperm.xlu0 %5388, %v5136
        %v5390 = vpop.permute.xlu0 %5389
        %5392 = vset.pattern.permute.xlu0 6
        %5393 = vperm.xlu0 %5392, %v5137
        %v5394 = vpop.permute.xlu0 %5393
        %v5396 = vmul.f32 %v5382, %v5362
        %v5397 = vmul.f32 %v5386, %v5367
        %v5398 = vmul.f32 %v5390, %v5372
        %v5399 = vmul.f32 %v5394, %v5377
        %5400 = vset.pattern.permute.xlu0 7
        %5401 = vperm.xlu0 %5400, %v5134
        %v5402 = vpop.permute.xlu0 %5401
        %5404 = vset.pattern.permute.xlu0 7
        %5405 = vperm.xlu0 %5404, %v5135
        %v5406 = vpop.permute.xlu0 %5405
        %5408 = vset.pattern.permute.xlu0 7
        %5409 = vperm.xlu0 %5408, %v5136
        %v5410 = vpop.permute.xlu0 %5409
        %5412 = vset.pattern.permute.xlu0 7
        %5413 = vperm.xlu0 %5412, %v5137
        %v5414 = vpop.permute.xlu0 %5413
        %v5416 = vadd.f32 %v5396, %v5402
        %v5417 = vadd.f32 %v5397, %v5406
        %v5418 = vadd.f32 %v5398, %v5410
        %v5419 = vadd.f32 %v5399, %v5414
        %v5420 = vmax.f32 %v5416, 0.0
        %v5421 = vmax.f32 %v5417, 0.0
        %v5422 = vmax.f32 %v5418, 0.0
        %v5423 = vmax.f32 %v5419, 0.0
        %5424 = vmatprep.subr.mxu0 0.0
        %5425 = vmatpush1.msra.mxu0 0.0
        %5426 = vmatprep.subr.mxu0 0.0
        %5427 = vmatpush1.msra.mxu0 0.0
        %5428 = vmatprep.subr.mxu0 0.0
        %5429 = vmatpush1.msra.mxu0 0.0
        %5430 = vmatprep.subr.mxu0 0.0
        %5431 = vmatpush1.msra.mxu0 0.0
        %5432 = vmatprep.subr.mxu0 0.0
        %5433 = vmatpush1.msra.mxu0 0.0
        %5434 = vmatprep.subr.mxu0 0.0
        %5435 = vmatpush1.msra.mxu0 0.0
        %5436 = vmatprep.subr.mxu0 0.0
        %5437 = vmatpush1.msra.mxu0 0.0
        %5438 = vmatprep.subr.mxu0 0.0
        %5439 = vmatpush1.msra.mxu0 0.0
        %5440 = vmatprep.subr.mxu0 0.0
        %5441 = vmatpush1.msra.mxu0 0.0
        %5442 = vmatprep.subr.mxu0 0.0
        %5443 = vmatpush1.msra.mxu0 0.0
        %5444 = vmatprep.subr.mxu0 0.0
        %5445 = vmatpush1.msra.mxu0 0.0
        %5446 = vmatprep.subr.mxu0 0.0
        %5447 = vmatpush1.msra.mxu0 0.0
        %5448 = vmatprep.subr.mxu0 0.0
        %5449 = vmatpush1.msra.mxu0 %v5423
        %5450 = vmatprep.subr.mxu0 0.0
        %5451 = vmatpush1.msra.mxu0 %v5422
        %5452 = vmatprep.subr.mxu0 0.0
        %5453 = vmatpush1.msra.mxu0 %v5421
        %5454 = vmatprep.subr.mxu0 0.0
        %5455 = vmatpush1.msra.mxu0 %v5420
        %5456 = vmatprep.subr.mxu0 0.0
        %5457 = vmatpush2.msra.mxu0 0.0
        %5458 = vmatprep.subr.mxu0 0.0
        %5459 = vmatpush2.msra.mxu0 0.0
        %5460 = vmatprep.subr.mxu0 0.0
        %5461 = vmatpush2.msra.mxu0 0.0
        %5462 = vmatprep.subr.mxu0 0.0
        %5463 = vmatpush2.msra.mxu0 0.0
        %5464 = vmatprep.subr.mxu0 0.0
        %5465 = vmatpush2.msra.mxu0 0.0
        %5466 = vmatprep.subr.mxu0 0.0
        %5467 = vmatpush2.msra.mxu0 0.0
        %5468 = vmatprep.subr.mxu0 0.0
        %5469 = vmatpush2.msra.mxu0 0.0
        %5470 = vmatprep.subr.mxu0 0.0
        %5471 = vmatpush2.msra.mxu0 0.0
        %5472 = vmatprep.subr.mxu0 0.0
        %5473 = vmatpush2.msra.mxu0 0.0
        %5474 = vmatprep.subr.mxu0 0.0
        %5475 = vmatpush2.msra.mxu0 0.0
        %5476 = vmatprep.subr.mxu0 0.0
        %5477 = vmatpush2.msra.mxu0 0.0
        %5478 = vmatprep.subr.mxu0 0.0
        %5479 = vmatpush2.msra.mxu0 0.0
        %5480 = vmatprep.subr.mxu0 0.0
        %5481 = vmatpush2.msra.mxu0 0.0
        %5482 = vmatprep.subr.mxu0 0.0
        %5483 = vmatpush2.msra.mxu0 0.0
        %5484 = vmatprep.subr.mxu0 0.0
        %5485 = vmatpush2.msra.mxu0 0.0
        %5486 = vmatprep.subr.mxu0 0.0
        %5487 = vmatpush2.msra.mxu0 0.0
        %5488 = vmatprep.mubr.f32.mxu0 0.0
        %5489 = vmatmul.mubr.f32.gmra.mxu0 %v953
        %v5490 = vpop.f32.mrf.mxu0
        %v5491 = vadd.f32 %v935, %v5490
        %v5492 = vpop.f32.mrf.mxu0
        %5493 = vmatprep.mubr.f32.mxu0 0.0
        %5494 = vmatmul.mubr.f32.gmra.mxu0 %v956
        %v5495 = vpop.f32.mrf.mxu0
        %v5496 = vadd.f32 %v940, %v5495
        %v5497 = vpop.f32.mrf.mxu0
        %5498 = vmatprep.mubr.f32.mxu0 0.0
        %5499 = vmatmul.mubr.f32.gmra.mxu0 %v959
        %v5500 = vpop.f32.mrf.mxu0
        %v5501 = vadd.f32 %v945, %v5500
        %v5502 = vpop.f32.mrf.mxu0
        %5503 = vmatprep.mubr.f32.mxu0 0.0
        %5504 = vmatmul.mubr.f32.gmra.mxu0 %v962
        %v5505 = vpop.f32.mrf.mxu0
        %v5506 = vadd.f32 %v950, %v5505
        %v5507 = vpop.f32.mrf.mxu0
        %5508 = vdwg.mxu0
        %v5509 = vadd.f32 %v5233, %v5491
        %v5510 = vadd.f32 %v5238, %v5496
        %v5511 = vadd.f32 %v5243, %v5501
        %v5512 = vadd.f32 %v5248, %v5506
        %5513 = vmatprep.subr.mxu0 0.0
        %5514 = vmatpush1.msra.mxu0 0.0
        %5515 = vmatprep.subr.mxu0 0.0
        %5516 = vmatpush1.msra.mxu0 0.0
        %5517 = vmatprep.subr.mxu0 0.0
        %5518 = vmatpush1.msra.mxu0 0.0
        %5519 = vmatprep.subr.mxu0 0.0
        %5520 = vmatpush1.msra.mxu0 0.0
        %5521 = vmatprep.subr.mxu0 0.0
        %5522 = vmatpush1.msra.mxu0 0.0
        %5523 = vmatprep.subr.mxu0 0.0
        %5524 = vmatpush1.msra.mxu0 0.0
        %5525 = vmatprep.subr.mxu0 0.0
        %5526 = vmatpush1.msra.mxu0 0.0
        %5527 = vmatprep.subr.mxu0 0.0
        %5528 = vmatpush1.msra.mxu0 0.0
        %5529 = vmatprep.subr.mxu0 0.0
        %5530 = vmatpush1.msra.mxu0 0.0
        %5531 = vmatprep.subr.mxu0 0.0
        %5532 = vmatpush1.msra.mxu0 0.0
        %5533 = vmatprep.subr.mxu0 0.0
        %5534 = vmatpush1.msra.mxu0 0.0
        %5535 = vmatprep.subr.mxu0 0.0
        %5536 = vmatpush1.msra.mxu0 0.0
        %5537 = vmatprep.subr.mxu0 0.0
        %5538 = vmatpush1.msra.mxu0 %v5512
        %5539 = vmatprep.subr.mxu0 0.0
        %5540 = vmatpush1.msra.mxu0 %v5511
        %5541 = vmatprep.subr.mxu0 0.0
        %5542 = vmatpush1.msra.mxu0 %v5510
        %5543 = vmatprep.subr.mxu0 0.0
        %5544 = vmatpush1.msra.mxu0 %v5509
        %5545 = vmatprep.subr.mxu0 0.0
        %5546 = vmatpush2.msra.mxu0 0.0
        %5547 = vmatprep.subr.mxu0 0.0
        %5548 = vmatpush2.msra.mxu0 0.0
        %5549 = vmatprep.subr.mxu0 0.0
        %5550 = vmatpush2.msra.mxu0 0.0
        %5551 = vmatprep.subr.mxu0 0.0
        %5552 = vmatpush2.msra.mxu0 0.0
        %5553 = vmatprep.subr.mxu0 0.0
        %5554 = vmatpush2.msra.mxu0 0.0
        %5555 = vmatprep.subr.mxu0 0.0
        %5556 = vmatpush2.msra.mxu0 0.0
        %5557 = vmatprep.subr.mxu0 0.0
        %5558 = vmatpush2.msra.mxu0 0.0
        %5559 = vmatprep.subr.mxu0 0.0
        %5560 = vmatpush2.msra.mxu0 0.0
        %5561 = vmatprep.subr.mxu0 0.0
        %5562 = vmatpush2.msra.mxu0 0.0
        %5563 = vmatprep.subr.mxu0 0.0
        %5564 = vmatpush2.msra.mxu0 0.0
        %5565 = vmatprep.subr.mxu0 0.0
        %5566 = vmatpush2.msra.mxu0 0.0
        %5567 = vmatprep.subr.mxu0 0.0
        %5568 = vmatpush2.msra.mxu0 0.0
        %5569 = vmatprep.subr.mxu0 0.0
        %5570 = vmatpush2.msra.mxu0 0.0
        %5571 = vmatprep.subr.mxu0 0.0
        %5572 = vmatpush2.msra.mxu0 0.0
        %5573 = vmatprep.subr.mxu0 0.0
        %5574 = vmatpush2.msra.mxu0 0.0
        %5575 = vmatprep.subr.mxu0 0.0
        %5576 = vmatpush2.msra.mxu0 0.0
        %5577 = vmatprep.mubr.f32.mxu0 0.0
        %5578 = vmatmul.mubr.f32.gmra.mxu0 %v1063
        %v5579 = vpop.f32.mrf.mxu0
        %v5580 = vadd.f32 %v1061, %v5579
        %v5581 = vpop.f32.mrf.mxu0
        %5582 = vdwg.mxu0
        %v5583 = vadd.f32 %v5580, 1.0
        %v5584 = vmul.f32 %v5132, %v5583
        %v5585 = vadd.f32 %v5029, %v5584
        %5586 = vset.pattern.permute.xlu0 9
        %5587 = vperm.xlu0 %5586, %v480
        %v5588 = vpop.permute.xlu0 %5587
        %v5590 = vsub.f32 %v479, %v5588
        %s5591 = scalar_lea.vmem %s470, 36
        %v5592 = vld [vmem:[%s5591] sm:$0x7]
        %v5594 = vsel %vm507, %v5592, 0
        %v5597 = vsel %vm511, %v5590, 0
        %5599 = vmatprep.subr.mxu0 0.0
        %5600 = vmatpush1.msra.mxu0 0.0
        %5601 = vmatprep.subr.mxu0 0.0
        %5602 = vmatpush1.msra.mxu0 0.0
        %5603 = vmatprep.subr.mxu0 0.0
        %5604 = vmatpush1.msra.mxu0 0.0
        %5605 = vmatprep.subr.mxu0 0.0
        %5606 = vmatpush1.msra.mxu0 0.0
        %5607 = vmatprep.subr.mxu0 0.0
        %5608 = vmatpush1.msra.mxu0 0.0
        %5609 = vmatprep.subr.mxu0 0.0
        %5610 = vmatpush1.msra.mxu0 0.0
        %5611 = vmatprep.subr.mxu0 0.0
        %5612 = vmatpush1.msra.mxu0 0.0
        %5613 = vmatprep.subr.mxu0 0.0
        %5614 = vmatpush1.msra.mxu0 0.0
        %5615 = vmatprep.subr.mxu0 0.0
        %5616 = vmatpush1.msra.mxu0 0.0
        %5617 = vmatprep.subr.mxu0 0.0
        %5618 = vmatpush1.msra.mxu0 0.0
        %5619 = vmatprep.subr.mxu0 0.0
        %5620 = vmatpush1.msra.mxu0 0.0
        %5621 = vmatprep.subr.mxu0 0.0
        %5622 = vmatpush1.msra.mxu0 0.0
        %5623 = vmatprep.subr.mxu0 0.0
        %5624 = vmatpush1.msra.mxu0 0.0
        %5625 = vmatprep.subr.mxu0 0.0
        %5626 = vmatpush1.msra.mxu0 0.0
        %5627 = vmatprep.subr.mxu0 0.0
        %5628 = vmatpush1.msra.mxu0 0.0
        %5629 = vmatprep.subr.mxu0 0.0
        %5630 = vmatpush1.msra.mxu0 %v5597
        %5631 = vmatprep.subr.mxu0 0.0
        %5632 = vmatpush2.msra.mxu0 0.0
        %5633 = vmatprep.subr.mxu0 0.0
        %5634 = vmatpush2.msra.mxu0 0.0
        %5635 = vmatprep.subr.mxu0 0.0
        %5636 = vmatpush2.msra.mxu0 0.0
        %5637 = vmatprep.subr.mxu0 0.0
        %5638 = vmatpush2.msra.mxu0 0.0
        %5639 = vmatprep.subr.mxu0 0.0
        %5640 = vmatpush2.msra.mxu0 0.0
        %5641 = vmatprep.subr.mxu0 0.0
        %5642 = vmatpush2.msra.mxu0 0.0
        %5643 = vmatprep.subr.mxu0 0.0
        %5644 = vmatpush2.msra.mxu0 0.0
        %5645 = vmatprep.subr.mxu0 0.0
        %5646 = vmatpush2.msra.mxu0 0.0
        %5647 = vmatprep.subr.mxu0 0.0
        %5648 = vmatpush2.msra.mxu0 0.0
        %5649 = vmatprep.subr.mxu0 0.0
        %5650 = vmatpush2.msra.mxu0 0.0
        %5651 = vmatprep.subr.mxu0 0.0
        %5652 = vmatpush2.msra.mxu0 0.0
        %5653 = vmatprep.subr.mxu0 0.0
        %5654 = vmatpush2.msra.mxu0 0.0
        %5655 = vmatprep.subr.mxu0 0.0
        %5656 = vmatpush2.msra.mxu0 0.0
        %5657 = vmatprep.subr.mxu0 0.0
        %5658 = vmatpush2.msra.mxu0 0.0
        %5659 = vmatprep.subr.mxu0 0.0
        %5660 = vmatpush2.msra.mxu0 0.0
        %5661 = vmatprep.subr.mxu0 0.0
        %5662 = vmatpush2.msra.mxu0 0.0
        %5663 = vmatprep.mubr.f32.mxu0 0.0
        %5664 = vmatmul.mubr.f32.gmra.mxu0 %v5594
        %v5665 = vpop.f32.mrf.mxu0
        %v5666 = vadd.f32 0.0, %v5665
        %v5667 = vpop.f32.mrf.mxu0
        %5668 = vdwg.mxu0
        %v5669 = vmul.f32 %v5666, %v5590
        %v5671 = vrot.slane %v5669, 1
        %v5673 = vadd.f32 %v5669, %v5671
        %v5674 = vrot.slane %v5669, 2
        %v5676 = vadd.f32 %v5673, %v5674
        %v5677 = vmul.f32 %v5676, -0.5
        %v5678 = vmul.f32 %v5677, 1.442695
        %v5679 = vpow.pop %v5678
        %5680 = vset.pattern.permute.xlu0 9
        %5681 = vperm.xlu0 %5680, %v481
        %v5682 = vpop.permute.xlu0 %5681
        %v5684 = vlaneseq
        %v5685 = vshrl.u32 %v5684, 7
        %v5686 = vsub.s32 0, %v5685
        %v5687 = vrot.slane %v5682, %v5686
        %v5688 = vmul.f32 %v5687, %v5679
        %s5689 = scalar_lea.vmem %s478, 288
        %v5690 = vld [vmem:[%s5689] sm:$0xff]
        %v5691 = vld [vmem:[%s5689 + $0x8] sm:$0xff]
        %v5692 = vld [vmem:[%s5689 + $0x10] sm:$0xff]
        %v5693 = vld [vmem:[%s5689 + $0x18] sm:$0xff]
        %5695 = vset.pattern.permute.xlu0 3
        %5696 = vperm.xlu0 %5695, %v5690
        %v5697 = vpop.permute.xlu0 %5696
        %5700 = vset.pattern.permute.xlu0 3
        %5701 = vperm.xlu0 %5700, %v5691
        %v5702 = vpop.permute.xlu0 %5701
        %5705 = vset.pattern.permute.xlu0 3
        %5706 = vperm.xlu0 %5705, %v5692
        %v5707 = vpop.permute.xlu0 %5706
        %5710 = vset.pattern.permute.xlu0 3
        %5711 = vperm.xlu0 %5710, %v5693
        %v5712 = vpop.permute.xlu0 %5711
        %v5714 = vsel %vm507, %v5690, 0
        %v5716 = vsel %vm507, %v5691, 0
        %v5718 = vsel %vm507, %v5692, 0
        %v5720 = vsel %vm507, %v5693, 0
        %5722 = vmatprep.subr.mxu0 0.0
        %5723 = vmatpush1.msra.mxu0 0.0
        %5724 = vmatprep.subr.mxu0 0.0
        %5725 = vmatpush1.msra.mxu0 0.0
        %5726 = vmatprep.subr.mxu0 0.0
        %5727 = vmatpush1.msra.mxu0 0.0
        %5728 = vmatprep.subr.mxu0 0.0
        %5729 = vmatpush1.msra.mxu0 0.0
        %5730 = vmatprep.subr.mxu0 0.0
        %5731 = vmatpush1.msra.mxu0 0.0
        %5732 = vmatprep.subr.mxu0 0.0
        %5733 = vmatpush1.msra.mxu0 0.0
        %5734 = vmatprep.subr.mxu0 0.0
        %5735 = vmatpush1.msra.mxu0 0.0
        %5736 = vmatprep.subr.mxu0 0.0
        %5737 = vmatpush1.msra.mxu0 0.0
        %5738 = vmatprep.subr.mxu0 0.0
        %5739 = vmatpush1.msra.mxu0 0.0
        %5740 = vmatprep.subr.mxu0 0.0
        %5741 = vmatpush1.msra.mxu0 0.0
        %5742 = vmatprep.subr.mxu0 0.0
        %5743 = vmatpush1.msra.mxu0 0.0
        %5744 = vmatprep.subr.mxu0 0.0
        %5745 = vmatpush1.msra.mxu0 0.0
        %5746 = vmatprep.subr.mxu0 0.0
        %5747 = vmatpush1.msra.mxu0 0.0
        %5748 = vmatprep.subr.mxu0 0.0
        %5749 = vmatpush1.msra.mxu0 0.0
        %5750 = vmatprep.subr.mxu0 0.0
        %5751 = vmatpush1.msra.mxu0 0.0
        %5752 = vmatprep.subr.mxu0 0.0
        %5753 = vmatpush1.msra.mxu0 %v639
        %5754 = vmatprep.subr.mxu0 0.0
        %5755 = vmatpush2.msra.mxu0 0.0
        %5756 = vmatprep.subr.mxu0 0.0
        %5757 = vmatpush2.msra.mxu0 0.0
        %5758 = vmatprep.subr.mxu0 0.0
        %5759 = vmatpush2.msra.mxu0 0.0
        %5760 = vmatprep.subr.mxu0 0.0
        %5761 = vmatpush2.msra.mxu0 0.0
        %5762 = vmatprep.subr.mxu0 0.0
        %5763 = vmatpush2.msra.mxu0 0.0
        %5764 = vmatprep.subr.mxu0 0.0
        %5765 = vmatpush2.msra.mxu0 0.0
        %5766 = vmatprep.subr.mxu0 0.0
        %5767 = vmatpush2.msra.mxu0 0.0
        %5768 = vmatprep.subr.mxu0 0.0
        %5769 = vmatpush2.msra.mxu0 0.0
        %5770 = vmatprep.subr.mxu0 0.0
        %5771 = vmatpush2.msra.mxu0 0.0
        %5772 = vmatprep.subr.mxu0 0.0
        %5773 = vmatpush2.msra.mxu0 0.0
        %5774 = vmatprep.subr.mxu0 0.0
        %5775 = vmatpush2.msra.mxu0 0.0
        %5776 = vmatprep.subr.mxu0 0.0
        %5777 = vmatpush2.msra.mxu0 0.0
        %5778 = vmatprep.subr.mxu0 0.0
        %5779 = vmatpush2.msra.mxu0 0.0
        %5780 = vmatprep.subr.mxu0 0.0
        %5781 = vmatpush2.msra.mxu0 0.0
        %5782 = vmatprep.subr.mxu0 0.0
        %5783 = vmatpush2.msra.mxu0 0.0
        %5784 = vmatprep.subr.mxu0 0.0
        %5785 = vmatpush2.msra.mxu0 0.0
        %5786 = vmatprep.mubr.f32.mxu0 0.0
        %5787 = vmatmul.mubr.f32.gmra.mxu0 %v5714
        %v5788 = vpop.f32.mrf.mxu0
        %v5789 = vadd.f32 %v5697, %v5788
        %v5790 = vpop.f32.mrf.mxu0
        %5791 = vmatprep.mubr.f32.mxu0 0.0
        %5792 = vmatmul.mubr.f32.gmra.mxu0 %v5716
        %v5793 = vpop.f32.mrf.mxu0
        %v5794 = vadd.f32 %v5702, %v5793
        %v5795 = vpop.f32.mrf.mxu0
        %5796 = vmatprep.mubr.f32.mxu0 0.0
        %5797 = vmatmul.mubr.f32.gmra.mxu0 %v5718
        %v5798 = vpop.f32.mrf.mxu0
        %v5799 = vadd.f32 %v5707, %v5798
        %v5800 = vpop.f32.mrf.mxu0
        %5801 = vmatprep.mubr.f32.mxu0 0.0
        %5802 = vmatmul.mubr.f32.gmra.mxu0 %v5720
        %v5803 = vpop.f32.mrf.mxu0
        %v5804 = vadd.f32 %v5712, %v5803
        %v5805 = vpop.f32.mrf.mxu0
        %5806 = vdwg.mxu0
        %5807 = vset.pattern.permute.xlu0 4
        %5808 = vperm.xlu0 %5807, %v5690
        %v5809 = vpop.permute.xlu0 %5808
        %5811 = vset.pattern.permute.xlu0 4
        %5812 = vperm.xlu0 %5811, %v5691
        %v5813 = vpop.permute.xlu0 %5812
        %5815 = vset.pattern.permute.xlu0 4
        %5816 = vperm.xlu0 %5815, %v5692
        %v5817 = vpop.permute.xlu0 %5816
        %5819 = vset.pattern.permute.xlu0 4
        %5820 = vperm.xlu0 %5819, %v5693
        %v5821 = vpop.permute.xlu0 %5820
        %v5823 = vmul.f32 %v5809, %v5789
        %v5824 = vmul.f32 %v5813, %v5794
        %v5825 = vmul.f32 %v5817, %v5799
        %v5826 = vmul.f32 %v5821, %v5804
        %5827 = vset.pattern.permute.xlu0 5
        %5828 = vperm.xlu0 %5827, %v5690
        %v5829 = vpop.permute.xlu0 %5828
        %5831 = vset.pattern.permute.xlu0 5
        %5832 = vperm.xlu0 %5831, %v5691
        %v5833 = vpop.permute.xlu0 %5832
        %5835 = vset.pattern.permute.xlu0 5
        %5836 = vperm.xlu0 %5835, %v5692
        %v5837 = vpop.permute.xlu0 %5836
        %5839 = vset.pattern.permute.xlu0 5
        %5840 = vperm.xlu0 %5839, %v5693
        %v5841 = vpop.permute.xlu0 %5840
        %v5843 = vadd.f32 %v5823, %v5829
        %v5844 = vadd.f32 %v5824, %v5833
        %v5845 = vadd.f32 %v5825, %v5837
        %v5846 = vadd.f32 %v5826, %v5841
        %v5847 = vmax.f32 %v5843, 0.0
        %v5848 = vmax.f32 %v5844, 0.0
        %v5849 = vmax.f32 %v5845, 0.0
        %v5850 = vmax.f32 %v5846, 0.0
        %5851 = vmatprep.subr.mxu0 0.0
        %5852 = vmatpush1.msra.mxu0 0.0
        %5853 = vmatprep.subr.mxu0 0.0
        %5854 = vmatpush1.msra.mxu0 0.0
        %5855 = vmatprep.subr.mxu0 0.0
        %5856 = vmatpush1.msra.mxu0 0.0
        %5857 = vmatprep.subr.mxu0 0.0
        %5858 = vmatpush1.msra.mxu0 0.0
        %5859 = vmatprep.subr.mxu0 0.0
        %5860 = vmatpush1.msra.mxu0 0.0
        %5861 = vmatprep.subr.mxu0 0.0
        %5862 = vmatpush1.msra.mxu0 0.0
        %5863 = vmatprep.subr.mxu0 0.0
        %5864 = vmatpush1.msra.mxu0 0.0
        %5865 = vmatprep.subr.mxu0 0.0
        %5866 = vmatpush1.msra.mxu0 0.0
        %5867 = vmatprep.subr.mxu0 0.0
        %5868 = vmatpush1.msra.mxu0 0.0
        %5869 = vmatprep.subr.mxu0 0.0
        %5870 = vmatpush1.msra.mxu0 0.0
        %5871 = vmatprep.subr.mxu0 0.0
        %5872 = vmatpush1.msra.mxu0 0.0
        %5873 = vmatprep.subr.mxu0 0.0
        %5874 = vmatpush1.msra.mxu0 0.0
        %5875 = vmatprep.subr.mxu0 0.0
        %5876 = vmatpush1.msra.mxu0 %v5850
        %5877 = vmatprep.subr.mxu0 0.0
        %5878 = vmatpush1.msra.mxu0 %v5849
        %5879 = vmatprep.subr.mxu0 0.0
        %5880 = vmatpush1.msra.mxu0 %v5848
        %5881 = vmatprep.subr.mxu0 0.0
        %5882 = vmatpush1.msra.mxu0 %v5847
        %5883 = vmatprep.subr.mxu0 0.0
        %5884 = vmatpush2.msra.mxu0 0.0
        %5885 = vmatprep.subr.mxu0 0.0
        %5886 = vmatpush2.msra.mxu0 0.0
        %5887 = vmatprep.subr.mxu0 0.0
        %5888 = vmatpush2.msra.mxu0 0.0
        %5889 = vmatprep.subr.mxu0 0.0
        %5890 = vmatpush2.msra.mxu0 0.0
        %5891 = vmatprep.subr.mxu0 0.0
        %5892 = vmatpush2.msra.mxu0 0.0
        %5893 = vmatprep.subr.mxu0 0.0
        %5894 = vmatpush2.msra.mxu0 0.0
        %5895 = vmatprep.subr.mxu0 0.0
        %5896 = vmatpush2.msra.mxu0 0.0
        %5897 = vmatprep.subr.mxu0 0.0
        %5898 = vmatpush2.msra.mxu0 0.0
        %5899 = vmatprep.subr.mxu0 0.0
        %5900 = vmatpush2.msra.mxu0 0.0
        %5901 = vmatprep.subr.mxu0 0.0
        %5902 = vmatpush2.msra.mxu0 0.0
        %5903 = vmatprep.subr.mxu0 0.0
        %5904 = vmatpush2.msra.mxu0 0.0
        %5905 = vmatprep.subr.mxu0 0.0
        %5906 = vmatpush2.msra.mxu0 0.0
        %5907 = vmatprep.subr.mxu0 0.0
        %5908 = vmatpush2.msra.mxu0 0.0
        %5909 = vmatprep.subr.mxu0 0.0
        %5910 = vmatpush2.msra.mxu0 0.0
        %5911 = vmatprep.subr.mxu0 0.0
        %5912 = vmatpush2.msra.mxu0 0.0
        %5913 = vmatprep.subr.mxu0 0.0
        %5914 = vmatpush2.msra.mxu0 0.0
        %5915 = vmatprep.mubr.f32.mxu0 0.0
        %5916 = vmatmul.mubr.f32.gmra.mxu0 %v792
        %v5917 = vpop.f32.mrf.mxu0
        %v5918 = vadd.f32 %v773, %v5917
        %v5919 = vpop.f32.mrf.mxu0
        %5920 = vmatprep.mubr.f32.mxu0 0.0
        %5921 = vmatmul.mubr.f32.gmra.mxu0 %v795
        %v5922 = vpop.f32.mrf.mxu0
        %v5923 = vadd.f32 %v778, %v5922
        %v5924 = vpop.f32.mrf.mxu0
        %5925 = vmatprep.mubr.f32.mxu0 0.0
        %5926 = vmatmul.mubr.f32.gmra.mxu0 %v798
        %v5927 = vpop.f32.mrf.mxu0
        %v5928 = vadd.f32 %v783, %v5927
        %v5929 = vpop.f32.mrf.mxu0
        %5930 = vmatprep.mubr.f32.mxu0 0.0
        %5931 = vmatmul.mubr.f32.gmra.mxu0 %v801
        %v5932 = vpop.f32.mrf.mxu0
        %v5933 = vadd.f32 %v788, %v5932
        %v5934 = vpop.f32.mrf.mxu0
        %5935 = vdwg.mxu0
        %5936 = vset.pattern.permute.xlu0 6
        %5937 = vperm.xlu0 %5936, %v5690
        %v5938 = vpop.permute.xlu0 %5937
        %5940 = vset.pattern.permute.xlu0 6
        %5941 = vperm.xlu0 %5940, %v5691
        %v5942 = vpop.permute.xlu0 %5941
        %5944 = vset.pattern.permute.xlu0 6
        %5945 = vperm.xlu0 %5944, %v5692
        %v5946 = vpop.permute.xlu0 %5945
        %5948 = vset.pattern.permute.xlu0 6
        %5949 = vperm.xlu0 %5948, %v5693
        %v5950 = vpop.permute.xlu0 %5949
        %v5952 = vmul.f32 %v5938, %v5918
        %v5953 = vmul.f32 %v5942, %v5923
        %v5954 = vmul.f32 %v5946, %v5928
        %v5955 = vmul.f32 %v5950, %v5933
        %5956 = vset.pattern.permute.xlu0 7
        %5957 = vperm.xlu0 %5956, %v5690
        %v5958 = vpop.permute.xlu0 %5957
        %5960 = vset.pattern.permute.xlu0 7
        %5961 = vperm.xlu0 %5960, %v5691
        %v5962 = vpop.permute.xlu0 %5961
        %5964 = vset.pattern.permute.xlu0 7
        %5965 = vperm.xlu0 %5964, %v5692
        %v5966 = vpop.permute.xlu0 %5965
        %5968 = vset.pattern.permute.xlu0 7
        %5969 = vperm.xlu0 %5968, %v5693
        %v5970 = vpop.permute.xlu0 %5969
        %v5972 = vadd.f32 %v5952, %v5958
        %v5973 = vadd.f32 %v5953, %v5962
        %v5974 = vadd.f32 %v5954, %v5966
        %v5975 = vadd.f32 %v5955, %v5970
        %v5976 = vmax.f32 %v5972, 0.0
        %v5977 = vmax.f32 %v5973, 0.0
        %v5978 = vmax.f32 %v5974, 0.0
        %v5979 = vmax.f32 %v5975, 0.0
        %5980 = vmatprep.subr.mxu0 0.0
        %5981 = vmatpush1.msra.mxu0 0.0
        %5982 = vmatprep.subr.mxu0 0.0
        %5983 = vmatpush1.msra.mxu0 0.0
        %5984 = vmatprep.subr.mxu0 0.0
        %5985 = vmatpush1.msra.mxu0 0.0
        %5986 = vmatprep.subr.mxu0 0.0
        %5987 = vmatpush1.msra.mxu0 0.0
        %5988 = vmatprep.subr.mxu0 0.0
        %5989 = vmatpush1.msra.mxu0 0.0
        %5990 = vmatprep.subr.mxu0 0.0
        %5991 = vmatpush1.msra.mxu0 0.0
        %5992 = vmatprep.subr.mxu0 0.0
        %5993 = vmatpush1.msra.mxu0 0.0
        %5994 = vmatprep.subr.mxu0 0.0
        %5995 = vmatpush1.msra.mxu0 0.0
        %5996 = vmatprep.subr.mxu0 0.0
        %5997 = vmatpush1.msra.mxu0 0.0
        %5998 = vmatprep.subr.mxu0 0.0
        %5999 = vmatpush1.msra.mxu0 0.0
        %6000 = vmatprep.subr.mxu0 0.0
        %6001 = vmatpush1.msra.mxu0 0.0
        %6002 = vmatprep.subr.mxu0 0.0
        %6003 = vmatpush1.msra.mxu0 0.0
        %6004 = vmatprep.subr.mxu0 0.0
        %6005 = vmatpush1.msra.mxu0 %v5979
        %6006 = vmatprep.subr.mxu0 0.0
        %6007 = vmatpush1.msra.mxu0 %v5978
        %6008 = vmatprep.subr.mxu0 0.0
        %6009 = vmatpush1.msra.mxu0 %v5977
        %6010 = vmatprep.subr.mxu0 0.0
        %6011 = vmatpush1.msra.mxu0 %v5976
        %6012 = vmatprep.subr.mxu0 0.0
        %6013 = vmatpush2.msra.mxu0 0.0
        %6014 = vmatprep.subr.mxu0 0.0
        %6015 = vmatpush2.msra.mxu0 0.0
        %6016 = vmatprep.subr.mxu0 0.0
        %6017 = vmatpush2.msra.mxu0 0.0
        %6018 = vmatprep.subr.mxu0 0.0
        %6019 = vmatpush2.msra.mxu0 0.0
        %6020 = vmatprep.subr.mxu0 0.0
        %6021 = vmatpush2.msra.mxu0 0.0
        %6022 = vmatprep.subr.mxu0 0.0
        %6023 = vmatpush2.msra.mxu0 0.0
        %6024 = vmatprep.subr.mxu0 0.0
        %6025 = vmatpush2.msra.mxu0 0.0
        %6026 = vmatprep.subr.mxu0 0.0
        %6027 = vmatpush2.msra.mxu0 0.0
        %6028 = vmatprep.subr.mxu0 0.0
        %6029 = vmatpush2.msra.mxu0 0.0
        %6030 = vmatprep.subr.mxu0 0.0
        %6031 = vmatpush2.msra.mxu0 0.0
        %6032 = vmatprep.subr.mxu0 0.0
        %6033 = vmatpush2.msra.mxu0 0.0
        %6034 = vmatprep.subr.mxu0 0.0
        %6035 = vmatpush2.msra.mxu0 0.0
        %6036 = vmatprep.subr.mxu0 0.0
        %6037 = vmatpush2.msra.mxu0 0.0
        %6038 = vmatprep.subr.mxu0 0.0
        %6039 = vmatpush2.msra.mxu0 0.0
        %6040 = vmatprep.subr.mxu0 0.0
        %6041 = vmatpush2.msra.mxu0 0.0
        %6042 = vmatprep.subr.mxu0 0.0
        %6043 = vmatpush2.msra.mxu0 0.0
        %6044 = vmatprep.mubr.f32.mxu0 0.0
        %6045 = vmatmul.mubr.f32.gmra.mxu0 %v953
        %v6046 = vpop.f32.mrf.mxu0
        %v6047 = vadd.f32 %v935, %v6046
        %v6048 = vpop.f32.mrf.mxu0
        %6049 = vmatprep.mubr.f32.mxu0 0.0
        %6050 = vmatmul.mubr.f32.gmra.mxu0 %v956
        %v6051 = vpop.f32.mrf.mxu0
        %v6052 = vadd.f32 %v940, %v6051
        %v6053 = vpop.f32.mrf.mxu0
        %6054 = vmatprep.mubr.f32.mxu0 0.0
        %6055 = vmatmul.mubr.f32.gmra.mxu0 %v959
        %v6056 = vpop.f32.mrf.mxu0
        %v6057 = vadd.f32 %v945, %v6056
        %v6058 = vpop.f32.mrf.mxu0
        %6059 = vmatprep.mubr.f32.mxu0 0.0
        %6060 = vmatmul.mubr.f32.gmra.mxu0 %v962
        %v6061 = vpop.f32.mrf.mxu0
        %v6062 = vadd.f32 %v950, %v6061
        %v6063 = vpop.f32.mrf.mxu0
        %6064 = vdwg.mxu0
        %v6065 = vadd.f32 %v5789, %v6047
        %v6066 = vadd.f32 %v5794, %v6052
        %v6067 = vadd.f32 %v5799, %v6057
        %v6068 = vadd.f32 %v5804, %v6062
        %6069 = vmatprep.subr.mxu0 0.0
        %6070 = vmatpush1.msra.mxu0 0.0
        %6071 = vmatprep.subr.mxu0 0.0
        %6072 = vmatpush1.msra.mxu0 0.0
        %6073 = vmatprep.subr.mxu0 0.0
        %6074 = vmatpush1.msra.mxu0 0.0
        %6075 = vmatprep.subr.mxu0 0.0
        %6076 = vmatpush1.msra.mxu0 0.0
        %6077 = vmatprep.subr.mxu0 0.0
        %6078 = vmatpush1.msra.mxu0 0.0
        %6079 = vmatprep.subr.mxu0 0.0
        %6080 = vmatpush1.msra.mxu0 0.0
        %6081 = vmatprep.subr.mxu0 0.0
        %6082 = vmatpush1.msra.mxu0 0.0
        %6083 = vmatprep.subr.mxu0 0.0
        %6084 = vmatpush1.msra.mxu0 0.0
        %6085 = vmatprep.subr.mxu0 0.0
        %6086 = vmatpush1.msra.mxu0 0.0
        %6087 = vmatprep.subr.mxu0 0.0
        %6088 = vmatpush1.msra.mxu0 0.0
        %6089 = vmatprep.subr.mxu0 0.0
        %6090 = vmatpush1.msra.mxu0 0.0
        %6091 = vmatprep.subr.mxu0 0.0
        %6092 = vmatpush1.msra.mxu0 0.0
        %6093 = vmatprep.subr.mxu0 0.0
        %6094 = vmatpush1.msra.mxu0 %v6068
        %6095 = vmatprep.subr.mxu0 0.0
        %6096 = vmatpush1.msra.mxu0 %v6067
        %6097 = vmatprep.subr.mxu0 0.0
        %6098 = vmatpush1.msra.mxu0 %v6066
        %6099 = vmatprep.subr.mxu0 0.0
        %6100 = vmatpush1.msra.mxu0 %v6065
        %6101 = vmatprep.subr.mxu0 0.0
        %6102 = vmatpush2.msra.mxu0 0.0
        %6103 = vmatprep.subr.mxu0 0.0
        %6104 = vmatpush2.msra.mxu0 0.0
        %6105 = vmatprep.subr.mxu0 0.0
        %6106 = vmatpush2.msra.mxu0 0.0
        %6107 = vmatprep.subr.mxu0 0.0
        %6108 = vmatpush2.msra.mxu0 0.0
        %6109 = vmatprep.subr.mxu0 0.0
        %6110 = vmatpush2.msra.mxu0 0.0
        %6111 = vmatprep.subr.mxu0 0.0
        %6112 = vmatpush2.msra.mxu0 0.0
        %6113 = vmatprep.subr.mxu0 0.0
        %6114 = vmatpush2.msra.mxu0 0.0
        %6115 = vmatprep.subr.mxu0 0.0
        %6116 = vmatpush2.msra.mxu0 0.0
        %6117 = vmatprep.subr.mxu0 0.0
        %6118 = vmatpush2.msra.mxu0 0.0
        %6119 = vmatprep.subr.mxu0 0.0
        %6120 = vmatpush2.msra.mxu0 0.0
        %6121 = vmatprep.subr.mxu0 0.0
        %6122 = vmatpush2.msra.mxu0 0.0
        %6123 = vmatprep.subr.mxu0 0.0
        %6124 = vmatpush2.msra.mxu0 0.0
        %6125 = vmatprep.subr.mxu0 0.0
        %6126 = vmatpush2.msra.mxu0 0.0
        %6127 = vmatprep.subr.mxu0 0.0
        %6128 = vmatpush2.msra.mxu0 0.0
        %6129 = vmatprep.subr.mxu0 0.0
        %6130 = vmatpush2.msra.mxu0 0.0
        %6131 = vmatprep.subr.mxu0 0.0
        %6132 = vmatpush2.msra.mxu0 0.0
        %6133 = vmatprep.mubr.f32.mxu0 0.0
        %6134 = vmatmul.mubr.f32.gmra.mxu0 %v1063
        %v6135 = vpop.f32.mrf.mxu0
        %v6136 = vadd.f32 %v1061, %v6135
        %v6137 = vpop.f32.mrf.mxu0
        %6138 = vdwg.mxu0
        %v6139 = vadd.f32 %v6136, 1.0
        %v6140 = vmul.f32 %v5688, %v6139
        %v6141 = vadd.f32 %v5585, %v6140
        %6142 = vset.pattern.permute.xlu0 10
        %6143 = vperm.xlu0 %6142, %v480
        %v6144 = vpop.permute.xlu0 %6143
        %v6146 = vsub.f32 %v479, %v6144
        %s6147 = scalar_lea.vmem %s470, 40
        %v6148 = vld [vmem:[%s6147] sm:$0x7]
        %v6150 = vsel %vm507, %v6148, 0
        %v6153 = vsel %vm511, %v6146, 0
        %6155 = vmatprep.subr.mxu0 0.0
        %6156 = vmatpush1.msra.mxu0 0.0
        %6157 = vmatprep.subr.mxu0 0.0
        %6158 = vmatpush1.msra.mxu0 0.0
        %6159 = vmatprep.subr.mxu0 0.0
        %6160 = vmatpush1.msra.mxu0 0.0
        %6161 = vmatprep.subr.mxu0 0.0
        %6162 = vmatpush1.msra.mxu0 0.0
        %6163 = vmatprep.subr.mxu0 0.0
        %6164 = vmatpush1.msra.mxu0 0.0
        %6165 = vmatprep.subr.mxu0 0.0
        %6166 = vmatpush1.msra.mxu0 0.0
        %6167 = vmatprep.subr.mxu0 0.0
        %6168 = vmatpush1.msra.mxu0 0.0
        %6169 = vmatprep.subr.mxu0 0.0
        %6170 = vmatpush1.msra.mxu0 0.0
        %6171 = vmatprep.subr.mxu0 0.0
        %6172 = vmatpush1.msra.mxu0 0.0
        %6173 = vmatprep.subr.mxu0 0.0
        %6174 = vmatpush1.msra.mxu0 0.0
        %6175 = vmatprep.subr.mxu0 0.0
        %6176 = vmatpush1.msra.mxu0 0.0
        %6177 = vmatprep.subr.mxu0 0.0
        %6178 = vmatpush1.msra.mxu0 0.0
        %6179 = vmatprep.subr.mxu0 0.0
        %6180 = vmatpush1.msra.mxu0 0.0
        %6181 = vmatprep.subr.mxu0 0.0
        %6182 = vmatpush1.msra.mxu0 0.0
        %6183 = vmatprep.subr.mxu0 0.0
        %6184 = vmatpush1.msra.mxu0 0.0
        %6185 = vmatprep.subr.mxu0 0.0
        %6186 = vmatpush1.msra.mxu0 %v6153
        %6187 = vmatprep.subr.mxu0 0.0
        %6188 = vmatpush2.msra.mxu0 0.0
        %6189 = vmatprep.subr.mxu0 0.0
        %6190 = vmatpush2.msra.mxu0 0.0
        %6191 = vmatprep.subr.mxu0 0.0
        %6192 = vmatpush2.msra.mxu0 0.0
        %6193 = vmatprep.subr.mxu0 0.0
        %6194 = vmatpush2.msra.mxu0 0.0
        %6195 = vmatprep.subr.mxu0 0.0
        %6196 = vmatpush2.msra.mxu0 0.0
        %6197 = vmatprep.subr.mxu0 0.0
        %6198 = vmatpush2.msra.mxu0 0.0
        %6199 = vmatprep.subr.mxu0 0.0
        %6200 = vmatpush2.msra.mxu0 0.0
        %6201 = vmatprep.subr.mxu0 0.0
        %6202 = vmatpush2.msra.mxu0 0.0
        %6203 = vmatprep.subr.mxu0 0.0
        %6204 = vmatpush2.msra.mxu0 0.0
        %6205 = vmatprep.subr.mxu0 0.0
        %6206 = vmatpush2.msra.mxu0 0.0
        %6207 = vmatprep.subr.mxu0 0.0
        %6208 = vmatpush2.msra.mxu0 0.0
        %6209 = vmatprep.subr.mxu0 0.0
        %6210 = vmatpush2.msra.mxu0 0.0
        %6211 = vmatprep.subr.mxu0 0.0
        %6212 = vmatpush2.msra.mxu0 0.0
        %6213 = vmatprep.subr.mxu0 0.0
        %6214 = vmatpush2.msra.mxu0 0.0
        %6215 = vmatprep.subr.mxu0 0.0
        %6216 = vmatpush2.msra.mxu0 0.0
        %6217 = vmatprep.subr.mxu0 0.0
        %6218 = vmatpush2.msra.mxu0 0.0
        %6219 = vmatprep.mubr.f32.mxu0 0.0
        %6220 = vmatmul.mubr.f32.gmra.mxu0 %v6150
        %v6221 = vpop.f32.mrf.mxu0
        %v6222 = vadd.f32 0.0, %v6221
        %v6223 = vpop.f32.mrf.mxu0
        %6224 = vdwg.mxu0
        %v6225 = vmul.f32 %v6222, %v6146
        %v6227 = vrot.slane %v6225, 1
        %v6229 = vadd.f32 %v6225, %v6227
        %v6230 = vrot.slane %v6225, 2
        %v6232 = vadd.f32 %v6229, %v6230
        %v6233 = vmul.f32 %v6232, -0.5
        %v6234 = vmul.f32 %v6233, 1.442695
        %v6235 = vpow.pop %v6234
        %6236 = vset.pattern.permute.xlu0 10
        %6237 = vperm.xlu0 %6236, %v481
        %v6238 = vpop.permute.xlu0 %6237
        %v6240 = vlaneseq
        %v6241 = vshrl.u32 %v6240, 7
        %v6242 = vsub.s32 0, %v6241
        %v6243 = vrot.slane %v6238, %v6242
        %v6244 = vmul.f32 %v6243, %v6235
        %s6245 = scalar_lea.vmem %s478, 320
        %v6246 = vld [vmem:[%s6245] sm:$0xff]
        %v6247 = vld [vmem:[%s6245 + $0x8] sm:$0xff]
        %v6248 = vld [vmem:[%s6245 + $0x10] sm:$0xff]
        %v6249 = vld [vmem:[%s6245 + $0x18] sm:$0xff]
        %6251 = vset.pattern.permute.xlu0 3
        %6252 = vperm.xlu0 %6251, %v6246
        %v6253 = vpop.permute.xlu0 %6252
        %6256 = vset.pattern.permute.xlu0 3
        %6257 = vperm.xlu0 %6256, %v6247
        %v6258 = vpop.permute.xlu0 %6257
        %6261 = vset.pattern.permute.xlu0 3
        %6262 = vperm.xlu0 %6261, %v6248
        %v6263 = vpop.permute.xlu0 %6262
        %6266 = vset.pattern.permute.xlu0 3
        %6267 = vperm.xlu0 %6266, %v6249
        %v6268 = vpop.permute.xlu0 %6267
        %v6270 = vsel %vm507, %v6246, 0
        %v6272 = vsel %vm507, %v6247, 0
        %v6274 = vsel %vm507, %v6248, 0
        %v6276 = vsel %vm507, %v6249, 0
        %6278 = vmatprep.subr.mxu0 0.0
        %6279 = vmatpush1.msra.mxu0 0.0
        %6280 = vmatprep.subr.mxu0 0.0
        %6281 = vmatpush1.msra.mxu0 0.0
        %6282 = vmatprep.subr.mxu0 0.0
        %6283 = vmatpush1.msra.mxu0 0.0
        %6284 = vmatprep.subr.mxu0 0.0
        %6285 = vmatpush1.msra.mxu0 0.0
        %6286 = vmatprep.subr.mxu0 0.0
        %6287 = vmatpush1.msra.mxu0 0.0
        %6288 = vmatprep.subr.mxu0 0.0
        %6289 = vmatpush1.msra.mxu0 0.0
        %6290 = vmatprep.subr.mxu0 0.0
        %6291 = vmatpush1.msra.mxu0 0.0
        %6292 = vmatprep.subr.mxu0 0.0
        %6293 = vmatpush1.msra.mxu0 0.0
        %6294 = vmatprep.subr.mxu0 0.0
        %6295 = vmatpush1.msra.mxu0 0.0
        %6296 = vmatprep.subr.mxu0 0.0
        %6297 = vmatpush1.msra.mxu0 0.0
        %6298 = vmatprep.subr.mxu0 0.0
        %6299 = vmatpush1.msra.mxu0 0.0
        %6300 = vmatprep.subr.mxu0 0.0
        %6301 = vmatpush1.msra.mxu0 0.0
        %6302 = vmatprep.subr.mxu0 0.0
        %6303 = vmatpush1.msra.mxu0 0.0
        %6304 = vmatprep.subr.mxu0 0.0
        %6305 = vmatpush1.msra.mxu0 0.0
        %6306 = vmatprep.subr.mxu0 0.0
        %6307 = vmatpush1.msra.mxu0 0.0
        %6308 = vmatprep.subr.mxu0 0.0
        %6309 = vmatpush1.msra.mxu0 %v639
        %6310 = vmatprep.subr.mxu0 0.0
        %6311 = vmatpush2.msra.mxu0 0.0
        %6312 = vmatprep.subr.mxu0 0.0
        %6313 = vmatpush2.msra.mxu0 0.0
        %6314 = vmatprep.subr.mxu0 0.0
        %6315 = vmatpush2.msra.mxu0 0.0
        %6316 = vmatprep.subr.mxu0 0.0
        %6317 = vmatpush2.msra.mxu0 0.0
        %6318 = vmatprep.subr.mxu0 0.0
        %6319 = vmatpush2.msra.mxu0 0.0
        %6320 = vmatprep.subr.mxu0 0.0
        %6321 = vmatpush2.msra.mxu0 0.0
        %6322 = vmatprep.subr.mxu0 0.0
        %6323 = vmatpush2.msra.mxu0 0.0
        %6324 = vmatprep.subr.mxu0 0.0
        %6325 = vmatpush2.msra.mxu0 0.0
        %6326 = vmatprep.subr.mxu0 0.0
        %6327 = vmatpush2.msra.mxu0 0.0
        %6328 = vmatprep.subr.mxu0 0.0
        %6329 = vmatpush2.msra.mxu0 0.0
        %6330 = vmatprep.subr.mxu0 0.0
        %6331 = vmatpush2.msra.mxu0 0.0
        %6332 = vmatprep.subr.mxu0 0.0
        %6333 = vmatpush2.msra.mxu0 0.0
        %6334 = vmatprep.subr.mxu0 0.0
        %6335 = vmatpush2.msra.mxu0 0.0
        %6336 = vmatprep.subr.mxu0 0.0
        %6337 = vmatpush2.msra.mxu0 0.0
        %6338 = vmatprep.subr.mxu0 0.0
        %6339 = vmatpush2.msra.mxu0 0.0
        %6340 = vmatprep.subr.mxu0 0.0
        %6341 = vmatpush2.msra.mxu0 0.0
        %6342 = vmatprep.mubr.f32.mxu0 0.0
        %6343 = vmatmul.mubr.f32.gmra.mxu0 %v6270
        %v6344 = vpop.f32.mrf.mxu0
        %v6345 = vadd.f32 %v6253, %v6344
        %v6346 = vpop.f32.mrf.mxu0
        %6347 = vmatprep.mubr.f32.mxu0 0.0
        %6348 = vmatmul.mubr.f32.gmra.mxu0 %v6272
        %v6349 = vpop.f32.mrf.mxu0
        %v6350 = vadd.f32 %v6258, %v6349
        %v6351 = vpop.f32.mrf.mxu0
        %6352 = vmatprep.mubr.f32.mxu0 0.0
        %6353 = vmatmul.mubr.f32.gmra.mxu0 %v6274
        %v6354 = vpop.f32.mrf.mxu0
        %v6355 = vadd.f32 %v6263, %v6354
        %v6356 = vpop.f32.mrf.mxu0
        %6357 = vmatprep.mubr.f32.mxu0 0.0
        %6358 = vmatmul.mubr.f32.gmra.mxu0 %v6276
        %v6359 = vpop.f32.mrf.mxu0
        %v6360 = vadd.f32 %v6268, %v6359
        %v6361 = vpop.f32.mrf.mxu0
        %6362 = vdwg.mxu0
        %6363 = vset.pattern.permute.xlu0 4
        %6364 = vperm.xlu0 %6363, %v6246
        %v6365 = vpop.permute.xlu0 %6364
        %6367 = vset.pattern.permute.xlu0 4
        %6368 = vperm.xlu0 %6367, %v6247
        %v6369 = vpop.permute.xlu0 %6368
        %6371 = vset.pattern.permute.xlu0 4
        %6372 = vperm.xlu0 %6371, %v6248
        %v6373 = vpop.permute.xlu0 %6372
        %6375 = vset.pattern.permute.xlu0 4
        %6376 = vperm.xlu0 %6375, %v6249
        %v6377 = vpop.permute.xlu0 %6376
        %v6379 = vmul.f32 %v6365, %v6345
        %v6380 = vmul.f32 %v6369, %v6350
        %v6381 = vmul.f32 %v6373, %v6355
        %v6382 = vmul.f32 %v6377, %v6360
        %6383 = vset.pattern.permute.xlu0 5
        %6384 = vperm.xlu0 %6383, %v6246
        %v6385 = vpop.permute.xlu0 %6384
        %6387 = vset.pattern.permute.xlu0 5
        %6388 = vperm.xlu0 %6387, %v6247
        %v6389 = vpop.permute.xlu0 %6388
        %6391 = vset.pattern.permute.xlu0 5
        %6392 = vperm.xlu0 %6391, %v6248
        %v6393 = vpop.permute.xlu0 %6392
        %6395 = vset.pattern.permute.xlu0 5
        %6396 = vperm.xlu0 %6395, %v6249
        %v6397 = vpop.permute.xlu0 %6396
        %v6399 = vadd.f32 %v6379, %v6385
        %v6400 = vadd.f32 %v6380, %v6389
        %v6401 = vadd.f32 %v6381, %v6393
        %v6402 = vadd.f32 %v6382, %v6397
        %v6403 = vmax.f32 %v6399, 0.0
        %v6404 = vmax.f32 %v6400, 0.0
        %v6405 = vmax.f32 %v6401, 0.0
        %v6406 = vmax.f32 %v6402, 0.0
        %6407 = vmatprep.subr.mxu0 0.0
        %6408 = vmatpush1.msra.mxu0 0.0
        %6409 = vmatprep.subr.mxu0 0.0
        %6410 = vmatpush1.msra.mxu0 0.0
        %6411 = vmatprep.subr.mxu0 0.0
        %6412 = vmatpush1.msra.mxu0 0.0
        %6413 = vmatprep.subr.mxu0 0.0
        %6414 = vmatpush1.msra.mxu0 0.0
        %6415 = vmatprep.subr.mxu0 0.0
        %6416 = vmatpush1.msra.mxu0 0.0
        %6417 = vmatprep.subr.mxu0 0.0
        %6418 = vmatpush1.msra.mxu0 0.0
        %6419 = vmatprep.subr.mxu0 0.0
        %6420 = vmatpush1.msra.mxu0 0.0
        %6421 = vmatprep.subr.mxu0 0.0
        %6422 = vmatpush1.msra.mxu0 0.0
        %6423 = vmatprep.subr.mxu0 0.0
        %6424 = vmatpush1.msra.mxu0 0.0
        %6425 = vmatprep.subr.mxu0 0.0
        %6426 = vmatpush1.msra.mxu0 0.0
        %6427 = vmatprep.subr.mxu0 0.0
        %6428 = vmatpush1.msra.mxu0 0.0
        %6429 = vmatprep.subr.mxu0 0.0
        %6430 = vmatpush1.msra.mxu0 0.0
        %6431 = vmatprep.subr.mxu0 0.0
        %6432 = vmatpush1.msra.mxu0 %v6406
        %6433 = vmatprep.subr.mxu0 0.0
        %6434 = vmatpush1.msra.mxu0 %v6405
        %6435 = vmatprep.subr.mxu0 0.0
        %6436 = vmatpush1.msra.mxu0 %v6404
        %6437 = vmatprep.subr.mxu0 0.0
        %6438 = vmatpush1.msra.mxu0 %v6403
        %6439 = vmatprep.subr.mxu0 0.0
        %6440 = vmatpush2.msra.mxu0 0.0
        %6441 = vmatprep.subr.mxu0 0.0
        %6442 = vmatpush2.msra.mxu0 0.0
        %6443 = vmatprep.subr.mxu0 0.0
        %6444 = vmatpush2.msra.mxu0 0.0
        %6445 = vmatprep.subr.mxu0 0.0
        %6446 = vmatpush2.msra.mxu0 0.0
        %6447 = vmatprep.subr.mxu0 0.0
        %6448 = vmatpush2.msra.mxu0 0.0
        %6449 = vmatprep.subr.mxu0 0.0
        %6450 = vmatpush2.msra.mxu0 0.0
        %6451 = vmatprep.subr.mxu0 0.0
        %6452 = vmatpush2.msra.mxu0 0.0
        %6453 = vmatprep.subr.mxu0 0.0
        %6454 = vmatpush2.msra.mxu0 0.0
        %6455 = vmatprep.subr.mxu0 0.0
        %6456 = vmatpush2.msra.mxu0 0.0
        %6457 = vmatprep.subr.mxu0 0.0
        %6458 = vmatpush2.msra.mxu0 0.0
        %6459 = vmatprep.subr.mxu0 0.0
        %6460 = vmatpush2.msra.mxu0 0.0
        %6461 = vmatprep.subr.mxu0 0.0
        %6462 = vmatpush2.msra.mxu0 0.0
        %6463 = vmatprep.subr.mxu0 0.0
        %6464 = vmatpush2.msra.mxu0 0.0
        %6465 = vmatprep.subr.mxu0 0.0
        %6466 = vmatpush2.msra.mxu0 0.0
        %6467 = vmatprep.subr.mxu0 0.0
        %6468 = vmatpush2.msra.mxu0 0.0
        %6469 = vmatprep.subr.mxu0 0.0
        %6470 = vmatpush2.msra.mxu0 0.0
        %6471 = vmatprep.mubr.f32.mxu0 0.0
        %6472 = vmatmul.mubr.f32.gmra.mxu0 %v792
        %v6473 = vpop.f32.mrf.mxu0
        %v6474 = vadd.f32 %v773, %v6473
        %v6475 = vpop.f32.mrf.mxu0
        %6476 = vmatprep.mubr.f32.mxu0 0.0
        %6477 = vmatmul.mubr.f32.gmra.mxu0 %v795
        %v6478 = vpop.f32.mrf.mxu0
        %v6479 = vadd.f32 %v778, %v6478
        %v6480 = vpop.f32.mrf.mxu0
        %6481 = vmatprep.mubr.f32.mxu0 0.0
        %6482 = vmatmul.mubr.f32.gmra.mxu0 %v798
        %v6483 = vpop.f32.mrf.mxu0
        %v6484 = vadd.f32 %v783, %v6483
        %v6485 = vpop.f32.mrf.mxu0
        %6486 = vmatprep.mubr.f32.mxu0 0.0
        %6487 = vmatmul.mubr.f32.gmra.mxu0 %v801
        %v6488 = vpop.f32.mrf.mxu0
        %v6489 = vadd.f32 %v788, %v6488
        %v6490 = vpop.f32.mrf.mxu0
        %6491 = vdwg.mxu0
        %6492 = vset.pattern.permute.xlu0 6
        %6493 = vperm.xlu0 %6492, %v6246
        %v6494 = vpop.permute.xlu0 %6493
        %6496 = vset.pattern.permute.xlu0 6
        %6497 = vperm.xlu0 %6496, %v6247
        %v6498 = vpop.permute.xlu0 %6497
        %6500 = vset.pattern.permute.xlu0 6
        %6501 = vperm.xlu0 %6500, %v6248
        %v6502 = vpop.permute.xlu0 %6501
        %6504 = vset.pattern.permute.xlu0 6
        %6505 = vperm.xlu0 %6504, %v6249
        %v6506 = vpop.permute.xlu0 %6505
        %v6508 = vmul.f32 %v6494, %v6474
        %v6509 = vmul.f32 %v6498, %v6479
        %v6510 = vmul.f32 %v6502, %v6484
        %v6511 = vmul.f32 %v6506, %v6489
        %6512 = vset.pattern.permute.xlu0 7
        %6513 = vperm.xlu0 %6512, %v6246
        %v6514 = vpop.permute.xlu0 %6513
        %6516 = vset.pattern.permute.xlu0 7
        %6517 = vperm.xlu0 %6516, %v6247
        %v6518 = vpop.permute.xlu0 %6517
        %6520 = vset.pattern.permute.xlu0 7
        %6521 = vperm.xlu0 %6520, %v6248
        %v6522 = vpop.permute.xlu0 %6521
        %6524 = vset.pattern.permute.xlu0 7
        %6525 = vperm.xlu0 %6524, %v6249
        %v6526 = vpop.permute.xlu0 %6525
        %v6528 = vadd.f32 %v6508, %v6514
        %v6529 = vadd.f32 %v6509, %v6518
        %v6530 = vadd.f32 %v6510, %v6522
        %v6531 = vadd.f32 %v6511, %v6526
        %v6532 = vmax.f32 %v6528, 0.0
        %v6533 = vmax.f32 %v6529, 0.0
        %v6534 = vmax.f32 %v6530, 0.0
        %v6535 = vmax.f32 %v6531, 0.0
        %6536 = vmatprep.subr.mxu0 0.0
        %6537 = vmatpush1.msra.mxu0 0.0
        %6538 = vmatprep.subr.mxu0 0.0
        %6539 = vmatpush1.msra.mxu0 0.0
        %6540 = vmatprep.subr.mxu0 0.0
        %6541 = vmatpush1.msra.mxu0 0.0
        %6542 = vmatprep.subr.mxu0 0.0
        %6543 = vmatpush1.msra.mxu0 0.0
        %6544 = vmatprep.subr.mxu0 0.0
        %6545 = vmatpush1.msra.mxu0 0.0
        %6546 = vmatprep.subr.mxu0 0.0
        %6547 = vmatpush1.msra.mxu0 0.0
        %6548 = vmatprep.subr.mxu0 0.0
        %6549 = vmatpush1.msra.mxu0 0.0
        %6550 = vmatprep.subr.mxu0 0.0
        %6551 = vmatpush1.msra.mxu0 0.0
        %6552 = vmatprep.subr.mxu0 0.0
        %6553 = vmatpush1.msra.mxu0 0.0
        %6554 = vmatprep.subr.mxu0 0.0
        %6555 = vmatpush1.msra.mxu0 0.0
        %6556 = vmatprep.subr.mxu0 0.0
        %6557 = vmatpush1.msra.mxu0 0.0
        %6558 = vmatprep.subr.mxu0 0.0
        %6559 = vmatpush1.msra.mxu0 0.0
        %6560 = vmatprep.subr.mxu0 0.0
        %6561 = vmatpush1.msra.mxu0 %v6535
        %6562 = vmatprep.subr.mxu0 0.0
        %6563 = vmatpush1.msra.mxu0 %v6534
        %6564 = vmatprep.subr.mxu0 0.0
        %6565 = vmatpush1.msra.mxu0 %v6533
        %6566 = vmatprep.subr.mxu0 0.0
        %6567 = vmatpush1.msra.mxu0 %v6532
        %6568 = vmatprep.subr.mxu0 0.0
        %6569 = vmatpush2.msra.mxu0 0.0
        %6570 = vmatprep.subr.mxu0 0.0
        %6571 = vmatpush2.msra.mxu0 0.0
        %6572 = vmatprep.subr.mxu0 0.0
        %6573 = vmatpush2.msra.mxu0 0.0
        %6574 = vmatprep.subr.mxu0 0.0
        %6575 = vmatpush2.msra.mxu0 0.0
        %6576 = vmatprep.subr.mxu0 0.0
        %6577 = vmatpush2.msra.mxu0 0.0
        %6578 = vmatprep.subr.mxu0 0.0
        %6579 = vmatpush2.msra.mxu0 0.0
        %6580 = vmatprep.subr.mxu0 0.0
        %6581 = vmatpush2.msra.mxu0 0.0
        %6582 = vmatprep.subr.mxu0 0.0
        %6583 = vmatpush2.msra.mxu0 0.0
        %6584 = vmatprep.subr.mxu0 0.0
        %6585 = vmatpush2.msra.mxu0 0.0
        %6586 = vmatprep.subr.mxu0 0.0
        %6587 = vmatpush2.msra.mxu0 0.0
        %6588 = vmatprep.subr.mxu0 0.0
        %6589 = vmatpush2.msra.mxu0 0.0
        %6590 = vmatprep.subr.mxu0 0.0
        %6591 = vmatpush2.msra.mxu0 0.0
        %6592 = vmatprep.subr.mxu0 0.0
        %6593 = vmatpush2.msra.mxu0 0.0
        %6594 = vmatprep.subr.mxu0 0.0
        %6595 = vmatpush2.msra.mxu0 0.0
        %6596 = vmatprep.subr.mxu0 0.0
        %6597 = vmatpush2.msra.mxu0 0.0
        %6598 = vmatprep.subr.mxu0 0.0
        %6599 = vmatpush2.msra.mxu0 0.0
        %6600 = vmatprep.mubr.f32.mxu0 0.0
        %6601 = vmatmul.mubr.f32.gmra.mxu0 %v953
        %v6602 = vpop.f32.mrf.mxu0
        %v6603 = vadd.f32 %v935, %v6602
        %v6604 = vpop.f32.mrf.mxu0
        %6605 = vmatprep.mubr.f32.mxu0 0.0
        %6606 = vmatmul.mubr.f32.gmra.mxu0 %v956
        %v6607 = vpop.f32.mrf.mxu0
        %v6608 = vadd.f32 %v940, %v6607
        %v6609 = vpop.f32.mrf.mxu0
        %6610 = vmatprep.mubr.f32.mxu0 0.0
        %6611 = vmatmul.mubr.f32.gmra.mxu0 %v959
        %v6612 = vpop.f32.mrf.mxu0
        %v6613 = vadd.f32 %v945, %v6612
        %v6614 = vpop.f32.mrf.mxu0
        %6615 = vmatprep.mubr.f32.mxu0 0.0
        %6616 = vmatmul.mubr.f32.gmra.mxu0 %v962
        %v6617 = vpop.f32.mrf.mxu0
        %v6618 = vadd.f32 %v950, %v6617
        %v6619 = vpop.f32.mrf.mxu0
        %6620 = vdwg.mxu0
        %v6621 = vadd.f32 %v6345, %v6603
        %v6622 = vadd.f32 %v6350, %v6608
        %v6623 = vadd.f32 %v6355, %v6613
        %v6624 = vadd.f32 %v6360, %v6618
        %6625 = vmatprep.subr.mxu0 0.0
        %6626 = vmatpush1.msra.mxu0 0.0
        %6627 = vmatprep.subr.mxu0 0.0
        %6628 = vmatpush1.msra.mxu0 0.0
        %6629 = vmatprep.subr.mxu0 0.0
        %6630 = vmatpush1.msra.mxu0 0.0
        %6631 = vmatprep.subr.mxu0 0.0
        %6632 = vmatpush1.msra.mxu0 0.0
        %6633 = vmatprep.subr.mxu0 0.0
        %6634 = vmatpush1.msra.mxu0 0.0
        %6635 = vmatprep.subr.mxu0 0.0
        %6636 = vmatpush1.msra.mxu0 0.0
        %6637 = vmatprep.subr.mxu0 0.0
        %6638 = vmatpush1.msra.mxu0 0.0
        %6639 = vmatprep.subr.mxu0 0.0
        %6640 = vmatpush1.msra.mxu0 0.0
        %6641 = vmatprep.subr.mxu0 0.0
        %6642 = vmatpush1.msra.mxu0 0.0
        %6643 = vmatprep.subr.mxu0 0.0
        %6644 = vmatpush1.msra.mxu0 0.0
        %6645 = vmatprep.subr.mxu0 0.0
        %6646 = vmatpush1.msra.mxu0 0.0
        %6647 = vmatprep.subr.mxu0 0.0
        %6648 = vmatpush1.msra.mxu0 0.0
        %6649 = vmatprep.subr.mxu0 0.0
        %6650 = vmatpush1.msra.mxu0 %v6624
        %6651 = vmatprep.subr.mxu0 0.0
        %6652 = vmatpush1.msra.mxu0 %v6623
        %6653 = vmatprep.subr.mxu0 0.0
        %6654 = vmatpush1.msra.mxu0 %v6622
        %6655 = vmatprep.subr.mxu0 0.0
        %6656 = vmatpush1.msra.mxu0 %v6621
        %6657 = vmatprep.subr.mxu0 0.0
        %6658 = vmatpush2.msra.mxu0 0.0
        %6659 = vmatprep.subr.mxu0 0.0
        %6660 = vmatpush2.msra.mxu0 0.0
        %6661 = vmatprep.subr.mxu0 0.0
        %6662 = vmatpush2.msra.mxu0 0.0
        %6663 = vmatprep.subr.mxu0 0.0
        %6664 = vmatpush2.msra.mxu0 0.0
        %6665 = vmatprep.subr.mxu0 0.0
        %6666 = vmatpush2.msra.mxu0 0.0
        %6667 = vmatprep.subr.mxu0 0.0
        %6668 = vmatpush2.msra.mxu0 0.0
        %6669 = vmatprep.subr.mxu0 0.0
        %6670 = vmatpush2.msra.mxu0 0.0
        %6671 = vmatprep.subr.mxu0 0.0
        %6672 = vmatpush2.msra.mxu0 0.0
        %6673 = vmatprep.subr.mxu0 0.0
        %6674 = vmatpush2.msra.mxu0 0.0
        %6675 = vmatprep.subr.mxu0 0.0
        %6676 = vmatpush2.msra.mxu0 0.0
        %6677 = vmatprep.subr.mxu0 0.0
        %6678 = vmatpush2.msra.mxu0 0.0
        %6679 = vmatprep.subr.mxu0 0.0
        %6680 = vmatpush2.msra.mxu0 0.0
        %6681 = vmatprep.subr.mxu0 0.0
        %6682 = vmatpush2.msra.mxu0 0.0
        %6683 = vmatprep.subr.mxu0 0.0
        %6684 = vmatpush2.msra.mxu0 0.0
        %6685 = vmatprep.subr.mxu0 0.0
        %6686 = vmatpush2.msra.mxu0 0.0
        %6687 = vmatprep.subr.mxu0 0.0
        %6688 = vmatpush2.msra.mxu0 0.0
        %6689 = vmatprep.mubr.f32.mxu0 0.0
        %6690 = vmatmul.mubr.f32.gmra.mxu0 %v1063
        %v6691 = vpop.f32.mrf.mxu0
        %v6692 = vadd.f32 %v1061, %v6691
        %v6693 = vpop.f32.mrf.mxu0
        %6694 = vdwg.mxu0
        %v6695 = vadd.f32 %v6692, 1.0
        %v6696 = vmul.f32 %v6244, %v6695
        %v6697 = vadd.f32 %v6141, %v6696
        %6698 = vset.pattern.permute.xlu0 11
        %6699 = vperm.xlu0 %6698, %v480
        %v6700 = vpop.permute.xlu0 %6699
        %v6702 = vsub.f32 %v479, %v6700
        %s6703 = scalar_lea.vmem %s470, 44
        %v6704 = vld [vmem:[%s6703] sm:$0x7]
        %v6706 = vsel %vm507, %v6704, 0
        %v6709 = vsel %vm511, %v6702, 0
        %6711 = vmatprep.subr.mxu0 0.0
        %6712 = vmatpush1.msra.mxu0 0.0
        %6713 = vmatprep.subr.mxu0 0.0
        %6714 = vmatpush1.msra.mxu0 0.0
        %6715 = vmatprep.subr.mxu0 0.0
        %6716 = vmatpush1.msra.mxu0 0.0
        %6717 = vmatprep.subr.mxu0 0.0
        %6718 = vmatpush1.msra.mxu0 0.0
        %6719 = vmatprep.subr.mxu0 0.0
        %6720 = vmatpush1.msra.mxu0 0.0
        %6721 = vmatprep.subr.mxu0 0.0
        %6722 = vmatpush1.msra.mxu0 0.0
        %6723 = vmatprep.subr.mxu0 0.0
        %6724 = vmatpush1.msra.mxu0 0.0
        %6725 = vmatprep.subr.mxu0 0.0
        %6726 = vmatpush1.msra.mxu0 0.0
        %6727 = vmatprep.subr.mxu0 0.0
        %6728 = vmatpush1.msra.mxu0 0.0
        %6729 = vmatprep.subr.mxu0 0.0
        %6730 = vmatpush1.msra.mxu0 0.0
        %6731 = vmatprep.subr.mxu0 0.0
        %6732 = vmatpush1.msra.mxu0 0.0
        %6733 = vmatprep.subr.mxu0 0.0
        %6734 = vmatpush1.msra.mxu0 0.0
        %6735 = vmatprep.subr.mxu0 0.0
        %6736 = vmatpush1.msra.mxu0 0.0
        %6737 = vmatprep.subr.mxu0 0.0
        %6738 = vmatpush1.msra.mxu0 0.0
        %6739 = vmatprep.subr.mxu0 0.0
        %6740 = vmatpush1.msra.mxu0 0.0
        %6741 = vmatprep.subr.mxu0 0.0
        %6742 = vmatpush1.msra.mxu0 %v6709
        %6743 = vmatprep.subr.mxu0 0.0
        %6744 = vmatpush2.msra.mxu0 0.0
        %6745 = vmatprep.subr.mxu0 0.0
        %6746 = vmatpush2.msra.mxu0 0.0
        %6747 = vmatprep.subr.mxu0 0.0
        %6748 = vmatpush2.msra.mxu0 0.0
        %6749 = vmatprep.subr.mxu0 0.0
        %6750 = vmatpush2.msra.mxu0 0.0
        %6751 = vmatprep.subr.mxu0 0.0
        %6752 = vmatpush2.msra.mxu0 0.0
        %6753 = vmatprep.subr.mxu0 0.0
        %6754 = vmatpush2.msra.mxu0 0.0
        %6755 = vmatprep.subr.mxu0 0.0
        %6756 = vmatpush2.msra.mxu0 0.0
        %6757 = vmatprep.subr.mxu0 0.0
        %6758 = vmatpush2.msra.mxu0 0.0
        %6759 = vmatprep.subr.mxu0 0.0
        %6760 = vmatpush2.msra.mxu0 0.0
        %6761 = vmatprep.subr.mxu0 0.0
        %6762 = vmatpush2.msra.mxu0 0.0
        %6763 = vmatprep.subr.mxu0 0.0
        %6764 = vmatpush2.msra.mxu0 0.0
        %6765 = vmatprep.subr.mxu0 0.0
        %6766 = vmatpush2.msra.mxu0 0.0
        %6767 = vmatprep.subr.mxu0 0.0
        %6768 = vmatpush2.msra.mxu0 0.0
        %6769 = vmatprep.subr.mxu0 0.0
        %6770 = vmatpush2.msra.mxu0 0.0
        %6771 = vmatprep.subr.mxu0 0.0
        %6772 = vmatpush2.msra.mxu0 0.0
        %6773 = vmatprep.subr.mxu0 0.0
        %6774 = vmatpush2.msra.mxu0 0.0
        %6775 = vmatprep.mubr.f32.mxu0 0.0
        %6776 = vmatmul.mubr.f32.gmra.mxu0 %v6706
        %v6777 = vpop.f32.mrf.mxu0
        %v6778 = vadd.f32 0.0, %v6777
        %v6779 = vpop.f32.mrf.mxu0
        %6780 = vdwg.mxu0
        %v6781 = vmul.f32 %v6778, %v6702
        %v6783 = vrot.slane %v6781, 1
        %v6785 = vadd.f32 %v6781, %v6783
        %v6786 = vrot.slane %v6781, 2
        %v6788 = vadd.f32 %v6785, %v6786
        %v6789 = vmul.f32 %v6788, -0.5
        %v6790 = vmul.f32 %v6789, 1.442695
        %v6791 = vpow.pop %v6790
        %6792 = vset.pattern.permute.xlu0 11
        %6793 = vperm.xlu0 %6792, %v481
        %v6794 = vpop.permute.xlu0 %6793
        %v6796 = vlaneseq
        %v6797 = vshrl.u32 %v6796, 7
        %v6798 = vsub.s32 0, %v6797
        %v6799 = vrot.slane %v6794, %v6798
        %v6800 = vmul.f32 %v6799, %v6791
        %s6801 = scalar_lea.vmem %s478, 352
        %v6802 = vld [vmem:[%s6801] sm:$0xff]
        %v6803 = vld [vmem:[%s6801 + $0x8] sm:$0xff]
        %v6804 = vld [vmem:[%s6801 + $0x10] sm:$0xff]
        %v6805 = vld [vmem:[%s6801 + $0x18] sm:$0xff]
        %6807 = vset.pattern.permute.xlu0 3
        %6808 = vperm.xlu0 %6807, %v6802
        %v6809 = vpop.permute.xlu0 %6808
        %6812 = vset.pattern.permute.xlu0 3
        %6813 = vperm.xlu0 %6812, %v6803
        %v6814 = vpop.permute.xlu0 %6813
        %6817 = vset.pattern.permute.xlu0 3
        %6818 = vperm.xlu0 %6817, %v6804
        %v6819 = vpop.permute.xlu0 %6818
        %6822 = vset.pattern.permute.xlu0 3
        %6823 = vperm.xlu0 %6822, %v6805
        %v6824 = vpop.permute.xlu0 %6823
        %v6826 = vsel %vm507, %v6802, 0
        %v6828 = vsel %vm507, %v6803, 0
        %v6830 = vsel %vm507, %v6804, 0
        %v6832 = vsel %vm507, %v6805, 0
        %6834 = vmatprep.subr.mxu0 0.0
        %6835 = vmatpush1.msra.mxu0 0.0
        %6836 = vmatprep.subr.mxu0 0.0
        %6837 = vmatpush1.msra.mxu0 0.0
        %6838 = vmatprep.subr.mxu0 0.0
        %6839 = vmatpush1.msra.mxu0 0.0
        %6840 = vmatprep.subr.mxu0 0.0
        %6841 = vmatpush1.msra.mxu0 0.0
        %6842 = vmatprep.subr.mxu0 0.0
        %6843 = vmatpush1.msra.mxu0 0.0
        %6844 = vmatprep.subr.mxu0 0.0
        %6845 = vmatpush1.msra.mxu0 0.0
        %6846 = vmatprep.subr.mxu0 0.0
        %6847 = vmatpush1.msra.mxu0 0.0
        %6848 = vmatprep.subr.mxu0 0.0
        %6849 = vmatpush1.msra.mxu0 0.0
        %6850 = vmatprep.subr.mxu0 0.0
        %6851 = vmatpush1.msra.mxu0 0.0
        %6852 = vmatprep.subr.mxu0 0.0
        %6853 = vmatpush1.msra.mxu0 0.0
        %6854 = vmatprep.subr.mxu0 0.0
        %6855 = vmatpush1.msra.mxu0 0.0
        %6856 = vmatprep.subr.mxu0 0.0
        %6857 = vmatpush1.msra.mxu0 0.0
        %6858 = vmatprep.subr.mxu0 0.0
        %6859 = vmatpush1.msra.mxu0 0.0
        %6860 = vmatprep.subr.mxu0 0.0
        %6861 = vmatpush1.msra.mxu0 0.0
        %6862 = vmatprep.subr.mxu0 0.0
        %6863 = vmatpush1.msra.mxu0 0.0
        %6864 = vmatprep.subr.mxu0 0.0
        %6865 = vmatpush1.msra.mxu0 %v639
        %6866 = vmatprep.subr.mxu0 0.0
        %6867 = vmatpush2.msra.mxu0 0.0
        %6868 = vmatprep.subr.mxu0 0.0
        %6869 = vmatpush2.msra.mxu0 0.0
        %6870 = vmatprep.subr.mxu0 0.0
        %6871 = vmatpush2.msra.mxu0 0.0
        %6872 = vmatprep.subr.mxu0 0.0
        %6873 = vmatpush2.msra.mxu0 0.0
        %6874 = vmatprep.subr.mxu0 0.0
        %6875 = vmatpush2.msra.mxu0 0.0
        %6876 = vmatprep.subr.mxu0 0.0
        %6877 = vmatpush2.msra.mxu0 0.0
        %6878 = vmatprep.subr.mxu0 0.0
        %6879 = vmatpush2.msra.mxu0 0.0
        %6880 = vmatprep.subr.mxu0 0.0
        %6881 = vmatpush2.msra.mxu0 0.0
        %6882 = vmatprep.subr.mxu0 0.0
        %6883 = vmatpush2.msra.mxu0 0.0
        %6884 = vmatprep.subr.mxu0 0.0
        %6885 = vmatpush2.msra.mxu0 0.0
        %6886 = vmatprep.subr.mxu0 0.0
        %6887 = vmatpush2.msra.mxu0 0.0
        %6888 = vmatprep.subr.mxu0 0.0
        %6889 = vmatpush2.msra.mxu0 0.0
        %6890 = vmatprep.subr.mxu0 0.0
        %6891 = vmatpush2.msra.mxu0 0.0
        %6892 = vmatprep.subr.mxu0 0.0
        %6893 = vmatpush2.msra.mxu0 0.0
        %6894 = vmatprep.subr.mxu0 0.0
        %6895 = vmatpush2.msra.mxu0 0.0
        %6896 = vmatprep.subr.mxu0 0.0
        %6897 = vmatpush2.msra.mxu0 0.0
        %6898 = vmatprep.mubr.f32.mxu0 0.0
        %6899 = vmatmul.mubr.f32.gmra.mxu0 %v6826
        %v6900 = vpop.f32.mrf.mxu0
        %v6901 = vadd.f32 %v6809, %v6900
        %v6902 = vpop.f32.mrf.mxu0
        %6903 = vmatprep.mubr.f32.mxu0 0.0
        %6904 = vmatmul.mubr.f32.gmra.mxu0 %v6828
        %v6905 = vpop.f32.mrf.mxu0
        %v6906 = vadd.f32 %v6814, %v6905
        %v6907 = vpop.f32.mrf.mxu0
        %6908 = vmatprep.mubr.f32.mxu0 0.0
        %6909 = vmatmul.mubr.f32.gmra.mxu0 %v6830
        %v6910 = vpop.f32.mrf.mxu0
        %v6911 = vadd.f32 %v6819, %v6910
        %v6912 = vpop.f32.mrf.mxu0
        %6913 = vmatprep.mubr.f32.mxu0 0.0
        %6914 = vmatmul.mubr.f32.gmra.mxu0 %v6832
        %v6915 = vpop.f32.mrf.mxu0
        %v6916 = vadd.f32 %v6824, %v6915
        %v6917 = vpop.f32.mrf.mxu0
        %6918 = vdwg.mxu0
        %6919 = vset.pattern.permute.xlu0 4
        %6920 = vperm.xlu0 %6919, %v6802
        %v6921 = vpop.permute.xlu0 %6920
        %6923 = vset.pattern.permute.xlu0 4
        %6924 = vperm.xlu0 %6923, %v6803
        %v6925 = vpop.permute.xlu0 %6924
        %6927 = vset.pattern.permute.xlu0 4
        %6928 = vperm.xlu0 %6927, %v6804
        %v6929 = vpop.permute.xlu0 %6928
        %6931 = vset.pattern.permute.xlu0 4
        %6932 = vperm.xlu0 %6931, %v6805
        %v6933 = vpop.permute.xlu0 %6932
        %v6935 = vmul.f32 %v6921, %v6901
        %v6936 = vmul.f32 %v6925, %v6906
        %v6937 = vmul.f32 %v6929, %v6911
        %v6938 = vmul.f32 %v6933, %v6916
        %6939 = vset.pattern.permute.xlu0 5
        %6940 = vperm.xlu0 %6939, %v6802
        %v6941 = vpop.permute.xlu0 %6940
        %6943 = vset.pattern.permute.xlu0 5
        %6944 = vperm.xlu0 %6943, %v6803
        %v6945 = vpop.permute.xlu0 %6944
        %6947 = vset.pattern.permute.xlu0 5
        %6948 = vperm.xlu0 %6947, %v6804
        %v6949 = vpop.permute.xlu0 %6948
        %6951 = vset.pattern.permute.xlu0 5
        %6952 = vperm.xlu0 %6951, %v6805
        %v6953 = vpop.permute.xlu0 %6952
        %v6955 = vadd.f32 %v6935, %v6941
        %v6956 = vadd.f32 %v6936, %v6945
        %v6957 = vadd.f32 %v6937, %v6949
        %v6958 = vadd.f32 %v6938, %v6953
        %v6959 = vmax.f32 %v6955, 0.0
        %v6960 = vmax.f32 %v6956, 0.0
        %v6961 = vmax.f32 %v6957, 0.0
        %v6962 = vmax.f32 %v6958, 0.0
        %6963 = vmatprep.subr.mxu0 0.0
        %6964 = vmatpush1.msra.mxu0 0.0
        %6965 = vmatprep.subr.mxu0 0.0
        %6966 = vmatpush1.msra.mxu0 0.0
        %6967 = vmatprep.subr.mxu0 0.0
        %6968 = vmatpush1.msra.mxu0 0.0
        %6969 = vmatprep.subr.mxu0 0.0
        %6970 = vmatpush1.msra.mxu0 0.0
        %6971 = vmatprep.subr.mxu0 0.0
        %6972 = vmatpush1.msra.mxu0 0.0
        %6973 = vmatprep.subr.mxu0 0.0
        %6974 = vmatpush1.msra.mxu0 0.0
        %6975 = vmatprep.subr.mxu0 0.0
        %6976 = vmatpush1.msra.mxu0 0.0
        %6977 = vmatprep.subr.mxu0 0.0
        %6978 = vmatpush1.msra.mxu0 0.0
        %6979 = vmatprep.subr.mxu0 0.0
        %6980 = vmatpush1.msra.mxu0 0.0
        %6981 = vmatprep.subr.mxu0 0.0
        %6982 = vmatpush1.msra.mxu0 0.0
        %6983 = vmatprep.subr.mxu0 0.0
        %6984 = vmatpush1.msra.mxu0 0.0
        %6985 = vmatprep.subr.mxu0 0.0
        %6986 = vmatpush1.msra.mxu0 0.0
        %6987 = vmatprep.subr.mxu0 0.0
        %6988 = vmatpush1.msra.mxu0 %v6962
        %6989 = vmatprep.subr.mxu0 0.0
        %6990 = vmatpush1.msra.mxu0 %v6961
        %6991 = vmatprep.subr.mxu0 0.0
        %6992 = vmatpush1.msra.mxu0 %v6960
        %6993 = vmatprep.subr.mxu0 0.0
        %6994 = vmatpush1.msra.mxu0 %v6959
        %6995 = vmatprep.subr.mxu0 0.0
        %6996 = vmatpush2.msra.mxu0 0.0
        %6997 = vmatprep.subr.mxu0 0.0
        %6998 = vmatpush2.msra.mxu0 0.0
        %6999 = vmatprep.subr.mxu0 0.0
        %7000 = vmatpush2.msra.mxu0 0.0
        %7001 = vmatprep.subr.mxu0 0.0
        %7002 = vmatpush2.msra.mxu0 0.0
        %7003 = vmatprep.subr.mxu0 0.0
        %7004 = vmatpush2.msra.mxu0 0.0
        %7005 = vmatprep.subr.mxu0 0.0
        %7006 = vmatpush2.msra.mxu0 0.0
        %7007 = vmatprep.subr.mxu0 0.0
        %7008 = vmatpush2.msra.mxu0 0.0
        %7009 = vmatprep.subr.mxu0 0.0
        %7010 = vmatpush2.msra.mxu0 0.0
        %7011 = vmatprep.subr.mxu0 0.0
        %7012 = vmatpush2.msra.mxu0 0.0
        %7013 = vmatprep.subr.mxu0 0.0
        %7014 = vmatpush2.msra.mxu0 0.0
        %7015 = vmatprep.subr.mxu0 0.0
        %7016 = vmatpush2.msra.mxu0 0.0
        %7017 = vmatprep.subr.mxu0 0.0
        %7018 = vmatpush2.msra.mxu0 0.0
        %7019 = vmatprep.subr.mxu0 0.0
        %7020 = vmatpush2.msra.mxu0 0.0
        %7021 = vmatprep.subr.mxu0 0.0
        %7022 = vmatpush2.msra.mxu0 0.0
        %7023 = vmatprep.subr.mxu0 0.0
        %7024 = vmatpush2.msra.mxu0 0.0
        %7025 = vmatprep.subr.mxu0 0.0
        %7026 = vmatpush2.msra.mxu0 0.0
        %7027 = vmatprep.mubr.f32.mxu0 0.0
        %7028 = vmatmul.mubr.f32.gmra.mxu0 %v792
        %v7029 = vpop.f32.mrf.mxu0
        %v7030 = vadd.f32 %v773, %v7029
        %v7031 = vpop.f32.mrf.mxu0
        %7032 = vmatprep.mubr.f32.mxu0 0.0
        %7033 = vmatmul.mubr.f32.gmra.mxu0 %v795
        %v7034 = vpop.f32.mrf.mxu0
        %v7035 = vadd.f32 %v778, %v7034
        %v7036 = vpop.f32.mrf.mxu0
        %7037 = vmatprep.mubr.f32.mxu0 0.0
        %7038 = vmatmul.mubr.f32.gmra.mxu0 %v798
        %v7039 = vpop.f32.mrf.mxu0
        %v7040 = vadd.f32 %v783, %v7039
        %v7041 = vpop.f32.mrf.mxu0
        %7042 = vmatprep.mubr.f32.mxu0 0.0
        %7043 = vmatmul.mubr.f32.gmra.mxu0 %v801
        %v7044 = vpop.f32.mrf.mxu0
        %v7045 = vadd.f32 %v788, %v7044
        %v7046 = vpop.f32.mrf.mxu0
        %7047 = vdwg.mxu0
        %7048 = vset.pattern.permute.xlu0 6
        %7049 = vperm.xlu0 %7048, %v6802
        %v7050 = vpop.permute.xlu0 %7049
        %7052 = vset.pattern.permute.xlu0 6
        %7053 = vperm.xlu0 %7052, %v6803
        %v7054 = vpop.permute.xlu0 %7053
        %7056 = vset.pattern.permute.xlu0 6
        %7057 = vperm.xlu0 %7056, %v6804
        %v7058 = vpop.permute.xlu0 %7057
        %7060 = vset.pattern.permute.xlu0 6
        %7061 = vperm.xlu0 %7060, %v6805
        %v7062 = vpop.permute.xlu0 %7061
        %v7064 = vmul.f32 %v7050, %v7030
        %v7065 = vmul.f32 %v7054, %v7035
        %v7066 = vmul.f32 %v7058, %v7040
        %v7067 = vmul.f32 %v7062, %v7045
        %7068 = vset.pattern.permute.xlu0 7
        %7069 = vperm.xlu0 %7068, %v6802
        %v7070 = vpop.permute.xlu0 %7069
        %7072 = vset.pattern.permute.xlu0 7
        %7073 = vperm.xlu0 %7072, %v6803
        %v7074 = vpop.permute.xlu0 %7073
        %7076 = vset.pattern.permute.xlu0 7
        %7077 = vperm.xlu0 %7076, %v6804
        %v7078 = vpop.permute.xlu0 %7077
        %7080 = vset.pattern.permute.xlu0 7
        %7081 = vperm.xlu0 %7080, %v6805
        %v7082 = vpop.permute.xlu0 %7081
        %v7084 = vadd.f32 %v7064, %v7070
        %v7085 = vadd.f32 %v7065, %v7074
        %v7086 = vadd.f32 %v7066, %v7078
        %v7087 = vadd.f32 %v7067, %v7082
        %v7088 = vmax.f32 %v7084, 0.0
        %v7089 = vmax.f32 %v7085, 0.0
        %v7090 = vmax.f32 %v7086, 0.0
        %v7091 = vmax.f32 %v7087, 0.0
        %7092 = vmatprep.subr.mxu0 0.0
        %7093 = vmatpush1.msra.mxu0 0.0
        %7094 = vmatprep.subr.mxu0 0.0
        %7095 = vmatpush1.msra.mxu0 0.0
        %7096 = vmatprep.subr.mxu0 0.0
        %7097 = vmatpush1.msra.mxu0 0.0
        %7098 = vmatprep.subr.mxu0 0.0
        %7099 = vmatpush1.msra.mxu0 0.0
        %7100 = vmatprep.subr.mxu0 0.0
        %7101 = vmatpush1.msra.mxu0 0.0
        %7102 = vmatprep.subr.mxu0 0.0
        %7103 = vmatpush1.msra.mxu0 0.0
        %7104 = vmatprep.subr.mxu0 0.0
        %7105 = vmatpush1.msra.mxu0 0.0
        %7106 = vmatprep.subr.mxu0 0.0
        %7107 = vmatpush1.msra.mxu0 0.0
        %7108 = vmatprep.subr.mxu0 0.0
        %7109 = vmatpush1.msra.mxu0 0.0
        %7110 = vmatprep.subr.mxu0 0.0
        %7111 = vmatpush1.msra.mxu0 0.0
        %7112 = vmatprep.subr.mxu0 0.0
        %7113 = vmatpush1.msra.mxu0 0.0
        %7114 = vmatprep.subr.mxu0 0.0
        %7115 = vmatpush1.msra.mxu0 0.0
        %7116 = vmatprep.subr.mxu0 0.0
        %7117 = vmatpush1.msra.mxu0 %v7091
        %7118 = vmatprep.subr.mxu0 0.0
        %7119 = vmatpush1.msra.mxu0 %v7090
        %7120 = vmatprep.subr.mxu0 0.0
        %7121 = vmatpush1.msra.mxu0 %v7089
        %7122 = vmatprep.subr.mxu0 0.0
        %7123 = vmatpush1.msra.mxu0 %v7088
        %7124 = vmatprep.subr.mxu0 0.0
        %7125 = vmatpush2.msra.mxu0 0.0
        %7126 = vmatprep.subr.mxu0 0.0
        %7127 = vmatpush2.msra.mxu0 0.0
        %7128 = vmatprep.subr.mxu0 0.0
        %7129 = vmatpush2.msra.mxu0 0.0
        %7130 = vmatprep.subr.mxu0 0.0
        %7131 = vmatpush2.msra.mxu0 0.0
        %7132 = vmatprep.subr.mxu0 0.0
        %7133 = vmatpush2.msra.mxu0 0.0
        %7134 = vmatprep.subr.mxu0 0.0
        %7135 = vmatpush2.msra.mxu0 0.0
        %7136 = vmatprep.subr.mxu0 0.0
        %7137 = vmatpush2.msra.mxu0 0.0
        %7138 = vmatprep.subr.mxu0 0.0
        %7139 = vmatpush2.msra.mxu0 0.0
        %7140 = vmatprep.subr.mxu0 0.0
        %7141 = vmatpush2.msra.mxu0 0.0
        %7142 = vmatprep.subr.mxu0 0.0
        %7143 = vmatpush2.msra.mxu0 0.0
        %7144 = vmatprep.subr.mxu0 0.0
        %7145 = vmatpush2.msra.mxu0 0.0
        %7146 = vmatprep.subr.mxu0 0.0
        %7147 = vmatpush2.msra.mxu0 0.0
        %7148 = vmatprep.subr.mxu0 0.0
        %7149 = vmatpush2.msra.mxu0 0.0
        %7150 = vmatprep.subr.mxu0 0.0
        %7151 = vmatpush2.msra.mxu0 0.0
        %7152 = vmatprep.subr.mxu0 0.0
        %7153 = vmatpush2.msra.mxu0 0.0
        %7154 = vmatprep.subr.mxu0 0.0
        %7155 = vmatpush2.msra.mxu0 0.0
        %7156 = vmatprep.mubr.f32.mxu0 0.0
        %7157 = vmatmul.mubr.f32.gmra.mxu0 %v953
        %v7158 = vpop.f32.mrf.mxu0
        %v7159 = vadd.f32 %v935, %v7158
        %v7160 = vpop.f32.mrf.mxu0
        %7161 = vmatprep.mubr.f32.mxu0 0.0
        %7162 = vmatmul.mubr.f32.gmra.mxu0 %v956
        %v7163 = vpop.f32.mrf.mxu0
        %v7164 = vadd.f32 %v940, %v7163
        %v7165 = vpop.f32.mrf.mxu0
        %7166 = vmatprep.mubr.f32.mxu0 0.0
        %7167 = vmatmul.mubr.f32.gmra.mxu0 %v959
        %v7168 = vpop.f32.mrf.mxu0
        %v7169 = vadd.f32 %v945, %v7168
        %v7170 = vpop.f32.mrf.mxu0
        %7171 = vmatprep.mubr.f32.mxu0 0.0
        %7172 = vmatmul.mubr.f32.gmra.mxu0 %v962
        %v7173 = vpop.f32.mrf.mxu0
        %v7174 = vadd.f32 %v950, %v7173
        %v7175 = vpop.f32.mrf.mxu0
        %7176 = vdwg.mxu0
        %v7177 = vadd.f32 %v6901, %v7159
        %v7178 = vadd.f32 %v6906, %v7164
        %v7179 = vadd.f32 %v6911, %v7169
        %v7180 = vadd.f32 %v6916, %v7174
        %7181 = vmatprep.subr.mxu0 0.0
        %7182 = vmatpush1.msra.mxu0 0.0
        %7183 = vmatprep.subr.mxu0 0.0
        %7184 = vmatpush1.msra.mxu0 0.0
        %7185 = vmatprep.subr.mxu0 0.0
        %7186 = vmatpush1.msra.mxu0 0.0
        %7187 = vmatprep.subr.mxu0 0.0
        %7188 = vmatpush1.msra.mxu0 0.0
        %7189 = vmatprep.subr.mxu0 0.0
        %7190 = vmatpush1.msra.mxu0 0.0
        %7191 = vmatprep.subr.mxu0 0.0
        %7192 = vmatpush1.msra.mxu0 0.0
        %7193 = vmatprep.subr.mxu0 0.0
        %7194 = vmatpush1.msra.mxu0 0.0
        %7195 = vmatprep.subr.mxu0 0.0
        %7196 = vmatpush1.msra.mxu0 0.0
        %7197 = vmatprep.subr.mxu0 0.0
        %7198 = vmatpush1.msra.mxu0 0.0
        %7199 = vmatprep.subr.mxu0 0.0
        %7200 = vmatpush1.msra.mxu0 0.0
        %7201 = vmatprep.subr.mxu0 0.0
        %7202 = vmatpush1.msra.mxu0 0.0
        %7203 = vmatprep.subr.mxu0 0.0
        %7204 = vmatpush1.msra.mxu0 0.0
        %7205 = vmatprep.subr.mxu0 0.0
        %7206 = vmatpush1.msra.mxu0 %v7180
        %7207 = vmatprep.subr.mxu0 0.0
        %7208 = vmatpush1.msra.mxu0 %v7179
        %7209 = vmatprep.subr.mxu0 0.0
        %7210 = vmatpush1.msra.mxu0 %v7178
        %7211 = vmatprep.subr.mxu0 0.0
        %7212 = vmatpush1.msra.mxu0 %v7177
        %7213 = vmatprep.subr.mxu0 0.0
        %7214 = vmatpush2.msra.mxu0 0.0
        %7215 = vmatprep.subr.mxu0 0.0
        %7216 = vmatpush2.msra.mxu0 0.0
        %7217 = vmatprep.subr.mxu0 0.0
        %7218 = vmatpush2.msra.mxu0 0.0
        %7219 = vmatprep.subr.mxu0 0.0
        %7220 = vmatpush2.msra.mxu0 0.0
        %7221 = vmatprep.subr.mxu0 0.0
        %7222 = vmatpush2.msra.mxu0 0.0
        %7223 = vmatprep.subr.mxu0 0.0
        %7224 = vmatpush2.msra.mxu0 0.0
        %7225 = vmatprep.subr.mxu0 0.0
        %7226 = vmatpush2.msra.mxu0 0.0
        %7227 = vmatprep.subr.mxu0 0.0
        %7228 = vmatpush2.msra.mxu0 0.0
        %7229 = vmatprep.subr.mxu0 0.0
        %7230 = vmatpush2.msra.mxu0 0.0
        %7231 = vmatprep.subr.mxu0 0.0
        %7232 = vmatpush2.msra.mxu0 0.0
        %7233 = vmatprep.subr.mxu0 0.0
        %7234 = vmatpush2.msra.mxu0 0.0
        %7235 = vmatprep.subr.mxu0 0.0
        %7236 = vmatpush2.msra.mxu0 0.0
        %7237 = vmatprep.subr.mxu0 0.0
        %7238 = vmatpush2.msra.mxu0 0.0
        %7239 = vmatprep.subr.mxu0 0.0
        %7240 = vmatpush2.msra.mxu0 0.0
        %7241 = vmatprep.subr.mxu0 0.0
        %7242 = vmatpush2.msra.mxu0 0.0
        %7243 = vmatprep.subr.mxu0 0.0
        %7244 = vmatpush2.msra.mxu0 0.0
        %7245 = vmatprep.mubr.f32.mxu0 0.0
        %7246 = vmatmul.mubr.f32.gmra.mxu0 %v1063
        %v7247 = vpop.f32.mrf.mxu0
        %v7248 = vadd.f32 %v1061, %v7247
        %v7249 = vpop.f32.mrf.mxu0
        %7250 = vdwg.mxu0
        %v7251 = vadd.f32 %v7248, 1.0
        %v7252 = vmul.f32 %v6800, %v7251
        %v7253 = vadd.f32 %v6697, %v7252
        %v7254 = vsub.f32 %v7253, -0.07
        %v7255 = vmul.f32 %v7254, 100.0
        %v7256 = vxor.u32 %v7255, 2147483648
        %v7257 = vmul.f32 %v7256, 1.442695
        %v7258 = vpow.pop %v7257
        %v7259 = vadd.f32 %v7258, 1.0
        %v7260 = vrcp.pop %v7259
        %v7261 = vmul.f32 1.0, %v7260
        %7262 = vst [vmem:[%s454] sm:$0x1] %v7261
        %s7263 = sand.u32 %s307, 1
        %s7264 = scalar_lea.sflag [#allocation4], %s7263
        %s7265 = sand.u32 %s307, 1
        %s7266 = scalar_lea.vmem [#allocation3], %s7265
        // Predicated region
        $region65: #{ldif_decoder_forward.1} parent=63 // pred_check
          %p7267 = pneg %p317
        $region66: #{ldif_decoder_forward.1} parent=63 // pred_check_branch
          %7269 = sbr.rel (%p7267) target = $region68
        $region67: #{ldif_decoder_forward.1} parent=63 // pred_region
          %s7271 = ssub.s32 16, 16
          %7272 = vsyncadd %s7264, %s7271
          %s7273 = sadd.s32 %s32, %s31
          %s7274 = smul.addr %s7273, 16
          %s7275 = scalar_lea.hbm %s11, %s7274
          %s7277 = sshll.u32 %s7266, 4
          %s7278 = int_to_ptr.vmem [resolvable:$true] %s7277
          %7280 = dma.vmem_to_hbm [thread:$0]  %s7278, 16, %s7275, %s7264
        $region68: #{ldif_decoder_forward.1} parent=63 // pred_fallthru
          _
      $region64: #{ldif_decoder_forward.1} parent=5 // pred_fallthru
        _
      %p7281 = scmp.le.s32.totalorder 2, %s22
      // Predicated region
      $region69: #{ldif_decoder_forward.1} parent=5 // pred_check
        %p7282 = pneg %p7281
      $region70: #{ldif_decoder_forward.1} parent=5 // pred_check_branch
        %7284 = sbr.rel (%p7282) target = $region72
      $region71: #{ldif_decoder_forward.1} parent=5 // pred_region
        %s7285 = ssub.s32 %s22, 2
        // Predicated region
        $region73: #{ldif_decoder_forward.1} parent=71 // pred_check
          %p7286 = pneg %p323
        $region74: #{ldif_decoder_forward.1} parent=71 // pred_check_branch
          %7288 = sbr.rel (%p7286) target = $region76
        $region75: #{ldif_decoder_forward.1} parent=71 // pred_region
          %s7289 = sand.u32 %s308, 1
          %s7290 = scalar_lea.sflag [#allocation4], %s7289
          %s7291 = sand.u32 %s308, 1
          %s7292 = scalar_lea.vmem [#allocation3], %s7291
          %7293 = dma.done %s7290, 16
        $region76: #{ldif_decoder_forward.1} parent=71 // pred_fallthru
          _
      $region72: #{ldif_decoder_forward.1} parent=5 // pred_fallthru
        _
    $region6: #{ldif_decoder_forward.1} parent=1 // loop_footer
      %s26 = sadd.s32 1, %s22
    $region7: #{ldif_decoder_forward.1} parent=1 // loop_footer_branch
      %21 = sbr.rel target = $region3
    $region8: #{ldif_decoder_forward.1} parent=1 // loop_exit
      _
    %7294 = vsyncpa [#allocation4], 1
    %s7295 = scalar_lea.sflag [#allocation4], 1
    %7296 = vsyncpa %s7295, 1

</llo_original>
